<compile_context>
chip_gen: v7x
topology: tpu7x:2x2x1
jax: 0.10.0
libtpu: 0.0.40
codegen_flags: <defaults>
</compile_context>

<pallas_src>
import functools

import numpy as np
import jax
import jax.numpy as jnp
from jax.experimental import pallas as pl
from jax.experimental.pallas import tpu as pltpu


_VMEM_LIMIT = 32 * 1024 * 1024   # safe on v5e/v6e (128 MiB) and v7x (64 MiB physical)
_HEAD_PAD = 128                  # lane-dense padded width of the dueling-head output


class Config:
    hidden_layer_size = 32
    number_of_outputs = 6
    normalize_image = True


# ----------------------------------------------------------------------------
# Fused whole-network kernel
# ----------------------------------------------------------------------------
def _fused_cnn_dueling_kernel(x_ref, w1_ref, b1_ref, w2_ref, b2_ref,
                              w3_ref, b3_ref, hw1_ref, hb1_ref,
                              hw2_ref, hb2_ref, o_ref, *, n_actions, tb):
    """x_ref: [tb, 11, 11, 64] space-to-depth(8) images.  o_ref: [tb, 1, 128]."""
    cdt = w1_ref.dtype                       # MXU operand dtype (f32 or bf16)
    w1 = w1_ref[...]
    b1 = b1_ref[...]
    w2 = w2_ref[...]
    b2 = b2_ref[...]
    w3 = w3_ref[...]
    b3 = b3_ref[...]
    hw1 = hw1_ref[...]
    hb1 = hb1_ref[...]
    hw2 = hw2_ref[...]
    hb2 = hb2_ref[...]
    inv_a = 1.0 / n_actions

    for s in range(tb):                      # static unroll over samples in the block
        # ---- conv1: 8x8 / stride-4 conv == 2x2 / stride-1 conv over the
        # space-to-depth(8) input.  Its GEMM columns are ordered so the output
        # comes out directly pixel-unshuffled by 2 -> [10, 10, 128] (lane-dense).
        p1 = jnp.concatenate(
            [x_ref[s, di:di + 10, dj:dj + 10, :]
             for di in range(2) for dj in range(2)],
            axis=-1).reshape(100, 256)                                   # [100, 256]
        a1 = jnp.maximum(
            jnp.dot(p1, w1, preferred_element_type=jnp.float32) + b1, 0.0)
        a1 = a1.astype(cdt).reshape(10, 10, 128)

        # ---- conv2: 4x4 / stride-2 conv == 2x2 / stride-1 conv over the
        # pixel-unshuffled conv1 output.  In-VMEM slice-and-concat im2col.
        p2 = jnp.concatenate(
            [a1[di:di + 9, dj:dj + 9, :]
             for di in range(2) for dj in range(2)],
            axis=-1).reshape(81, 512)                                    # [81, 512]
        a2 = jnp.maximum(
            jnp.dot(p2, w2, preferred_element_type=jnp.float32) + b2, 0.0)
        a2 = a2.astype(cdt).reshape(9, 9, 64)

        # ---- conv3: 3x3 / stride-1 conv, in-VMEM im2col.
        p3 = jnp.concatenate(
            [a2[di:di + 7, dj:dj + 7, :]
             for di in range(3) for dj in range(3)],
            axis=-1).reshape(49, 576)                                    # [49, 576]
        a3 = jnp.maximum(
            jnp.dot(p3, w3, preferred_element_type=jnp.float32) + b3, 0.0)
        a3 = a3.astype(cdt).reshape(7, 7, 64)

        # ---- flatten to (h, w, c) order with two lane-axis concats
        # (avoids an awkward [49,64] -> [1,3136] minor-dim reshape).
        rows = jnp.concatenate([a3[:, j, :] for j in range(7)], axis=-1)       # [7, 448]
        flat = jnp.concatenate([rows[i:i + 1, :] for i in range(7)], axis=-1)  # [1, 3136]

        # ---- dueling head: advantage1|value1 fused into one matmul;
        # advantage2|value2 merged into one zero-padded lane-dense matmul.
        h = jnp.maximum(
            jnp.dot(flat, hw1, preferred_element_type=jnp.float32) + hb1, 0.0)  # [1, 2H]
        z = jnp.dot(h, hw2, preferred_element_type=jnp.float32) + hb2           # [1, 128]
        adv = z[:, :n_actions]
        val = z[:, n_actions:n_actions + 1]
        adv_mean = jnp.sum(adv, axis=1, keepdims=True) * inv_a
        # Lanes >= n_actions are written but meaningless; caller slices them off.
        o_ref[s] = (z + (val - adv_mean)).astype(o_ref.dtype)                   # [1, 128]


def _pick_block_batch(batch):
    """Samples per grid block: keep >= 2 blocks whenever B >= 2 (v7x megacore)."""
    for cand in (8, 4, 2):
        if batch % cand == 0 and batch // cand >= 2:
            return cand
    return 1


def _fused_forward(xs, kp, n_actions):
    batch = xs.shape[0]
    tb = _pick_block_batch(batch)
    grid = (batch // tb,)
    h2 = kp["head_w1"].shape[1]

    def resident(arr):
        nd = arr.ndim
        return pl.BlockSpec(arr.shape, lambda g, _n=nd: (0,) * _n)

    flops_per_sample = 2 * (100 * 256 * 128 + 81 * 512 * 64 + 49 * 576 * 64
                            + 3136 * h2 + h2 * _HEAD_PAD)
    weight_names = ("conv1_w", "conv1_b", "conv2_w", "conv2_b", "conv3_w",
                    "conv3_b", "head_w1", "head_b1", "head_w2", "head_b2")
    weight_bytes = sum(int(np.prod(kp[k].shape)) * kp[k].dtype.itemsize
                       for k in weight_names)

    kernel = functools.partial(_fused_cnn_dueling_kernel,
                               n_actions=n_actions, tb=tb)
    out = pl.pallas_call(
        kernel,
        out_shape=jax.ShapeDtypeStruct((batch, 1, _HEAD_PAD), jnp.float32),
        grid=grid,
        in_specs=[
            pl.BlockSpec((tb, 11, 11, 64), lambda g: (g, 0, 0, 0)),
            resident(kp["conv1_w"]), resident(kp["conv1_b"]),
            resident(kp["conv2_w"]), resident(kp["conv2_b"]),
            resident(kp["conv3_w"]), resident(kp["conv3_b"]),
            resident(kp["head_w1"]), resident(kp["head_b1"]),
            resident(kp["head_w2"]), resident(kp["head_b2"]),
        ],
        out_specs=pl.BlockSpec((tb, 1, _HEAD_PAD), lambda g: (g, 0, 0)),
        compiler_params=pltpu.CompilerParams(
            dimension_semantics=("parallel",),
            vmem_limit_bytes=_VMEM_LIMIT),
        cost_estimate=pl.CostEstimate(
            flops=flops_per_sample * batch,
            transcendentals=0,
            bytes_accessed=batch * (11 * 11 * 64 * xs.dtype.itemsize
                                    + _HEAD_PAD * 4) + weight_bytes),
    )(xs, kp["conv1_w"], kp["conv1_b"], kp["conv2_w"], kp["conv2_b"],
      kp["conv3_w"], kp["conv3_b"], kp["head_w1"], kp["head_b1"],
      kp["head_w2"], kp["head_b2"])
    return out[:, 0, :n_actions]


# ----------------------------------------------------------------------------
# Wrapper glue: input space-to-depth(8)
# ----------------------------------------------------------------------------
def _space_to_depth8(x):
    """[B, 1, 84, 84] NCHW -> [B, 11, 11, 64]; channel = (row%8)*8 + (col%8).

    Input is zero-padded 84 -> 88; the padded taps get zero GEMM weight."""
    b = x.shape[0]
    img = jnp.pad(x[:, 0, :, :], ((0, 0), (0, 4), (0, 4)))
    img = img.reshape(b, 11, 8, 11, 8).transpose(0, 1, 3, 2, 4)
    return img.reshape(b, 11, 11, 64)


# ----------------------------------------------------------------------------
# Model: canonical params, kernel-layout preparation, forward
# ----------------------------------------------------------------------------
def init_params(key, config):
    """Canonical (PyTorch-layout) params: conv W [Cout,Cin,kh,kw], linear W [in,out]."""
    ks = jax.random.split(key, 14)

    def lin_init(kw_, kb_, fan_in, shape_w, shape_b):
        bound = 1.0 / jnp.sqrt(fan_in)
        w = jax.random.uniform(kw_, shape_w, jnp.float32, -bound, bound)
        b = jax.random.uniform(kb_, shape_b, jnp.float32, -bound, bound)
        return w, b

    h = config.hidden_layer_size
    a = config.number_of_outputs
    p = {}
    p["conv1_w"], p["conv1_b"] = lin_init(ks[0], ks[1], 1 * 8 * 8, (32, 1, 8, 8), (32,))
    p["conv2_w"], p["conv2_b"] = lin_init(ks[2], ks[3], 32 * 4 * 4, (64, 32, 4, 4), (64,))
    p["conv3_w"], p["conv3_b"] = lin_init(ks[4], ks[5], 64 * 3 * 3, (64, 64, 3, 3), (64,))
    p["a1_w"], p["a1_b"] = lin_init(ks[6], ks[7], 3136, (3136, h), (h,))
    p["a2_w"], p["a2_b"] = lin_init(ks[8], ks[9], h, (h, a), (a,))
    p["v1_w"], p["v1_b"] = lin_init(ks[10], ks[11], 3136, (3136, h), (h,))
    p["v2_w"], p["v2_b"] = lin_init(ks[12], ks[13], h, (h, 1), (1,))
    return p


def prepare_params(params, config, compute_dtype=jnp.float32):
    """One-time transformation of canonical params into the fused-kernel layout.

    * conv1: [256, 128] GEMM.  Rows = (cell_dh, cell_dw, row%8, col%8) over a 2x2
      window of depth-8 input cells; cols = (out_row_parity, out_col_parity, cout),
      i.e. the conv1 output comes out pixel-unshuffled by 2.  Taps outside the
      original 8x8 kernel (and the 84->88 padding) are zero.  1/255 folded in.
    * conv2: [512, 64] GEMM over a 2x2 window of the unshuffled conv1 output.
    * conv3: [576, 64] GEMM, standard (kh, kw, cin) rows.
    * head layer 1: advantage1|value1 concatenated, rows permuted from PyTorch's
      (C,H,W) flatten to the kernel's (H,W,C) flatten.
    * head layer 2: advantage2|value2 merged into one [2H, 128] lane-dense,
      zero-padded matrix.  Biases stay f32.
    """
    h = config.hidden_layer_size
    a = config.number_of_outputs
    cd = compute_dtype

    w1 = np.asarray(params["conv1_w"], np.float32)       # [32, 1, 8, 8]
    w2 = np.asarray(params["conv2_w"], np.float32)       # [64, 32, 4, 4]
    w3 = np.asarray(params["conv3_w"], np.float32)       # [64, 64, 3, 3]
    if config.normalize_image:
        w1 = w1 / 255.0                                  # fold x/255 into conv1

    w1p = np.zeros((2, 2, 8, 8, 2, 2, 32), np.float32)   # (di,dj,r8,c8, ph,pw,cout)
    for di in range(2):
        for ph in range(2):
            for r8 in range(8):
                ki = 8 * di + r8 - 4 * ph
                if not 0 <= ki < 8:
                    continue
                for dj in range(2):
                    for pw in range(2):
                        for c8 in range(8):
                            kj = 8 * dj + c8 - 4 * pw
                            if not 0 <= kj < 8:
                                continue
                            w1p[di, dj, r8, c8, ph, pw, :] = w1[:, 0, ki, kj]
    w1p = w1p.reshape(256, 128)
    b1p = np.tile(np.asarray(params["conv1_b"], np.float32), 4).reshape(1, -1)

    w2p = np.zeros((2, 2, 2, 2, 32, 64), np.float32)      # (di,dj,ph,pw,cin,cout)
    for di in range(2):
        for dj in range(2):
            for ph in range(2):
                for pw in range(2):
                    w2p[di, dj, ph, pw] = w2[:, :, 2 * di + ph, 2 * dj + pw].T
    w2p = w2p.reshape(512, 64)
    b2p = np.asarray(params["conv2_b"], np.float32).reshape(1, -1)

    w3p = w3.transpose(2, 3, 1, 0).reshape(9 * 64, 64)
    b3p = np.asarray(params["conv3_b"], np.float32).reshape(1, -1)

    def chw_to_hwc_rows(w):                               # rows (C,H,W) -> rows (H,W,C)
        w = np.asarray(w, np.float32)
        return w.reshape(64, 7, 7, -1).transpose(1, 2, 0, 3).reshape(7 * 7 * 64, -1)

    hw1 = np.concatenate([chw_to_hwc_rows(params["a1_w"]),
                          chw_to_hwc_rows(params["v1_w"])], axis=1)     # [3136, 2H]
    hb1 = np.concatenate([np.asarray(params["a1_b"], np.float32),
                          np.asarray(params["v1_b"], np.float32)]).reshape(1, -1)

    hw2 = np.zeros((2 * h, _HEAD_PAD), np.float32)
    hw2[:h, :a] = np.asarray(params["a2_w"], np.float32)
    hw2[h:, a] = np.asarray(params["v2_w"], np.float32)[:, 0]
    hb2 = np.zeros((1, _HEAD_PAD), np.float32)
    hb2[0, :a] = np.asarray(params["a2_b"], np.float32)
    hb2[0, a] = np.asarray(params["v2_b"], np.float32)[0]

    return {
        "conv1_w": jnp.asarray(w1p, cd), "conv1_b": jnp.asarray(b1p, jnp.float32),
        "conv2_w": jnp.asarray(w2p, cd), "conv2_b": jnp.asarray(b2p, jnp.float32),
        "conv3_w": jnp.asarray(w3p, cd), "conv3_b": jnp.asarray(b3p, jnp.float32),
        "head_w1": jnp.asarray(hw1, cd), "head_b1": jnp.asarray(hb1, jnp.float32),
        "head_w2": jnp.asarray(hw2, jnp.float32),
        "head_b2": jnp.asarray(hb2, jnp.float32),
    }


@functools.partial(jax.jit, static_argnums=(2,))
def forward(kparams, x, n_actions):
    """x: [B, 1, 84, 84] NCHW float32 (PyTorch convention). Returns [B, n_actions]."""
    cdt = kparams["conv1_w"].dtype
    xs = _space_to_depth8(x.astype(cdt))                  # [B, 11, 11, 64]
    return _fused_forward(xs, kparams, n_actions)


# ----------------------------------------------------------------------------
# Pure-JAX reference (canonical PyTorch semantics, for the sanity check only)
# ----------------------------------------------------------------------------
def forward_ref(params, x, normalize_image=True):
    if normalize_image:
        x = x / 255.0

    def conv(x, w, b, s):
        y = jax.lax.conv_general_dilated(
            x, w, window_strides=(s, s), padding="VALID",
            dimension_numbers=("NCHW", "OIHW", "NCHW"))
        return jax.nn.relu(y + b.reshape(1, -1, 1, 1))

    y = conv(x, params["conv1_w"], params["conv1_b"], 4)
    y = conv(y, params["conv2_w"], params["conv2_b"], 2)
    y = conv(y, params["conv3_w"], params["conv3_b"], 1)
    flat = y.reshape(y.shape[0], -1)                      # PyTorch (C, H, W) flatten
    h_a = jax.nn.relu(flat @ params["a1_w"] + params["a1_b"])
    adv = h_a @ params["a2_w"] + params["a2_b"]
    h_v = jax.nn.relu(flat @ params["v1_w"] + params["v1_b"])
    val = h_v @ params["v2_w"] + params["v2_b"]
    return val + adv - adv.mean(axis=1, keepdims=True)


if __name__ == "__main__":
    config = Config()
    key = jax.random.PRNGKey(0)
    k_param, k_x = jax.random.split(key)
    params = init_params(k_param, config)

    # Batch=2; 84x84 spatial is fixed by the architecture (7*7*64 flatten).
    x = jax.random.uniform(k_x, (2, 1, 84, 84), jnp.float32, 0.0, 255.0)

    ref = forward_ref(params, x, config.normalize_image)

    # f32 path.
    kp_f32 = prepare_params(params, config, compute_dtype=jnp.float32)
    out = jax.block_until_ready(forward(kp_f32, x, config.number_of_outputs))
    assert out.shape == (2, config.number_of_outputs)
    assert jnp.allclose(out, ref, atol=2e-3, rtol=2e-3), \
        float(jnp.max(jnp.abs(out - ref)))

    # bf16 MXU-operand path (valid on v5e/v6e/v7x): f32 accumulation everywhere.
    kp_bf16 = prepare_params(params, config, compute_dtype=jnp.bfloat16)
    out_bf16 = jax.block_until_ready(forward(kp_bf16, x, config.number_of_outputs))
    assert out_bf16.shape == (2, config.number_of_outputs)
    assert jnp.allclose(out_bf16, ref, atol=2e-1, rtol=2e-1), \
        float(jnp.max(jnp.abs(out_bf16 - ref)))

    print("KERNEL_OK")
</pallas_src>

<mosaic_0001>
module attributes {stable_mosaic.version = 11 : i64} {
  func.func @_fused_cnn_dueling_kernel(%arg0: i32, %arg1: memref<1x11x11x64xf32, #tpu.memory_space<vmem>>, %arg2: memref<256x128xf32, #tpu.memory_space<vmem>>, %arg3: memref<1x128xf32, #tpu.memory_space<vmem>>, %arg4: memref<512x64xf32, #tpu.memory_space<vmem>>, %arg5: memref<1x64xf32, #tpu.memory_space<vmem>>, %arg6: memref<576x64xf32, #tpu.memory_space<vmem>>, %arg7: memref<1x64xf32, #tpu.memory_space<vmem>>, %arg8: memref<3136x64xf32, #tpu.memory_space<vmem>>, %arg9: memref<1x64xf32, #tpu.memory_space<vmem>>, %arg10: memref<64x128xf32, #tpu.memory_space<vmem>>, %arg11: memref<1x128xf32, #tpu.memory_space<vmem>>, %arg12: memref<1x1x128xf32, #tpu.memory_space<vmem>>) attributes {dimension_semantics = [#tpu.dimension_semantics<parallel>], iteration_bounds = array<i64: 2>, scalar_prefetch = 0 : i64, scratch_operands = 0 : i64, tpu.core_type = #tpu.core_type<tc>, window_params = [{transform_indices = @transform_0, window_bounds = array<i64: 1, 11, 11, 64>}, {pipeline_mode = #tpu.pipeline_mode<synchronous>, transform_indices = @transform_1, window_bounds = array<i64: 256, 128>}, {pipeline_mode = #tpu.pipeline_mode<synchronous>, transform_indices = @transform_2, window_bounds = array<i64: 1, 128>}, {pipeline_mode = #tpu.pipeline_mode<synchronous>, transform_indices = @transform_3, window_bounds = array<i64: 512, 64>}, {pipeline_mode = #tpu.pipeline_mode<synchronous>, transform_indices = @transform_4, window_bounds = array<i64: 1, 64>}, {pipeline_mode = #tpu.pipeline_mode<synchronous>, transform_indices = @transform_5, window_bounds = array<i64: 576, 64>}, {pipeline_mode = #tpu.pipeline_mode<synchronous>, transform_indices = @transform_6, window_bounds = array<i64: 1, 64>}, {pipeline_mode = #tpu.pipeline_mode<synchronous>, transform_indices = @transform_7, window_bounds = array<i64: 3136, 64>}, {pipeline_mode = #tpu.pipeline_mode<synchronous>, transform_indices = @transform_8, window_bounds = array<i64: 1, 64>}, {pipeline_mode = #tpu.pipeline_mode<synchronous>, transform_indices = @transform_9, window_bounds = array<i64: 64, 128>}, {pipeline_mode = #tpu.pipeline_mode<synchronous>, transform_indices = @transform_10, window_bounds = array<i64: 1, 128>}, {transform_indices = @transform_11, window_bounds = array<i64: 1, 1, 128>}]} {
    %c0 = arith.constant 0 : index
    %c0_0 = arith.constant 0 : index
    %0 = vector.load %arg2[%c0, %c0_0] : memref<256x128xf32, #tpu.memory_space<vmem>>, vector<256x128xf32>
    %c0_1 = arith.constant 0 : index
    %c0_2 = arith.constant 0 : index
    %1 = vector.load %arg3[%c0_1, %c0_2] : memref<1x128xf32, #tpu.memory_space<vmem>>, vector<1x128xf32>
    %c0_3 = arith.constant 0 : index
    %c0_4 = arith.constant 0 : index
    %2 = vector.load %arg4[%c0_3, %c0_4] : memref<512x64xf32, #tpu.memory_space<vmem>>, vector<512x64xf32>
    %c0_5 = arith.constant 0 : index
    %c0_6 = arith.constant 0 : index
    %3 = vector.load %arg5[%c0_5, %c0_6] : memref<1x64xf32, #tpu.memory_space<vmem>>, vector<1x64xf32>
    %c0_7 = arith.constant 0 : index
    %c0_8 = arith.constant 0 : index
    %4 = vector.load %arg6[%c0_7, %c0_8] : memref<576x64xf32, #tpu.memory_space<vmem>>, vector<576x64xf32>
    %c0_9 = arith.constant 0 : index
    %c0_10 = arith.constant 0 : index
    %5 = vector.load %arg7[%c0_9, %c0_10] : memref<1x64xf32, #tpu.memory_space<vmem>>, vector<1x64xf32>
    %c0_11 = arith.constant 0 : index
    %c0_12 = arith.constant 0 : index
    %6 = vector.load %arg8[%c0_11, %c0_12] : memref<3136x64xf32, #tpu.memory_space<vmem>>, vector<3136x64xf32>
    %c0_13 = arith.constant 0 : index
    %c0_14 = arith.constant 0 : index
    %7 = vector.load %arg9[%c0_13, %c0_14] : memref<1x64xf32, #tpu.memory_space<vmem>>, vector<1x64xf32>
    %c0_15 = arith.constant 0 : index
    %c0_16 = arith.constant 0 : index
    %8 = vector.load %arg10[%c0_15, %c0_16] : memref<64x128xf32, #tpu.memory_space<vmem>>, vector<64x128xf32>
    %c0_17 = arith.constant 0 : index
    %c0_18 = arith.constant 0 : index
    %9 = vector.load %arg11[%c0_17, %c0_18] : memref<1x128xf32, #tpu.memory_space<vmem>>, vector<1x128xf32>
    %c0_19 = arith.constant 0 : index
    %c0_20 = arith.constant 0 : index
    %c0_21 = arith.constant 0 : index
    %c0_22 = arith.constant 0 : index
    %10 = vector.load %arg1[%c0_19, %c0_20, %c0_21, %c0_22] : memref<1x11x11x64xf32, #tpu.memory_space<vmem>>, vector<1x10x10x64xf32>
    %11 = vector.shape_cast %10 : vector<1x10x10x64xf32> to vector<10x10x64xf32>
    %c0_23 = arith.constant 0 : index
    %c0_24 = arith.constant 0 : index
    %c1 = arith.constant 1 : index
    %c0_25 = arith.constant 0 : index
    %12 = vector.load %arg1[%c0_23, %c0_24, %c1, %c0_25] : memref<1x11x11x64xf32, #tpu.memory_space<vmem>>, vector<1x10x10x64xf32>
    %13 = vector.shape_cast %12 : vector<1x10x10x64xf32> to vector<10x10x64xf32>
    %c0_26 = arith.constant 0 : index
    %c1_27 = arith.constant 1 : index
    %c0_28 = arith.constant 0 : index
    %c0_29 = arith.constant 0 : index
    %14 = vector.load %arg1[%c0_26, %c1_27, %c0_28, %c0_29] : memref<1x11x11x64xf32, #tpu.memory_space<vmem>>, vector<1x10x10x64xf32>
    %15 = vector.shape_cast %14 : vector<1x10x10x64xf32> to vector<10x10x64xf32>
    %c0_30 = arith.constant 0 : index
    %c1_31 = arith.constant 1 : index
    %c1_32 = arith.constant 1 : index
    %c0_33 = arith.constant 0 : index
    %16 = vector.load %arg1[%c0_30, %c1_31, %c1_32, %c0_33] : memref<1x11x11x64xf32, #tpu.memory_space<vmem>>, vector<1x10x10x64xf32>
    %17 = vector.shape_cast %16 : vector<1x10x10x64xf32> to vector<10x10x64xf32>
    %18 = tpu.concatenate %11, %13, %15, %17 in 2 : vector<10x10x64xf32>, vector<10x10x64xf32>, vector<10x10x64xf32>, vector<10x10x64xf32> -> vector<10x10x256xf32>
    %19 = vector.shape_cast %18 : vector<10x10x256xf32> to vector<100x256xf32>
    %cst = arith.constant dense<0.000000e+00> : vector<100x128xf32>
    %20 = tpu.matmul %19, %0, %cst {dimension_numbers = #tpu.dot_dimension_numbers<[1], [0], [0], [1], [0, 0, 1, 1], [], []>} : vector<100x256xf32>, vector<256x128xf32>, vector<100x128xf32> -> vector<100x128xf32>
    %21 = vector.broadcast %1 : vector<1x128xf32> to vector<100x128xf32>
    %22 = arith.addf %20, %21 : vector<100x128xf32>
    %cst_34 = arith.constant 0.000000e+00 : f32
    %23 = vector.broadcast %cst_34 : f32 to vector<100x128xf32>
    %24 = arith.maximumf %22, %23 : vector<100x128xf32>
    %25 = vector.shape_cast %24 : vector<100x128xf32> to vector<10x10x128xf32>
    %26 = vector.extract_strided_slice %25 {offsets = [0, 0, 0], sizes = [9, 9, 128], strides = [1, 1, 1]} : vector<10x10x128xf32> to vector<9x9x128xf32>
    %27 = vector.extract_strided_slice %25 {offsets = [0, 1, 0], sizes = [9, 9, 128], strides = [1, 1, 1]} : vector<10x10x128xf32> to vector<9x9x128xf32>
    %28 = vector.extract_strided_slice %25 {offsets = [1, 0, 0], sizes = [9, 9, 128], strides = [1, 1, 1]} : vector<10x10x128xf32> to vector<9x9x128xf32>
    %29 = vector.extract_strided_slice %25 {offsets = [1, 1, 0], sizes = [9, 9, 128], strides = [1, 1, 1]} : vector<10x10x128xf32> to vector<9x9x128xf32>
    %30 = tpu.concatenate %26, %27, %28, %29 in 2 : vector<9x9x128xf32>, vector<9x9x128xf32>, vector<9x9x128xf32>, vector<9x9x128xf32> -> vector<9x9x512xf32>
    %31 = vector.shape_cast %30 : vector<9x9x512xf32> to vector<81x512xf32>
    %cst_35 = arith.constant dense<0.000000e+00> : vector<81x64xf32>
    %32 = tpu.matmul %31, %2, %cst_35 {dimension_numbers = #tpu.dot_dimension_numbers<[1], [0], [0], [1], [0, 0, 1, 1], [], []>} : vector<81x512xf32>, vector<512x64xf32>, vector<81x64xf32> -> vector<81x64xf32>
    %33 = vector.broadcast %3 : vector<1x64xf32> to vector<81x64xf32>
    %34 = arith.addf %32, %33 : vector<81x64xf32>
    %cst_36 = arith.constant 0.000000e+00 : f32
    %35 = vector.broadcast %cst_36 : f32 to vector<81x64xf32>
    %36 = arith.maximumf %34, %35 : vector<81x64xf32>
    %37 = vector.shape_cast %36 : vector<81x64xf32> to vector<9x9x64xf32>
    %38 = vector.extract_strided_slice %37 {offsets = [0, 0, 0], sizes = [7, 7, 64], strides = [1, 1, 1]} : vector<9x9x64xf32> to vector<7x7x64xf32>
    %39 = vector.extract_strided_slice %37 {offsets = [0, 1, 0], sizes = [7, 7, 64], strides = [1, 1, 1]} : vector<9x9x64xf32> to vector<7x7x64xf32>
    %40 = vector.extract_strided_slice %37 {offsets = [0, 2, 0], sizes = [7, 7, 64], strides = [1, 1, 1]} : vector<9x9x64xf32> to vector<7x7x64xf32>
    %41 = vector.extract_strided_slice %37 {offsets = [1, 0, 0], sizes = [7, 7, 64], strides = [1, 1, 1]} : vector<9x9x64xf32> to vector<7x7x64xf32>
    %42 = vector.extract_strided_slice %37 {offsets = [1, 1, 0], sizes = [7, 7, 64], strides = [1, 1, 1]} : vector<9x9x64xf32> to vector<7x7x64xf32>
    %43 = vector.extract_strided_slice %37 {offsets = [1, 2, 0], sizes = [7, 7, 64], strides = [1, 1, 1]} : vector<9x9x64xf32> to vector<7x7x64xf32>
    %44 = vector.extract_strided_slice %37 {offsets = [2, 0, 0], sizes = [7, 7, 64], strides = [1, 1, 1]} : vector<9x9x64xf32> to vector<7x7x64xf32>
    %45 = vector.extract_strided_slice %37 {offsets = [2, 1, 0], sizes = [7, 7, 64], strides = [1, 1, 1]} : vector<9x9x64xf32> to vector<7x7x64xf32>
    %46 = vector.extract_strided_slice %37 {offsets = [2, 2, 0], sizes = [7, 7, 64], strides = [1, 1, 1]} : vector<9x9x64xf32> to vector<7x7x64xf32>
    %47 = tpu.concatenate %38, %39, %40, %41, %42, %43, %44, %45, %46 in 2 : vector<7x7x64xf32>, vector<7x7x64xf32>, vector<7x7x64xf32>, vector<7x7x64xf32>, vector<7x7x64xf32>, vector<7x7x64xf32>, vector<7x7x64xf32>, vector<7x7x64xf32>, vector<7x7x64xf32> -> vector<7x7x576xf32>
    %48 = vector.shape_cast %47 : vector<7x7x576xf32> to vector<49x576xf32>
    %cst_37 = arith.constant dense<0.000000e+00> : vector<49x64xf32>
    %49 = tpu.matmul %48, %4, %cst_37 {dimension_numbers = #tpu.dot_dimension_numbers<[1], [0], [0], [1], [0, 0, 1, 1], [], []>} : vector<49x576xf32>, vector<576x64xf32>, vector<49x64xf32> -> vector<49x64xf32>
    %50 = vector.broadcast %5 : vector<1x64xf32> to vector<49x64xf32>
    %51 = arith.addf %49, %50 : vector<49x64xf32>
    %cst_38 = arith.constant 0.000000e+00 : f32
    %52 = vector.broadcast %cst_38 : f32 to vector<49x64xf32>
    %53 = arith.maximumf %51, %52 : vector<49x64xf32>
    %54 = vector.shape_cast %53 : vector<49x64xf32> to vector<7x7x64xf32>
    %55 = vector.extract_strided_slice %54 {offsets = [0, 0, 0], sizes = [7, 1, 64], strides = [1, 1, 1]} : vector<7x7x64xf32> to vector<7x1x64xf32>
    %56 = vector.shape_cast %55 : vector<7x1x64xf32> to vector<7x64xf32>
    %57 = vector.extract_strided_slice %54 {offsets = [0, 1, 0], sizes = [7, 1, 64], strides = [1, 1, 1]} : vector<7x7x64xf32> to vector<7x1x64xf32>
    %58 = vector.shape_cast %57 : vector<7x1x64xf32> to vector<7x64xf32>
    %59 = vector.extract_strided_slice %54 {offsets = [0, 2, 0], sizes = [7, 1, 64], strides = [1, 1, 1]} : vector<7x7x64xf32> to vector<7x1x64xf32>
    %60 = vector.shape_cast %59 : vector<7x1x64xf32> to vector<7x64xf32>
    %61 = vector.extract_strided_slice %54 {offsets = [0, 3, 0], sizes = [7, 1, 64], strides = [1, 1, 1]} : vector<7x7x64xf32> to vector<7x1x64xf32>
    %62 = vector.shape_cast %61 : vector<7x1x64xf32> to vector<7x64xf32>
    %63 = vector.extract_strided_slice %54 {offsets = [0, 4, 0], sizes = [7, 1, 64], strides = [1, 1, 1]} : vector<7x7x64xf32> to vector<7x1x64xf32>
    %64 = vector.shape_cast %63 : vector<7x1x64xf32> to vector<7x64xf32>
    %65 = vector.extract_strided_slice %54 {offsets = [0, 5, 0], sizes = [7, 1, 64], strides = [1, 1, 1]} : vector<7x7x64xf32> to vector<7x1x64xf32>
    %66 = vector.shape_cast %65 : vector<7x1x64xf32> to vector<7x64xf32>
    %67 = vector.extract_strided_slice %54 {offsets = [0, 6, 0], sizes = [7, 1, 64], strides = [1, 1, 1]} : vector<7x7x64xf32> to vector<7x1x64xf32>
    %68 = vector.shape_cast %67 : vector<7x1x64xf32> to vector<7x64xf32>
    %69 = tpu.concatenate %56, %58, %60, %62, %64, %66, %68 in 1 : vector<7x64xf32>, vector<7x64xf32>, vector<7x64xf32>, vector<7x64xf32>, vector<7x64xf32>, vector<7x64xf32>, vector<7x64xf32> -> vector<7x448xf32>
    %70 = vector.extract_strided_slice %69 {offsets = [0, 0], sizes = [1, 448], strides = [1, 1]} : vector<7x448xf32> to vector<1x448xf32>
    %71 = vector.extract_strided_slice %69 {offsets = [1, 0], sizes = [1, 448], strides = [1, 1]} : vector<7x448xf32> to vector<1x448xf32>
    %72 = vector.extract_strided_slice %69 {offsets = [2, 0], sizes = [1, 448], strides = [1, 1]} : vector<7x448xf32> to vector<1x448xf32>
    %73 = vector.extract_strided_slice %69 {offsets = [3, 0], sizes = [1, 448], strides = [1, 1]} : vector<7x448xf32> to vector<1x448xf32>
    %74 = vector.extract_strided_slice %69 {offsets = [4, 0], sizes = [1, 448], strides = [1, 1]} : vector<7x448xf32> to vector<1x448xf32>
    %75 = vector.extract_strided_slice %69 {offsets = [5, 0], sizes = [1, 448], strides = [1, 1]} : vector<7x448xf32> to vector<1x448xf32>
    %76 = vector.extract_strided_slice %69 {offsets = [6, 0], sizes = [1, 448], strides = [1, 1]} : vector<7x448xf32> to vector<1x448xf32>
    %77 = tpu.concatenate %70, %71, %72, %73, %74, %75, %76 in 1 : vector<1x448xf32>, vector<1x448xf32>, vector<1x448xf32>, vector<1x448xf32>, vector<1x448xf32>, vector<1x448xf32>, vector<1x448xf32> -> vector<1x3136xf32>
    %cst_39 = arith.constant dense<0.000000e+00> : vector<1x64xf32>
    %78 = tpu.matmul %77, %6, %cst_39 {dimension_numbers = #tpu.dot_dimension_numbers<[1], [0], [0], [1], [0, 0, 1, 1], [], []>} : vector<1x3136xf32>, vector<3136x64xf32>, vector<1x64xf32> -> vector<1x64xf32>
    %79 = arith.addf %78, %7 : vector<1x64xf32>
    %cst_40 = arith.constant 0.000000e+00 : f32
    %80 = vector.broadcast %cst_40 : f32 to vector<1x64xf32>
    %81 = arith.maximumf %79, %80 : vector<1x64xf32>
    %cst_41 = arith.constant dense<0.000000e+00> : vector<1x128xf32>
    %82 = tpu.matmul %81, %8, %cst_41 {dimension_numbers = #tpu.dot_dimension_numbers<[1], [0], [0], [1], [0, 0, 1, 1], [], []>} : vector<1x64xf32>, vector<64x128xf32>, vector<1x128xf32> -> vector<1x128xf32>
    %83 = arith.addf %82, %9 : vector<1x128xf32>
    %84 = vector.extract_strided_slice %83 {offsets = [0, 0], sizes = [1, 6], strides = [1, 1]} : vector<1x128xf32> to vector<1x6xf32>
    %85 = vector.extract_strided_slice %83 {offsets = [0, 6], sizes = [1, 1], strides = [1, 1]} : vector<1x128xf32> to vector<1x1xf32>
    %cst_42 = arith.constant dense<0.000000e+00> : vector<1xf32>
    %86 = vector.multi_reduction <add>, %84, %cst_42 [1] : vector<1x6xf32> to vector<1xf32>
    %87 = vector.shape_cast %86 : vector<1xf32> to vector<1x1xf32>
    %cst_43 = arith.constant 0.166666672 : f32
    %88 = vector.broadcast %cst_43 : f32 to vector<1x1xf32>
    %89 = arith.mulf %87, %88 : vector<1x1xf32>
    %90 = arith.subf %85, %89 : vector<1x1xf32>
    %91 = vector.broadcast %90 : vector<1x1xf32> to vector<1x128xf32>
    %92 = arith.addf %83, %91 : vector<1x128xf32>
    %c0_44 = arith.constant 0 : index
    %c0_45 = arith.constant 0 : index
    %c0_46 = arith.constant 0 : index
    %93 = vector.load %arg12[%c0_44, %c0_45, %c0_46] : memref<1x1x128xf32, #tpu.memory_space<vmem>>, vector<1x1x128xf32>
    %94 = vector.shape_cast %93 : vector<1x1x128xf32> to vector<1x128xf32>
    %95 = vector.shape_cast %92 : vector<1x128xf32> to vector<1x1x128xf32>
    tpu.vector_store %arg12[%c0_44, %c0_45, %c0_46], %95 {strides = array<i32>} : memref<1x1x128xf32, #tpu.memory_space<vmem>>, vector<1x1x128xf32>,
    return
  }
  func.func @transform_0(%arg0: i32) -> (i32, i32, i32, i32) {
    %c0_i32 = arith.constant 0 : i32
    %c0_i32_0 = arith.constant 0 : i32
    %c0_i32_1 = arith.constant 0 : i32
    %c0_i32_2 = arith.constant 0 : i32
    return %arg0, %c0_i32, %c0_i32_0, %c0_i32_1 : i32, i32, i32, i32
  }
  func.func @transform_1(%arg0: i32) -> (i32, i32) {
    %c0_i32 = arith.constant 0 : i32
    %c0_i32_0 = arith.constant 0 : i32
    %c0_i32_1 = arith.constant 0 : i32
    return %c0_i32, %c0_i32_0 : i32, i32
  }
  func.func @transform_2(%arg0: i32) -> (i32, i32) {
    %c0_i32 = arith.constant 0 : i32
    %c0_i32_0 = arith.constant 0 : i32
    %c0_i32_1 = arith.constant 0 : i32
    return %c0_i32, %c0_i32_0 : i32, i32
  }
  func.func @transform_3(%arg0: i32) -> (i32, i32) {
    %c0_i32 = arith.constant 0 : i32
    %c0_i32_0 = arith.constant 0 : i32
    %c0_i32_1 = arith.constant 0 : i32
    return %c0_i32, %c0_i32_0 : i32, i32
  }
  func.func @transform_4(%arg0: i32) -> (i32, i32) {
    %c0_i32 = arith.constant 0 : i32
    %c0_i32_0 = arith.constant 0 : i32
    %c0_i32_1 = arith.constant 0 : i32
    return %c0_i32, %c0_i32_0 : i32, i32
  }
  func.func @transform_5(%arg0: i32) -> (i32, i32) {
    %c0_i32 = arith.constant 0 : i32
    %c0_i32_0 = arith.constant 0 : i32
    %c0_i32_1 = arith.constant 0 : i32
    return %c0_i32, %c0_i32_0 : i32, i32
  }
  func.func @transform_6(%arg0: i32) -> (i32, i32) {
    %c0_i32 = arith.constant 0 : i32
    %c0_i32_0 = arith.constant 0 : i32
    %c0_i32_1 = arith.constant 0 : i32
    return %c0_i32, %c0_i32_0 : i32, i32
  }
  func.func @transform_7(%arg0: i32) -> (i32, i32) {
    %c0_i32 = arith.constant 0 : i32
    %c0_i32_0 = arith.constant 0 : i32
    %c0_i32_1 = arith.constant 0 : i32
    return %c0_i32, %c0_i32_0 : i32, i32
  }
  func.func @transform_8(%arg0: i32) -> (i32, i32) {
    %c0_i32 = arith.constant 0 : i32
    %c0_i32_0 = arith.constant 0 : i32
    %c0_i32_1 = arith.constant 0 : i32
    return %c0_i32, %c0_i32_0 : i32, i32
  }
  func.func @transform_9(%arg0: i32) -> (i32, i32) {
    %c0_i32 = arith.constant 0 : i32
    %c0_i32_0 = arith.constant 0 : i32
    %c0_i32_1 = arith.constant 0 : i32
    return %c0_i32, %c0_i32_0 : i32, i32
  }
  func.func @transform_10(%arg0: i32) -> (i32, i32) {
    %c0_i32 = arith.constant 0 : i32
    %c0_i32_0 = arith.constant 0 : i32
    %c0_i32_1 = arith.constant 0 : i32
    return %c0_i32, %c0_i32_0 : i32, i32
  }
  func.func @transform_11(%arg0: i32) -> (i32, i32, i32) {
    %c0_i32 = arith.constant 0 : i32
    %c0_i32_0 = arith.constant 0 : i32
    %c0_i32_1 = arith.constant 0 : i32
    return %arg0, %c0_i32, %c0_i32_0 : i32, i32, i32
  }
}

</mosaic_0001>

<llo_original>
// kernel: forward.1
$region0: #{forward.1}
  #allocation0 [shape = 'u32[]', space=smem, size = 0x4, offset = 0x4, fixed_abs, tag = 'smem constant byte address 0x4 - core index']
  #allocation1 [shape = 'u32[144,128]{1,0:T(1,128)}', space=vmem, size = 0x12000, scoped, tag = 'internal scratch']
  %s0 = inlined_call_operand.vmem [shape: f32[2,11,11,64], index: 0, kind: input, shape index: {}]
  %s1 = inlined_call_operand.vmem [shape: f32[256,128], index: 1, kind: input, shape index: {}]
  %s2 = inlined_call_operand.vmem [shape: f32[1,128], index: 2, kind: input, shape index: {}]
  %s3 = inlined_call_operand.vmem [shape: f32[512,64], index: 3, kind: input, shape index: {}]
  %s4 = inlined_call_operand.vmem [shape: f32[1,64], index: 4, kind: input, shape index: {}]
  %s5 = inlined_call_operand.vmem [shape: f32[576,64], index: 5, kind: input, shape index: {}]
  %s6 = inlined_call_operand.vmem [shape: f32[1,64], index: 6, kind: input, shape index: {}]
  %s7 = inlined_call_operand.vmem [shape: f32[3136,64], index: 7, kind: input, shape index: {}]
  %s8 = inlined_call_operand.vmem [shape: f32[1,64], index: 8, kind: input, shape index: {}]
  %s9 = inlined_call_operand.vmem [shape: f32[64,128], index: 9, kind: input, shape index: {}]
  %s10 = inlined_call_operand.vmem [shape: f32[1,128], index: 10, kind: input, shape index: {}]
  %s11 = inlined_call_operand.hbm [shape: f32[2,1,128], index: 11, kind: output, shape index: {}]
  %s12 = sld [smem:[#allocation0]]
  $region77: #{forward.1} parent=0
    _
  %s14 = ssub.s32 1, %s12
  %s15 = scalar_select 0, %s14, %s12
  $region1: #{forward.1} parent=0
    #allocation2 [shape = 'u8[1024]{0}', space=vmem, size = 0x400, scoped, tag = 'output window, operand 0']
    #allocation3 [shape = 's32[2]{0}', space=sflag, size = 0x8, scoped, tag = 'scoped memory for forward.1']
    %16 = vsyncpa [#allocation3], 0
    %s17 = scalar_lea.sflag [#allocation3], 1
    %18 = vsyncpa %s17, 0
    loop: start=0, step=1, limit=4
    $region2: #{forward.1} parent=1 // loop_pre_header
      _
    $region3: #{forward.1} parent=1 // loop_header
      %s20 = sphi 0, %s24
      %p21 = scmp.ge.s32.totalorder %s20, 4
      %s30 = sphi 0, %s32
      %s33 = sphi 0, %s30
      %s34 = sphi 0, %s33
      %s50 = sphi 0, %s34
      %s54 = sphi 0, %s54
      %s56 = sphi 0, %s54
      %s57 = sphi 0, %s56
      %s71 = sphi 0, %s57
      %s75 = sphi 0, %s75
      %s77 = sphi 0, %s75
      %s78 = sphi 0, %s77
      %s92 = sphi 0, %s78
      %s96 = sphi 0, %s96
      %s98 = sphi 0, %s96
      %s99 = sphi 0, %s98
      %s113 = sphi 0, %s99
      %s117 = sphi 0, %s117
      %s119 = sphi 0, %s117
      %s120 = sphi 0, %s119
      %s134 = sphi 0, %s120
      %s138 = sphi 0, %s138
      %s140 = sphi 0, %s138
      %s141 = sphi 0, %s140
      %s155 = sphi 0, %s141
      %s159 = sphi 0, %s159
      %s161 = sphi 0, %s159
      %s162 = sphi 0, %s161
      %s176 = sphi 0, %s162
      %s180 = sphi 0, %s180
      %s182 = sphi 0, %s180
      %s183 = sphi 0, %s182
      %s197 = sphi 0, %s183
      %s201 = sphi 0, %s201
      %s203 = sphi 0, %s201
      %s204 = sphi 0, %s203
      %s218 = sphi 0, %s204
      %s222 = sphi 0, %s222
      %s224 = sphi 0, %s222
      %s225 = sphi 0, %s224
      %s239 = sphi 0, %s225
      %s243 = sphi 0, %s243
      %s245 = sphi 0, %s243
      %s246 = sphi 0, %s245
      %s260 = sphi 0, %s246
      %s266 = sphi 0, %s268
      %s269 = sphi 0, %s266
      %s270 = sphi 0, %s269
      %s286 = sphi 0, %s270
    $region4: #{forward.1} parent=1 // loop_header_branch
      %23 = sbr.rel (%p21) target = $region8
    $region5: #{forward.1} parent=1 // loop_body
      %s25 = ssub.s32 %s20, 1
      %s26 = ssub.s32 %s20, 2
      %s27 = sadd.s32 %s20, 1
      %s28 = ssub.s32 %s20, %s27
      %p29 = scmp.eq.s32.totalorder %s28, 0
      %s31 = sadd.s32 %s30, 1
      %s32 = scalar_select %p29, %s30, %s31
      %p35 = pneg %p29
      %p36 = scmp.eq.s32.totalorder %s20, 1
      %p37 = por %p35, %p36
      %p38 = scmp.ne.s32.totalorder %s30, %s33
      %p39 = scmp.eq.s32.totalorder %s20, 0
      %p40 = por %p38, %p39
      %p41 = scmp.ne.s32.totalorder %s30, %s33
      %p42 = scmp.eq.s32.totalorder %s25, 1
      %p43 = por %p41, %p42
      %p44 = scmp.ne.s32.totalorder %s33, %s34
      %p45 = scmp.eq.s32.totalorder %s25, 0
      %p46 = por %p44, %p45
      %p47 = scmp.ne.s32.totalorder %s33, %s34
      %p48 = scmp.eq.s32.totalorder %s26, 1
      %p49 = por %p47, %p48
      %p51 = scmp.ne.s32.totalorder %s34, %s50
      %p52 = scmp.eq.s32.totalorder %s26, 0
      %p53 = por %p51, %p52
      %s55 = sadd.s32 %s54, 1
      %p58 = scmp.eq.s32.totalorder %s20, 1
      %p59 = scmp.ne.s32.totalorder %s54, %s56
      %p60 = scmp.eq.s32.totalorder %s20, 0
      %p61 = por %p59, %p60
      %p62 = scmp.ne.s32.totalorder %s54, %s56
      %p63 = scmp.eq.s32.totalorder %s25, 1
      %p64 = por %p62, %p63
      %p65 = scmp.ne.s32.totalorder %s56, %s57
      %p66 = scmp.eq.s32.totalorder %s25, 0
      %p67 = por %p65, %p66
      %p68 = scmp.ne.s32.totalorder %s56, %s57
      %p69 = scmp.eq.s32.totalorder %s26, 1
      %p70 = por %p68, %p69
      %p72 = scmp.ne.s32.totalorder %s57, %s71
      %p73 = scmp.eq.s32.totalorder %s26, 0
      %p74 = por %p72, %p73
      %s76 = sadd.s32 %s75, 1
      %p79 = scmp.eq.s32.totalorder %s20, 1
      %p80 = scmp.ne.s32.totalorder %s75, %s77
      %p81 = scmp.eq.s32.totalorder %s20, 0
      %p82 = por %p80, %p81
      %p83 = scmp.ne.s32.totalorder %s75, %s77
      %p84 = scmp.eq.s32.totalorder %s25, 1
      %p85 = por %p83, %p84
      %p86 = scmp.ne.s32.totalorder %s77, %s78
      %p87 = scmp.eq.s32.totalorder %s25, 0
      %p88 = por %p86, %p87
      %p89 = scmp.ne.s32.totalorder %s77, %s78
      %p90 = scmp.eq.s32.totalorder %s26, 1
      %p91 = por %p89, %p90
      %p93 = scmp.ne.s32.totalorder %s78, %s92
      %p94 = scmp.eq.s32.totalorder %s26, 0
      %p95 = por %p93, %p94
      %s97 = sadd.s32 %s96, 1
      %p100 = scmp.eq.s32.totalorder %s20, 1
      %p101 = scmp.ne.s32.totalorder %s96, %s98
      %p102 = scmp.eq.s32.totalorder %s20, 0
      %p103 = por %p101, %p102
      %p104 = scmp.ne.s32.totalorder %s96, %s98
      %p105 = scmp.eq.s32.totalorder %s25, 1
      %p106 = por %p104, %p105
      %p107 = scmp.ne.s32.totalorder %s98, %s99
      %p108 = scmp.eq.s32.totalorder %s25, 0
      %p109 = por %p107, %p108
      %p110 = scmp.ne.s32.totalorder %s98, %s99
      %p111 = scmp.eq.s32.totalorder %s26, 1
      %p112 = por %p110, %p111
      %p114 = scmp.ne.s32.totalorder %s99, %s113
      %p115 = scmp.eq.s32.totalorder %s26, 0
      %p116 = por %p114, %p115
      %s118 = sadd.s32 %s117, 1
      %p121 = scmp.eq.s32.totalorder %s20, 1
      %p122 = scmp.ne.s32.totalorder %s117, %s119
      %p123 = scmp.eq.s32.totalorder %s20, 0
      %p124 = por %p122, %p123
      %p125 = scmp.ne.s32.totalorder %s117, %s119
      %p126 = scmp.eq.s32.totalorder %s25, 1
      %p127 = por %p125, %p126
      %p128 = scmp.ne.s32.totalorder %s119, %s120
      %p129 = scmp.eq.s32.totalorder %s25, 0
      %p130 = por %p128, %p129
      %p131 = scmp.ne.s32.totalorder %s119, %s120
      %p132 = scmp.eq.s32.totalorder %s26, 1
      %p133 = por %p131, %p132
      %p135 = scmp.ne.s32.totalorder %s120, %s134
      %p136 = scmp.eq.s32.totalorder %s26, 0
      %p137 = por %p135, %p136
      %s139 = sadd.s32 %s138, 1
      %p142 = scmp.eq.s32.totalorder %s20, 1
      %p143 = scmp.ne.s32.totalorder %s138, %s140
      %p144 = scmp.eq.s32.totalorder %s20, 0
      %p145 = por %p143, %p144
      %p146 = scmp.ne.s32.totalorder %s138, %s140
      %p147 = scmp.eq.s32.totalorder %s25, 1
      %p148 = por %p146, %p147
      %p149 = scmp.ne.s32.totalorder %s140, %s141
      %p150 = scmp.eq.s32.totalorder %s25, 0
      %p151 = por %p149, %p150
      %p152 = scmp.ne.s32.totalorder %s140, %s141
      %p153 = scmp.eq.s32.totalorder %s26, 1
      %p154 = por %p152, %p153
      %p156 = scmp.ne.s32.totalorder %s141, %s155
      %p157 = scmp.eq.s32.totalorder %s26, 0
      %p158 = por %p156, %p157
      %s160 = sadd.s32 %s159, 1
      %p163 = scmp.eq.s32.totalorder %s20, 1
      %p164 = scmp.ne.s32.totalorder %s159, %s161
      %p165 = scmp.eq.s32.totalorder %s20, 0
      %p166 = por %p164, %p165
      %p167 = scmp.ne.s32.totalorder %s159, %s161
      %p168 = scmp.eq.s32.totalorder %s25, 1
      %p169 = por %p167, %p168
      %p170 = scmp.ne.s32.totalorder %s161, %s162
      %p171 = scmp.eq.s32.totalorder %s25, 0
      %p172 = por %p170, %p171
      %p173 = scmp.ne.s32.totalorder %s161, %s162
      %p174 = scmp.eq.s32.totalorder %s26, 1
      %p175 = por %p173, %p174
      %p177 = scmp.ne.s32.totalorder %s162, %s176
      %p178 = scmp.eq.s32.totalorder %s26, 0
      %p179 = por %p177, %p178
      %s181 = sadd.s32 %s180, 1
      %p184 = scmp.eq.s32.totalorder %s20, 1
      %p185 = scmp.ne.s32.totalorder %s180, %s182
      %p186 = scmp.eq.s32.totalorder %s20, 0
      %p187 = por %p185, %p186
      %p188 = scmp.ne.s32.totalorder %s180, %s182
      %p189 = scmp.eq.s32.totalorder %s25, 1
      %p190 = por %p188, %p189
      %p191 = scmp.ne.s32.totalorder %s182, %s183
      %p192 = scmp.eq.s32.totalorder %s25, 0
      %p193 = por %p191, %p192
      %p194 = scmp.ne.s32.totalorder %s182, %s183
      %p195 = scmp.eq.s32.totalorder %s26, 1
      %p196 = por %p194, %p195
      %p198 = scmp.ne.s32.totalorder %s183, %s197
      %p199 = scmp.eq.s32.totalorder %s26, 0
      %p200 = por %p198, %p199
      %s202 = sadd.s32 %s201, 1
      %p205 = scmp.eq.s32.totalorder %s20, 1
      %p206 = scmp.ne.s32.totalorder %s201, %s203
      %p207 = scmp.eq.s32.totalorder %s20, 0
      %p208 = por %p206, %p207
      %p209 = scmp.ne.s32.totalorder %s201, %s203
      %p210 = scmp.eq.s32.totalorder %s25, 1
      %p211 = por %p209, %p210
      %p212 = scmp.ne.s32.totalorder %s203, %s204
      %p213 = scmp.eq.s32.totalorder %s25, 0
      %p214 = por %p212, %p213
      %p215 = scmp.ne.s32.totalorder %s203, %s204
      %p216 = scmp.eq.s32.totalorder %s26, 1
      %p217 = por %p215, %p216
      %p219 = scmp.ne.s32.totalorder %s204, %s218
      %p220 = scmp.eq.s32.totalorder %s26, 0
      %p221 = por %p219, %p220
      %s223 = sadd.s32 %s222, 1
      %p226 = scmp.eq.s32.totalorder %s20, 1
      %p227 = scmp.ne.s32.totalorder %s222, %s224
      %p228 = scmp.eq.s32.totalorder %s20, 0
      %p229 = por %p227, %p228
      %p230 = scmp.ne.s32.totalorder %s222, %s224
      %p231 = scmp.eq.s32.totalorder %s25, 1
      %p232 = por %p230, %p231
      %p233 = scmp.ne.s32.totalorder %s224, %s225
      %p234 = scmp.eq.s32.totalorder %s25, 0
      %p235 = por %p233, %p234
      %p236 = scmp.ne.s32.totalorder %s224, %s225
      %p237 = scmp.eq.s32.totalorder %s26, 1
      %p238 = por %p236, %p237
      %p240 = scmp.ne.s32.totalorder %s225, %s239
      %p241 = scmp.eq.s32.totalorder %s26, 0
      %p242 = por %p240, %p241
      %s244 = sadd.s32 %s243, 1
      %p247 = scmp.eq.s32.totalorder %s20, 1
      %p248 = scmp.ne.s32.totalorder %s243, %s245
      %p249 = scmp.eq.s32.totalorder %s20, 0
      %p250 = por %p248, %p249
      %p251 = scmp.ne.s32.totalorder %s243, %s245
      %p252 = scmp.eq.s32.totalorder %s25, 1
      %p253 = por %p251, %p252
      %p254 = scmp.ne.s32.totalorder %s245, %s246
      %p255 = scmp.eq.s32.totalorder %s25, 0
      %p256 = por %p254, %p255
      %p257 = scmp.ne.s32.totalorder %s245, %s246
      %p258 = scmp.eq.s32.totalorder %s26, 1
      %p259 = por %p257, %p258
      %p261 = scmp.ne.s32.totalorder %s246, %s260
      %p262 = scmp.eq.s32.totalorder %s26, 0
      %p263 = por %p261, %p262
      %s264 = ssub.s32 %s20, %s27
      %p265 = scmp.eq.s32.totalorder %s264, 0
      %s267 = sadd.s32 %s266, 1
      %s268 = scalar_select %p265, %s266, %s267
      %p271 = pneg %p265
      %p272 = scmp.eq.s32.totalorder %s20, 1
      %p273 = por %p271, %p272
      %p274 = scmp.ne.s32.totalorder %s266, %s269
      %p275 = scmp.eq.s32.totalorder %s20, 0
      %p276 = por %p274, %p275
      %p277 = scmp.ne.s32.totalorder %s266, %s269
      %p278 = scmp.eq.s32.totalorder %s25, 1
      %p279 = por %p277, %p278
      %p280 = scmp.ne.s32.totalorder %s269, %s270
      %p281 = scmp.eq.s32.totalorder %s25, 0
      %p282 = por %p280, %p281
      %p283 = scmp.ne.s32.totalorder %s269, %s270
      %p284 = scmp.eq.s32.totalorder %s26, 1
      %p285 = por %p283, %p284
      %p287 = scmp.ne.s32.totalorder %s270, %s286
      %p288 = scmp.eq.s32.totalorder %s26, 0
      %p289 = por %p287, %p288
      %p290 = scmp.le.s32.totalorder 1, %s20
      %p291 = scmp.lt.s32.totalorder %s20, 3
      %p292 = pnand %p290, %p291
      %p293 = pneg %p292
      // Predicated region
      $region9: #{forward.1} parent=5 // pred_check
        _
      $region10: #{forward.1} parent=5 // pred_check_branch
        %295 = sbr.rel (%p292) target = $region12
      $region11: #{forward.1} parent=5 // pred_region
        %s296 = ssub.s32 %s20, 1
        // Predicated region
        $region13: #{forward.1} parent=11 // pred_check
          %p297 = pneg %p67
        $region14: #{forward.1} parent=11 // pred_check_branch
          %299 = sbr.rel (%p297) target = $region16
        $region15: #{forward.1} parent=11 // pred_region
          _
        $region16: #{forward.1} parent=11 // pred_fallthru
          _
        // Predicated region
        $region17: #{forward.1} parent=11 // pred_check
          %p300 = pneg %p88
        $region18: #{forward.1} parent=11 // pred_check_branch
          %302 = sbr.rel (%p300) target = $region20
        $region19: #{forward.1} parent=11 // pred_region
          _
        $region20: #{forward.1} parent=11 // pred_fallthru
          _
        // Predicated region
        $region21: #{forward.1} parent=11 // pred_check
          %p303 = pneg %p109
        $region22: #{forward.1} parent=11 // pred_check_branch
          %305 = sbr.rel (%p303) target = $region24
        $region23: #{forward.1} parent=11 // pred_region
          _
        $region24: #{forward.1} parent=11 // pred_fallthru
          _
        // Predicated region
        $region25: #{forward.1} parent=11 // pred_check
          %p306 = pneg %p130
        $region26: #{forward.1} parent=11 // pred_check_branch
          %308 = sbr.rel (%p306) target = $region28
        $region27: #{forward.1} parent=11 // pred_region
          _
        $region28: #{forward.1} parent=11 // pred_fallthru
          _
        // Predicated region
        $region29: #{forward.1} parent=11 // pred_check
          %p309 = pneg %p151
        $region30: #{forward.1} parent=11 // pred_check_branch
          %311 = sbr.rel (%p309) target = $region32
        $region31: #{forward.1} parent=11 // pred_region
          _
        $region32: #{forward.1} parent=11 // pred_fallthru
          _
        // Predicated region
        $region33: #{forward.1} parent=11 // pred_check
          %p312 = pneg %p172
        $region34: #{forward.1} parent=11 // pred_check_branch
          %314 = sbr.rel (%p312) target = $region36
        $region35: #{forward.1} parent=11 // pred_region
          _
        $region36: #{forward.1} parent=11 // pred_fallthru
          _
        // Predicated region
        $region37: #{forward.1} parent=11 // pred_check
          %p315 = pneg %p193
        $region38: #{forward.1} parent=11 // pred_check_branch
          %317 = sbr.rel (%p315) target = $region40
        $region39: #{forward.1} parent=11 // pred_region
          _
        $region40: #{forward.1} parent=11 // pred_fallthru
          _
        // Predicated region
        $region41: #{forward.1} parent=11 // pred_check
          %p318 = pneg %p214
        $region42: #{forward.1} parent=11 // pred_check_branch
          %320 = sbr.rel (%p318) target = $region44
        $region43: #{forward.1} parent=11 // pred_region
          _
        $region44: #{forward.1} parent=11 // pred_fallthru
          _
        // Predicated region
        $region45: #{forward.1} parent=11 // pred_check
          %p321 = pneg %p235
        $region46: #{forward.1} parent=11 // pred_check_branch
          %323 = sbr.rel (%p321) target = $region48
        $region47: #{forward.1} parent=11 // pred_region
          _
        $region48: #{forward.1} parent=11 // pred_fallthru
          _
        // Predicated region
        $region49: #{forward.1} parent=11 // pred_check
          %p324 = pneg %p256
        $region50: #{forward.1} parent=11 // pred_check_branch
          %326 = sbr.rel (%p324) target = $region52
        $region51: #{forward.1} parent=11 // pred_region
          _
        $region52: #{forward.1} parent=11 // pred_fallthru
          _
      $region12: #{forward.1} parent=5 // pred_fallthru
        _
      %p327 = scmp.lt.s32.totalorder %s20, 2
      // Predicated region
      $region53: #{forward.1} parent=5 // pred_check
        %p328 = pneg %p327
      $region54: #{forward.1} parent=5 // pred_check_branch
        %330 = sbr.rel (%p328) target = $region56
      $region55: #{forward.1} parent=5 // pred_region
        // Predicated region
        $region57: #{forward.1} parent=55 // pred_check
          %p331 = pneg %p40
        $region58: #{forward.1} parent=55 // pred_check_branch
          %333 = sbr.rel (%p331) target = $region60
        $region59: #{forward.1} parent=55 // pred_region
          %p334 = scmp.lt.s32.totalorder %s20, 1
          %s335 = scalar_select %p334, %s20, 1
          %s336 = smul.addr %s335, 22
          %s337 = smul.addr %s336, 8
          %s338 = scalar_lea.vmem %s0, %s337
        $region60: #{forward.1} parent=55 // pred_fallthru
          _
      $region56: #{forward.1} parent=5 // pred_fallthru
        _
      %p339 = scmp.le.s32.totalorder 1, %s20
      %p340 = scmp.lt.s32.totalorder %s20, 3
      %p341 = pnand %p339, %p340
      %p342 = pneg %p341
      // Predicated region
      $region61: #{forward.1} parent=5 // pred_check
        _
      $region62: #{forward.1} parent=5 // pred_check_branch
        %344 = sbr.rel (%p341) target = $region64
      $region63: #{forward.1} parent=5 // pred_region
        %s345 = ssub.s32 %s20, 1
        %p346 = scmp.lt.s32.totalorder %s25, 1
        %s347 = scalar_select %p346, %s25, 1
        %s348 = smul.addr %s347, 22
        %s349 = smul.addr %s348, 8
        %s350 = scalar_lea.vmem %s0, %s349
        %p351 = pneg %p46
        %p352 = pneg %p43
        %p353 = pneg %p67
        %p354 = pneg %p64
        %p355 = pneg %p88
        %p356 = pneg %p85
        %p357 = pneg %p109
        %p358 = pneg %p106
        %p359 = pneg %p130
        %p360 = pneg %p127
        %p361 = pneg %p151
        %p362 = pneg %p148
        %p363 = pneg %p172
        %p364 = pneg %p169
        %p365 = pneg %p193
        %p366 = pneg %p190
        %p367 = pneg %p214
        %p368 = pneg %p211
        %p369 = pneg %p235
        %p370 = pneg %p232
        %p371 = pneg %p256
        %p372 = pneg %p253
        %p373 = pneg %p282
        %p374 = pneg %p279
        %s375 = sand.u32 %s269, 1
        %s376 = scalar_lea.sflag [#allocation3], %s375
        %s377 = sand.u32 %s269, 1
        %s378 = scalar_lea.vmem [#allocation2], %s377
        %p379 = scmp.lt.s32.totalorder %s25, 1
        %s380 = scalar_select %p379, %s25, 1
        %s381 = smul.addr %s380, 22
        %s382 = smul.addr %s381, 8
        %s383 = scalar_lea.vmem %s0, %s382
        %v384 = vld [vmem:[%s1] sm:$0xff]
        %v385 = vld [vmem:[%s1 + $0x8] sm:$0xff]
        %v386 = vld [vmem:[%s1 + $0x10] sm:$0xff]
        %v387 = vld [vmem:[%s1 + $0x18] sm:$0xff]
        %v388 = vld [vmem:[%s1 + $0x20] sm:$0xff]
        %v389 = vld [vmem:[%s1 + $0x28] sm:$0xff]
        %v390 = vld [vmem:[%s1 + $0x30] sm:$0xff]
        %v391 = vld [vmem:[%s1 + $0x38] sm:$0xff]
        %v392 = vld [vmem:[%s1 + $0x40] sm:$0xff]
        %v393 = vld [vmem:[%s1 + $0x48] sm:$0xff]
        %v394 = vld [vmem:[%s1 + $0x50] sm:$0xff]
        %v395 = vld [vmem:[%s1 + $0x58] sm:$0xff]
        %v396 = vld [vmem:[%s1 + $0x60] sm:$0xff]
        %v397 = vld [vmem:[%s1 + $0x68] sm:$0xff]
        %v398 = vld [vmem:[%s1 + $0x70] sm:$0xff]
        %v399 = vld [vmem:[%s1 + $0x78] sm:$0xff]
        %v400 = vld [vmem:[%s1 + $0x80] sm:$0xff]
        %v401 = vld [vmem:[%s1 + $0x88] sm:$0xff]
        %v402 = vld [vmem:[%s1 + $0x90] sm:$0xff]
        %v403 = vld [vmem:[%s1 + $0x98] sm:$0xff]
        %v404 = vld [vmem:[%s1 + $0xa0] sm:$0xff]
        %v405 = vld [vmem:[%s1 + $0xa8] sm:$0xff]
        %v406 = vld [vmem:[%s1 + $0xb0] sm:$0xff]
        %v407 = vld [vmem:[%s1 + $0xb8] sm:$0xff]
        %v408 = vld [vmem:[%s1 + $0xc0] sm:$0xff]
        %v409 = vld [vmem:[%s1 + $0xc8] sm:$0xff]
        %v410 = vld [vmem:[%s1 + $0xd0] sm:$0xff]
        %v411 = vld [vmem:[%s1 + $0xd8] sm:$0xff]
        %v412 = vld [vmem:[%s1 + $0xe0] sm:$0xff]
        %v413 = vld [vmem:[%s1 + $0xe8] sm:$0xff]
        %v414 = vld [vmem:[%s1 + $0xf0] sm:$0xff]
        %v415 = vld [vmem:[%s1 + $0xf8] sm:$0xff]
        %v416 = vld [vmem:[%s2] sm:$0x1]
        %v417 = vld [vmem:[%s3] sm:$0xff]
        %v418 = vld [vmem:[%s3 + $0x8] sm:$0xff]
        %v419 = vld [vmem:[%s3 + $0x10] sm:$0xff]
        %v420 = vld [vmem:[%s3 + $0x18] sm:$0xff]
        %v421 = vld [vmem:[%s3 + $0x20] sm:$0xff]
        %v422 = vld [vmem:[%s3 + $0x28] sm:$0xff]
        %v423 = vld [vmem:[%s3 + $0x30] sm:$0xff]
        %v424 = vld [vmem:[%s3 + $0x38] sm:$0xff]
        %v425 = vld [vmem:[%s3 + $0x40] sm:$0xff]
        %v426 = vld [vmem:[%s3 + $0x48] sm:$0xff]
        %v427 = vld [vmem:[%s3 + $0x50] sm:$0xff]
        %v428 = vld [vmem:[%s3 + $0x58] sm:$0xff]
        %v429 = vld [vmem:[%s3 + $0x60] sm:$0xff]
        %v430 = vld [vmem:[%s3 + $0x68] sm:$0xff]
        %v431 = vld [vmem:[%s3 + $0x70] sm:$0xff]
        %v432 = vld [vmem:[%s3 + $0x78] sm:$0xff]
        %v433 = vld [vmem:[%s3 + $0x80] sm:$0xff]
        %v434 = vld [vmem:[%s3 + $0x88] sm:$0xff]
        %v435 = vld [vmem:[%s3 + $0x90] sm:$0xff]
        %v436 = vld [vmem:[%s3 + $0x98] sm:$0xff]
        %v437 = vld [vmem:[%s3 + $0xa0] sm:$0xff]
        %v438 = vld [vmem:[%s3 + $0xa8] sm:$0xff]
        %v439 = vld [vmem:[%s3 + $0xb0] sm:$0xff]
        %v440 = vld [vmem:[%s3 + $0xb8] sm:$0xff]
        %v441 = vld [vmem:[%s3 + $0xc0] sm:$0xff]
        %v442 = vld [vmem:[%s3 + $0xc8] sm:$0xff]
        %v443 = vld [vmem:[%s3 + $0xd0] sm:$0xff]
        %v444 = vld [vmem:[%s3 + $0xd8] sm:$0xff]
        %v445 = vld [vmem:[%s3 + $0xe0] sm:$0xff]
        %v446 = vld [vmem:[%s3 + $0xe8] sm:$0xff]
        %v447 = vld [vmem:[%s3 + $0xf0] sm:$0xff]
        %v448 = vld [vmem:[%s3 + $0xf8] sm:$0xff]
        %v449 = vld [vmem:[%s3 + $0x100] sm:$0xff]
        %v450 = vld [vmem:[%s3 + $0x108] sm:$0xff]
        %v451 = vld [vmem:[%s3 + $0x110] sm:$0xff]
        %v452 = vld [vmem:[%s3 + $0x118] sm:$0xff]
        %v453 = vld [vmem:[%s3 + $0x120] sm:$0xff]
        %v454 = vld [vmem:[%s3 + $0x128] sm:$0xff]
        %v455 = vld [vmem:[%s3 + $0x130] sm:$0xff]
        %v456 = vld [vmem:[%s3 + $0x138] sm:$0xff]
        %v457 = vld [vmem:[%s3 + $0x140] sm:$0xff]
        %v458 = vld [vmem:[%s3 + $0x148] sm:$0xff]
        %v459 = vld [vmem:[%s3 + $0x150] sm:$0xff]
        %v460 = vld [vmem:[%s3 + $0x158] sm:$0xff]
        %v461 = vld [vmem:[%s3 + $0x160] sm:$0xff]
        %v462 = vld [vmem:[%s3 + $0x168] sm:$0xff]
        %v463 = vld [vmem:[%s3 + $0x170] sm:$0xff]
        %v464 = vld [vmem:[%s3 + $0x178] sm:$0xff]
        %v465 = vld [vmem:[%s3 + $0x180] sm:$0xff]
        %v466 = vld [vmem:[%s3 + $0x188] sm:$0xff]
        %v467 = vld [vmem:[%s3 + $0x190] sm:$0xff]
        %v468 = vld [vmem:[%s3 + $0x198] sm:$0xff]
        %v469 = vld [vmem:[%s3 + $0x1a0] sm:$0xff]
        %v470 = vld [vmem:[%s3 + $0x1a8] sm:$0xff]
        %v471 = vld [vmem:[%s3 + $0x1b0] sm:$0xff]
        %v472 = vld [vmem:[%s3 + $0x1b8] sm:$0xff]
        %v473 = vld [vmem:[%s3 + $0x1c0] sm:$0xff]
        %v474 = vld [vmem:[%s3 + $0x1c8] sm:$0xff]
        %v475 = vld [vmem:[%s3 + $0x1d0] sm:$0xff]
        %v476 = vld [vmem:[%s3 + $0x1d8] sm:$0xff]
        %v477 = vld [vmem:[%s3 + $0x1e0] sm:$0xff]
        %v478 = vld [vmem:[%s3 + $0x1e8] sm:$0xff]
        %v479 = vld [vmem:[%s3 + $0x1f0] sm:$0xff]
        %v480 = vld [vmem:[%s3 + $0x1f8] sm:$0xff]
        %v481 = vld [vmem:[%s4] sm:$0x1]
        %v482 = vld [vmem:[%s5] sm:$0xff]
        %v483 = vld [vmem:[%s5 + $0x8] sm:$0xff]
        %v484 = vld [vmem:[%s5 + $0x10] sm:$0xff]
        %v485 = vld [vmem:[%s5 + $0x18] sm:$0xff]
        %v486 = vld [vmem:[%s5 + $0x20] sm:$0xff]
        %v487 = vld [vmem:[%s5 + $0x28] sm:$0xff]
        %v488 = vld [vmem:[%s5 + $0x30] sm:$0xff]
        %v489 = vld [vmem:[%s5 + $0x38] sm:$0xff]
        %v490 = vld [vmem:[%s5 + $0x40] sm:$0xff]
        %v491 = vld [vmem:[%s5 + $0x48] sm:$0xff]
        %v492 = vld [vmem:[%s5 + $0x50] sm:$0xff]
        %v493 = vld [vmem:[%s5 + $0x58] sm:$0xff]
        %v494 = vld [vmem:[%s5 + $0x60] sm:$0xff]
        %v495 = vld [vmem:[%s5 + $0x68] sm:$0xff]
        %v496 = vld [vmem:[%s5 + $0x70] sm:$0xff]
        %v497 = vld [vmem:[%s5 + $0x78] sm:$0xff]
        %v498 = vld [vmem:[%s5 + $0x80] sm:$0xff]
        %v499 = vld [vmem:[%s5 + $0x88] sm:$0xff]
        %v500 = vld [vmem:[%s5 + $0x90] sm:$0xff]
        %v501 = vld [vmem:[%s5 + $0x98] sm:$0xff]
        %v502 = vld [vmem:[%s5 + $0xa0] sm:$0xff]
        %v503 = vld [vmem:[%s5 + $0xa8] sm:$0xff]
        %v504 = vld [vmem:[%s5 + $0xb0] sm:$0xff]
        %v505 = vld [vmem:[%s5 + $0xb8] sm:$0xff]
        %v506 = vld [vmem:[%s5 + $0xc0] sm:$0xff]
        %v507 = vld [vmem:[%s5 + $0xc8] sm:$0xff]
        %v508 = vld [vmem:[%s5 + $0xd0] sm:$0xff]
        %v509 = vld [vmem:[%s5 + $0xd8] sm:$0xff]
        %v510 = vld [vmem:[%s5 + $0xe0] sm:$0xff]
        %v511 = vld [vmem:[%s5 + $0xe8] sm:$0xff]
        %v512 = vld [vmem:[%s5 + $0xf0] sm:$0xff]
        %v513 = vld [vmem:[%s5 + $0xf8] sm:$0xff]
        %v514 = vld [vmem:[%s5 + $0x100] sm:$0xff]
        %v515 = vld [vmem:[%s5 + $0x108] sm:$0xff]
        %v516 = vld [vmem:[%s5 + $0x110] sm:$0xff]
        %v517 = vld [vmem:[%s5 + $0x118] sm:$0xff]
        %v518 = vld [vmem:[%s5 + $0x120] sm:$0xff]
        %v519 = vld [vmem:[%s5 + $0x128] sm:$0xff]
        %v520 = vld [vmem:[%s5 + $0x130] sm:$0xff]
        %v521 = vld [vmem:[%s5 + $0x138] sm:$0xff]
        %v522 = vld [vmem:[%s5 + $0x140] sm:$0xff]
        %v523 = vld [vmem:[%s5 + $0x148] sm:$0xff]
        %v524 = vld [vmem:[%s5 + $0x150] sm:$0xff]
        %v525 = vld [vmem:[%s5 + $0x158] sm:$0xff]
        %v526 = vld [vmem:[%s5 + $0x160] sm:$0xff]
        %v527 = vld [vmem:[%s5 + $0x168] sm:$0xff]
        %v528 = vld [vmem:[%s5 + $0x170] sm:$0xff]
        %v529 = vld [vmem:[%s5 + $0x178] sm:$0xff]
        %v530 = vld [vmem:[%s5 + $0x180] sm:$0xff]
        %v531 = vld [vmem:[%s5 + $0x188] sm:$0xff]
        %v532 = vld [vmem:[%s5 + $0x190] sm:$0xff]
        %v533 = vld [vmem:[%s5 + $0x198] sm:$0xff]
        %v534 = vld [vmem:[%s5 + $0x1a0] sm:$0xff]
        %v535 = vld [vmem:[%s5 + $0x1a8] sm:$0xff]
        %v536 = vld [vmem:[%s5 + $0x1b0] sm:$0xff]
        %v537 = vld [vmem:[%s5 + $0x1b8] sm:$0xff]
        %v538 = vld [vmem:[%s5 + $0x1c0] sm:$0xff]
        %v539 = vld [vmem:[%s5 + $0x1c8] sm:$0xff]
        %v540 = vld [vmem:[%s5 + $0x1d0] sm:$0xff]
        %v541 = vld [vmem:[%s5 + $0x1d8] sm:$0xff]
        %v542 = vld [vmem:[%s5 + $0x1e0] sm:$0xff]
        %v543 = vld [vmem:[%s5 + $0x1e8] sm:$0xff]
        %v544 = vld [vmem:[%s5 + $0x1f0] sm:$0xff]
        %v545 = vld [vmem:[%s5 + $0x1f8] sm:$0xff]
        %v546 = vld [vmem:[%s5 + $0x200] sm:$0xff]
        %v547 = vld [vmem:[%s5 + $0x208] sm:$0xff]
        %v548 = vld [vmem:[%s5 + $0x210] sm:$0xff]
        %v549 = vld [vmem:[%s5 + $0x218] sm:$0xff]
        %v550 = vld [vmem:[%s5 + $0x220] sm:$0xff]
        %v551 = vld [vmem:[%s5 + $0x228] sm:$0xff]
        %v552 = vld [vmem:[%s5 + $0x230] sm:$0xff]
        %v553 = vld [vmem:[%s5 + $0x238] sm:$0xff]
        %v554 = vld [vmem:[%s6] sm:$0x1]
        %v555 = vld [vmem:[%s7] sm:$0xff]
        %v556 = vld [vmem:[%s7 + $0x8] sm:$0xff]
        %v557 = vld [vmem:[%s7 + $0x10] sm:$0xff]
        %v558 = vld [vmem:[%s7 + $0x18] sm:$0xff]
        %v559 = vld [vmem:[%s7 + $0x20] sm:$0xff]
        %v560 = vld [vmem:[%s7 + $0x28] sm:$0xff]
        %v561 = vld [vmem:[%s7 + $0x30] sm:$0xff]
        %v562 = vld [vmem:[%s7 + $0x38] sm:$0xff]
        %v563 = vld [vmem:[%s7 + $0x40] sm:$0xff]
        %v564 = vld [vmem:[%s7 + $0x48] sm:$0xff]
        %v565 = vld [vmem:[%s7 + $0x50] sm:$0xff]
        %v566 = vld [vmem:[%s7 + $0x58] sm:$0xff]
        %v567 = vld [vmem:[%s7 + $0x60] sm:$0xff]
        %v568 = vld [vmem:[%s7 + $0x68] sm:$0xff]
        %v569 = vld [vmem:[%s7 + $0x70] sm:$0xff]
        %v570 = vld [vmem:[%s7 + $0x78] sm:$0xff]
        %v571 = vld [vmem:[%s7 + $0x80] sm:$0xff]
        %v572 = vld [vmem:[%s7 + $0x88] sm:$0xff]
        %v573 = vld [vmem:[%s7 + $0x90] sm:$0xff]
        %v574 = vld [vmem:[%s7 + $0x98] sm:$0xff]
        %v575 = vld [vmem:[%s7 + $0xa0] sm:$0xff]
        %v576 = vld [vmem:[%s7 + $0xa8] sm:$0xff]
        %v577 = vld [vmem:[%s7 + $0xb0] sm:$0xff]
        %v578 = vld [vmem:[%s7 + $0xb8] sm:$0xff]
        %v579 = vld [vmem:[%s7 + $0xc0] sm:$0xff]
        %v580 = vld [vmem:[%s7 + $0xc8] sm:$0xff]
        %v581 = vld [vmem:[%s7 + $0xd0] sm:$0xff]
        %v582 = vld [vmem:[%s7 + $0xd8] sm:$0xff]
        %v583 = vld [vmem:[%s7 + $0xe0] sm:$0xff]
        %v584 = vld [vmem:[%s7 + $0xe8] sm:$0xff]
        %v585 = vld [vmem:[%s7 + $0xf0] sm:$0xff]
        %v586 = vld [vmem:[%s7 + $0xf8] sm:$0xff]
        %v587 = vld [vmem:[%s7 + $0x100] sm:$0xff]
        %v588 = vld [vmem:[%s7 + $0x108] sm:$0xff]
        %v589 = vld [vmem:[%s7 + $0x110] sm:$0xff]
        %v590 = vld [vmem:[%s7 + $0x118] sm:$0xff]
        %v591 = vld [vmem:[%s7 + $0x120] sm:$0xff]
        %v592 = vld [vmem:[%s7 + $0x128] sm:$0xff]
        %v593 = vld [vmem:[%s7 + $0x130] sm:$0xff]
        %v594 = vld [vmem:[%s7 + $0x138] sm:$0xff]
        %v595 = vld [vmem:[%s7 + $0x140] sm:$0xff]
        %v596 = vld [vmem:[%s7 + $0x148] sm:$0xff]
        %v597 = vld [vmem:[%s7 + $0x150] sm:$0xff]
        %v598 = vld [vmem:[%s7 + $0x158] sm:$0xff]
        %v599 = vld [vmem:[%s7 + $0x160] sm:$0xff]
        %v600 = vld [vmem:[%s7 + $0x168] sm:$0xff]
        %v601 = vld [vmem:[%s7 + $0x170] sm:$0xff]
        %v602 = vld [vmem:[%s7 + $0x178] sm:$0xff]
        %v603 = vld [vmem:[%s7 + $0x180] sm:$0xff]
        %v604 = vld [vmem:[%s7 + $0x188] sm:$0xff]
        %v605 = vld [vmem:[%s7 + $0x190] sm:$0xff]
        %v606 = vld [vmem:[%s7 + $0x198] sm:$0xff]
        %v607 = vld [vmem:[%s7 + $0x1a0] sm:$0xff]
        %v608 = vld [vmem:[%s7 + $0x1a8] sm:$0xff]
        %v609 = vld [vmem:[%s7 + $0x1b0] sm:$0xff]
        %v610 = vld [vmem:[%s7 + $0x1b8] sm:$0xff]
        %v611 = vld [vmem:[%s7 + $0x1c0] sm:$0xff]
        %v612 = vld [vmem:[%s7 + $0x1c8] sm:$0xff]
        %v613 = vld [vmem:[%s7 + $0x1d0] sm:$0xff]
        %v614 = vld [vmem:[%s7 + $0x1d8] sm:$0xff]
        %v615 = vld [vmem:[%s7 + $0x1e0] sm:$0xff]
        %v616 = vld [vmem:[%s7 + $0x1e8] sm:$0xff]
        %v617 = vld [vmem:[%s7 + $0x1f0] sm:$0xff]
        %v618 = vld [vmem:[%s7 + $0x1f8] sm:$0xff]
        %v619 = vld [vmem:[%s7 + $0x200] sm:$0xff]
        %v620 = vld [vmem:[%s7 + $0x208] sm:$0xff]
        %v621 = vld [vmem:[%s7 + $0x210] sm:$0xff]
        %v622 = vld [vmem:[%s7 + $0x218] sm:$0xff]
        %v623 = vld [vmem:[%s7 + $0x220] sm:$0xff]
        %v624 = vld [vmem:[%s7 + $0x228] sm:$0xff]
        %v625 = vld [vmem:[%s7 + $0x230] sm:$0xff]
        %v626 = vld [vmem:[%s7 + $0x238] sm:$0xff]
        %v627 = vld [vmem:[%s7 + $0x240] sm:$0xff]
        %v628 = vld [vmem:[%s7 + $0x248] sm:$0xff]
        %v629 = vld [vmem:[%s7 + $0x250] sm:$0xff]
        %v630 = vld [vmem:[%s7 + $0x258] sm:$0xff]
        %v631 = vld [vmem:[%s7 + $0x260] sm:$0xff]
        %v632 = vld [vmem:[%s7 + $0x268] sm:$0xff]
        %v633 = vld [vmem:[%s7 + $0x270] sm:$0xff]
        %v634 = vld [vmem:[%s7 + $0x278] sm:$0xff]
        %v635 = vld [vmem:[%s7 + $0x280] sm:$0xff]
        %v636 = vld [vmem:[%s7 + $0x288] sm:$0xff]
        %v637 = vld [vmem:[%s7 + $0x290] sm:$0xff]
        %v638 = vld [vmem:[%s7 + $0x298] sm:$0xff]
        %v639 = vld [vmem:[%s7 + $0x2a0] sm:$0xff]
        %v640 = vld [vmem:[%s7 + $0x2a8] sm:$0xff]
        %v641 = vld [vmem:[%s7 + $0x2b0] sm:$0xff]
        %v642 = vld [vmem:[%s7 + $0x2b8] sm:$0xff]
        %v643 = vld [vmem:[%s7 + $0x2c0] sm:$0xff]
        %v644 = vld [vmem:[%s7 + $0x2c8] sm:$0xff]
        %v645 = vld [vmem:[%s7 + $0x2d0] sm:$0xff]
        %v646 = vld [vmem:[%s7 + $0x2d8] sm:$0xff]
        %v647 = vld [vmem:[%s7 + $0x2e0] sm:$0xff]
        %v648 = vld [vmem:[%s7 + $0x2e8] sm:$0xff]
        %v649 = vld [vmem:[%s7 + $0x2f0] sm:$0xff]
        %v650 = vld [vmem:[%s7 + $0x2f8] sm:$0xff]
        %v651 = vld [vmem:[%s7 + $0x300] sm:$0xff]
        %v652 = vld [vmem:[%s7 + $0x308] sm:$0xff]
        %v653 = vld [vmem:[%s7 + $0x310] sm:$0xff]
        %v654 = vld [vmem:[%s7 + $0x318] sm:$0xff]
        %v655 = vld [vmem:[%s7 + $0x320] sm:$0xff]
        %v656 = vld [vmem:[%s7 + $0x328] sm:$0xff]
        %v657 = vld [vmem:[%s7 + $0x330] sm:$0xff]
        %v658 = vld [vmem:[%s7 + $0x338] sm:$0xff]
        %v659 = vld [vmem:[%s7 + $0x340] sm:$0xff]
        %v660 = vld [vmem:[%s7 + $0x348] sm:$0xff]
        %v661 = vld [vmem:[%s7 + $0x350] sm:$0xff]
        %v662 = vld [vmem:[%s7 + $0x358] sm:$0xff]
        %v663 = vld [vmem:[%s7 + $0x360] sm:$0xff]
        %v664 = vld [vmem:[%s7 + $0x368] sm:$0xff]
        %v665 = vld [vmem:[%s7 + $0x370] sm:$0xff]
        %v666 = vld [vmem:[%s7 + $0x378] sm:$0xff]
        %v667 = vld [vmem:[%s7 + $0x380] sm:$0xff]
        %v668 = vld [vmem:[%s7 + $0x388] sm:$0xff]
        %v669 = vld [vmem:[%s7 + $0x390] sm:$0xff]
        %v670 = vld [vmem:[%s7 + $0x398] sm:$0xff]
        %v671 = vld [vmem:[%s7 + $0x3a0] sm:$0xff]
        %v672 = vld [vmem:[%s7 + $0x3a8] sm:$0xff]
        %v673 = vld [vmem:[%s7 + $0x3b0] sm:$0xff]
        %v674 = vld [vmem:[%s7 + $0x3b8] sm:$0xff]
        %v675 = vld [vmem:[%s7 + $0x3c0] sm:$0xff]
        %v676 = vld [vmem:[%s7 + $0x3c8] sm:$0xff]
        %v677 = vld [vmem:[%s7 + $0x3d0] sm:$0xff]
        %v678 = vld [vmem:[%s7 + $0x3d8] sm:$0xff]
        %v679 = vld [vmem:[%s7 + $0x3e0] sm:$0xff]
        %v680 = vld [vmem:[%s7 + $0x3e8] sm:$0xff]
        %v681 = vld [vmem:[%s7 + $0x3f0] sm:$0xff]
        %v682 = vld [vmem:[%s7 + $0x3f8] sm:$0xff]
        %v683 = vld [vmem:[%s7 + $0x400] sm:$0xff]
        %v684 = vld [vmem:[%s7 + $0x408] sm:$0xff]
        %v685 = vld [vmem:[%s7 + $0x410] sm:$0xff]
        %v686 = vld [vmem:[%s7 + $0x418] sm:$0xff]
        %v687 = vld [vmem:[%s7 + $0x420] sm:$0xff]
        %v688 = vld [vmem:[%s7 + $0x428] sm:$0xff]
        %v689 = vld [vmem:[%s7 + $0x430] sm:$0xff]
        %v690 = vld [vmem:[%s7 + $0x438] sm:$0xff]
        %v691 = vld [vmem:[%s7 + $0x440] sm:$0xff]
        %v692 = vld [vmem:[%s7 + $0x448] sm:$0xff]
        %v693 = vld [vmem:[%s7 + $0x450] sm:$0xff]
        %v694 = vld [vmem:[%s7 + $0x458] sm:$0xff]
        %v695 = vld [vmem:[%s7 + $0x460] sm:$0xff]
        %v696 = vld [vmem:[%s7 + $0x468] sm:$0xff]
        %v697 = vld [vmem:[%s7 + $0x470] sm:$0xff]
        %v698 = vld [vmem:[%s7 + $0x478] sm:$0xff]
        %v699 = vld [vmem:[%s7 + $0x480] sm:$0xff]
        %v700 = vld [vmem:[%s7 + $0x488] sm:$0xff]
        %v701 = vld [vmem:[%s7 + $0x490] sm:$0xff]
        %v702 = vld [vmem:[%s7 + $0x498] sm:$0xff]
        %v703 = vld [vmem:[%s7 + $0x4a0] sm:$0xff]
        %v704 = vld [vmem:[%s7 + $0x4a8] sm:$0xff]
        %v705 = vld [vmem:[%s7 + $0x4b0] sm:$0xff]
        %v706 = vld [vmem:[%s7 + $0x4b8] sm:$0xff]
        %v707 = vld [vmem:[%s7 + $0x4c0] sm:$0xff]
        %v708 = vld [vmem:[%s7 + $0x4c8] sm:$0xff]
        %v709 = vld [vmem:[%s7 + $0x4d0] sm:$0xff]
        %v710 = vld [vmem:[%s7 + $0x4d8] sm:$0xff]
        %v711 = vld [vmem:[%s7 + $0x4e0] sm:$0xff]
        %v712 = vld [vmem:[%s7 + $0x4e8] sm:$0xff]
        %v713 = vld [vmem:[%s7 + $0x4f0] sm:$0xff]
        %v714 = vld [vmem:[%s7 + $0x4f8] sm:$0xff]
        %v715 = vld [vmem:[%s7 + $0x500] sm:$0xff]
        %v716 = vld [vmem:[%s7 + $0x508] sm:$0xff]
        %v717 = vld [vmem:[%s7 + $0x510] sm:$0xff]
        %v718 = vld [vmem:[%s7 + $0x518] sm:$0xff]
        %v719 = vld [vmem:[%s7 + $0x520] sm:$0xff]
        %v720 = vld [vmem:[%s7 + $0x528] sm:$0xff]
        %v721 = vld [vmem:[%s7 + $0x530] sm:$0xff]
        %v722 = vld [vmem:[%s7 + $0x538] sm:$0xff]
        %v723 = vld [vmem:[%s7 + $0x540] sm:$0xff]
        %v724 = vld [vmem:[%s7 + $0x548] sm:$0xff]
        %v725 = vld [vmem:[%s7 + $0x550] sm:$0xff]
        %v726 = vld [vmem:[%s7 + $0x558] sm:$0xff]
        %v727 = vld [vmem:[%s7 + $0x560] sm:$0xff]
        %v728 = vld [vmem:[%s7 + $0x568] sm:$0xff]
        %v729 = vld [vmem:[%s7 + $0x570] sm:$0xff]
        %v730 = vld [vmem:[%s7 + $0x578] sm:$0xff]
        %v731 = vld [vmem:[%s7 + $0x580] sm:$0xff]
        %v732 = vld [vmem:[%s7 + $0x588] sm:$0xff]
        %v733 = vld [vmem:[%s7 + $0x590] sm:$0xff]
        %v734 = vld [vmem:[%s7 + $0x598] sm:$0xff]
        %v735 = vld [vmem:[%s7 + $0x5a0] sm:$0xff]
        %v736 = vld [vmem:[%s7 + $0x5a8] sm:$0xff]
        %v737 = vld [vmem:[%s7 + $0x5b0] sm:$0xff]
        %v738 = vld [vmem:[%s7 + $0x5b8] sm:$0xff]
        %v739 = vld [vmem:[%s7 + $0x5c0] sm:$0xff]
        %v740 = vld [vmem:[%s7 + $0x5c8] sm:$0xff]
        %v741 = vld [vmem:[%s7 + $0x5d0] sm:$0xff]
        %v742 = vld [vmem:[%s7 + $0x5d8] sm:$0xff]
        %v743 = vld [vmem:[%s7 + $0x5e0] sm:$0xff]
        %v744 = vld [vmem:[%s7 + $0x5e8] sm:$0xff]
        %v745 = vld [vmem:[%s7 + $0x5f0] sm:$0xff]
        %v746 = vld [vmem:[%s7 + $0x5f8] sm:$0xff]
        %v747 = vld [vmem:[%s7 + $0x600] sm:$0xff]
        %v748 = vld [vmem:[%s7 + $0x608] sm:$0xff]
        %v749 = vld [vmem:[%s7 + $0x610] sm:$0xff]
        %v750 = vld [vmem:[%s7 + $0x618] sm:$0xff]
        %v751 = vld [vmem:[%s7 + $0x620] sm:$0xff]
        %v752 = vld [vmem:[%s7 + $0x628] sm:$0xff]
        %v753 = vld [vmem:[%s7 + $0x630] sm:$0xff]
        %v754 = vld [vmem:[%s7 + $0x638] sm:$0xff]
        %v755 = vld [vmem:[%s7 + $0x640] sm:$0xff]
        %v756 = vld [vmem:[%s7 + $0x648] sm:$0xff]
        %v757 = vld [vmem:[%s7 + $0x650] sm:$0xff]
        %v758 = vld [vmem:[%s7 + $0x658] sm:$0xff]
        %v759 = vld [vmem:[%s7 + $0x660] sm:$0xff]
        %v760 = vld [vmem:[%s7 + $0x668] sm:$0xff]
        %v761 = vld [vmem:[%s7 + $0x670] sm:$0xff]
        %v762 = vld [vmem:[%s7 + $0x678] sm:$0xff]
        %v763 = vld [vmem:[%s7 + $0x680] sm:$0xff]
        %v764 = vld [vmem:[%s7 + $0x688] sm:$0xff]
        %v765 = vld [vmem:[%s7 + $0x690] sm:$0xff]
        %v766 = vld [vmem:[%s7 + $0x698] sm:$0xff]
        %v767 = vld [vmem:[%s7 + $0x6a0] sm:$0xff]
        %v768 = vld [vmem:[%s7 + $0x6a8] sm:$0xff]
        %v769 = vld [vmem:[%s7 + $0x6b0] sm:$0xff]
        %v770 = vld [vmem:[%s7 + $0x6b8] sm:$0xff]
        %v771 = vld [vmem:[%s7 + $0x6c0] sm:$0xff]
        %v772 = vld [vmem:[%s7 + $0x6c8] sm:$0xff]
        %v773 = vld [vmem:[%s7 + $0x6d0] sm:$0xff]
        %v774 = vld [vmem:[%s7 + $0x6d8] sm:$0xff]
        %v775 = vld [vmem:[%s7 + $0x6e0] sm:$0xff]
        %v776 = vld [vmem:[%s7 + $0x6e8] sm:$0xff]
        %v777 = vld [vmem:[%s7 + $0x6f0] sm:$0xff]
        %v778 = vld [vmem:[%s7 + $0x6f8] sm:$0xff]
        %v779 = vld [vmem:[%s7 + $0x700] sm:$0xff]
        %v780 = vld [vmem:[%s7 + $0x708] sm:$0xff]
        %v781 = vld [vmem:[%s7 + $0x710] sm:$0xff]
        %v782 = vld [vmem:[%s7 + $0x718] sm:$0xff]
        %v783 = vld [vmem:[%s7 + $0x720] sm:$0xff]
        %v784 = vld [vmem:[%s7 + $0x728] sm:$0xff]
        %v785 = vld [vmem:[%s7 + $0x730] sm:$0xff]
        %v786 = vld [vmem:[%s7 + $0x738] sm:$0xff]
        %v787 = vld [vmem:[%s7 + $0x740] sm:$0xff]
        %v788 = vld [vmem:[%s7 + $0x748] sm:$0xff]
        %v789 = vld [vmem:[%s7 + $0x750] sm:$0xff]
        %v790 = vld [vmem:[%s7 + $0x758] sm:$0xff]
        %v791 = vld [vmem:[%s7 + $0x760] sm:$0xff]
        %v792 = vld [vmem:[%s7 + $0x768] sm:$0xff]
        %v793 = vld [vmem:[%s7 + $0x770] sm:$0xff]
        %v794 = vld [vmem:[%s7 + $0x778] sm:$0xff]
        %v795 = vld [vmem:[%s7 + $0x780] sm:$0xff]
        %v796 = vld [vmem:[%s7 + $0x788] sm:$0xff]
        %v797 = vld [vmem:[%s7 + $0x790] sm:$0xff]
        %v798 = vld [vmem:[%s7 + $0x798] sm:$0xff]
        %v799 = vld [vmem:[%s7 + $0x7a0] sm:$0xff]
        %v800 = vld [vmem:[%s7 + $0x7a8] sm:$0xff]
        %v801 = vld [vmem:[%s7 + $0x7b0] sm:$0xff]
        %v802 = vld [vmem:[%s7 + $0x7b8] sm:$0xff]
        %v803 = vld [vmem:[%s7 + $0x7c0] sm:$0xff]
        %v804 = vld [vmem:[%s7 + $0x7c8] sm:$0xff]
        %v805 = vld [vmem:[%s7 + $0x7d0] sm:$0xff]
        %v806 = vld [vmem:[%s7 + $0x7d8] sm:$0xff]
        %v807 = vld [vmem:[%s7 + $0x7e0] sm:$0xff]
        %v808 = vld [vmem:[%s7 + $0x7e8] sm:$0xff]
        %v809 = vld [vmem:[%s7 + $0x7f0] sm:$0xff]
        %v810 = vld [vmem:[%s7 + $0x7f8] sm:$0xff]
        %v811 = vld [vmem:[%s7 + $0x800] sm:$0xff]
        %v812 = vld [vmem:[%s7 + $0x808] sm:$0xff]
        %v813 = vld [vmem:[%s7 + $0x810] sm:$0xff]
        %v814 = vld [vmem:[%s7 + $0x818] sm:$0xff]
        %v815 = vld [vmem:[%s7 + $0x820] sm:$0xff]
        %v816 = vld [vmem:[%s7 + $0x828] sm:$0xff]
        %v817 = vld [vmem:[%s7 + $0x830] sm:$0xff]
        %v818 = vld [vmem:[%s7 + $0x838] sm:$0xff]
        %v819 = vld [vmem:[%s7 + $0x840] sm:$0xff]
        %v820 = vld [vmem:[%s7 + $0x848] sm:$0xff]
        %v821 = vld [vmem:[%s7 + $0x850] sm:$0xff]
        %v822 = vld [vmem:[%s7 + $0x858] sm:$0xff]
        %v823 = vld [vmem:[%s7 + $0x860] sm:$0xff]
        %v824 = vld [vmem:[%s7 + $0x868] sm:$0xff]
        %v825 = vld [vmem:[%s7 + $0x870] sm:$0xff]
        %v826 = vld [vmem:[%s7 + $0x878] sm:$0xff]
        %v827 = vld [vmem:[%s7 + $0x880] sm:$0xff]
        %v828 = vld [vmem:[%s7 + $0x888] sm:$0xff]
        %v829 = vld [vmem:[%s7 + $0x890] sm:$0xff]
        %v830 = vld [vmem:[%s7 + $0x898] sm:$0xff]
        %v831 = vld [vmem:[%s7 + $0x8a0] sm:$0xff]
        %v832 = vld [vmem:[%s7 + $0x8a8] sm:$0xff]
        %v833 = vld [vmem:[%s7 + $0x8b0] sm:$0xff]
        %v834 = vld [vmem:[%s7 + $0x8b8] sm:$0xff]
        %v835 = vld [vmem:[%s7 + $0x8c0] sm:$0xff]
        %v836 = vld [vmem:[%s7 + $0x8c8] sm:$0xff]
        %v837 = vld [vmem:[%s7 + $0x8d0] sm:$0xff]
        %v838 = vld [vmem:[%s7 + $0x8d8] sm:$0xff]
        %v839 = vld [vmem:[%s7 + $0x8e0] sm:$0xff]
        %v840 = vld [vmem:[%s7 + $0x8e8] sm:$0xff]
        %v841 = vld [vmem:[%s7 + $0x8f0] sm:$0xff]
        %v842 = vld [vmem:[%s7 + $0x8f8] sm:$0xff]
        %v843 = vld [vmem:[%s7 + $0x900] sm:$0xff]
        %v844 = vld [vmem:[%s7 + $0x908] sm:$0xff]
        %v845 = vld [vmem:[%s7 + $0x910] sm:$0xff]
        %v846 = vld [vmem:[%s7 + $0x918] sm:$0xff]
        %v847 = vld [vmem:[%s7 + $0x920] sm:$0xff]
        %v848 = vld [vmem:[%s7 + $0x928] sm:$0xff]
        %v849 = vld [vmem:[%s7 + $0x930] sm:$0xff]
        %v850 = vld [vmem:[%s7 + $0x938] sm:$0xff]
        %v851 = vld [vmem:[%s7 + $0x940] sm:$0xff]
        %v852 = vld [vmem:[%s7 + $0x948] sm:$0xff]
        %v853 = vld [vmem:[%s7 + $0x950] sm:$0xff]
        %v854 = vld [vmem:[%s7 + $0x958] sm:$0xff]
        %v855 = vld [vmem:[%s7 + $0x960] sm:$0xff]
        %v856 = vld [vmem:[%s7 + $0x968] sm:$0xff]
        %v857 = vld [vmem:[%s7 + $0x970] sm:$0xff]
        %v858 = vld [vmem:[%s7 + $0x978] sm:$0xff]
        %v859 = vld [vmem:[%s7 + $0x980] sm:$0xff]
        %v860 = vld [vmem:[%s7 + $0x988] sm:$0xff]
        %v861 = vld [vmem:[%s7 + $0x990] sm:$0xff]
        %v862 = vld [vmem:[%s7 + $0x998] sm:$0xff]
        %v863 = vld [vmem:[%s7 + $0x9a0] sm:$0xff]
        %v864 = vld [vmem:[%s7 + $0x9a8] sm:$0xff]
        %v865 = vld [vmem:[%s7 + $0x9b0] sm:$0xff]
        %v866 = vld [vmem:[%s7 + $0x9b8] sm:$0xff]
        %v867 = vld [vmem:[%s7 + $0x9c0] sm:$0xff]
        %v868 = vld [vmem:[%s7 + $0x9c8] sm:$0xff]
        %v869 = vld [vmem:[%s7 + $0x9d0] sm:$0xff]
        %v870 = vld [vmem:[%s7 + $0x9d8] sm:$0xff]
        %v871 = vld [vmem:[%s7 + $0x9e0] sm:$0xff]
        %v872 = vld [vmem:[%s7 + $0x9e8] sm:$0xff]
        %v873 = vld [vmem:[%s7 + $0x9f0] sm:$0xff]
        %v874 = vld [vmem:[%s7 + $0x9f8] sm:$0xff]
        %v875 = vld [vmem:[%s7 + $0xa00] sm:$0xff]
        %v876 = vld [vmem:[%s7 + $0xa08] sm:$0xff]
        %v877 = vld [vmem:[%s7 + $0xa10] sm:$0xff]
        %v878 = vld [vmem:[%s7 + $0xa18] sm:$0xff]
        %v879 = vld [vmem:[%s7 + $0xa20] sm:$0xff]
        %v880 = vld [vmem:[%s7 + $0xa28] sm:$0xff]
        %v881 = vld [vmem:[%s7 + $0xa30] sm:$0xff]
        %v882 = vld [vmem:[%s7 + $0xa38] sm:$0xff]
        %v883 = vld [vmem:[%s7 + $0xa40] sm:$0xff]
        %v884 = vld [vmem:[%s7 + $0xa48] sm:$0xff]
        %v885 = vld [vmem:[%s7 + $0xa50] sm:$0xff]
        %v886 = vld [vmem:[%s7 + $0xa58] sm:$0xff]
        %v887 = vld [vmem:[%s7 + $0xa60] sm:$0xff]
        %v888 = vld [vmem:[%s7 + $0xa68] sm:$0xff]
        %v889 = vld [vmem:[%s7 + $0xa70] sm:$0xff]
        %v890 = vld [vmem:[%s7 + $0xa78] sm:$0xff]
        %v891 = vld [vmem:[%s7 + $0xa80] sm:$0xff]
        %v892 = vld [vmem:[%s7 + $0xa88] sm:$0xff]
        %v893 = vld [vmem:[%s7 + $0xa90] sm:$0xff]
        %v894 = vld [vmem:[%s7 + $0xa98] sm:$0xff]
        %v895 = vld [vmem:[%s7 + $0xaa0] sm:$0xff]
        %v896 = vld [vmem:[%s7 + $0xaa8] sm:$0xff]
        %v897 = vld [vmem:[%s7 + $0xab0] sm:$0xff]
        %v898 = vld [vmem:[%s7 + $0xab8] sm:$0xff]
        %v899 = vld [vmem:[%s7 + $0xac0] sm:$0xff]
        %v900 = vld [vmem:[%s7 + $0xac8] sm:$0xff]
        %v901 = vld [vmem:[%s7 + $0xad0] sm:$0xff]
        %v902 = vld [vmem:[%s7 + $0xad8] sm:$0xff]
        %v903 = vld [vmem:[%s7 + $0xae0] sm:$0xff]
        %v904 = vld [vmem:[%s7 + $0xae8] sm:$0xff]
        %v905 = vld [vmem:[%s7 + $0xaf0] sm:$0xff]
        %v906 = vld [vmem:[%s7 + $0xaf8] sm:$0xff]
        %v907 = vld [vmem:[%s7 + $0xb00] sm:$0xff]
        %v908 = vld [vmem:[%s7 + $0xb08] sm:$0xff]
        %v909 = vld [vmem:[%s7 + $0xb10] sm:$0xff]
        %v910 = vld [vmem:[%s7 + $0xb18] sm:$0xff]
        %v911 = vld [vmem:[%s7 + $0xb20] sm:$0xff]
        %v912 = vld [vmem:[%s7 + $0xb28] sm:$0xff]
        %v913 = vld [vmem:[%s7 + $0xb30] sm:$0xff]
        %v914 = vld [vmem:[%s7 + $0xb38] sm:$0xff]
        %v915 = vld [vmem:[%s7 + $0xb40] sm:$0xff]
        %v916 = vld [vmem:[%s7 + $0xb48] sm:$0xff]
        %v917 = vld [vmem:[%s7 + $0xb50] sm:$0xff]
        %v918 = vld [vmem:[%s7 + $0xb58] sm:$0xff]
        %v919 = vld [vmem:[%s7 + $0xb60] sm:$0xff]
        %v920 = vld [vmem:[%s7 + $0xb68] sm:$0xff]
        %v921 = vld [vmem:[%s7 + $0xb70] sm:$0xff]
        %v922 = vld [vmem:[%s7 + $0xb78] sm:$0xff]
        %v923 = vld [vmem:[%s7 + $0xb80] sm:$0xff]
        %v924 = vld [vmem:[%s7 + $0xb88] sm:$0xff]
        %v925 = vld [vmem:[%s7 + $0xb90] sm:$0xff]
        %v926 = vld [vmem:[%s7 + $0xb98] sm:$0xff]
        %v927 = vld [vmem:[%s7 + $0xba0] sm:$0xff]
        %v928 = vld [vmem:[%s7 + $0xba8] sm:$0xff]
        %v929 = vld [vmem:[%s7 + $0xbb0] sm:$0xff]
        %v930 = vld [vmem:[%s7 + $0xbb8] sm:$0xff]
        %v931 = vld [vmem:[%s7 + $0xbc0] sm:$0xff]
        %v932 = vld [vmem:[%s7 + $0xbc8] sm:$0xff]
        %v933 = vld [vmem:[%s7 + $0xbd0] sm:$0xff]
        %v934 = vld [vmem:[%s7 + $0xbd8] sm:$0xff]
        %v935 = vld [vmem:[%s7 + $0xbe0] sm:$0xff]
        %v936 = vld [vmem:[%s7 + $0xbe8] sm:$0xff]
        %v937 = vld [vmem:[%s7 + $0xbf0] sm:$0xff]
        %v938 = vld [vmem:[%s7 + $0xbf8] sm:$0xff]
        %v939 = vld [vmem:[%s7 + $0xc00] sm:$0xff]
        %v940 = vld [vmem:[%s7 + $0xc08] sm:$0xff]
        %v941 = vld [vmem:[%s7 + $0xc10] sm:$0xff]
        %v942 = vld [vmem:[%s7 + $0xc18] sm:$0xff]
        %v943 = vld [vmem:[%s7 + $0xc20] sm:$0xff]
        %v944 = vld [vmem:[%s7 + $0xc28] sm:$0xff]
        %v945 = vld [vmem:[%s7 + $0xc30] sm:$0xff]
        %v946 = vld [vmem:[%s7 + $0xc38] sm:$0xff]
        %v947 = vld [vmem:[%s8] sm:$0x1]
        %v948 = vld [vmem:[%s9] sm:$0xff]
        %v949 = vld [vmem:[%s9 + $0x8] sm:$0xff]
        %v950 = vld [vmem:[%s9 + $0x10] sm:$0xff]
        %v951 = vld [vmem:[%s9 + $0x18] sm:$0xff]
        %v952 = vld [vmem:[%s9 + $0x20] sm:$0xff]
        %v953 = vld [vmem:[%s9 + $0x28] sm:$0xff]
        %v954 = vld [vmem:[%s9 + $0x30] sm:$0xff]
        %v955 = vld [vmem:[%s9 + $0x38] sm:$0xff]
        %v956 = vld [vmem:[%s10] sm:$0x1]
        %v957 = vld [vmem:[%s383] sm:$0xff]
        %v958 = vld [vmem:[%s383 + $0x8] sm:$0x3]
        %v959 = vld [vmem:[%s383 + $0x10] sm:$0xff]
        %v960 = vld [vmem:[%s383 + $0x18] sm:$0x3]
        %v961 = vld [vmem:[%s383 + $0x20] sm:$0xff]
        %v962 = vld [vmem:[%s383 + $0x28] sm:$0x3]
        %v963 = vld [vmem:[%s383 + $0x30] sm:$0xff]
        %v964 = vld [vmem:[%s383 + $0x38] sm:$0x3]
        %v965 = vld [vmem:[%s383 + $0x40] sm:$0xff]
        %v966 = vld [vmem:[%s383 + $0x48] sm:$0x3]
        %v967 = vld [vmem:[%s383 + $0x50] sm:$0xff]
        %v968 = vld [vmem:[%s383 + $0x58] sm:$0x3]
        %v969 = vld [vmem:[%s383 + $0x60] sm:$0xff]
        %v970 = vld [vmem:[%s383 + $0x68] sm:$0x3]
        %v971 = vld [vmem:[%s383 + $0x70] sm:$0xff]
        %v972 = vld [vmem:[%s383 + $0x78] sm:$0x3]
        %v973 = vld [vmem:[%s383 + $0x80] sm:$0xff]
        %v974 = vld [vmem:[%s383 + $0x88] sm:$0x3]
        %v975 = vld [vmem:[%s383 + $0x90] sm:$0xff]
        %v976 = vld [vmem:[%s383 + $0x98] sm:$0x3]
        %v977 = vld [vmem:[%s383 + $0x1] sm:$0xff]
        %v978 = vld [vmem:[%s383 + $0x9] sm:$0x3]
        %v979 = vld [vmem:[%s383 + $0x11] sm:$0xff]
        %v980 = vld [vmem:[%s383 + $0x19] sm:$0x3]
        %v981 = vld [vmem:[%s383 + $0x21] sm:$0xff]
        %v982 = vld [vmem:[%s383 + $0x29] sm:$0x3]
        %v983 = vld [vmem:[%s383 + $0x31] sm:$0xff]
        %v984 = vld [vmem:[%s383 + $0x39] sm:$0x3]
        %v985 = vld [vmem:[%s383 + $0x41] sm:$0xff]
        %v986 = vld [vmem:[%s383 + $0x49] sm:$0x3]
        %v987 = vld [vmem:[%s383 + $0x51] sm:$0xff]
        %v988 = vld [vmem:[%s383 + $0x59] sm:$0x3]
        %v989 = vld [vmem:[%s383 + $0x61] sm:$0xff]
        %v990 = vld [vmem:[%s383 + $0x69] sm:$0x3]
        %v991 = vld [vmem:[%s383 + $0x71] sm:$0xff]
        %v992 = vld [vmem:[%s383 + $0x79] sm:$0x3]
        %v993 = vld [vmem:[%s383 + $0x81] sm:$0xff]
        %v994 = vld [vmem:[%s383 + $0x89] sm:$0x3]
        %v995 = vld [vmem:[%s383 + $0x91] sm:$0xff]
        %v996 = vld [vmem:[%s383 + $0x99] sm:$0x3]
        %s997 = scalar_lea.vmem %s383, 16
        %v998 = vld [vmem:[%s997] sm:$0xff]
        %v999 = vld [vmem:[%s997 + $0x8] sm:$0x3]
        %v1000 = vld [vmem:[%s997 + $0x10] sm:$0xff]
        %v1001 = vld [vmem:[%s997 + $0x18] sm:$0x3]
        %v1002 = vld [vmem:[%s997 + $0x20] sm:$0xff]
        %v1003 = vld [vmem:[%s997 + $0x28] sm:$0x3]
        %v1004 = vld [vmem:[%s997 + $0x30] sm:$0xff]
        %v1005 = vld [vmem:[%s997 + $0x38] sm:$0x3]
        %v1006 = vld [vmem:[%s997 + $0x40] sm:$0xff]
        %v1007 = vld [vmem:[%s997 + $0x48] sm:$0x3]
        %v1008 = vld [vmem:[%s997 + $0x50] sm:$0xff]
        %v1009 = vld [vmem:[%s997 + $0x58] sm:$0x3]
        %v1010 = vld [vmem:[%s997 + $0x60] sm:$0xff]
        %v1011 = vld [vmem:[%s997 + $0x68] sm:$0x3]
        %v1012 = vld [vmem:[%s997 + $0x70] sm:$0xff]
        %v1013 = vld [vmem:[%s997 + $0x78] sm:$0x3]
        %v1014 = vld [vmem:[%s997 + $0x80] sm:$0xff]
        %v1015 = vld [vmem:[%s997 + $0x88] sm:$0x3]
        %v1016 = vld [vmem:[%s997 + $0x90] sm:$0xff]
        %v1017 = vld [vmem:[%s997 + $0x98] sm:$0x3]
        %v1018 = vld [vmem:[%s997 + $0x1] sm:$0xff]
        %v1019 = vld [vmem:[%s997 + $0x9] sm:$0x3]
        %v1020 = vld [vmem:[%s997 + $0x11] sm:$0xff]
        %v1021 = vld [vmem:[%s997 + $0x19] sm:$0x3]
        %v1022 = vld [vmem:[%s997 + $0x21] sm:$0xff]
        %v1023 = vld [vmem:[%s997 + $0x29] sm:$0x3]
        %v1024 = vld [vmem:[%s997 + $0x31] sm:$0xff]
        %v1025 = vld [vmem:[%s997 + $0x39] sm:$0x3]
        %v1026 = vld [vmem:[%s997 + $0x41] sm:$0xff]
        %v1027 = vld [vmem:[%s997 + $0x49] sm:$0x3]
        %v1028 = vld [vmem:[%s997 + $0x51] sm:$0xff]
        %v1029 = vld [vmem:[%s997 + $0x59] sm:$0x3]
        %v1030 = vld [vmem:[%s997 + $0x61] sm:$0xff]
        %v1031 = vld [vmem:[%s997 + $0x69] sm:$0x3]
        %v1032 = vld [vmem:[%s997 + $0x71] sm:$0xff]
        %v1033 = vld [vmem:[%s997 + $0x79] sm:$0x3]
        %v1034 = vld [vmem:[%s997 + $0x81] sm:$0xff]
        %v1035 = vld [vmem:[%s997 + $0x89] sm:$0x3]
        %v1036 = vld [vmem:[%s997 + $0x91] sm:$0xff]
        %v1037 = vld [vmem:[%s997 + $0x99] sm:$0x3]
        %1058 = vrot.lane.b32.xlu0 %v977, 64
        %v1059 = vpop.permute.xlu0 %1058
        %1060 = vrot.lane.b32.xlu0 %v978, 64
        %v1061 = vpop.permute.xlu0 %1060
        %1062 = vrot.lane.b32.xlu0 %v979, 64
        %v1063 = vpop.permute.xlu0 %1062
        %1064 = vrot.lane.b32.xlu0 %v980, 64
        %v1065 = vpop.permute.xlu0 %1064
        %1066 = vrot.lane.b32.xlu0 %v981, 64
        %v1067 = vpop.permute.xlu0 %1066
        %1068 = vrot.lane.b32.xlu0 %v982, 64
        %v1069 = vpop.permute.xlu0 %1068
        %1070 = vrot.lane.b32.xlu0 %v983, 64
        %v1071 = vpop.permute.xlu0 %1070
        %1072 = vrot.lane.b32.xlu0 %v984, 64
        %v1073 = vpop.permute.xlu0 %1072
        %1074 = vrot.lane.b32.xlu0 %v985, 64
        %v1075 = vpop.permute.xlu0 %1074
        %1076 = vrot.lane.b32.xlu0 %v986, 64
        %v1077 = vpop.permute.xlu0 %1076
        %1078 = vrot.lane.b32.xlu0 %v987, 64
        %v1079 = vpop.permute.xlu0 %1078
        %1080 = vrot.lane.b32.xlu0 %v988, 64
        %v1081 = vpop.permute.xlu0 %1080
        %1082 = vrot.lane.b32.xlu0 %v989, 64
        %v1083 = vpop.permute.xlu0 %1082
        %1084 = vrot.lane.b32.xlu0 %v990, 64
        %v1085 = vpop.permute.xlu0 %1084
        %1086 = vrot.lane.b32.xlu0 %v991, 64
        %v1087 = vpop.permute.xlu0 %1086
        %1088 = vrot.lane.b32.xlu0 %v992, 64
        %v1089 = vpop.permute.xlu0 %1088
        %1090 = vrot.lane.b32.xlu0 %v993, 64
        %v1091 = vpop.permute.xlu0 %1090
        %1092 = vrot.lane.b32.xlu0 %v994, 64
        %v1093 = vpop.permute.xlu0 %1092
        %1094 = vrot.lane.b32.xlu0 %v995, 64
        %v1095 = vpop.permute.xlu0 %1094
        %1096 = vrot.lane.b32.xlu0 %v996, 64
        %v1097 = vpop.permute.xlu0 %1096
        %1138 = vrot.lane.b32.xlu0 %v1018, 64
        %v1139 = vpop.permute.xlu0 %1138
        %1140 = vrot.lane.b32.xlu0 %v1019, 64
        %v1141 = vpop.permute.xlu0 %1140
        %1142 = vrot.lane.b32.xlu0 %v1020, 64
        %v1143 = vpop.permute.xlu0 %1142
        %1144 = vrot.lane.b32.xlu0 %v1021, 64
        %v1145 = vpop.permute.xlu0 %1144
        %1146 = vrot.lane.b32.xlu0 %v1022, 64
        %v1147 = vpop.permute.xlu0 %1146
        %1148 = vrot.lane.b32.xlu0 %v1023, 64
        %v1149 = vpop.permute.xlu0 %1148
        %1150 = vrot.lane.b32.xlu0 %v1024, 64
        %v1151 = vpop.permute.xlu0 %1150
        %1152 = vrot.lane.b32.xlu0 %v1025, 64
        %v1153 = vpop.permute.xlu0 %1152
        %1154 = vrot.lane.b32.xlu0 %v1026, 64
        %v1155 = vpop.permute.xlu0 %1154
        %1156 = vrot.lane.b32.xlu0 %v1027, 64
        %v1157 = vpop.permute.xlu0 %1156
        %1158 = vrot.lane.b32.xlu0 %v1028, 64
        %v1159 = vpop.permute.xlu0 %1158
        %1160 = vrot.lane.b32.xlu0 %v1029, 64
        %v1161 = vpop.permute.xlu0 %1160
        %1162 = vrot.lane.b32.xlu0 %v1030, 64
        %v1163 = vpop.permute.xlu0 %1162
        %1164 = vrot.lane.b32.xlu0 %v1031, 64
        %v1165 = vpop.permute.xlu0 %1164
        %1166 = vrot.lane.b32.xlu0 %v1032, 64
        %v1167 = vpop.permute.xlu0 %1166
        %1168 = vrot.lane.b32.xlu0 %v1033, 64
        %v1169 = vpop.permute.xlu0 %1168
        %1170 = vrot.lane.b32.xlu0 %v1034, 64
        %v1171 = vpop.permute.xlu0 %1170
        %1172 = vrot.lane.b32.xlu0 %v1035, 64
        %v1173 = vpop.permute.xlu0 %1172
        %1174 = vrot.lane.b32.xlu0 %v1036, 64
        %v1175 = vpop.permute.xlu0 %1174
        %1176 = vrot.lane.b32.xlu0 %v1037, 64
        %v1177 = vpop.permute.xlu0 %1176
        %vm1198 = vcmask 523264
        %v1199 = vsel %vm1198, %v957, %v1059
        %v1200 = vsel %vm1198, %v958, %v1061
        %v1201 = vsel %vm1198, %v959, %v1063
        %v1202 = vsel %vm1198, %v960, %v1065
        %v1203 = vsel %vm1198, %v961, %v1067
        %v1204 = vsel %vm1198, %v962, %v1069
        %v1205 = vsel %vm1198, %v963, %v1071
        %v1206 = vsel %vm1198, %v964, %v1073
        %v1207 = vsel %vm1198, %v965, %v1075
        %v1208 = vsel %vm1198, %v966, %v1077
        %v1209 = vsel %vm1198, %v967, %v1079
        %v1210 = vsel %vm1198, %v968, %v1081
        %v1211 = vsel %vm1198, %v969, %v1083
        %v1212 = vsel %vm1198, %v970, %v1085
        %v1213 = vsel %vm1198, %v971, %v1087
        %v1214 = vsel %vm1198, %v972, %v1089
        %v1215 = vsel %vm1198, %v973, %v1091
        %v1216 = vsel %vm1198, %v974, %v1093
        %v1217 = vsel %vm1198, %v975, %v1095
        %v1218 = vsel %vm1198, %v976, %v1097
        %v1219 = vsel %vm1198, %v998, %v1139
        %v1220 = vsel %vm1198, %v999, %v1141
        %v1221 = vsel %vm1198, %v1000, %v1143
        %v1222 = vsel %vm1198, %v1001, %v1145
        %v1223 = vsel %vm1198, %v1002, %v1147
        %v1224 = vsel %vm1198, %v1003, %v1149
        %v1225 = vsel %vm1198, %v1004, %v1151
        %v1226 = vsel %vm1198, %v1005, %v1153
        %v1227 = vsel %vm1198, %v1006, %v1155
        %v1228 = vsel %vm1198, %v1007, %v1157
        %v1229 = vsel %vm1198, %v1008, %v1159
        %v1230 = vsel %vm1198, %v1009, %v1161
        %v1231 = vsel %vm1198, %v1010, %v1163
        %v1232 = vsel %vm1198, %v1011, %v1165
        %v1233 = vsel %vm1198, %v1012, %v1167
        %v1234 = vsel %vm1198, %v1013, %v1169
        %v1235 = vsel %vm1198, %v1014, %v1171
        %v1236 = vsel %vm1198, %v1015, %v1173
        %v1237 = vsel %vm1198, %v1016, %v1175
        %v1238 = vsel %vm1198, %v1017, %v1177
        %v1279 = vcombine.low %v1199, %v1219
        %v1280 = vcombine.high %v1199, %v1219
        %v1282 = vunpack.c.l.s4 1983009808
        %v1283 = vunpack.c.0.s8 %v1282
        %v1284 = vlaneseq
        %v1285 = vshrl.u32 %v1284, 7
        %v1286 = vsub.s32 %v1283, %v1285
        %v1287 = vrot.slane %v1279, %v1286
        %v1289 = vunpack.c.l.s4 1983009808
        %v1290 = vunpack.c.0.s8 %v1289
        %v1291 = vlaneseq
        %v1292 = vshrl.u32 %v1291, 7
        %v1293 = vsub.s32 %v1290, %v1292
        %v1294 = vrot.slane %v1280, %v1293
        %v1295 = vcombine.high %v1287, %v1287
        %v1296 = vcombine.high %v1294, %v1294
        %v1297 = vcombine.low %v1200, %v1220
        %v1299 = vunpack.c.l.s4 1983009808
        %v1300 = vunpack.c.0.s8 %v1299
        %v1301 = vlaneseq
        %v1302 = vshrl.u32 %v1301, 7
        %v1303 = vsub.s32 %v1300, %v1302
        %v1304 = vrot.slane %v1297, %v1303
        %v1305 = vcombine.low %v1201, %v1221
        %v1306 = vcombine.high %v1201, %v1221
        %v1308 = vunpack.c.l.s4 1983009808
        %v1309 = vunpack.c.0.s8 %v1308
        %v1310 = vlaneseq
        %v1311 = vshrl.u32 %v1310, 7
        %v1312 = vsub.s32 %v1309, %v1311
        %v1313 = vrot.slane %v1305, %v1312
        %v1315 = vunpack.c.l.s4 1983009808
        %v1316 = vunpack.c.0.s8 %v1315
        %v1317 = vlaneseq
        %v1318 = vshrl.u32 %v1317, 7
        %v1319 = vsub.s32 %v1316, %v1318
        %v1320 = vrot.slane %v1306, %v1319
        %v1321 = vcombine.high %v1313, %v1313
        %v1322 = vcombine.high %v1320, %v1320
        %v1323 = vcombine.low %v1202, %v1222
        %v1325 = vunpack.c.l.s4 1983009808
        %v1326 = vunpack.c.0.s8 %v1325
        %v1327 = vlaneseq
        %v1328 = vshrl.u32 %v1327, 7
        %v1329 = vsub.s32 %v1326, %v1328
        %v1330 = vrot.slane %v1323, %v1329
        %v1331 = vcombine.low %v1203, %v1223
        %v1332 = vcombine.high %v1203, %v1223
        %v1334 = vunpack.c.l.s4 1983009808
        %v1335 = vunpack.c.0.s8 %v1334
        %v1336 = vlaneseq
        %v1337 = vshrl.u32 %v1336, 7
        %v1338 = vsub.s32 %v1335, %v1337
        %v1339 = vrot.slane %v1331, %v1338
        %v1341 = vunpack.c.l.s4 1983009808
        %v1342 = vunpack.c.0.s8 %v1341
        %v1343 = vlaneseq
        %v1344 = vshrl.u32 %v1343, 7
        %v1345 = vsub.s32 %v1342, %v1344
        %v1346 = vrot.slane %v1332, %v1345
        %v1347 = vcombine.high %v1339, %v1339
        %v1348 = vcombine.high %v1346, %v1346
        %v1349 = vcombine.low %v1204, %v1224
        %v1351 = vunpack.c.l.s4 1983009808
        %v1352 = vunpack.c.0.s8 %v1351
        %v1353 = vlaneseq
        %v1354 = vshrl.u32 %v1353, 7
        %v1355 = vsub.s32 %v1352, %v1354
        %v1356 = vrot.slane %v1349, %v1355
        %v1357 = vcombine.low %v1205, %v1225
        %v1358 = vcombine.high %v1205, %v1225
        %v1360 = vunpack.c.l.s4 1983009808
        %v1361 = vunpack.c.0.s8 %v1360
        %v1362 = vlaneseq
        %v1363 = vshrl.u32 %v1362, 7
        %v1364 = vsub.s32 %v1361, %v1363
        %v1365 = vrot.slane %v1357, %v1364
        %v1367 = vunpack.c.l.s4 1983009808
        %v1368 = vunpack.c.0.s8 %v1367
        %v1369 = vlaneseq
        %v1370 = vshrl.u32 %v1369, 7
        %v1371 = vsub.s32 %v1368, %v1370
        %v1372 = vrot.slane %v1358, %v1371
        %v1373 = vcombine.high %v1365, %v1365
        %v1374 = vcombine.high %v1372, %v1372
        %v1375 = vcombine.low %v1206, %v1226
        %v1377 = vunpack.c.l.s4 1983009808
        %v1378 = vunpack.c.0.s8 %v1377
        %v1379 = vlaneseq
        %v1380 = vshrl.u32 %v1379, 7
        %v1381 = vsub.s32 %v1378, %v1380
        %v1382 = vrot.slane %v1375, %v1381
        %v1383 = vcombine.low %v1207, %v1227
        %v1384 = vcombine.high %v1207, %v1227
        %v1386 = vunpack.c.l.s4 1983009808
        %v1387 = vunpack.c.0.s8 %v1386
        %v1388 = vlaneseq
        %v1389 = vshrl.u32 %v1388, 7
        %v1390 = vsub.s32 %v1387, %v1389
        %v1391 = vrot.slane %v1383, %v1390
        %v1393 = vunpack.c.l.s4 1983009808
        %v1394 = vunpack.c.0.s8 %v1393
        %v1395 = vlaneseq
        %v1396 = vshrl.u32 %v1395, 7
        %v1397 = vsub.s32 %v1394, %v1396
        %v1398 = vrot.slane %v1384, %v1397
        %v1399 = vcombine.high %v1391, %v1391
        %v1400 = vcombine.high %v1398, %v1398
        %v1401 = vcombine.low %v1208, %v1228
        %v1403 = vunpack.c.l.s4 1983009808
        %v1404 = vunpack.c.0.s8 %v1403
        %v1405 = vlaneseq
        %v1406 = vshrl.u32 %v1405, 7
        %v1407 = vsub.s32 %v1404, %v1406
        %v1408 = vrot.slane %v1401, %v1407
        %v1409 = vcombine.low %v1209, %v1229
        %v1410 = vcombine.high %v1209, %v1229
        %v1412 = vunpack.c.l.s4 1983009808
        %v1413 = vunpack.c.0.s8 %v1412
        %v1414 = vlaneseq
        %v1415 = vshrl.u32 %v1414, 7
        %v1416 = vsub.s32 %v1413, %v1415
        %v1417 = vrot.slane %v1409, %v1416
        %v1419 = vunpack.c.l.s4 1983009808
        %v1420 = vunpack.c.0.s8 %v1419
        %v1421 = vlaneseq
        %v1422 = vshrl.u32 %v1421, 7
        %v1423 = vsub.s32 %v1420, %v1422
        %v1424 = vrot.slane %v1410, %v1423
        %v1425 = vcombine.high %v1417, %v1417
        %v1426 = vcombine.high %v1424, %v1424
        %v1427 = vcombine.low %v1210, %v1230
        %v1429 = vunpack.c.l.s4 1983009808
        %v1430 = vunpack.c.0.s8 %v1429
        %v1431 = vlaneseq
        %v1432 = vshrl.u32 %v1431, 7
        %v1433 = vsub.s32 %v1430, %v1432
        %v1434 = vrot.slane %v1427, %v1433
        %v1435 = vcombine.low %v1211, %v1231
        %v1436 = vcombine.high %v1211, %v1231
        %v1438 = vunpack.c.l.s4 1983009808
        %v1439 = vunpack.c.0.s8 %v1438
        %v1440 = vlaneseq
        %v1441 = vshrl.u32 %v1440, 7
        %v1442 = vsub.s32 %v1439, %v1441
        %v1443 = vrot.slane %v1435, %v1442
        %v1445 = vunpack.c.l.s4 1983009808
        %v1446 = vunpack.c.0.s8 %v1445
        %v1447 = vlaneseq
        %v1448 = vshrl.u32 %v1447, 7
        %v1449 = vsub.s32 %v1446, %v1448
        %v1450 = vrot.slane %v1436, %v1449
        %v1451 = vcombine.high %v1443, %v1443
        %v1452 = vcombine.high %v1450, %v1450
        %v1453 = vcombine.low %v1212, %v1232
        %v1455 = vunpack.c.l.s4 1983009808
        %v1456 = vunpack.c.0.s8 %v1455
        %v1457 = vlaneseq
        %v1458 = vshrl.u32 %v1457, 7
        %v1459 = vsub.s32 %v1456, %v1458
        %v1460 = vrot.slane %v1453, %v1459
        %v1461 = vcombine.low %v1213, %v1233
        %v1462 = vcombine.high %v1213, %v1233
        %v1464 = vunpack.c.l.s4 1983009808
        %v1465 = vunpack.c.0.s8 %v1464
        %v1466 = vlaneseq
        %v1467 = vshrl.u32 %v1466, 7
        %v1468 = vsub.s32 %v1465, %v1467
        %v1469 = vrot.slane %v1461, %v1468
        %v1471 = vunpack.c.l.s4 1983009808
        %v1472 = vunpack.c.0.s8 %v1471
        %v1473 = vlaneseq
        %v1474 = vshrl.u32 %v1473, 7
        %v1475 = vsub.s32 %v1472, %v1474
        %v1476 = vrot.slane %v1462, %v1475
        %v1477 = vcombine.high %v1469, %v1469
        %v1478 = vcombine.high %v1476, %v1476
        %v1479 = vcombine.low %v1214, %v1234
        %v1481 = vunpack.c.l.s4 1983009808
        %v1482 = vunpack.c.0.s8 %v1481
        %v1483 = vlaneseq
        %v1484 = vshrl.u32 %v1483, 7
        %v1485 = vsub.s32 %v1482, %v1484
        %v1486 = vrot.slane %v1479, %v1485
        %v1487 = vcombine.low %v1215, %v1235
        %v1488 = vcombine.high %v1215, %v1235
        %v1490 = vunpack.c.l.s4 1983009808
        %v1491 = vunpack.c.0.s8 %v1490
        %v1492 = vlaneseq
        %v1493 = vshrl.u32 %v1492, 7
        %v1494 = vsub.s32 %v1491, %v1493
        %v1495 = vrot.slane %v1487, %v1494
        %v1497 = vunpack.c.l.s4 1983009808
        %v1498 = vunpack.c.0.s8 %v1497
        %v1499 = vlaneseq
        %v1500 = vshrl.u32 %v1499, 7
        %v1501 = vsub.s32 %v1498, %v1500
        %v1502 = vrot.slane %v1488, %v1501
        %v1503 = vcombine.high %v1495, %v1495
        %v1504 = vcombine.high %v1502, %v1502
        %v1505 = vcombine.low %v1216, %v1236
        %v1507 = vunpack.c.l.s4 1983009808
        %v1508 = vunpack.c.0.s8 %v1507
        %v1509 = vlaneseq
        %v1510 = vshrl.u32 %v1509, 7
        %v1511 = vsub.s32 %v1508, %v1510
        %v1512 = vrot.slane %v1505, %v1511
        %v1513 = vcombine.low %v1217, %v1237
        %v1514 = vcombine.high %v1217, %v1237
        %v1516 = vunpack.c.l.s4 1983009808
        %v1517 = vunpack.c.0.s8 %v1516
        %v1518 = vlaneseq
        %v1519 = vshrl.u32 %v1518, 7
        %v1520 = vsub.s32 %v1517, %v1519
        %v1521 = vrot.slane %v1513, %v1520
        %v1523 = vunpack.c.l.s4 1983009808
        %v1524 = vunpack.c.0.s8 %v1523
        %v1525 = vlaneseq
        %v1526 = vshrl.u32 %v1525, 7
        %v1527 = vsub.s32 %v1524, %v1526
        %v1528 = vrot.slane %v1514, %v1527
        %v1529 = vcombine.high %v1521, %v1521
        %v1530 = vcombine.high %v1528, %v1528
        %v1531 = vcombine.low %v1218, %v1238
        %v1533 = vunpack.c.l.s4 1983009808
        %v1534 = vunpack.c.0.s8 %v1533
        %v1535 = vlaneseq
        %v1536 = vshrl.u32 %v1535, 7
        %v1537 = vsub.s32 %v1534, %v1536
        %v1538 = vrot.slane %v1531, %v1537
        %v1540 = vlaneseq
        %v1541 = vshrl.u32 %v1540, 7
        %v1542 = vsub.s32 0, %v1541
        %v1543 = vrot.slane %v416, %v1542
        %v1545 = vcombine.low %v1287, %v1295
        %v1546 = vcombine.low %v1294, %v1296
        %v1548 = vunpack.c.l.s4 1983009808
        %v1549 = vunpack.c.0.s8 %v1548
        %v1550 = vlaneseq
        %v1551 = vshrl.u32 %v1550, 7
        %v1552 = vsub.s32 %v1549, %v1551
        %v1553 = vrot.slane %v1545, %v1552
        %v1555 = vunpack.c.l.s4 1983009808
        %v1556 = vunpack.c.0.s8 %v1555
        %v1557 = vlaneseq
        %v1558 = vshrl.u32 %v1557, 7
        %v1559 = vsub.s32 %v1556, %v1558
        %v1560 = vrot.slane %v1546, %v1559
        %v1561 = vcombine.low %v1553, %v1560
        %v1562 = vcombine.high %v1553, %v1560
        %v1563 = vcombine.low %v1304, %v1313
        %v1564 = vcombine.low %v1321, %v1320
        %v1566 = vunpack.c.l.s4 1983009808
        %v1567 = vunpack.c.0.s8 %v1566
        %v1568 = vlaneseq
        %v1569 = vshrl.u32 %v1568, 7
        %v1570 = vsub.s32 %v1567, %v1569
        %v1571 = vrot.slane %v1563, %v1570
        %v1573 = vunpack.c.l.s4 1983009808
        %v1574 = vunpack.c.0.s8 %v1573
        %v1575 = vlaneseq
        %v1576 = vshrl.u32 %v1575, 7
        %v1577 = vsub.s32 %v1574, %v1576
        %v1578 = vrot.slane %v1564, %v1577
        %v1579 = vcombine.low %v1571, %v1578
        %v1580 = vcombine.high %v1571, %v1578
        %v1581 = vcombine.low %v1322, %v1330
        %v1582 = vcombine.low %v1339, %v1347
        %v1584 = vunpack.c.l.s4 1983009808
        %v1585 = vunpack.c.0.s8 %v1584
        %v1586 = vlaneseq
        %v1587 = vshrl.u32 %v1586, 7
        %v1588 = vsub.s32 %v1585, %v1587
        %v1589 = vrot.slane %v1581, %v1588
        %v1591 = vunpack.c.l.s4 1983009808
        %v1592 = vunpack.c.0.s8 %v1591
        %v1593 = vlaneseq
        %v1594 = vshrl.u32 %v1593, 7
        %v1595 = vsub.s32 %v1592, %v1594
        %v1596 = vrot.slane %v1582, %v1595
        %v1597 = vcombine.low %v1589, %v1596
        %v1598 = vcombine.high %v1589, %v1596
        %v1599 = vcombine.low %v1346, %v1348
        %v1600 = vcombine.low %v1356, %v1365
        %v1602 = vunpack.c.l.s4 1983009808
        %v1603 = vunpack.c.0.s8 %v1602
        %v1604 = vlaneseq
        %v1605 = vshrl.u32 %v1604, 7
        %v1606 = vsub.s32 %v1603, %v1605
        %v1607 = vrot.slane %v1599, %v1606
        %v1609 = vunpack.c.l.s4 1983009808
        %v1610 = vunpack.c.0.s8 %v1609
        %v1611 = vlaneseq
        %v1612 = vshrl.u32 %v1611, 7
        %v1613 = vsub.s32 %v1610, %v1612
        %v1614 = vrot.slane %v1600, %v1613
        %v1615 = vcombine.low %v1607, %v1614
        %v1616 = vcombine.high %v1607, %v1614
        %v1617 = vcombine.low %v1373, %v1372
        %v1618 = vcombine.low %v1374, %v1382
        %v1620 = vunpack.c.l.s4 1983009808
        %v1621 = vunpack.c.0.s8 %v1620
        %v1622 = vlaneseq
        %v1623 = vshrl.u32 %v1622, 7
        %v1624 = vsub.s32 %v1621, %v1623
        %v1625 = vrot.slane %v1617, %v1624
        %v1627 = vunpack.c.l.s4 1983009808
        %v1628 = vunpack.c.0.s8 %v1627
        %v1629 = vlaneseq
        %v1630 = vshrl.u32 %v1629, 7
        %v1631 = vsub.s32 %v1628, %v1630
        %v1632 = vrot.slane %v1618, %v1631
        %v1633 = vcombine.low %v1625, %v1632
        %v1634 = vcombine.high %v1625, %v1632
        %v1635 = vcombine.low %v1391, %v1399
        %v1636 = vcombine.low %v1398, %v1400
        %v1638 = vunpack.c.l.s4 1983009808
        %v1639 = vunpack.c.0.s8 %v1638
        %v1640 = vlaneseq
        %v1641 = vshrl.u32 %v1640, 7
        %v1642 = vsub.s32 %v1639, %v1641
        %v1643 = vrot.slane %v1635, %v1642
        %v1645 = vunpack.c.l.s4 1983009808
        %v1646 = vunpack.c.0.s8 %v1645
        %v1647 = vlaneseq
        %v1648 = vshrl.u32 %v1647, 7
        %v1649 = vsub.s32 %v1646, %v1648
        %v1650 = vrot.slane %v1636, %v1649
        %v1651 = vcombine.low %v1643, %v1650
        %v1652 = vcombine.high %v1643, %v1650
        %v1653 = vcombine.low %v1408, %v1417
        %v1654 = vcombine.low %v1425, %v1424
        %v1656 = vunpack.c.l.s4 1983009808
        %v1657 = vunpack.c.0.s8 %v1656
        %v1658 = vlaneseq
        %v1659 = vshrl.u32 %v1658, 7
        %v1660 = vsub.s32 %v1657, %v1659
        %v1661 = vrot.slane %v1653, %v1660
        %v1663 = vunpack.c.l.s4 1983009808
        %v1664 = vunpack.c.0.s8 %v1663
        %v1665 = vlaneseq
        %v1666 = vshrl.u32 %v1665, 7
        %v1667 = vsub.s32 %v1664, %v1666
        %v1668 = vrot.slane %v1654, %v1667
        %v1669 = vcombine.low %v1661, %v1668
        %v1670 = vcombine.high %v1661, %v1668
        %v1671 = vcombine.low %v1426, %v1434
        %v1672 = vcombine.low %v1443, %v1451
        %v1674 = vunpack.c.l.s4 1983009808
        %v1675 = vunpack.c.0.s8 %v1674
        %v1676 = vlaneseq
        %v1677 = vshrl.u32 %v1676, 7
        %v1678 = vsub.s32 %v1675, %v1677
        %v1679 = vrot.slane %v1671, %v1678
        %v1681 = vunpack.c.l.s4 1983009808
        %v1682 = vunpack.c.0.s8 %v1681
        %v1683 = vlaneseq
        %v1684 = vshrl.u32 %v1683, 7
        %v1685 = vsub.s32 %v1682, %v1684
        %v1686 = vrot.slane %v1672, %v1685
        %v1687 = vcombine.low %v1679, %v1686
        %v1688 = vcombine.high %v1679, %v1686
        %v1689 = vcombine.low %v1450, %v1452
        %v1690 = vcombine.low %v1460, %v1469
        %v1692 = vunpack.c.l.s4 1983009808
        %v1693 = vunpack.c.0.s8 %v1692
        %v1694 = vlaneseq
        %v1695 = vshrl.u32 %v1694, 7
        %v1696 = vsub.s32 %v1693, %v1695
        %v1697 = vrot.slane %v1689, %v1696
        %v1699 = vunpack.c.l.s4 1983009808
        %v1700 = vunpack.c.0.s8 %v1699
        %v1701 = vlaneseq
        %v1702 = vshrl.u32 %v1701, 7
        %v1703 = vsub.s32 %v1700, %v1702
        %v1704 = vrot.slane %v1690, %v1703
        %v1705 = vcombine.low %v1697, %v1704
        %v1706 = vcombine.high %v1697, %v1704
        %v1707 = vcombine.low %v1477, %v1476
        %v1708 = vcombine.low %v1478, %v1486
        %v1710 = vunpack.c.l.s4 1983009808
        %v1711 = vunpack.c.0.s8 %v1710
        %v1712 = vlaneseq
        %v1713 = vshrl.u32 %v1712, 7
        %v1714 = vsub.s32 %v1711, %v1713
        %v1715 = vrot.slane %v1707, %v1714
        %v1717 = vunpack.c.l.s4 1983009808
        %v1718 = vunpack.c.0.s8 %v1717
        %v1719 = vlaneseq
        %v1720 = vshrl.u32 %v1719, 7
        %v1721 = vsub.s32 %v1718, %v1720
        %v1722 = vrot.slane %v1708, %v1721
        %v1723 = vcombine.low %v1715, %v1722
        %v1724 = vcombine.high %v1715, %v1722
        %v1725 = vcombine.low %v1495, %v1503
        %v1726 = vcombine.low %v1502, %v1504
        %v1728 = vunpack.c.l.s4 1983009808
        %v1729 = vunpack.c.0.s8 %v1728
        %v1730 = vlaneseq
        %v1731 = vshrl.u32 %v1730, 7
        %v1732 = vsub.s32 %v1729, %v1731
        %v1733 = vrot.slane %v1725, %v1732
        %v1735 = vunpack.c.l.s4 1983009808
        %v1736 = vunpack.c.0.s8 %v1735
        %v1737 = vlaneseq
        %v1738 = vshrl.u32 %v1737, 7
        %v1739 = vsub.s32 %v1736, %v1738
        %v1740 = vrot.slane %v1726, %v1739
        %v1741 = vcombine.low %v1733, %v1740
        %v1742 = vcombine.high %v1733, %v1740
        %v1743 = vcombine.low %v1512, %v1521
        %v1744 = vcombine.low %v1529, %v1528
        %v1746 = vunpack.c.l.s4 1983009808
        %v1747 = vunpack.c.0.s8 %v1746
        %v1748 = vlaneseq
        %v1749 = vshrl.u32 %v1748, 7
        %v1750 = vsub.s32 %v1747, %v1749
        %v1751 = vrot.slane %v1743, %v1750
        %v1753 = vunpack.c.l.s4 1983009808
        %v1754 = vunpack.c.0.s8 %v1753
        %v1755 = vlaneseq
        %v1756 = vshrl.u32 %v1755, 7
        %v1757 = vsub.s32 %v1754, %v1756
        %v1758 = vrot.slane %v1744, %v1757
        %v1759 = vcombine.low %v1751, %v1758
        %v1760 = vcombine.high %v1751, %v1758
        %v1761 = vcombine.low %v1530, %v1538
        %v1763 = vunpack.c.l.s4 1983009808
        %v1764 = vunpack.c.0.s8 %v1763
        %v1765 = vlaneseq
        %v1766 = vshrl.u32 %v1765, 7
        %v1767 = vsub.s32 %v1764, %v1766
        %v1768 = vrot.slane %v1761, %v1767
        %v1769 = vcombine.high %v1768, %v1768
        %1796 = vmatprep.subr.mxu0 0.0
        %1797 = vmatpush1.msra.mxu0 %v384
        %1798 = vmatprep.subr.mxu0 0.0
        %1799 = vmatpush1.msra.mxu0 %v385
        %1800 = vmatprep.subr.mxu0 0.0
        %1801 = vmatpush1.msra.mxu0 %v386
        %1802 = vmatprep.subr.mxu0 0.0
        %1803 = vmatpush1.msra.mxu0 %v387
        %1804 = vmatprep.subr.mxu0 0.0
        %1805 = vmatpush1.msra.mxu0 %v388
        %1806 = vmatprep.subr.mxu0 0.0
        %1807 = vmatpush1.msra.mxu0 %v389
        %1808 = vmatprep.subr.mxu0 0.0
        %1809 = vmatpush1.msra.mxu0 %v390
        %1810 = vmatprep.subr.mxu0 0.0
        %1811 = vmatpush1.msra.mxu0 %v391
        %1812 = vmatprep.subr.mxu0 0.0
        %1813 = vmatpush1.msra.mxu0 %v392
        %1814 = vmatprep.subr.mxu0 0.0
        %1815 = vmatpush1.msra.mxu0 %v393
        %1816 = vmatprep.subr.mxu0 0.0
        %1817 = vmatpush1.msra.mxu0 %v394
        %1818 = vmatprep.subr.mxu0 0.0
        %1819 = vmatpush1.msra.mxu0 %v395
        %1820 = vmatprep.subr.mxu0 0.0
        %1821 = vmatpush1.msra.mxu0 %v396
        %1822 = vmatprep.subr.mxu0 0.0
        %1823 = vmatpush1.msra.mxu0 %v397
        %1824 = vmatprep.subr.mxu0 0.0
        %1825 = vmatpush1.msra.mxu0 %v398
        %1826 = vmatprep.subr.mxu0 0.0
        %1827 = vmatpush1.msra.mxu0 %v399
        %1828 = vmatprep.subr.mxu0 0.0
        %1829 = vmatpush1.msra.mxu0 %v400
        %1830 = vmatprep.subr.mxu0 0.0
        %1831 = vmatpush1.msra.mxu0 %v401
        %1832 = vmatprep.subr.mxu0 0.0
        %1833 = vmatpush1.msra.mxu0 %v402
        %1834 = vmatprep.subr.mxu0 0.0
        %1835 = vmatpush1.msra.mxu0 %v403
        %1836 = vmatprep.subr.mxu0 0.0
        %1837 = vmatpush1.msra.mxu0 %v404
        %1838 = vmatprep.subr.mxu0 0.0
        %1839 = vmatpush1.msra.mxu0 %v405
        %1840 = vmatprep.subr.mxu0 0.0
        %1841 = vmatpush1.msra.mxu0 %v406
        %1842 = vmatprep.subr.mxu0 0.0
        %1843 = vmatpush1.msra.mxu0 %v407
        %1844 = vmatprep.subr.mxu0 0.0
        %1845 = vmatpush1.msra.mxu0 %v408
        %1846 = vmatprep.subr.mxu0 0.0
        %1847 = vmatpush1.msra.mxu0 %v409
        %1848 = vmatprep.subr.mxu0 0.0
        %1849 = vmatpush1.msra.mxu0 %v410
        %1850 = vmatprep.subr.mxu0 0.0
        %1851 = vmatpush1.msra.mxu0 %v411
        %1852 = vmatprep.subr.mxu0 0.0
        %1853 = vmatpush1.msra.mxu0 %v412
        %1854 = vmatprep.subr.mxu0 0.0
        %1855 = vmatpush1.msra.mxu0 %v413
        %1856 = vmatprep.subr.mxu0 0.0
        %1857 = vmatpush1.msra.mxu0 %v414
        %1858 = vmatprep.subr.mxu0 0.0
        %1859 = vmatpush1.msra.mxu0 %v415
        %1860 = vmatprep.mubr.f32.mxu0 %v1562
        %1861 = vmatmul.mubr.f32.gmra.mrb[0].mxu0 %v1561
        %v1862 = vpop.f32.mrb[0].mxu0
        %v1863 = vadd.f32 %v1543, %v1862
        %v1864 = vpop.f32.mrb[0].mxu0
        %1865 = vmatprep.mubr.f32.mxu0 %v1580
        %1866 = vmatmul.mubr.f32.gmra.mrb[0].mxu0 %v1579
        %v1867 = vpop.f32.mrb[0].mxu0
        %v1868 = vadd.f32 %v1543, %v1867
        %v1869 = vpop.f32.mrb[0].mxu0
        %1870 = vmatprep.mubr.f32.mxu0 %v1598
        %1871 = vmatmul.mubr.f32.gmra.mrb[0].mxu0 %v1597
        %v1872 = vpop.f32.mrb[0].mxu0
        %v1873 = vadd.f32 %v1543, %v1872
        %v1874 = vpop.f32.mrb[0].mxu0
        %1875 = vmatprep.mubr.f32.mxu0 %v1616
        %1876 = vmatmul.mubr.f32.gmra.mrb[0].mxu0 %v1615
        %v1877 = vpop.f32.mrb[0].mxu0
        %v1878 = vadd.f32 %v1543, %v1877
        %v1879 = vpop.f32.mrb[0].mxu0
        %1880 = vmatprep.mubr.f32.mxu0 %v1634
        %1881 = vmatmul.mubr.f32.gmra.mrb[0].mxu0 %v1633
        %v1882 = vpop.f32.mrb[0].mxu0
        %v1883 = vadd.f32 %v1543, %v1882
        %v1884 = vpop.f32.mrb[0].mxu0
        %1885 = vmatprep.mubr.f32.mxu0 %v1652
        %1886 = vmatmul.mubr.f32.gmra.mrb[0].mxu0 %v1651
        %v1887 = vpop.f32.mrb[0].mxu0
        %v1888 = vadd.f32 %v1543, %v1887
        %v1889 = vpop.f32.mrb[0].mxu0
        %1890 = vmatprep.mubr.f32.mxu0 %v1670
        %1891 = vmatmul.mubr.f32.gmra.mrb[0].mxu0 %v1669
        %v1892 = vpop.f32.mrb[0].mxu0
        %v1893 = vadd.f32 %v1543, %v1892
        %v1894 = vpop.f32.mrb[0].mxu0
        %1895 = vmatprep.mubr.f32.mxu0 %v1688
        %1896 = vmatmul.mubr.f32.gmra.mrb[0].mxu0 %v1687
        %v1897 = vpop.f32.mrb[0].mxu0
        %v1898 = vadd.f32 %v1543, %v1897
        %v1899 = vpop.f32.mrb[0].mxu0
        %1900 = vmatprep.mubr.f32.mxu0 %v1706
        %1901 = vmatmul.mubr.f32.gmra.mrb[0].mxu0 %v1705
        %v1902 = vpop.f32.mrb[0].mxu0
        %v1903 = vadd.f32 %v1543, %v1902
        %v1904 = vpop.f32.mrb[0].mxu0
        %1905 = vmatprep.mubr.f32.mxu0 %v1724
        %1906 = vmatmul.mubr.f32.gmra.mrb[0].mxu0 %v1723
        %v1907 = vpop.f32.mrb[0].mxu0
        %v1908 = vadd.f32 %v1543, %v1907
        %v1909 = vpop.f32.mrb[0].mxu0
        %1910 = vmatprep.mubr.f32.mxu0 %v1742
        %1911 = vmatmul.mubr.f32.gmra.mrb[0].mxu0 %v1741
        %v1912 = vpop.f32.mrb[0].mxu0
        %v1913 = vadd.f32 %v1543, %v1912
        %v1914 = vpop.f32.mrb[0].mxu0
        %1915 = vmatprep.mubr.f32.mxu0 %v1760
        %1916 = vmatmul.mubr.f32.gmra.mrb[0].mxu0 %v1759
        %v1917 = vpop.f32.mrb[0].mxu0
        %v1918 = vadd.f32 %v1543, %v1917
        %v1919 = vpop.f32.mrb[0].mxu0
        %1920 = vmatprep.mubr.f32.mxu0 %v1769
        %1921 = vmatmul.mubr.f32.gmra.mrb[0].mxu0 %v1768
        %v1922 = vpop.f32.mrb[0].mxu0
        %v1923 = vadd.f32 %v1543, %v1922
        %v1924 = vpop.f32.mrb[0].mxu0
        %1925 = vdwg.mxu0
        %v1926 = vmax.f32 %v1863, 0.0
        %v1927 = vmax.f32 %v1868, 0.0
        %v1928 = vmax.f32 %v1873, 0.0
        %v1929 = vmax.f32 %v1878, 0.0
        %v1930 = vmax.f32 %v1883, 0.0
        %v1931 = vmax.f32 %v1888, 0.0
        %v1932 = vmax.f32 %v1893, 0.0
        %v1933 = vmax.f32 %v1898, 0.0
        %v1934 = vmax.f32 %v1903, 0.0
        %v1935 = vmax.f32 %v1908, 0.0
        %v1936 = vmax.f32 %v1913, 0.0
        %v1937 = vmax.f32 %v1918, 0.0
        %v1938 = vmax.f32 %v1923, 0.0
        %v1952 = vcombine.high %v1926, %v1926
        %v1954 = vunpack.c.l.s4 1983009808
        %v1955 = vunpack.c.0.s8 %v1954
        %v1956 = vlaneseq
        %v1957 = vshrl.u32 %v1956, 7
        %v1958 = vsub.s32 %v1955, %v1957
        %v1959 = vrot.slane %v1926, %v1958
        %v1961 = vunpack.c.l.s4 1983009808
        %v1962 = vunpack.c.0.s8 %v1961
        %v1963 = vlaneseq
        %v1964 = vshrl.u32 %v1963, 7
        %v1965 = vsub.s32 %v1962, %v1964
        %v1966 = vrot.slane %v1952, %v1965
        %v1967 = vcombine.high %v1959, %v1959
        %v1968 = vcombine.high %v1966, %v1966
        %v1969 = vcombine.high %v1927, %v1927
        %v1971 = vunpack.c.l.s4 1983009808
        %v1972 = vunpack.c.0.s8 %v1971
        %v1973 = vlaneseq
        %v1974 = vshrl.u32 %v1973, 7
        %v1975 = vsub.s32 %v1972, %v1974
        %v1976 = vrot.slane %v1927, %v1975
        %v1978 = vunpack.c.l.s4 1983009808
        %v1979 = vunpack.c.0.s8 %v1978
        %v1980 = vlaneseq
        %v1981 = vshrl.u32 %v1980, 7
        %v1982 = vsub.s32 %v1979, %v1981
        %v1983 = vrot.slane %v1969, %v1982
        %v1984 = vcombine.high %v1976, %v1976
        %v1985 = vcombine.high %v1983, %v1983
        %v1986 = vcombine.high %v1928, %v1928
        %v1988 = vunpack.c.l.s4 1983009808
        %v1989 = vunpack.c.0.s8 %v1988
        %v1990 = vlaneseq
        %v1991 = vshrl.u32 %v1990, 7
        %v1992 = vsub.s32 %v1989, %v1991
        %v1993 = vrot.slane %v1928, %v1992
        %v1995 = vunpack.c.l.s4 1983009808
        %v1996 = vunpack.c.0.s8 %v1995
        %v1997 = vlaneseq
        %v1998 = vshrl.u32 %v1997, 7
        %v1999 = vsub.s32 %v1996, %v1998
        %v2000 = vrot.slane %v1986, %v1999
        %v2001 = vcombine.high %v1993, %v1993
        %v2002 = vcombine.high %v2000, %v2000
        %v2003 = vcombine.high %v1929, %v1929
        %v2005 = vunpack.c.l.s4 1983009808
        %v2006 = vunpack.c.0.s8 %v2005
        %v2007 = vlaneseq
        %v2008 = vshrl.u32 %v2007, 7
        %v2009 = vsub.s32 %v2006, %v2008
        %v2010 = vrot.slane %v1929, %v2009
        %v2012 = vunpack.c.l.s4 1983009808
        %v2013 = vunpack.c.0.s8 %v2012
        %v2014 = vlaneseq
        %v2015 = vshrl.u32 %v2014, 7
        %v2016 = vsub.s32 %v2013, %v2015
        %v2017 = vrot.slane %v2003, %v2016
        %v2018 = vcombine.high %v2010, %v2010
        %v2019 = vcombine.high %v2017, %v2017
        %v2020 = vcombine.high %v1930, %v1930
        %v2022 = vunpack.c.l.s4 1983009808
        %v2023 = vunpack.c.0.s8 %v2022
        %v2024 = vlaneseq
        %v2025 = vshrl.u32 %v2024, 7
        %v2026 = vsub.s32 %v2023, %v2025
        %v2027 = vrot.slane %v1930, %v2026
        %v2029 = vunpack.c.l.s4 1983009808
        %v2030 = vunpack.c.0.s8 %v2029
        %v2031 = vlaneseq
        %v2032 = vshrl.u32 %v2031, 7
        %v2033 = vsub.s32 %v2030, %v2032
        %v2034 = vrot.slane %v2020, %v2033
        %v2035 = vcombine.high %v2027, %v2027
        %v2036 = vcombine.high %v2034, %v2034
        %v2037 = vcombine.high %v1931, %v1931
        %v2039 = vunpack.c.l.s4 1983009808
        %v2040 = vunpack.c.0.s8 %v2039
        %v2041 = vlaneseq
        %v2042 = vshrl.u32 %v2041, 7
        %v2043 = vsub.s32 %v2040, %v2042
        %v2044 = vrot.slane %v1931, %v2043
        %v2046 = vunpack.c.l.s4 1983009808
        %v2047 = vunpack.c.0.s8 %v2046
        %v2048 = vlaneseq
        %v2049 = vshrl.u32 %v2048, 7
        %v2050 = vsub.s32 %v2047, %v2049
        %v2051 = vrot.slane %v2037, %v2050
        %v2052 = vcombine.high %v2044, %v2044
        %v2053 = vcombine.high %v2051, %v2051
        %v2054 = vcombine.high %v1932, %v1932
        %v2056 = vunpack.c.l.s4 1983009808
        %v2057 = vunpack.c.0.s8 %v2056
        %v2058 = vlaneseq
        %v2059 = vshrl.u32 %v2058, 7
        %v2060 = vsub.s32 %v2057, %v2059
        %v2061 = vrot.slane %v1932, %v2060
        %v2063 = vunpack.c.l.s4 1983009808
        %v2064 = vunpack.c.0.s8 %v2063
        %v2065 = vlaneseq
        %v2066 = vshrl.u32 %v2065, 7
        %v2067 = vsub.s32 %v2064, %v2066
        %v2068 = vrot.slane %v2054, %v2067
        %v2069 = vcombine.high %v2061, %v2061
        %v2070 = vcombine.high %v2068, %v2068
        %v2071 = vcombine.high %v1933, %v1933
        %v2073 = vunpack.c.l.s4 1983009808
        %v2074 = vunpack.c.0.s8 %v2073
        %v2075 = vlaneseq
        %v2076 = vshrl.u32 %v2075, 7
        %v2077 = vsub.s32 %v2074, %v2076
        %v2078 = vrot.slane %v1933, %v2077
        %v2080 = vunpack.c.l.s4 1983009808
        %v2081 = vunpack.c.0.s8 %v2080
        %v2082 = vlaneseq
        %v2083 = vshrl.u32 %v2082, 7
        %v2084 = vsub.s32 %v2081, %v2083
        %v2085 = vrot.slane %v2071, %v2084
        %v2086 = vcombine.high %v2078, %v2078
        %v2087 = vcombine.high %v2085, %v2085
        %v2088 = vcombine.high %v1934, %v1934
        %v2090 = vunpack.c.l.s4 1983009808
        %v2091 = vunpack.c.0.s8 %v2090
        %v2092 = vlaneseq
        %v2093 = vshrl.u32 %v2092, 7
        %v2094 = vsub.s32 %v2091, %v2093
        %v2095 = vrot.slane %v1934, %v2094
        %v2097 = vunpack.c.l.s4 1983009808
        %v2098 = vunpack.c.0.s8 %v2097
        %v2099 = vlaneseq
        %v2100 = vshrl.u32 %v2099, 7
        %v2101 = vsub.s32 %v2098, %v2100
        %v2102 = vrot.slane %v2088, %v2101
        %v2103 = vcombine.high %v2095, %v2095
        %v2104 = vcombine.high %v2102, %v2102
        %v2105 = vcombine.high %v1935, %v1935
        %v2107 = vunpack.c.l.s4 1983009808
        %v2108 = vunpack.c.0.s8 %v2107
        %v2109 = vlaneseq
        %v2110 = vshrl.u32 %v2109, 7
        %v2111 = vsub.s32 %v2108, %v2110
        %v2112 = vrot.slane %v1935, %v2111
        %v2114 = vunpack.c.l.s4 1983009808
        %v2115 = vunpack.c.0.s8 %v2114
        %v2116 = vlaneseq
        %v2117 = vshrl.u32 %v2116, 7
        %v2118 = vsub.s32 %v2115, %v2117
        %v2119 = vrot.slane %v2105, %v2118
        %v2120 = vcombine.high %v2112, %v2112
        %v2121 = vcombine.high %v2119, %v2119
        %v2122 = vcombine.high %v1936, %v1936
        %v2124 = vunpack.c.l.s4 1983009808
        %v2125 = vunpack.c.0.s8 %v2124
        %v2126 = vlaneseq
        %v2127 = vshrl.u32 %v2126, 7
        %v2128 = vsub.s32 %v2125, %v2127
        %v2129 = vrot.slane %v1936, %v2128
        %v2131 = vunpack.c.l.s4 1983009808
        %v2132 = vunpack.c.0.s8 %v2131
        %v2133 = vlaneseq
        %v2134 = vshrl.u32 %v2133, 7
        %v2135 = vsub.s32 %v2132, %v2134
        %v2136 = vrot.slane %v2122, %v2135
        %v2137 = vcombine.high %v2129, %v2129
        %v2138 = vcombine.high %v2136, %v2136
        %v2139 = vcombine.high %v1937, %v1937
        %v2141 = vunpack.c.l.s4 1983009808
        %v2142 = vunpack.c.0.s8 %v2141
        %v2143 = vlaneseq
        %v2144 = vshrl.u32 %v2143, 7
        %v2145 = vsub.s32 %v2142, %v2144
        %v2146 = vrot.slane %v1937, %v2145
        %v2148 = vunpack.c.l.s4 1983009808
        %v2149 = vunpack.c.0.s8 %v2148
        %v2150 = vlaneseq
        %v2151 = vshrl.u32 %v2150, 7
        %v2152 = vsub.s32 %v2149, %v2151
        %v2153 = vrot.slane %v2139, %v2152
        %v2154 = vcombine.high %v2146, %v2146
        %v2155 = vcombine.high %v2153, %v2153
        %v2157 = vunpack.c.l.s4 1983009808
        %v2158 = vunpack.c.0.s8 %v2157
        %v2159 = vlaneseq
        %v2160 = vshrl.u32 %v2159, 7
        %v2161 = vsub.s32 %v2158, %v2160
        %v2162 = vrot.slane %v1938, %v2161
        %v2163 = vcombine.high %v2162, %v2162
        %v2164 = vcombine.low %v1959, %v1967
        %v2165 = vcombine.low %v1966, %v1968
        %v2167 = vunpack.c.l.s4 1983009808
        %v2168 = vunpack.c.0.s8 %v2167
        %v2169 = vlaneseq
        %v2170 = vshrl.u32 %v2169, 7
        %v2171 = vsub.s32 %v2168, %v2170
        %v2172 = vrot.slane %v2164, %v2171
        %v2174 = vunpack.c.l.s4 1983009808
        %v2175 = vunpack.c.0.s8 %v2174
        %v2176 = vlaneseq
        %v2177 = vshrl.u32 %v2176, 7
        %v2178 = vsub.s32 %v2175, %v2177
        %v2179 = vrot.slane %v2165, %v2178
        %v2180 = vcombine.low %v2172, %v2179
        %v2182 = vunpack.c.l.s4 1983009808
        %v2183 = vunpack.c.0.s8 %v2182
        %v2184 = vlaneseq
        %v2185 = vshrl.u32 %v2184, 7
        %v2186 = vsub.s32 %v2183, %v2185
        %v2187 = vrot.slane %v1976, %v2186
        %v2188 = vcombine.low %v1984, %v1983
        %v2189 = vcombine.low %v1985, %v1993
        %v2191 = vunpack.c.l.s4 1983009808
        %v2192 = vunpack.c.0.s8 %v2191
        %v2193 = vlaneseq
        %v2194 = vshrl.u32 %v2193, 7
        %v2195 = vsub.s32 %v2192, %v2194
        %v2196 = vrot.slane %v2188, %v2195
        %v2198 = vunpack.c.l.s4 1983009808
        %v2199 = vunpack.c.0.s8 %v2198
        %v2200 = vlaneseq
        %v2201 = vshrl.u32 %v2200, 7
        %v2202 = vsub.s32 %v2199, %v2201
        %v2203 = vrot.slane %v2189, %v2202
        %v2204 = vcombine.low %v2196, %v2203
        %v2206 = vunpack.c.l.s4 1983009808
        %v2207 = vunpack.c.0.s8 %v2206
        %v2208 = vlaneseq
        %v2209 = vshrl.u32 %v2208, 7
        %v2210 = vsub.s32 %v2207, %v2209
        %v2211 = vrot.slane %v2001, %v2210
        %v2212 = vcombine.low %v2000, %v2002
        %v2213 = vcombine.low %v2010, %v2018
        %v2215 = vunpack.c.l.s4 1983009808
        %v2216 = vunpack.c.0.s8 %v2215
        %v2217 = vlaneseq
        %v2218 = vshrl.u32 %v2217, 7
        %v2219 = vsub.s32 %v2216, %v2218
        %v2220 = vrot.slane %v2212, %v2219
        %v2222 = vunpack.c.l.s4 1983009808
        %v2223 = vunpack.c.0.s8 %v2222
        %v2224 = vlaneseq
        %v2225 = vshrl.u32 %v2224, 7
        %v2226 = vsub.s32 %v2223, %v2225
        %v2227 = vrot.slane %v2213, %v2226
        %v2228 = vcombine.low %v2220, %v2227
        %v2230 = vunpack.c.l.s4 1983009808
        %v2231 = vunpack.c.0.s8 %v2230
        %v2232 = vlaneseq
        %v2233 = vshrl.u32 %v2232, 7
        %v2234 = vsub.s32 %v2231, %v2233
        %v2235 = vrot.slane %v2017, %v2234
        %v2236 = vcombine.low %v2019, %v2027
        %v2237 = vcombine.low %v2035, %v2034
        %v2239 = vunpack.c.l.s4 1983009808
        %v2240 = vunpack.c.0.s8 %v2239
        %v2241 = vlaneseq
        %v2242 = vshrl.u32 %v2241, 7
        %v2243 = vsub.s32 %v2240, %v2242
        %v2244 = vrot.slane %v2236, %v2243
        %v2246 = vunpack.c.l.s4 1983009808
        %v2247 = vunpack.c.0.s8 %v2246
        %v2248 = vlaneseq
        %v2249 = vshrl.u32 %v2248, 7
        %v2250 = vsub.s32 %v2247, %v2249
        %v2251 = vrot.slane %v2237, %v2250
        %v2252 = vcombine.low %v2244, %v2251
        %v2254 = vunpack.c.l.s4 1983009808
        %v2255 = vunpack.c.0.s8 %v2254
        %v2256 = vlaneseq
        %v2257 = vshrl.u32 %v2256, 7
        %v2258 = vsub.s32 %v2255, %v2257
        %v2259 = vrot.slane %v2036, %v2258
        %v2260 = vcombine.low %v2044, %v2052
        %v2261 = vcombine.low %v2051, %v2053
        %v2263 = vunpack.c.l.s4 1983009808
        %v2264 = vunpack.c.0.s8 %v2263
        %v2265 = vlaneseq
        %v2266 = vshrl.u32 %v2265, 7
        %v2267 = vsub.s32 %v2264, %v2266
        %v2268 = vrot.slane %v2260, %v2267
        %v2270 = vunpack.c.l.s4 1983009808
        %v2271 = vunpack.c.0.s8 %v2270
        %v2272 = vlaneseq
        %v2273 = vshrl.u32 %v2272, 7
        %v2274 = vsub.s32 %v2271, %v2273
        %v2275 = vrot.slane %v2261, %v2274
        %v2276 = vcombine.low %v2268, %v2275
        %v2278 = vunpack.c.l.s4 1983009808
        %v2279 = vunpack.c.0.s8 %v2278
        %v2280 = vlaneseq
        %v2281 = vshrl.u32 %v2280, 7
        %v2282 = vsub.s32 %v2279, %v2281
        %v2283 = vrot.slane %v2061, %v2282
        %v2284 = vcombine.low %v2069, %v2068
        %v2285 = vcombine.low %v2070, %v2078
        %v2287 = vunpack.c.l.s4 1983009808
        %v2288 = vunpack.c.0.s8 %v2287
        %v2289 = vlaneseq
        %v2290 = vshrl.u32 %v2289, 7
        %v2291 = vsub.s32 %v2288, %v2290
        %v2292 = vrot.slane %v2284, %v2291
        %v2294 = vunpack.c.l.s4 1983009808
        %v2295 = vunpack.c.0.s8 %v2294
        %v2296 = vlaneseq
        %v2297 = vshrl.u32 %v2296, 7
        %v2298 = vsub.s32 %v2295, %v2297
        %v2299 = vrot.slane %v2285, %v2298
        %v2300 = vcombine.low %v2292, %v2299
        %v2302 = vunpack.c.l.s4 1983009808
        %v2303 = vunpack.c.0.s8 %v2302
        %v2304 = vlaneseq
        %v2305 = vshrl.u32 %v2304, 7
        %v2306 = vsub.s32 %v2303, %v2305
        %v2307 = vrot.slane %v2086, %v2306
        %v2308 = vcombine.low %v2085, %v2087
        %v2309 = vcombine.low %v2095, %v2103
        %v2311 = vunpack.c.l.s4 1983009808
        %v2312 = vunpack.c.0.s8 %v2311
        %v2313 = vlaneseq
        %v2314 = vshrl.u32 %v2313, 7
        %v2315 = vsub.s32 %v2312, %v2314
        %v2316 = vrot.slane %v2308, %v2315
        %v2318 = vunpack.c.l.s4 1983009808
        %v2319 = vunpack.c.0.s8 %v2318
        %v2320 = vlaneseq
        %v2321 = vshrl.u32 %v2320, 7
        %v2322 = vsub.s32 %v2319, %v2321
        %v2323 = vrot.slane %v2309, %v2322
        %v2324 = vcombine.low %v2316, %v2323
        %v2326 = vunpack.c.l.s4 1983009808
        %v2327 = vunpack.c.0.s8 %v2326
        %v2328 = vlaneseq
        %v2329 = vshrl.u32 %v2328, 7
        %v2330 = vsub.s32 %v2327, %v2329
        %v2331 = vrot.slane %v2102, %v2330
        %v2332 = vcombine.low %v2104, %v2112
        %v2333 = vcombine.low %v2120, %v2119
        %v2335 = vunpack.c.l.s4 1983009808
        %v2336 = vunpack.c.0.s8 %v2335
        %v2337 = vlaneseq
        %v2338 = vshrl.u32 %v2337, 7
        %v2339 = vsub.s32 %v2336, %v2338
        %v2340 = vrot.slane %v2332, %v2339
        %v2342 = vunpack.c.l.s4 1983009808
        %v2343 = vunpack.c.0.s8 %v2342
        %v2344 = vlaneseq
        %v2345 = vshrl.u32 %v2344, 7
        %v2346 = vsub.s32 %v2343, %v2345
        %v2347 = vrot.slane %v2333, %v2346
        %v2348 = vcombine.low %v2340, %v2347
        %v2350 = vunpack.c.l.s4 1983009808
        %v2351 = vunpack.c.0.s8 %v2350
        %v2352 = vlaneseq
        %v2353 = vshrl.u32 %v2352, 7
        %v2354 = vsub.s32 %v2351, %v2353
        %v2355 = vrot.slane %v2121, %v2354
        %v2356 = vcombine.low %v2129, %v2137
        %v2357 = vcombine.low %v2136, %v2138
        %v2359 = vunpack.c.l.s4 1983009808
        %v2360 = vunpack.c.0.s8 %v2359
        %v2361 = vlaneseq
        %v2362 = vshrl.u32 %v2361, 7
        %v2363 = vsub.s32 %v2360, %v2362
        %v2364 = vrot.slane %v2356, %v2363
        %v2366 = vunpack.c.l.s4 1983009808
        %v2367 = vunpack.c.0.s8 %v2366
        %v2368 = vlaneseq
        %v2369 = vshrl.u32 %v2368, 7
        %v2370 = vsub.s32 %v2367, %v2369
        %v2371 = vrot.slane %v2357, %v2370
        %v2372 = vcombine.low %v2364, %v2371
        %v2374 = vunpack.c.l.s4 1983009808
        %v2375 = vunpack.c.0.s8 %v2374
        %v2376 = vlaneseq
        %v2377 = vshrl.u32 %v2376, 7
        %v2378 = vsub.s32 %v2375, %v2377
        %v2379 = vrot.slane %v2146, %v2378
        %vm2380 = vcmask 1046528
        %v2381 = vrot.slane %v2180, 1
        %v2382 = vrot.slane %v2187, 1
        %v2383 = vsel %vm2380, %v2381, %v2382
        %v2384 = vrot.slane %v2204, 1
        %v2385 = vrot.slane %v2211, 1
        %v2386 = vsel %vm2380, %v2384, %v2385
        %v2387 = vrot.slane %v2228, 1
        %v2388 = vrot.slane %v2235, 1
        %v2389 = vsel %vm2380, %v2387, %v2388
        %v2390 = vrot.slane %v2252, 1
        %v2391 = vrot.slane %v2259, 1
        %v2392 = vsel %vm2380, %v2390, %v2391
        %v2393 = vrot.slane %v2276, 1
        %v2394 = vrot.slane %v2283, 1
        %v2395 = vsel %vm2380, %v2393, %v2394
        %v2396 = vrot.slane %v2300, 1
        %v2397 = vrot.slane %v2307, 1
        %v2398 = vsel %vm2380, %v2396, %v2397
        %v2399 = vrot.slane %v2324, 1
        %v2400 = vrot.slane %v2331, 1
        %v2401 = vsel %vm2380, %v2399, %v2400
        %v2402 = vrot.slane %v2348, 1
        %v2403 = vrot.slane %v2355, 1
        %v2404 = vsel %vm2380, %v2402, %v2403
        %v2405 = vrot.slane %v2372, 1
        %v2406 = vrot.slane %v2379, 1
        %v2407 = vsel %vm2380, %v2405, %v2406
        %v2408 = vcombine.low %v2154, %v2153
        %v2409 = vcombine.low %v2155, %v2162
        %v2411 = vunpack.c.l.s4 1983009808
        %v2412 = vunpack.c.0.s8 %v2411
        %v2413 = vlaneseq
        %v2414 = vshrl.u32 %v2413, 7
        %v2415 = vsub.s32 %v2412, %v2414
        %v2416 = vrot.slane %v2408, %v2415
        %v2418 = vunpack.c.l.s4 1983009808
        %v2419 = vunpack.c.0.s8 %v2418
        %v2420 = vlaneseq
        %v2421 = vshrl.u32 %v2420, 7
        %v2422 = vsub.s32 %v2419, %v2421
        %v2423 = vrot.slane %v2409, %v2422
        %v2424 = vcombine.low %v2416, %v2423
        %v2426 = vunpack.c.l.s4 1983009808
        %v2427 = vunpack.c.0.s8 %v2426
        %v2428 = vlaneseq
        %v2429 = vshrl.u32 %v2428, 7
        %v2430 = vsub.s32 %v2427, %v2429
        %v2431 = vrot.slane %v2163, %v2430
        %v2432 = vrot.slane %v2424, 1
        %v2433 = vrot.slane %v2431, 1
        %v2434 = vsel %vm2380, %v2432, %v2433
        %v2435 = vcombine.low %v2180, %v2383
        %v2436 = vcombine.high %v2180, %v2383
        %v2437 = vcombine.low %v2204, %v2386
        %v2438 = vcombine.high %v2204, %v2386
        %v2440 = vunpack.c.l.s4 1966171168
        %v2441 = vunpack.c.0.s8 %v2440
        %v2442 = vlaneseq
        %v2443 = vshrl.u32 %v2442, 7
        %v2444 = vsub.s32 %v2441, %v2443
        %v2445 = vrot.slane %v2435, %v2444
        %v2447 = vunpack.c.l.s4 1966171168
        %v2448 = vunpack.c.0.s8 %v2447
        %v2449 = vlaneseq
        %v2450 = vshrl.u32 %v2449, 7
        %v2451 = vsub.s32 %v2448, %v2450
        %v2452 = vrot.slane %v2436, %v2451
        %v2454 = vunpack.c.l.s4 1966171168
        %v2455 = vunpack.c.0.s8 %v2454
        %v2456 = vlaneseq
        %v2457 = vshrl.u32 %v2456, 7
        %v2458 = vsub.s32 %v2455, %v2457
        %v2459 = vrot.slane %v2437, %v2458
        %v2461 = vunpack.c.l.s4 1966171168
        %v2462 = vunpack.c.0.s8 %v2461
        %v2463 = vlaneseq
        %v2464 = vshrl.u32 %v2463, 7
        %v2465 = vsub.s32 %v2462, %v2464
        %v2466 = vrot.slane %v2438, %v2465
        %v2467 = vcombine.low %v2445, %v2459
        %v2468 = vcombine.high %v2445, %v2459
        %v2469 = vcombine.low %v2452, %v2466
        %v2470 = vcombine.high %v2452, %v2466
        %v2472 = vunpack.c.l.s4 1966171168
        %v2473 = vunpack.c.0.s8 %v2472
        %v2474 = vlaneseq
        %v2475 = vshrl.u32 %v2474, 7
        %v2476 = vsub.s32 %v2473, %v2475
        %v2477 = vrot.slane %v2467, %v2476
        %v2479 = vunpack.c.l.s4 1966171168
        %v2480 = vunpack.c.0.s8 %v2479
        %v2481 = vlaneseq
        %v2482 = vshrl.u32 %v2481, 7
        %v2483 = vsub.s32 %v2480, %v2482
        %v2484 = vrot.slane %v2469, %v2483
        %v2486 = vunpack.c.l.s4 1966171168
        %v2487 = vunpack.c.0.s8 %v2486
        %v2488 = vlaneseq
        %v2489 = vshrl.u32 %v2488, 7
        %v2490 = vsub.s32 %v2487, %v2489
        %v2491 = vrot.slane %v2468, %v2490
        %v2493 = vunpack.c.l.s4 1966171168
        %v2494 = vunpack.c.0.s8 %v2493
        %v2495 = vlaneseq
        %v2496 = vshrl.u32 %v2495, 7
        %v2497 = vsub.s32 %v2494, %v2496
        %v2498 = vrot.slane %v2470, %v2497
        %v2499 = vcombine.high %v2477, %v2477
        %v2500 = vcombine.high %v2484, %v2484
        %v2501 = vcombine.high %v2491, %v2491
        %v2502 = vcombine.high %v2498, %v2498
        %v2503 = vcombine.low %v2187, %v2382
        %v2504 = vcombine.low %v2211, %v2385
        %v2506 = vunpack.c.l.s4 1966171168
        %v2507 = vunpack.c.0.s8 %v2506
        %v2508 = vlaneseq
        %v2509 = vshrl.u32 %v2508, 7
        %v2510 = vsub.s32 %v2507, %v2509
        %v2511 = vrot.slane %v2503, %v2510
        %v2513 = vunpack.c.l.s4 1966171168
        %v2514 = vunpack.c.0.s8 %v2513
        %v2515 = vlaneseq
        %v2516 = vshrl.u32 %v2515, 7
        %v2517 = vsub.s32 %v2514, %v2516
        %v2518 = vrot.slane %v2504, %v2517
        %v2519 = vcombine.low %v2511, %v2518
        %v2521 = vunpack.c.l.s4 1966171168
        %v2522 = vunpack.c.0.s8 %v2521
        %v2523 = vlaneseq
        %v2524 = vshrl.u32 %v2523, 7
        %v2525 = vsub.s32 %v2522, %v2524
        %v2526 = vrot.slane %v2519, %v2525
        %v2527 = vcombine.low %v2228, %v2389
        %v2528 = vcombine.high %v2228, %v2389
        %v2530 = vunpack.c.l.s4 1966171168
        %v2531 = vunpack.c.0.s8 %v2530
        %v2532 = vlaneseq
        %v2533 = vshrl.u32 %v2532, 7
        %v2534 = vsub.s32 %v2531, %v2533
        %v2535 = vrot.slane %v2527, %v2534
        %v2537 = vunpack.c.l.s4 1966171168
        %v2538 = vunpack.c.0.s8 %v2537
        %v2539 = vlaneseq
        %v2540 = vshrl.u32 %v2539, 7
        %v2541 = vsub.s32 %v2538, %v2540
        %v2542 = vrot.slane %v2528, %v2541
        %v2543 = vcombine.low %v2459, %v2535
        %v2544 = vcombine.high %v2459, %v2535
        %v2545 = vcombine.low %v2466, %v2542
        %v2546 = vcombine.high %v2466, %v2542
        %v2548 = vunpack.c.l.s4 1966171168
        %v2549 = vunpack.c.0.s8 %v2548
        %v2550 = vlaneseq
        %v2551 = vshrl.u32 %v2550, 7
        %v2552 = vsub.s32 %v2549, %v2551
        %v2553 = vrot.slane %v2543, %v2552
        %v2555 = vunpack.c.l.s4 1966171168
        %v2556 = vunpack.c.0.s8 %v2555
        %v2557 = vlaneseq
        %v2558 = vshrl.u32 %v2557, 7
        %v2559 = vsub.s32 %v2556, %v2558
        %v2560 = vrot.slane %v2545, %v2559
        %v2562 = vunpack.c.l.s4 1966171168
        %v2563 = vunpack.c.0.s8 %v2562
        %v2564 = vlaneseq
        %v2565 = vshrl.u32 %v2564, 7
        %v2566 = vsub.s32 %v2563, %v2565
        %v2567 = vrot.slane %v2544, %v2566
        %v2569 = vunpack.c.l.s4 1966171168
        %v2570 = vunpack.c.0.s8 %v2569
        %v2571 = vlaneseq
        %v2572 = vshrl.u32 %v2571, 7
        %v2573 = vsub.s32 %v2570, %v2572
        %v2574 = vrot.slane %v2546, %v2573
        %v2575 = vcombine.high %v2553, %v2553
        %v2576 = vcombine.high %v2560, %v2560
        %v2577 = vcombine.high %v2567, %v2567
        %v2578 = vcombine.high %v2574, %v2574
        %v2579 = vcombine.low %v2235, %v2388
        %v2581 = vunpack.c.l.s4 1966171168
        %v2582 = vunpack.c.0.s8 %v2581
        %v2583 = vlaneseq
        %v2584 = vshrl.u32 %v2583, 7
        %v2585 = vsub.s32 %v2582, %v2584
        %v2586 = vrot.slane %v2579, %v2585
        %v2587 = vcombine.low %v2518, %v2586
        %v2589 = vunpack.c.l.s4 1966171168
        %v2590 = vunpack.c.0.s8 %v2589
        %v2591 = vlaneseq
        %v2592 = vshrl.u32 %v2591, 7
        %v2593 = vsub.s32 %v2590, %v2592
        %v2594 = vrot.slane %v2587, %v2593
        %v2595 = vcombine.low %v2252, %v2392
        %v2596 = vcombine.high %v2252, %v2392
        %v2598 = vunpack.c.l.s4 1966171168
        %v2599 = vunpack.c.0.s8 %v2598
        %v2600 = vlaneseq
        %v2601 = vshrl.u32 %v2600, 7
        %v2602 = vsub.s32 %v2599, %v2601
        %v2603 = vrot.slane %v2595, %v2602
        %v2605 = vunpack.c.l.s4 1966171168
        %v2606 = vunpack.c.0.s8 %v2605
        %v2607 = vlaneseq
        %v2608 = vshrl.u32 %v2607, 7
        %v2609 = vsub.s32 %v2606, %v2608
        %v2610 = vrot.slane %v2596, %v2609
        %v2611 = vcombine.low %v2535, %v2603
        %v2612 = vcombine.high %v2535, %v2603
        %v2613 = vcombine.low %v2542, %v2610
        %v2614 = vcombine.high %v2542, %v2610
        %v2616 = vunpack.c.l.s4 1966171168
        %v2617 = vunpack.c.0.s8 %v2616
        %v2618 = vlaneseq
        %v2619 = vshrl.u32 %v2618, 7
        %v2620 = vsub.s32 %v2617, %v2619
        %v2621 = vrot.slane %v2611, %v2620
        %v2623 = vunpack.c.l.s4 1966171168
        %v2624 = vunpack.c.0.s8 %v2623
        %v2625 = vlaneseq
        %v2626 = vshrl.u32 %v2625, 7
        %v2627 = vsub.s32 %v2624, %v2626
        %v2628 = vrot.slane %v2613, %v2627
        %v2630 = vunpack.c.l.s4 1966171168
        %v2631 = vunpack.c.0.s8 %v2630
        %v2632 = vlaneseq
        %v2633 = vshrl.u32 %v2632, 7
        %v2634 = vsub.s32 %v2631, %v2633
        %v2635 = vrot.slane %v2612, %v2634
        %v2637 = vunpack.c.l.s4 1966171168
        %v2638 = vunpack.c.0.s8 %v2637
        %v2639 = vlaneseq
        %v2640 = vshrl.u32 %v2639, 7
        %v2641 = vsub.s32 %v2638, %v2640
        %v2642 = vrot.slane %v2614, %v2641
        %v2643 = vcombine.high %v2621, %v2621
        %v2644 = vcombine.high %v2628, %v2628
        %v2645 = vcombine.high %v2635, %v2635
        %v2646 = vcombine.high %v2642, %v2642
        %v2647 = vcombine.low %v2259, %v2391
        %v2649 = vunpack.c.l.s4 1966171168
        %v2650 = vunpack.c.0.s8 %v2649
        %v2651 = vlaneseq
        %v2652 = vshrl.u32 %v2651, 7
        %v2653 = vsub.s32 %v2650, %v2652
        %v2654 = vrot.slane %v2647, %v2653
        %v2655 = vcombine.low %v2586, %v2654
        %v2657 = vunpack.c.l.s4 1966171168
        %v2658 = vunpack.c.0.s8 %v2657
        %v2659 = vlaneseq
        %v2660 = vshrl.u32 %v2659, 7
        %v2661 = vsub.s32 %v2658, %v2660
        %v2662 = vrot.slane %v2655, %v2661
        %v2663 = vcombine.low %v2276, %v2395
        %v2664 = vcombine.high %v2276, %v2395
        %v2666 = vunpack.c.l.s4 1966171168
        %v2667 = vunpack.c.0.s8 %v2666
        %v2668 = vlaneseq
        %v2669 = vshrl.u32 %v2668, 7
        %v2670 = vsub.s32 %v2667, %v2669
        %v2671 = vrot.slane %v2663, %v2670
        %v2673 = vunpack.c.l.s4 1966171168
        %v2674 = vunpack.c.0.s8 %v2673
        %v2675 = vlaneseq
        %v2676 = vshrl.u32 %v2675, 7
        %v2677 = vsub.s32 %v2674, %v2676
        %v2678 = vrot.slane %v2664, %v2677
        %v2679 = vcombine.low %v2603, %v2671
        %v2680 = vcombine.high %v2603, %v2671
        %v2681 = vcombine.low %v2610, %v2678
        %v2682 = vcombine.high %v2610, %v2678
        %v2684 = vunpack.c.l.s4 1966171168
        %v2685 = vunpack.c.0.s8 %v2684
        %v2686 = vlaneseq
        %v2687 = vshrl.u32 %v2686, 7
        %v2688 = vsub.s32 %v2685, %v2687
        %v2689 = vrot.slane %v2679, %v2688
        %v2691 = vunpack.c.l.s4 1966171168
        %v2692 = vunpack.c.0.s8 %v2691
        %v2693 = vlaneseq
        %v2694 = vshrl.u32 %v2693, 7
        %v2695 = vsub.s32 %v2692, %v2694
        %v2696 = vrot.slane %v2681, %v2695
        %v2698 = vunpack.c.l.s4 1966171168
        %v2699 = vunpack.c.0.s8 %v2698
        %v2700 = vlaneseq
        %v2701 = vshrl.u32 %v2700, 7
        %v2702 = vsub.s32 %v2699, %v2701
        %v2703 = vrot.slane %v2680, %v2702
        %v2705 = vunpack.c.l.s4 1966171168
        %v2706 = vunpack.c.0.s8 %v2705
        %v2707 = vlaneseq
        %v2708 = vshrl.u32 %v2707, 7
        %v2709 = vsub.s32 %v2706, %v2708
        %v2710 = vrot.slane %v2682, %v2709
        %v2711 = vcombine.high %v2689, %v2689
        %v2712 = vcombine.high %v2696, %v2696
        %v2713 = vcombine.high %v2703, %v2703
        %v2714 = vcombine.high %v2710, %v2710
        %v2715 = vcombine.low %v2283, %v2394
        %v2717 = vunpack.c.l.s4 1966171168
        %v2718 = vunpack.c.0.s8 %v2717
        %v2719 = vlaneseq
        %v2720 = vshrl.u32 %v2719, 7
        %v2721 = vsub.s32 %v2718, %v2720
        %v2722 = vrot.slane %v2715, %v2721
        %v2723 = vcombine.low %v2654, %v2722
        %v2725 = vunpack.c.l.s4 1966171168
        %v2726 = vunpack.c.0.s8 %v2725
        %v2727 = vlaneseq
        %v2728 = vshrl.u32 %v2727, 7
        %v2729 = vsub.s32 %v2726, %v2728
        %v2730 = vrot.slane %v2723, %v2729
        %v2731 = vcombine.low %v2300, %v2398
        %v2732 = vcombine.high %v2300, %v2398
        %v2734 = vunpack.c.l.s4 1966171168
        %v2735 = vunpack.c.0.s8 %v2734
        %v2736 = vlaneseq
        %v2737 = vshrl.u32 %v2736, 7
        %v2738 = vsub.s32 %v2735, %v2737
        %v2739 = vrot.slane %v2731, %v2738
        %v2741 = vunpack.c.l.s4 1966171168
        %v2742 = vunpack.c.0.s8 %v2741
        %v2743 = vlaneseq
        %v2744 = vshrl.u32 %v2743, 7
        %v2745 = vsub.s32 %v2742, %v2744
        %v2746 = vrot.slane %v2732, %v2745
        %v2747 = vcombine.low %v2671, %v2739
        %v2748 = vcombine.high %v2671, %v2739
        %v2749 = vcombine.low %v2678, %v2746
        %v2750 = vcombine.high %v2678, %v2746
        %v2752 = vunpack.c.l.s4 1966171168
        %v2753 = vunpack.c.0.s8 %v2752
        %v2754 = vlaneseq
        %v2755 = vshrl.u32 %v2754, 7
        %v2756 = vsub.s32 %v2753, %v2755
        %v2757 = vrot.slane %v2747, %v2756
        %v2759 = vunpack.c.l.s4 1966171168
        %v2760 = vunpack.c.0.s8 %v2759
        %v2761 = vlaneseq
        %v2762 = vshrl.u32 %v2761, 7
        %v2763 = vsub.s32 %v2760, %v2762
        %v2764 = vrot.slane %v2749, %v2763
        %v2766 = vunpack.c.l.s4 1966171168
        %v2767 = vunpack.c.0.s8 %v2766
        %v2768 = vlaneseq
        %v2769 = vshrl.u32 %v2768, 7
        %v2770 = vsub.s32 %v2767, %v2769
        %v2771 = vrot.slane %v2748, %v2770
        %v2773 = vunpack.c.l.s4 1966171168
        %v2774 = vunpack.c.0.s8 %v2773
        %v2775 = vlaneseq
        %v2776 = vshrl.u32 %v2775, 7
        %v2777 = vsub.s32 %v2774, %v2776
        %v2778 = vrot.slane %v2750, %v2777
        %v2779 = vcombine.high %v2757, %v2757
        %v2780 = vcombine.high %v2764, %v2764
        %v2781 = vcombine.high %v2771, %v2771
        %v2782 = vcombine.high %v2778, %v2778
        %v2783 = vcombine.low %v2307, %v2397
        %v2785 = vunpack.c.l.s4 1966171168
        %v2786 = vunpack.c.0.s8 %v2785
        %v2787 = vlaneseq
        %v2788 = vshrl.u32 %v2787, 7
        %v2789 = vsub.s32 %v2786, %v2788
        %v2790 = vrot.slane %v2783, %v2789
        %v2791 = vcombine.low %v2722, %v2790
        %v2793 = vunpack.c.l.s4 1966171168
        %v2794 = vunpack.c.0.s8 %v2793
        %v2795 = vlaneseq
        %v2796 = vshrl.u32 %v2795, 7
        %v2797 = vsub.s32 %v2794, %v2796
        %v2798 = vrot.slane %v2791, %v2797
        %v2799 = vcombine.low %v2324, %v2401
        %v2800 = vcombine.high %v2324, %v2401
        %v2802 = vunpack.c.l.s4 1966171168
        %v2803 = vunpack.c.0.s8 %v2802
        %v2804 = vlaneseq
        %v2805 = vshrl.u32 %v2804, 7
        %v2806 = vsub.s32 %v2803, %v2805
        %v2807 = vrot.slane %v2799, %v2806
        %v2809 = vunpack.c.l.s4 1966171168
        %v2810 = vunpack.c.0.s8 %v2809
        %v2811 = vlaneseq
        %v2812 = vshrl.u32 %v2811, 7
        %v2813 = vsub.s32 %v2810, %v2812
        %v2814 = vrot.slane %v2800, %v2813
        %v2815 = vcombine.low %v2739, %v2807
        %v2816 = vcombine.high %v2739, %v2807
        %v2817 = vcombine.low %v2746, %v2814
        %v2818 = vcombine.high %v2746, %v2814
        %v2820 = vunpack.c.l.s4 1966171168
        %v2821 = vunpack.c.0.s8 %v2820
        %v2822 = vlaneseq
        %v2823 = vshrl.u32 %v2822, 7
        %v2824 = vsub.s32 %v2821, %v2823
        %v2825 = vrot.slane %v2815, %v2824
        %v2827 = vunpack.c.l.s4 1966171168
        %v2828 = vunpack.c.0.s8 %v2827
        %v2829 = vlaneseq
        %v2830 = vshrl.u32 %v2829, 7
        %v2831 = vsub.s32 %v2828, %v2830
        %v2832 = vrot.slane %v2817, %v2831
        %v2834 = vunpack.c.l.s4 1966171168
        %v2835 = vunpack.c.0.s8 %v2834
        %v2836 = vlaneseq
        %v2837 = vshrl.u32 %v2836, 7
        %v2838 = vsub.s32 %v2835, %v2837
        %v2839 = vrot.slane %v2816, %v2838
        %v2841 = vunpack.c.l.s4 1966171168
        %v2842 = vunpack.c.0.s8 %v2841
        %v2843 = vlaneseq
        %v2844 = vshrl.u32 %v2843, 7
        %v2845 = vsub.s32 %v2842, %v2844
        %v2846 = vrot.slane %v2818, %v2845
        %v2847 = vcombine.high %v2825, %v2825
        %v2848 = vcombine.high %v2832, %v2832
        %v2849 = vcombine.high %v2839, %v2839
        %v2850 = vcombine.high %v2846, %v2846
        %v2851 = vcombine.low %v2331, %v2400
        %v2853 = vunpack.c.l.s4 1966171168
        %v2854 = vunpack.c.0.s8 %v2853
        %v2855 = vlaneseq
        %v2856 = vshrl.u32 %v2855, 7
        %v2857 = vsub.s32 %v2854, %v2856
        %v2858 = vrot.slane %v2851, %v2857
        %v2859 = vcombine.low %v2790, %v2858
        %v2861 = vunpack.c.l.s4 1966171168
        %v2862 = vunpack.c.0.s8 %v2861
        %v2863 = vlaneseq
        %v2864 = vshrl.u32 %v2863, 7
        %v2865 = vsub.s32 %v2862, %v2864
        %v2866 = vrot.slane %v2859, %v2865
        %v2867 = vcombine.low %v2348, %v2404
        %v2868 = vcombine.high %v2348, %v2404
        %v2870 = vunpack.c.l.s4 1966171168
        %v2871 = vunpack.c.0.s8 %v2870
        %v2872 = vlaneseq
        %v2873 = vshrl.u32 %v2872, 7
        %v2874 = vsub.s32 %v2871, %v2873
        %v2875 = vrot.slane %v2867, %v2874
        %v2877 = vunpack.c.l.s4 1966171168
        %v2878 = vunpack.c.0.s8 %v2877
        %v2879 = vlaneseq
        %v2880 = vshrl.u32 %v2879, 7
        %v2881 = vsub.s32 %v2878, %v2880
        %v2882 = vrot.slane %v2868, %v2881
        %v2883 = vcombine.low %v2807, %v2875
        %v2884 = vcombine.high %v2807, %v2875
        %v2885 = vcombine.low %v2814, %v2882
        %v2886 = vcombine.high %v2814, %v2882
        %v2888 = vunpack.c.l.s4 1966171168
        %v2889 = vunpack.c.0.s8 %v2888
        %v2890 = vlaneseq
        %v2891 = vshrl.u32 %v2890, 7
        %v2892 = vsub.s32 %v2889, %v2891
        %v2893 = vrot.slane %v2883, %v2892
        %v2895 = vunpack.c.l.s4 1966171168
        %v2896 = vunpack.c.0.s8 %v2895
        %v2897 = vlaneseq
        %v2898 = vshrl.u32 %v2897, 7
        %v2899 = vsub.s32 %v2896, %v2898
        %v2900 = vrot.slane %v2885, %v2899
        %v2902 = vunpack.c.l.s4 1966171168
        %v2903 = vunpack.c.0.s8 %v2902
        %v2904 = vlaneseq
        %v2905 = vshrl.u32 %v2904, 7
        %v2906 = vsub.s32 %v2903, %v2905
        %v2907 = vrot.slane %v2884, %v2906
        %v2909 = vunpack.c.l.s4 1966171168
        %v2910 = vunpack.c.0.s8 %v2909
        %v2911 = vlaneseq
        %v2912 = vshrl.u32 %v2911, 7
        %v2913 = vsub.s32 %v2910, %v2912
        %v2914 = vrot.slane %v2886, %v2913
        %v2915 = vcombine.high %v2893, %v2893
        %v2916 = vcombine.high %v2900, %v2900
        %v2917 = vcombine.high %v2907, %v2907
        %v2918 = vcombine.high %v2914, %v2914
        %v2919 = vcombine.low %v2355, %v2403
        %v2921 = vunpack.c.l.s4 1966171168
        %v2922 = vunpack.c.0.s8 %v2921
        %v2923 = vlaneseq
        %v2924 = vshrl.u32 %v2923, 7
        %v2925 = vsub.s32 %v2922, %v2924
        %v2926 = vrot.slane %v2919, %v2925
        %v2927 = vcombine.low %v2858, %v2926
        %v2929 = vunpack.c.l.s4 1966171168
        %v2930 = vunpack.c.0.s8 %v2929
        %v2931 = vlaneseq
        %v2932 = vshrl.u32 %v2931, 7
        %v2933 = vsub.s32 %v2930, %v2932
        %v2934 = vrot.slane %v2927, %v2933
        %v2935 = vcombine.low %v2372, %v2407
        %v2936 = vcombine.high %v2372, %v2407
        %v2938 = vunpack.c.l.s4 1966171168
        %v2939 = vunpack.c.0.s8 %v2938
        %v2940 = vlaneseq
        %v2941 = vshrl.u32 %v2940, 7
        %v2942 = vsub.s32 %v2939, %v2941
        %v2943 = vrot.slane %v2935, %v2942
        %v2945 = vunpack.c.l.s4 1966171168
        %v2946 = vunpack.c.0.s8 %v2945
        %v2947 = vlaneseq
        %v2948 = vshrl.u32 %v2947, 7
        %v2949 = vsub.s32 %v2946, %v2948
        %v2950 = vrot.slane %v2936, %v2949
        %v2951 = vcombine.low %v2875, %v2943
        %v2952 = vcombine.high %v2875, %v2943
        %v2953 = vcombine.low %v2882, %v2950
        %v2954 = vcombine.high %v2882, %v2950
        %v2956 = vunpack.c.l.s4 1966171168
        %v2957 = vunpack.c.0.s8 %v2956
        %v2958 = vlaneseq
        %v2959 = vshrl.u32 %v2958, 7
        %v2960 = vsub.s32 %v2957, %v2959
        %v2961 = vrot.slane %v2951, %v2960
        %v2963 = vunpack.c.l.s4 1966171168
        %v2964 = vunpack.c.0.s8 %v2963
        %v2965 = vlaneseq
        %v2966 = vshrl.u32 %v2965, 7
        %v2967 = vsub.s32 %v2964, %v2966
        %v2968 = vrot.slane %v2953, %v2967
        %v2970 = vunpack.c.l.s4 1966171168
        %v2971 = vunpack.c.0.s8 %v2970
        %v2972 = vlaneseq
        %v2973 = vshrl.u32 %v2972, 7
        %v2974 = vsub.s32 %v2971, %v2973
        %v2975 = vrot.slane %v2952, %v2974
        %v2977 = vunpack.c.l.s4 1966171168
        %v2978 = vunpack.c.0.s8 %v2977
        %v2979 = vlaneseq
        %v2980 = vshrl.u32 %v2979, 7
        %v2981 = vsub.s32 %v2978, %v2980
        %v2982 = vrot.slane %v2954, %v2981
        %v2983 = vcombine.high %v2961, %v2961
        %v2984 = vcombine.high %v2968, %v2968
        %v2985 = vcombine.high %v2975, %v2975
        %v2986 = vcombine.high %v2982, %v2982
        %v2987 = vcombine.low %v2379, %v2406
        %v2989 = vunpack.c.l.s4 1966171168
        %v2990 = vunpack.c.0.s8 %v2989
        %v2991 = vlaneseq
        %v2992 = vshrl.u32 %v2991, 7
        %v2993 = vsub.s32 %v2990, %v2992
        %v2994 = vrot.slane %v2987, %v2993
        %v2995 = vcombine.low %v2926, %v2994
        %v2997 = vunpack.c.l.s4 1966171168
        %v2998 = vunpack.c.0.s8 %v2997
        %v2999 = vlaneseq
        %v3000 = vshrl.u32 %v2999, 7
        %v3001 = vsub.s32 %v2998, %v3000
        %v3002 = vrot.slane %v2995, %v3001
        %v3003 = vcombine.low %v2424, %v2434
        %v3004 = vcombine.high %v2424, %v2434
        %v3006 = vunpack.c.l.s4 1966171168
        %v3007 = vunpack.c.0.s8 %v3006
        %v3008 = vlaneseq
        %v3009 = vshrl.u32 %v3008, 7
        %v3010 = vsub.s32 %v3007, %v3009
        %v3011 = vrot.slane %v3003, %v3010
        %v3013 = vunpack.c.l.s4 1966171168
        %v3014 = vunpack.c.0.s8 %v3013
        %v3015 = vlaneseq
        %v3016 = vshrl.u32 %v3015, 7
        %v3017 = vsub.s32 %v3014, %v3016
        %v3018 = vrot.slane %v3004, %v3017
        %v3019 = vcombine.low %v2943, %v3011
        %v3020 = vcombine.high %v2943, %v3011
        %v3021 = vcombine.low %v2950, %v3018
        %v3022 = vcombine.high %v2950, %v3018
        %v3024 = vunpack.c.l.s4 1966171168
        %v3025 = vunpack.c.0.s8 %v3024
        %v3026 = vlaneseq
        %v3027 = vshrl.u32 %v3026, 7
        %v3028 = vsub.s32 %v3025, %v3027
        %v3029 = vrot.slane %v3019, %v3028
        %v3031 = vunpack.c.l.s4 1966171168
        %v3032 = vunpack.c.0.s8 %v3031
        %v3033 = vlaneseq
        %v3034 = vshrl.u32 %v3033, 7
        %v3035 = vsub.s32 %v3032, %v3034
        %v3036 = vrot.slane %v3021, %v3035
        %v3038 = vunpack.c.l.s4 1966171168
        %v3039 = vunpack.c.0.s8 %v3038
        %v3040 = vlaneseq
        %v3041 = vshrl.u32 %v3040, 7
        %v3042 = vsub.s32 %v3039, %v3041
        %v3043 = vrot.slane %v3020, %v3042
        %v3045 = vunpack.c.l.s4 1966171168
        %v3046 = vunpack.c.0.s8 %v3045
        %v3047 = vlaneseq
        %v3048 = vshrl.u32 %v3047, 7
        %v3049 = vsub.s32 %v3046, %v3048
        %v3050 = vrot.slane %v3022, %v3049
        %v3051 = vcombine.high %v3029, %v3029
        %v3052 = vcombine.high %v3036, %v3036
        %v3053 = vcombine.high %v3043, %v3043
        %v3054 = vcombine.high %v3050, %v3050
        %v3055 = vcombine.low %v2431, %v2433
        %v3057 = vunpack.c.l.s4 1966171168
        %v3058 = vunpack.c.0.s8 %v3057
        %v3059 = vlaneseq
        %v3060 = vshrl.u32 %v3059, 7
        %v3061 = vsub.s32 %v3058, %v3060
        %v3062 = vrot.slane %v3055, %v3061
        %v3063 = vcombine.low %v2994, %v3062
        %v3065 = vunpack.c.l.s4 1966171168
        %v3066 = vunpack.c.0.s8 %v3065
        %v3067 = vlaneseq
        %v3068 = vshrl.u32 %v3067, 7
        %v3069 = vsub.s32 %v3066, %v3068
        %v3070 = vrot.slane %v3063, %v3069
        %v3072 = vlaneseq
        %v3073 = vshrl.u32 %v3072, 7
        %v3074 = vsub.s32 0, %v3073
        %v3075 = vrot.slane %v481, %v3074
        %v3077 = vcombine.low %v2477, %v2491
        %v3078 = vcombine.low %v2499, %v2501
        %v3079 = vcombine.low %v2484, %v2498
        %v3080 = vcombine.low %v2500, %v2502
        %v3082 = vunpack.c.l.s4 1966171168
        %v3083 = vunpack.c.0.s8 %v3082
        %v3084 = vlaneseq
        %v3085 = vshrl.u32 %v3084, 7
        %v3086 = vsub.s32 %v3083, %v3085
        %v3087 = vrot.slane %v3077, %v3086
        %v3089 = vunpack.c.l.s4 1966171168
        %v3090 = vunpack.c.0.s8 %v3089
        %v3091 = vlaneseq
        %v3092 = vshrl.u32 %v3091, 7
        %v3093 = vsub.s32 %v3090, %v3092
        %v3094 = vrot.slane %v3078, %v3093
        %v3096 = vunpack.c.l.s4 1966171168
        %v3097 = vunpack.c.0.s8 %v3096
        %v3098 = vlaneseq
        %v3099 = vshrl.u32 %v3098, 7
        %v3100 = vsub.s32 %v3097, %v3099
        %v3101 = vrot.slane %v3079, %v3100
        %v3103 = vunpack.c.l.s4 1966171168
        %v3104 = vunpack.c.0.s8 %v3103
        %v3105 = vlaneseq
        %v3106 = vshrl.u32 %v3105, 7
        %v3107 = vsub.s32 %v3104, %v3106
        %v3108 = vrot.slane %v3080, %v3107
        %v3109 = vcombine.low %v3087, %v3094
        %v3110 = vcombine.high %v3087, %v3094
        %v3111 = vcombine.low %v3101, %v3108
        %v3112 = vcombine.high %v3101, %v3108
        %v3114 = vunpack.c.l.s4 1966171168
        %v3115 = vunpack.c.0.s8 %v3114
        %v3116 = vlaneseq
        %v3117 = vshrl.u32 %v3116, 7
        %v3118 = vsub.s32 %v3115, %v3117
        %v3119 = vrot.slane %v3109, %v3118
        %v3121 = vunpack.c.l.s4 1966171168
        %v3122 = vunpack.c.0.s8 %v3121
        %v3123 = vlaneseq
        %v3124 = vshrl.u32 %v3123, 7
        %v3125 = vsub.s32 %v3122, %v3124
        %v3126 = vrot.slane %v3110, %v3125
        %v3128 = vunpack.c.l.s4 1966171168
        %v3129 = vunpack.c.0.s8 %v3128
        %v3130 = vlaneseq
        %v3131 = vshrl.u32 %v3130, 7
        %v3132 = vsub.s32 %v3129, %v3131
        %v3133 = vrot.slane %v3111, %v3132
        %v3135 = vunpack.c.l.s4 1966171168
        %v3136 = vunpack.c.0.s8 %v3135
        %v3137 = vlaneseq
        %v3138 = vshrl.u32 %v3137, 7
        %v3139 = vsub.s32 %v3136, %v3138
        %v3140 = vrot.slane %v3112, %v3139
        %v3141 = vcombine.low %v3119, %v3133
        %v3142 = vcombine.high %v3119, %v3133
        %v3143 = vcombine.low %v3126, %v3140
        %v3144 = vcombine.high %v3126, %v3140
        %v3145 = vcombine.low %v2526, %v2553
        %v3146 = vcombine.low %v2567, %v2575
        %v3147 = vcombine.low %v2577, %v2560
        %v3148 = vcombine.low %v2574, %v2576
        %v3150 = vunpack.c.l.s4 1966171168
        %v3151 = vunpack.c.0.s8 %v3150
        %v3152 = vlaneseq
        %v3153 = vshrl.u32 %v3152, 7
        %v3154 = vsub.s32 %v3151, %v3153
        %v3155 = vrot.slane %v3145, %v3154
        %v3157 = vunpack.c.l.s4 1966171168
        %v3158 = vunpack.c.0.s8 %v3157
        %v3159 = vlaneseq
        %v3160 = vshrl.u32 %v3159, 7
        %v3161 = vsub.s32 %v3158, %v3160
        %v3162 = vrot.slane %v3146, %v3161
        %v3164 = vunpack.c.l.s4 1966171168
        %v3165 = vunpack.c.0.s8 %v3164
        %v3166 = vlaneseq
        %v3167 = vshrl.u32 %v3166, 7
        %v3168 = vsub.s32 %v3165, %v3167
        %v3169 = vrot.slane %v3147, %v3168
        %v3171 = vunpack.c.l.s4 1966171168
        %v3172 = vunpack.c.0.s8 %v3171
        %v3173 = vlaneseq
        %v3174 = vshrl.u32 %v3173, 7
        %v3175 = vsub.s32 %v3172, %v3174
        %v3176 = vrot.slane %v3148, %v3175
        %v3177 = vcombine.low %v3155, %v3162
        %v3178 = vcombine.high %v3155, %v3162
        %v3179 = vcombine.low %v3169, %v3176
        %v3180 = vcombine.high %v3169, %v3176
        %v3182 = vunpack.c.l.s4 1966171168
        %v3183 = vunpack.c.0.s8 %v3182
        %v3184 = vlaneseq
        %v3185 = vshrl.u32 %v3184, 7
        %v3186 = vsub.s32 %v3183, %v3185
        %v3187 = vrot.slane %v3177, %v3186
        %v3189 = vunpack.c.l.s4 1966171168
        %v3190 = vunpack.c.0.s8 %v3189
        %v3191 = vlaneseq
        %v3192 = vshrl.u32 %v3191, 7
        %v3193 = vsub.s32 %v3190, %v3192
        %v3194 = vrot.slane %v3178, %v3193
        %v3196 = vunpack.c.l.s4 1966171168
        %v3197 = vunpack.c.0.s8 %v3196
        %v3198 = vlaneseq
        %v3199 = vshrl.u32 %v3198, 7
        %v3200 = vsub.s32 %v3197, %v3199
        %v3201 = vrot.slane %v3179, %v3200
        %v3203 = vunpack.c.l.s4 1966171168
        %v3204 = vunpack.c.0.s8 %v3203
        %v3205 = vlaneseq
        %v3206 = vshrl.u32 %v3205, 7
        %v3207 = vsub.s32 %v3204, %v3206
        %v3208 = vrot.slane %v3180, %v3207
        %v3209 = vcombine.low %v3187, %v3201
        %v3210 = vcombine.high %v3187, %v3201
        %v3211 = vcombine.low %v3194, %v3208
        %v3212 = vcombine.high %v3194, %v3208
        %v3213 = vcombine.low %v2578, %v2594
        %v3214 = vcombine.low %v2621, %v2635
        %v3215 = vcombine.low %v2643, %v2645
        %v3216 = vcombine.low %v2628, %v2642
        %v3218 = vunpack.c.l.s4 1966171168
        %v3219 = vunpack.c.0.s8 %v3218
        %v3220 = vlaneseq
        %v3221 = vshrl.u32 %v3220, 7
        %v3222 = vsub.s32 %v3219, %v3221
        %v3223 = vrot.slane %v3213, %v3222
        %v3225 = vunpack.c.l.s4 1966171168
        %v3226 = vunpack.c.0.s8 %v3225
        %v3227 = vlaneseq
        %v3228 = vshrl.u32 %v3227, 7
        %v3229 = vsub.s32 %v3226, %v3228
        %v3230 = vrot.slane %v3214, %v3229
        %v3232 = vunpack.c.l.s4 1966171168
        %v3233 = vunpack.c.0.s8 %v3232
        %v3234 = vlaneseq
        %v3235 = vshrl.u32 %v3234, 7
        %v3236 = vsub.s32 %v3233, %v3235
        %v3237 = vrot.slane %v3215, %v3236
        %v3239 = vunpack.c.l.s4 1966171168
        %v3240 = vunpack.c.0.s8 %v3239
        %v3241 = vlaneseq
        %v3242 = vshrl.u32 %v3241, 7
        %v3243 = vsub.s32 %v3240, %v3242
        %v3244 = vrot.slane %v3216, %v3243
        %v3245 = vcombine.low %v3223, %v3230
        %v3246 = vcombine.high %v3223, %v3230
        %v3247 = vcombine.low %v3237, %v3244
        %v3248 = vcombine.high %v3237, %v3244
        %v3250 = vunpack.c.l.s4 1966171168
        %v3251 = vunpack.c.0.s8 %v3250
        %v3252 = vlaneseq
        %v3253 = vshrl.u32 %v3252, 7
        %v3254 = vsub.s32 %v3251, %v3253
        %v3255 = vrot.slane %v3245, %v3254
        %v3257 = vunpack.c.l.s4 1966171168
        %v3258 = vunpack.c.0.s8 %v3257
        %v3259 = vlaneseq
        %v3260 = vshrl.u32 %v3259, 7
        %v3261 = vsub.s32 %v3258, %v3260
        %v3262 = vrot.slane %v3246, %v3261
        %v3264 = vunpack.c.l.s4 1966171168
        %v3265 = vunpack.c.0.s8 %v3264
        %v3266 = vlaneseq
        %v3267 = vshrl.u32 %v3266, 7
        %v3268 = vsub.s32 %v3265, %v3267
        %v3269 = vrot.slane %v3247, %v3268
        %v3271 = vunpack.c.l.s4 1966171168
        %v3272 = vunpack.c.0.s8 %v3271
        %v3273 = vlaneseq
        %v3274 = vshrl.u32 %v3273, 7
        %v3275 = vsub.s32 %v3272, %v3274
        %v3276 = vrot.slane %v3248, %v3275
        %v3277 = vcombine.low %v3255, %v3269
        %v3278 = vcombine.high %v3255, %v3269
        %v3279 = vcombine.low %v3262, %v3276
        %v3280 = vcombine.high %v3262, %v3276
        %v3281 = vcombine.low %v2644, %v2646
        %v3282 = vcombine.low %v2662, %v2689
        %v3283 = vcombine.low %v2703, %v2711
        %v3284 = vcombine.low %v2713, %v2696
        %v3286 = vunpack.c.l.s4 1966171168
        %v3287 = vunpack.c.0.s8 %v3286
        %v3288 = vlaneseq
        %v3289 = vshrl.u32 %v3288, 7
        %v3290 = vsub.s32 %v3287, %v3289
        %v3291 = vrot.slane %v3281, %v3290
        %v3293 = vunpack.c.l.s4 1966171168
        %v3294 = vunpack.c.0.s8 %v3293
        %v3295 = vlaneseq
        %v3296 = vshrl.u32 %v3295, 7
        %v3297 = vsub.s32 %v3294, %v3296
        %v3298 = vrot.slane %v3282, %v3297
        %v3300 = vunpack.c.l.s4 1966171168
        %v3301 = vunpack.c.0.s8 %v3300
        %v3302 = vlaneseq
        %v3303 = vshrl.u32 %v3302, 7
        %v3304 = vsub.s32 %v3301, %v3303
        %v3305 = vrot.slane %v3283, %v3304
        %v3307 = vunpack.c.l.s4 1966171168
        %v3308 = vunpack.c.0.s8 %v3307
        %v3309 = vlaneseq
        %v3310 = vshrl.u32 %v3309, 7
        %v3311 = vsub.s32 %v3308, %v3310
        %v3312 = vrot.slane %v3284, %v3311
        %v3313 = vcombine.low %v3291, %v3298
        %v3314 = vcombine.high %v3291, %v3298
        %v3315 = vcombine.low %v3305, %v3312
        %v3316 = vcombine.high %v3305, %v3312
        %v3318 = vunpack.c.l.s4 1966171168
        %v3319 = vunpack.c.0.s8 %v3318
        %v3320 = vlaneseq
        %v3321 = vshrl.u32 %v3320, 7
        %v3322 = vsub.s32 %v3319, %v3321
        %v3323 = vrot.slane %v3313, %v3322
        %v3325 = vunpack.c.l.s4 1966171168
        %v3326 = vunpack.c.0.s8 %v3325
        %v3327 = vlaneseq
        %v3328 = vshrl.u32 %v3327, 7
        %v3329 = vsub.s32 %v3326, %v3328
        %v3330 = vrot.slane %v3314, %v3329
        %v3332 = vunpack.c.l.s4 1966171168
        %v3333 = vunpack.c.0.s8 %v3332
        %v3334 = vlaneseq
        %v3335 = vshrl.u32 %v3334, 7
        %v3336 = vsub.s32 %v3333, %v3335
        %v3337 = vrot.slane %v3315, %v3336
        %v3339 = vunpack.c.l.s4 1966171168
        %v3340 = vunpack.c.0.s8 %v3339
        %v3341 = vlaneseq
        %v3342 = vshrl.u32 %v3341, 7
        %v3343 = vsub.s32 %v3340, %v3342
        %v3344 = vrot.slane %v3316, %v3343
        %v3345 = vcombine.low %v3323, %v3337
        %v3346 = vcombine.high %v3323, %v3337
        %v3347 = vcombine.low %v3330, %v3344
        %v3348 = vcombine.high %v3330, %v3344
        %v3349 = vcombine.low %v2710, %v2712
        %v3350 = vcombine.low %v2714, %v2730
        %v3351 = vcombine.low %v2757, %v2771
        %v3352 = vcombine.low %v2779, %v2781
        %v3354 = vunpack.c.l.s4 1966171168
        %v3355 = vunpack.c.0.s8 %v3354
        %v3356 = vlaneseq
        %v3357 = vshrl.u32 %v3356, 7
        %v3358 = vsub.s32 %v3355, %v3357
        %v3359 = vrot.slane %v3349, %v3358
        %v3361 = vunpack.c.l.s4 1966171168
        %v3362 = vunpack.c.0.s8 %v3361
        %v3363 = vlaneseq
        %v3364 = vshrl.u32 %v3363, 7
        %v3365 = vsub.s32 %v3362, %v3364
        %v3366 = vrot.slane %v3350, %v3365
        %v3368 = vunpack.c.l.s4 1966171168
        %v3369 = vunpack.c.0.s8 %v3368
        %v3370 = vlaneseq
        %v3371 = vshrl.u32 %v3370, 7
        %v3372 = vsub.s32 %v3369, %v3371
        %v3373 = vrot.slane %v3351, %v3372
        %v3375 = vunpack.c.l.s4 1966171168
        %v3376 = vunpack.c.0.s8 %v3375
        %v3377 = vlaneseq
        %v3378 = vshrl.u32 %v3377, 7
        %v3379 = vsub.s32 %v3376, %v3378
        %v3380 = vrot.slane %v3352, %v3379
        %v3381 = vcombine.low %v3359, %v3366
        %v3382 = vcombine.high %v3359, %v3366
        %v3383 = vcombine.low %v3373, %v3380
        %v3384 = vcombine.high %v3373, %v3380
        %v3386 = vunpack.c.l.s4 1966171168
        %v3387 = vunpack.c.0.s8 %v3386
        %v3388 = vlaneseq
        %v3389 = vshrl.u32 %v3388, 7
        %v3390 = vsub.s32 %v3387, %v3389
        %v3391 = vrot.slane %v3381, %v3390
        %v3393 = vunpack.c.l.s4 1966171168
        %v3394 = vunpack.c.0.s8 %v3393
        %v3395 = vlaneseq
        %v3396 = vshrl.u32 %v3395, 7
        %v3397 = vsub.s32 %v3394, %v3396
        %v3398 = vrot.slane %v3382, %v3397
        %v3400 = vunpack.c.l.s4 1966171168
        %v3401 = vunpack.c.0.s8 %v3400
        %v3402 = vlaneseq
        %v3403 = vshrl.u32 %v3402, 7
        %v3404 = vsub.s32 %v3401, %v3403
        %v3405 = vrot.slane %v3383, %v3404
        %v3407 = vunpack.c.l.s4 1966171168
        %v3408 = vunpack.c.0.s8 %v3407
        %v3409 = vlaneseq
        %v3410 = vshrl.u32 %v3409, 7
        %v3411 = vsub.s32 %v3408, %v3410
        %v3412 = vrot.slane %v3384, %v3411
        %v3413 = vcombine.low %v3391, %v3405
        %v3414 = vcombine.high %v3391, %v3405
        %v3415 = vcombine.low %v3398, %v3412
        %v3416 = vcombine.high %v3398, %v3412
        %v3417 = vcombine.low %v2764, %v2778
        %v3418 = vcombine.low %v2780, %v2782
        %v3419 = vcombine.low %v2798, %v2825
        %v3420 = vcombine.low %v2839, %v2847
        %v3422 = vunpack.c.l.s4 1966171168
        %v3423 = vunpack.c.0.s8 %v3422
        %v3424 = vlaneseq
        %v3425 = vshrl.u32 %v3424, 7
        %v3426 = vsub.s32 %v3423, %v3425
        %v3427 = vrot.slane %v3417, %v3426
        %v3429 = vunpack.c.l.s4 1966171168
        %v3430 = vunpack.c.0.s8 %v3429
        %v3431 = vlaneseq
        %v3432 = vshrl.u32 %v3431, 7
        %v3433 = vsub.s32 %v3430, %v3432
        %v3434 = vrot.slane %v3418, %v3433
        %v3436 = vunpack.c.l.s4 1966171168
        %v3437 = vunpack.c.0.s8 %v3436
        %v3438 = vlaneseq
        %v3439 = vshrl.u32 %v3438, 7
        %v3440 = vsub.s32 %v3437, %v3439
        %v3441 = vrot.slane %v3419, %v3440
        %v3443 = vunpack.c.l.s4 1966171168
        %v3444 = vunpack.c.0.s8 %v3443
        %v3445 = vlaneseq
        %v3446 = vshrl.u32 %v3445, 7
        %v3447 = vsub.s32 %v3444, %v3446
        %v3448 = vrot.slane %v3420, %v3447
        %v3449 = vcombine.low %v3427, %v3434
        %v3450 = vcombine.high %v3427, %v3434
        %v3451 = vcombine.low %v3441, %v3448
        %v3452 = vcombine.high %v3441, %v3448
        %v3454 = vunpack.c.l.s4 1966171168
        %v3455 = vunpack.c.0.s8 %v3454
        %v3456 = vlaneseq
        %v3457 = vshrl.u32 %v3456, 7
        %v3458 = vsub.s32 %v3455, %v3457
        %v3459 = vrot.slane %v3449, %v3458
        %v3461 = vunpack.c.l.s4 1966171168
        %v3462 = vunpack.c.0.s8 %v3461
        %v3463 = vlaneseq
        %v3464 = vshrl.u32 %v3463, 7
        %v3465 = vsub.s32 %v3462, %v3464
        %v3466 = vrot.slane %v3450, %v3465
        %v3468 = vunpack.c.l.s4 1966171168
        %v3469 = vunpack.c.0.s8 %v3468
        %v3470 = vlaneseq
        %v3471 = vshrl.u32 %v3470, 7
        %v3472 = vsub.s32 %v3469, %v3471
        %v3473 = vrot.slane %v3451, %v3472
        %v3475 = vunpack.c.l.s4 1966171168
        %v3476 = vunpack.c.0.s8 %v3475
        %v3477 = vlaneseq
        %v3478 = vshrl.u32 %v3477, 7
        %v3479 = vsub.s32 %v3476, %v3478
        %v3480 = vrot.slane %v3452, %v3479
        %v3481 = vcombine.low %v3459, %v3473
        %v3482 = vcombine.high %v3459, %v3473
        %v3483 = vcombine.low %v3466, %v3480
        %v3484 = vcombine.high %v3466, %v3480
        %v3485 = vcombine.low %v2849, %v2832
        %v3486 = vcombine.low %v2846, %v2848
        %v3487 = vcombine.low %v2850, %v2866
        %v3488 = vcombine.low %v2893, %v2907
        %v3490 = vunpack.c.l.s4 1966171168
        %v3491 = vunpack.c.0.s8 %v3490
        %v3492 = vlaneseq
        %v3493 = vshrl.u32 %v3492, 7
        %v3494 = vsub.s32 %v3491, %v3493
        %v3495 = vrot.slane %v3485, %v3494
        %v3497 = vunpack.c.l.s4 1966171168
        %v3498 = vunpack.c.0.s8 %v3497
        %v3499 = vlaneseq
        %v3500 = vshrl.u32 %v3499, 7
        %v3501 = vsub.s32 %v3498, %v3500
        %v3502 = vrot.slane %v3486, %v3501
        %v3504 = vunpack.c.l.s4 1966171168
        %v3505 = vunpack.c.0.s8 %v3504
        %v3506 = vlaneseq
        %v3507 = vshrl.u32 %v3506, 7
        %v3508 = vsub.s32 %v3505, %v3507
        %v3509 = vrot.slane %v3487, %v3508
        %v3511 = vunpack.c.l.s4 1966171168
        %v3512 = vunpack.c.0.s8 %v3511
        %v3513 = vlaneseq
        %v3514 = vshrl.u32 %v3513, 7
        %v3515 = vsub.s32 %v3512, %v3514
        %v3516 = vrot.slane %v3488, %v3515
        %v3517 = vcombine.low %v3495, %v3502
        %v3518 = vcombine.high %v3495, %v3502
        %v3519 = vcombine.low %v3509, %v3516
        %v3520 = vcombine.high %v3509, %v3516
        %v3522 = vunpack.c.l.s4 1966171168
        %v3523 = vunpack.c.0.s8 %v3522
        %v3524 = vlaneseq
        %v3525 = vshrl.u32 %v3524, 7
        %v3526 = vsub.s32 %v3523, %v3525
        %v3527 = vrot.slane %v3517, %v3526
        %v3529 = vunpack.c.l.s4 1966171168
        %v3530 = vunpack.c.0.s8 %v3529
        %v3531 = vlaneseq
        %v3532 = vshrl.u32 %v3531, 7
        %v3533 = vsub.s32 %v3530, %v3532
        %v3534 = vrot.slane %v3518, %v3533
        %v3536 = vunpack.c.l.s4 1966171168
        %v3537 = vunpack.c.0.s8 %v3536
        %v3538 = vlaneseq
        %v3539 = vshrl.u32 %v3538, 7
        %v3540 = vsub.s32 %v3537, %v3539
        %v3541 = vrot.slane %v3519, %v3540
        %v3543 = vunpack.c.l.s4 1966171168
        %v3544 = vunpack.c.0.s8 %v3543
        %v3545 = vlaneseq
        %v3546 = vshrl.u32 %v3545, 7
        %v3547 = vsub.s32 %v3544, %v3546
        %v3548 = vrot.slane %v3520, %v3547
        %v3549 = vcombine.low %v3527, %v3541
        %v3550 = vcombine.high %v3527, %v3541
        %v3551 = vcombine.low %v3534, %v3548
        %v3552 = vcombine.high %v3534, %v3548
        %v3553 = vcombine.low %v2915, %v2917
        %v3554 = vcombine.low %v2900, %v2914
        %v3555 = vcombine.low %v2916, %v2918
        %v3556 = vcombine.low %v2934, %v2961
        %v3558 = vunpack.c.l.s4 1966171168
        %v3559 = vunpack.c.0.s8 %v3558
        %v3560 = vlaneseq
        %v3561 = vshrl.u32 %v3560, 7
        %v3562 = vsub.s32 %v3559, %v3561
        %v3563 = vrot.slane %v3553, %v3562
        %v3565 = vunpack.c.l.s4 1966171168
        %v3566 = vunpack.c.0.s8 %v3565
        %v3567 = vlaneseq
        %v3568 = vshrl.u32 %v3567, 7
        %v3569 = vsub.s32 %v3566, %v3568
        %v3570 = vrot.slane %v3554, %v3569
        %v3572 = vunpack.c.l.s4 1966171168
        %v3573 = vunpack.c.0.s8 %v3572
        %v3574 = vlaneseq
        %v3575 = vshrl.u32 %v3574, 7
        %v3576 = vsub.s32 %v3573, %v3575
        %v3577 = vrot.slane %v3555, %v3576
        %v3579 = vunpack.c.l.s4 1966171168
        %v3580 = vunpack.c.0.s8 %v3579
        %v3581 = vlaneseq
        %v3582 = vshrl.u32 %v3581, 7
        %v3583 = vsub.s32 %v3580, %v3582
        %v3584 = vrot.slane %v3556, %v3583
        %v3585 = vcombine.low %v3563, %v3570
        %v3586 = vcombine.high %v3563, %v3570
        %v3587 = vcombine.low %v3577, %v3584
        %v3588 = vcombine.high %v3577, %v3584
        %v3590 = vunpack.c.l.s4 1966171168
        %v3591 = vunpack.c.0.s8 %v3590
        %v3592 = vlaneseq
        %v3593 = vshrl.u32 %v3592, 7
        %v3594 = vsub.s32 %v3591, %v3593
        %v3595 = vrot.slane %v3585, %v3594
        %v3597 = vunpack.c.l.s4 1966171168
        %v3598 = vunpack.c.0.s8 %v3597
        %v3599 = vlaneseq
        %v3600 = vshrl.u32 %v3599, 7
        %v3601 = vsub.s32 %v3598, %v3600
        %v3602 = vrot.slane %v3586, %v3601
        %v3604 = vunpack.c.l.s4 1966171168
        %v3605 = vunpack.c.0.s8 %v3604
        %v3606 = vlaneseq
        %v3607 = vshrl.u32 %v3606, 7
        %v3608 = vsub.s32 %v3605, %v3607
        %v3609 = vrot.slane %v3587, %v3608
        %v3611 = vunpack.c.l.s4 1966171168
        %v3612 = vunpack.c.0.s8 %v3611
        %v3613 = vlaneseq
        %v3614 = vshrl.u32 %v3613, 7
        %v3615 = vsub.s32 %v3612, %v3614
        %v3616 = vrot.slane %v3588, %v3615
        %v3617 = vcombine.low %v3595, %v3609
        %v3618 = vcombine.high %v3595, %v3609
        %v3619 = vcombine.low %v3602, %v3616
        %v3620 = vcombine.high %v3602, %v3616
        %v3621 = vcombine.low %v2975, %v2983
        %v3622 = vcombine.low %v2985, %v2968
        %v3623 = vcombine.low %v2982, %v2984
        %v3624 = vcombine.low %v2986, %v3002
        %v3626 = vunpack.c.l.s4 1966171168
        %v3627 = vunpack.c.0.s8 %v3626
        %v3628 = vlaneseq
        %v3629 = vshrl.u32 %v3628, 7
        %v3630 = vsub.s32 %v3627, %v3629
        %v3631 = vrot.slane %v3621, %v3630
        %v3633 = vunpack.c.l.s4 1966171168
        %v3634 = vunpack.c.0.s8 %v3633
        %v3635 = vlaneseq
        %v3636 = vshrl.u32 %v3635, 7
        %v3637 = vsub.s32 %v3634, %v3636
        %v3638 = vrot.slane %v3622, %v3637
        %v3640 = vunpack.c.l.s4 1966171168
        %v3641 = vunpack.c.0.s8 %v3640
        %v3642 = vlaneseq
        %v3643 = vshrl.u32 %v3642, 7
        %v3644 = vsub.s32 %v3641, %v3643
        %v3645 = vrot.slane %v3623, %v3644
        %v3647 = vunpack.c.l.s4 1966171168
        %v3648 = vunpack.c.0.s8 %v3647
        %v3649 = vlaneseq
        %v3650 = vshrl.u32 %v3649, 7
        %v3651 = vsub.s32 %v3648, %v3650
        %v3652 = vrot.slane %v3624, %v3651
        %v3653 = vcombine.low %v3631, %v3638
        %v3654 = vcombine.high %v3631, %v3638
        %v3655 = vcombine.low %v3645, %v3652
        %v3656 = vcombine.high %v3645, %v3652
        %v3658 = vunpack.c.l.s4 1966171168
        %v3659 = vunpack.c.0.s8 %v3658
        %v3660 = vlaneseq
        %v3661 = vshrl.u32 %v3660, 7
        %v3662 = vsub.s32 %v3659, %v3661
        %v3663 = vrot.slane %v3653, %v3662
        %v3665 = vunpack.c.l.s4 1966171168
        %v3666 = vunpack.c.0.s8 %v3665
        %v3667 = vlaneseq
        %v3668 = vshrl.u32 %v3667, 7
        %v3669 = vsub.s32 %v3666, %v3668
        %v3670 = vrot.slane %v3654, %v3669
        %v3672 = vunpack.c.l.s4 1966171168
        %v3673 = vunpack.c.0.s8 %v3672
        %v3674 = vlaneseq
        %v3675 = vshrl.u32 %v3674, 7
        %v3676 = vsub.s32 %v3673, %v3675
        %v3677 = vrot.slane %v3655, %v3676
        %v3679 = vunpack.c.l.s4 1966171168
        %v3680 = vunpack.c.0.s8 %v3679
        %v3681 = vlaneseq
        %v3682 = vshrl.u32 %v3681, 7
        %v3683 = vsub.s32 %v3680, %v3682
        %v3684 = vrot.slane %v3656, %v3683
        %v3685 = vcombine.low %v3663, %v3677
        %v3686 = vcombine.high %v3663, %v3677
        %v3687 = vcombine.low %v3670, %v3684
        %v3688 = vcombine.high %v3670, %v3684
        %v3689 = vcombine.low %v3029, %v3043
        %v3690 = vcombine.low %v3051, %v3053
        %v3691 = vcombine.low %v3036, %v3050
        %v3692 = vcombine.low %v3052, %v3054
        %v3694 = vunpack.c.l.s4 1966171168
        %v3695 = vunpack.c.0.s8 %v3694
        %v3696 = vlaneseq
        %v3697 = vshrl.u32 %v3696, 7
        %v3698 = vsub.s32 %v3695, %v3697
        %v3699 = vrot.slane %v3689, %v3698
        %v3701 = vunpack.c.l.s4 1966171168
        %v3702 = vunpack.c.0.s8 %v3701
        %v3703 = vlaneseq
        %v3704 = vshrl.u32 %v3703, 7
        %v3705 = vsub.s32 %v3702, %v3704
        %v3706 = vrot.slane %v3690, %v3705
        %v3708 = vunpack.c.l.s4 1966171168
        %v3709 = vunpack.c.0.s8 %v3708
        %v3710 = vlaneseq
        %v3711 = vshrl.u32 %v3710, 7
        %v3712 = vsub.s32 %v3709, %v3711
        %v3713 = vrot.slane %v3691, %v3712
        %v3715 = vunpack.c.l.s4 1966171168
        %v3716 = vunpack.c.0.s8 %v3715
        %v3717 = vlaneseq
        %v3718 = vshrl.u32 %v3717, 7
        %v3719 = vsub.s32 %v3716, %v3718
        %v3720 = vrot.slane %v3692, %v3719
        %v3721 = vcombine.low %v3699, %v3706
        %v3722 = vcombine.high %v3699, %v3706
        %v3723 = vcombine.low %v3713, %v3720
        %v3724 = vcombine.high %v3713, %v3720
        %v3726 = vunpack.c.l.s4 1966171168
        %v3727 = vunpack.c.0.s8 %v3726
        %v3728 = vlaneseq
        %v3729 = vshrl.u32 %v3728, 7
        %v3730 = vsub.s32 %v3727, %v3729
        %v3731 = vrot.slane %v3721, %v3730
        %v3733 = vunpack.c.l.s4 1966171168
        %v3734 = vunpack.c.0.s8 %v3733
        %v3735 = vlaneseq
        %v3736 = vshrl.u32 %v3735, 7
        %v3737 = vsub.s32 %v3734, %v3736
        %v3738 = vrot.slane %v3722, %v3737
        %v3740 = vunpack.c.l.s4 1966171168
        %v3741 = vunpack.c.0.s8 %v3740
        %v3742 = vlaneseq
        %v3743 = vshrl.u32 %v3742, 7
        %v3744 = vsub.s32 %v3741, %v3743
        %v3745 = vrot.slane %v3723, %v3744
        %v3747 = vunpack.c.l.s4 1966171168
        %v3748 = vunpack.c.0.s8 %v3747
        %v3749 = vlaneseq
        %v3750 = vshrl.u32 %v3749, 7
        %v3751 = vsub.s32 %v3748, %v3750
        %v3752 = vrot.slane %v3724, %v3751
        %v3753 = vcombine.low %v3731, %v3745
        %v3754 = vcombine.high %v3731, %v3745
        %v3755 = vcombine.low %v3738, %v3752
        %v3756 = vcombine.high %v3738, %v3752
        %v3758 = vunpack.c.l.s4 1966171168
        %v3759 = vunpack.c.0.s8 %v3758
        %v3760 = vlaneseq
        %v3761 = vshrl.u32 %v3760, 7
        %v3762 = vsub.s32 %v3759, %v3761
        %v3763 = vrot.slane %v3070, %v3762
        %v3764 = vcombine.high %v3763, %v3763
        %v3766 = vunpack.c.l.s4 1966171168
        %v3767 = vunpack.c.0.s8 %v3766
        %v3768 = vlaneseq
        %v3769 = vshrl.u32 %v3768, 7
        %v3770 = vsub.s32 %v3767, %v3769
        %v3771 = vrot.slane %v3763, %v3770
        %v3773 = vunpack.c.l.s4 1966171168
        %v3774 = vunpack.c.0.s8 %v3773
        %v3775 = vlaneseq
        %v3776 = vshrl.u32 %v3775, 7
        %v3777 = vsub.s32 %v3774, %v3776
        %v3778 = vrot.slane %v3764, %v3777
        %v3779 = vcombine.high %v3771, %v3771
        %v3780 = vcombine.high %v3778, %v3778
        %3825 = vmatprep.subr.mxu0 0.0
        %3826 = vmatpush1.msra.mxu0 %v417
        %3827 = vmatprep.subr.mxu0 0.0
        %3828 = vmatpush1.msra.mxu0 %v418
        %3829 = vmatprep.subr.mxu0 0.0
        %3830 = vmatpush1.msra.mxu0 %v419
        %3831 = vmatprep.subr.mxu0 0.0
        %3832 = vmatpush1.msra.mxu0 %v420
        %3833 = vmatprep.subr.mxu0 0.0
        %3834 = vmatpush1.msra.mxu0 %v421
        %3835 = vmatprep.subr.mxu0 0.0
        %3836 = vmatpush1.msra.mxu0 %v422
        %3837 = vmatprep.subr.mxu0 0.0
        %3838 = vmatpush1.msra.mxu0 %v423
        %3839 = vmatprep.subr.mxu0 0.0
        %3840 = vmatpush1.msra.mxu0 %v424
        %3841 = vmatprep.subr.mxu0 0.0
        %3842 = vmatpush1.msra.mxu0 %v425
        %3843 = vmatprep.subr.mxu0 0.0
        %3844 = vmatpush1.msra.mxu0 %v426
        %3845 = vmatprep.subr.mxu0 0.0
        %3846 = vmatpush1.msra.mxu0 %v427
        %3847 = vmatprep.subr.mxu0 0.0
        %3848 = vmatpush1.msra.mxu0 %v428
        %3849 = vmatprep.subr.mxu0 0.0
        %3850 = vmatpush1.msra.mxu0 %v429
        %3851 = vmatprep.subr.mxu0 0.0
        %3852 = vmatpush1.msra.mxu0 %v430
        %3853 = vmatprep.subr.mxu0 0.0
        %3854 = vmatpush1.msra.mxu0 %v431
        %3855 = vmatprep.subr.mxu0 0.0
        %3856 = vmatpush1.msra.mxu0 %v432
        %3857 = vmatprep.subr.mxu0 0.0
        %3858 = vmatpush1.msra.mxu0 %v433
        %3859 = vmatprep.subr.mxu0 0.0
        %3860 = vmatpush1.msra.mxu0 %v434
        %3861 = vmatprep.subr.mxu0 0.0
        %3862 = vmatpush1.msra.mxu0 %v435
        %3863 = vmatprep.subr.mxu0 0.0
        %3864 = vmatpush1.msra.mxu0 %v436
        %3865 = vmatprep.subr.mxu0 0.0
        %3866 = vmatpush1.msra.mxu0 %v437
        %3867 = vmatprep.subr.mxu0 0.0
        %3868 = vmatpush1.msra.mxu0 %v438
        %3869 = vmatprep.subr.mxu0 0.0
        %3870 = vmatpush1.msra.mxu0 %v439
        %3871 = vmatprep.subr.mxu0 0.0
        %3872 = vmatpush1.msra.mxu0 %v440
        %3873 = vmatprep.subr.mxu0 0.0
        %3874 = vmatpush1.msra.mxu0 %v441
        %3875 = vmatprep.subr.mxu0 0.0
        %3876 = vmatpush1.msra.mxu0 %v442
        %3877 = vmatprep.subr.mxu0 0.0
        %3878 = vmatpush1.msra.mxu0 %v443
        %3879 = vmatprep.subr.mxu0 0.0
        %3880 = vmatpush1.msra.mxu0 %v444
        %3881 = vmatprep.subr.mxu0 0.0
        %3882 = vmatpush1.msra.mxu0 %v445
        %3883 = vmatprep.subr.mxu0 0.0
        %3884 = vmatpush1.msra.mxu0 %v446
        %3885 = vmatprep.subr.mxu0 0.0
        %3886 = vmatpush1.msra.mxu0 %v447
        %3887 = vmatprep.subr.mxu0 0.0
        %3888 = vmatpush1.msra.mxu0 %v448
        %3889 = vmatprep.mubr.f32.mxu0 %v3143
        %3890 = vmatmul.mubr.f32.gmra.mrb[0].mxu0 %v3141
        %v3891 = vpop.f32.mrb[0].mxu0
        %v3892 = vadd.f32 %v3075, %v3891
        %v3893 = vpop.f32.mrb[0].mxu0
        %3894 = vmatprep.mubr.f32.mxu0 %v3211
        %3895 = vmatmul.mubr.f32.gmra.mrb[0].mxu0 %v3209
        %v3896 = vpop.f32.mrb[0].mxu0
        %v3897 = vadd.f32 %v3075, %v3896
        %v3898 = vpop.f32.mrb[0].mxu0
        %3899 = vmatprep.mubr.f32.mxu0 %v3279
        %3900 = vmatmul.mubr.f32.gmra.mrb[0].mxu0 %v3277
        %v3901 = vpop.f32.mrb[0].mxu0
        %v3902 = vadd.f32 %v3075, %v3901
        %v3903 = vpop.f32.mrb[0].mxu0
        %3904 = vmatprep.mubr.f32.mxu0 %v3347
        %3905 = vmatmul.mubr.f32.gmra.mrb[0].mxu0 %v3345
        %v3906 = vpop.f32.mrb[0].mxu0
        %v3907 = vadd.f32 %v3075, %v3906
        %v3908 = vpop.f32.mrb[0].mxu0
        %3909 = vmatprep.mubr.f32.mxu0 %v3415
        %3910 = vmatmul.mubr.f32.gmra.mrb[0].mxu0 %v3413
        %v3911 = vpop.f32.mrb[0].mxu0
        %v3912 = vadd.f32 %v3075, %v3911
        %v3913 = vpop.f32.mrb[0].mxu0
        %3914 = vmatprep.mubr.f32.mxu0 %v3483
        %3915 = vmatmul.mubr.f32.gmra.mrb[0].mxu0 %v3481
        %v3916 = vpop.f32.mrb[0].mxu0
        %v3917 = vadd.f32 %v3075, %v3916
        %v3918 = vpop.f32.mrb[0].mxu0
        %3919 = vmatprep.mubr.f32.mxu0 %v3551
        %3920 = vmatmul.mubr.f32.gmra.mrb[0].mxu0 %v3549
        %v3921 = vpop.f32.mrb[0].mxu0
        %v3922 = vadd.f32 %v3075, %v3921
        %v3923 = vpop.f32.mrb[0].mxu0
        %3924 = vmatprep.mubr.f32.mxu0 %v3619
        %3925 = vmatmul.mubr.f32.gmra.mrb[0].mxu0 %v3617
        %v3926 = vpop.f32.mrb[0].mxu0
        %v3927 = vadd.f32 %v3075, %v3926
        %v3928 = vpop.f32.mrb[0].mxu0
        %3929 = vmatprep.mubr.f32.mxu0 %v3687
        %3930 = vmatmul.mubr.f32.gmra.mrb[0].mxu0 %v3685
        %v3931 = vpop.f32.mrb[0].mxu0
        %v3932 = vadd.f32 %v3075, %v3931
        %v3933 = vpop.f32.mrb[0].mxu0
        %3934 = vmatprep.mubr.f32.mxu0 %v3755
        %3935 = vmatmul.mubr.f32.gmra.mrb[0].mxu0 %v3753
        %v3936 = vpop.f32.mrb[0].mxu0
        %v3937 = vadd.f32 %v3075, %v3936
        %v3938 = vpop.f32.mrb[0].mxu0
        %3939 = vmatprep.mubr.f32.mxu0 %v3778
        %3940 = vmatmul.mubr.f32.gmra.mrb[0].mxu0 %v3771
        %v3941 = vpop.f32.mrb[0].mxu0
        %v3942 = vadd.f32 %v3075, %v3941
        %v3943 = vpop.f32.mrb[0].mxu0
        %3944 = vdwg.mxu0
        %3945 = vmatprep.subr.mxu0 0.0
        %3946 = vmatpush1.msra.mxu0 %v449
        %3947 = vmatprep.subr.mxu0 0.0
        %3948 = vmatpush1.msra.mxu0 %v450
        %3949 = vmatprep.subr.mxu0 0.0
        %3950 = vmatpush1.msra.mxu0 %v451
        %3951 = vmatprep.subr.mxu0 0.0
        %3952 = vmatpush1.msra.mxu0 %v452
        %3953 = vmatprep.subr.mxu0 0.0
        %3954 = vmatpush1.msra.mxu0 %v453
        %3955 = vmatprep.subr.mxu0 0.0
        %3956 = vmatpush1.msra.mxu0 %v454
        %3957 = vmatprep.subr.mxu0 0.0
        %3958 = vmatpush1.msra.mxu0 %v455
        %3959 = vmatprep.subr.mxu0 0.0
        %3960 = vmatpush1.msra.mxu0 %v456
        %3961 = vmatprep.subr.mxu0 0.0
        %3962 = vmatpush1.msra.mxu0 %v457
        %3963 = vmatprep.subr.mxu0 0.0
        %3964 = vmatpush1.msra.mxu0 %v458
        %3965 = vmatprep.subr.mxu0 0.0
        %3966 = vmatpush1.msra.mxu0 %v459
        %3967 = vmatprep.subr.mxu0 0.0
        %3968 = vmatpush1.msra.mxu0 %v460
        %3969 = vmatprep.subr.mxu0 0.0
        %3970 = vmatpush1.msra.mxu0 %v461
        %3971 = vmatprep.subr.mxu0 0.0
        %3972 = vmatpush1.msra.mxu0 %v462
        %3973 = vmatprep.subr.mxu0 0.0
        %3974 = vmatpush1.msra.mxu0 %v463
        %3975 = vmatprep.subr.mxu0 0.0
        %3976 = vmatpush1.msra.mxu0 %v464
        %3977 = vmatprep.subr.mxu0 0.0
        %3978 = vmatpush1.msra.mxu0 %v465
        %3979 = vmatprep.subr.mxu0 0.0
        %3980 = vmatpush1.msra.mxu0 %v466
        %3981 = vmatprep.subr.mxu0 0.0
        %3982 = vmatpush1.msra.mxu0 %v467
        %3983 = vmatprep.subr.mxu0 0.0
        %3984 = vmatpush1.msra.mxu0 %v468
        %3985 = vmatprep.subr.mxu0 0.0
        %3986 = vmatpush1.msra.mxu0 %v469
        %3987 = vmatprep.subr.mxu0 0.0
        %3988 = vmatpush1.msra.mxu0 %v470
        %3989 = vmatprep.subr.mxu0 0.0
        %3990 = vmatpush1.msra.mxu0 %v471
        %3991 = vmatprep.subr.mxu0 0.0
        %3992 = vmatpush1.msra.mxu0 %v472
        %3993 = vmatprep.subr.mxu0 0.0
        %3994 = vmatpush1.msra.mxu0 %v473
        %3995 = vmatprep.subr.mxu0 0.0
        %3996 = vmatpush1.msra.mxu0 %v474
        %3997 = vmatprep.subr.mxu0 0.0
        %3998 = vmatpush1.msra.mxu0 %v475
        %3999 = vmatprep.subr.mxu0 0.0
        %4000 = vmatpush1.msra.mxu0 %v476
        %4001 = vmatprep.subr.mxu0 0.0
        %4002 = vmatpush1.msra.mxu0 %v477
        %4003 = vmatprep.subr.mxu0 0.0
        %4004 = vmatpush1.msra.mxu0 %v478
        %4005 = vmatprep.subr.mxu0 0.0
        %4006 = vmatpush1.msra.mxu0 %v479
        %4007 = vmatprep.subr.mxu0 0.0
        %4008 = vmatpush1.msra.mxu0 %v480
        %4009 = vmatprep.mubr.f32.mxu0 %v3144
        %4010 = vmatmul.mubr.f32.gmra.mrb[0].mxu0 %v3142
        %v4011 = vpop.f32.mrb[0].mxu0
        %v4012 = vadd.f32 %v3892, %v4011
        %v4013 = vpop.f32.mrb[0].mxu0
        %4014 = vmatprep.mubr.f32.mxu0 %v3212
        %4015 = vmatmul.mubr.f32.gmra.mrb[0].mxu0 %v3210
        %v4016 = vpop.f32.mrb[0].mxu0
        %v4017 = vadd.f32 %v3897, %v4016
        %v4018 = vpop.f32.mrb[0].mxu0
        %4019 = vmatprep.mubr.f32.mxu0 %v3280
        %4020 = vmatmul.mubr.f32.gmra.mrb[0].mxu0 %v3278
        %v4021 = vpop.f32.mrb[0].mxu0
        %v4022 = vadd.f32 %v3902, %v4021
        %v4023 = vpop.f32.mrb[0].mxu0
        %4024 = vmatprep.mubr.f32.mxu0 %v3348
        %4025 = vmatmul.mubr.f32.gmra.mrb[0].mxu0 %v3346
        %v4026 = vpop.f32.mrb[0].mxu0
        %v4027 = vadd.f32 %v3907, %v4026
        %v4028 = vpop.f32.mrb[0].mxu0
        %4029 = vmatprep.mubr.f32.mxu0 %v3416
        %4030 = vmatmul.mubr.f32.gmra.mrb[0].mxu0 %v3414
        %v4031 = vpop.f32.mrb[0].mxu0
        %v4032 = vadd.f32 %v3912, %v4031
        %v4033 = vpop.f32.mrb[0].mxu0
        %4034 = vmatprep.mubr.f32.mxu0 %v3484
        %4035 = vmatmul.mubr.f32.gmra.mrb[0].mxu0 %v3482
        %v4036 = vpop.f32.mrb[0].mxu0
        %v4037 = vadd.f32 %v3917, %v4036
        %v4038 = vpop.f32.mrb[0].mxu0
        %4039 = vmatprep.mubr.f32.mxu0 %v3552
        %4040 = vmatmul.mubr.f32.gmra.mrb[0].mxu0 %v3550
        %v4041 = vpop.f32.mrb[0].mxu0
        %v4042 = vadd.f32 %v3922, %v4041
        %v4043 = vpop.f32.mrb[0].mxu0
        %4044 = vmatprep.mubr.f32.mxu0 %v3620
        %4045 = vmatmul.mubr.f32.gmra.mrb[0].mxu0 %v3618
        %v4046 = vpop.f32.mrb[0].mxu0
        %v4047 = vadd.f32 %v3927, %v4046
        %v4048 = vpop.f32.mrb[0].mxu0
        %4049 = vmatprep.mubr.f32.mxu0 %v3688
        %4050 = vmatmul.mubr.f32.gmra.mrb[0].mxu0 %v3686
        %v4051 = vpop.f32.mrb[0].mxu0
        %v4052 = vadd.f32 %v3932, %v4051
        %v4053 = vpop.f32.mrb[0].mxu0
        %4054 = vmatprep.mubr.f32.mxu0 %v3756
        %4055 = vmatmul.mubr.f32.gmra.mrb[0].mxu0 %v3754
        %v4056 = vpop.f32.mrb[0].mxu0
        %v4057 = vadd.f32 %v3937, %v4056
        %v4058 = vpop.f32.mrb[0].mxu0
        %4059 = vmatprep.mubr.f32.mxu0 %v3780
        %4060 = vmatmul.mubr.f32.gmra.mrb[0].mxu0 %v3779
        %v4061 = vpop.f32.mrb[0].mxu0
        %v4062 = vadd.f32 %v3942, %v4061
        %v4063 = vpop.f32.mrb[0].mxu0
        %4064 = vdwg.mxu0
        %v4065 = vmax.f32 %v4012, 0.0
        %v4066 = vmax.f32 %v4017, 0.0
        %v4067 = vmax.f32 %v4022, 0.0
        %v4068 = vmax.f32 %v4027, 0.0
        %v4069 = vmax.f32 %v4032, 0.0
        %v4070 = vmax.f32 %v4037, 0.0
        %v4071 = vmax.f32 %v4042, 0.0
        %v4072 = vmax.f32 %v4047, 0.0
        %v4073 = vmax.f32 %v4052, 0.0
        %v4074 = vmax.f32 %v4057, 0.0
        %v4075 = vmax.f32 %v4062, 0.0
        %v4087 = vcombine.high %v4065, %v4065
        %v4089 = vunpack.c.l.s4 1966171168
        %v4090 = vunpack.c.0.s8 %v4089
        %v4091 = vlaneseq
        %v4092 = vshrl.u32 %v4091, 7
        %v4093 = vsub.s32 %v4090, %v4092
        %v4094 = vrot.slane %v4065, %v4093
        %v4096 = vunpack.c.l.s4 1966171168
        %v4097 = vunpack.c.0.s8 %v4096
        %v4098 = vlaneseq
        %v4099 = vshrl.u32 %v4098, 7
        %v4100 = vsub.s32 %v4097, %v4099
        %v4101 = vrot.slane %v4087, %v4100
        %v4102 = vcombine.high %v4094, %v4094
        %v4103 = vcombine.high %v4101, %v4101
        %v4105 = vunpack.c.l.s4 1966171168
        %v4106 = vunpack.c.0.s8 %v4105
        %v4107 = vlaneseq
        %v4108 = vshrl.u32 %v4107, 7
        %v4109 = vsub.s32 %v4106, %v4108
        %v4110 = vrot.slane %v4094, %v4109
        %v4112 = vunpack.c.l.s4 1966171168
        %v4113 = vunpack.c.0.s8 %v4112
        %v4114 = vlaneseq
        %v4115 = vshrl.u32 %v4114, 7
        %v4116 = vsub.s32 %v4113, %v4115
        %v4117 = vrot.slane %v4101, %v4116
        %v4119 = vunpack.c.l.s4 1966171168
        %v4120 = vunpack.c.0.s8 %v4119
        %v4121 = vlaneseq
        %v4122 = vshrl.u32 %v4121, 7
        %v4123 = vsub.s32 %v4120, %v4122
        %v4124 = vrot.slane %v4102, %v4123
        %v4126 = vunpack.c.l.s4 1966171168
        %v4127 = vunpack.c.0.s8 %v4126
        %v4128 = vlaneseq
        %v4129 = vshrl.u32 %v4128, 7
        %v4130 = vsub.s32 %v4127, %v4129
        %v4131 = vrot.slane %v4103, %v4130
        %v4132 = vcombine.high %v4110, %v4110
        %v4133 = vcombine.high %v4117, %v4117
        %v4134 = vcombine.high %v4124, %v4124
        %v4135 = vcombine.high %v4131, %v4131
        %v4136 = vcombine.high %v4066, %v4066
        %v4138 = vunpack.c.l.s4 1966171168
        %v4139 = vunpack.c.0.s8 %v4138
        %v4140 = vlaneseq
        %v4141 = vshrl.u32 %v4140, 7
        %v4142 = vsub.s32 %v4139, %v4141
        %v4143 = vrot.slane %v4066, %v4142
        %v4145 = vunpack.c.l.s4 1966171168
        %v4146 = vunpack.c.0.s8 %v4145
        %v4147 = vlaneseq
        %v4148 = vshrl.u32 %v4147, 7
        %v4149 = vsub.s32 %v4146, %v4148
        %v4150 = vrot.slane %v4136, %v4149
        %v4151 = vcombine.high %v4143, %v4143
        %v4152 = vcombine.high %v4150, %v4150
        %v4154 = vunpack.c.l.s4 1966171168
        %v4155 = vunpack.c.0.s8 %v4154
        %v4156 = vlaneseq
        %v4157 = vshrl.u32 %v4156, 7
        %v4158 = vsub.s32 %v4155, %v4157
        %v4159 = vrot.slane %v4143, %v4158
        %v4161 = vunpack.c.l.s4 1966171168
        %v4162 = vunpack.c.0.s8 %v4161
        %v4163 = vlaneseq
        %v4164 = vshrl.u32 %v4163, 7
        %v4165 = vsub.s32 %v4162, %v4164
        %v4166 = vrot.slane %v4150, %v4165
        %v4168 = vunpack.c.l.s4 1966171168
        %v4169 = vunpack.c.0.s8 %v4168
        %v4170 = vlaneseq
        %v4171 = vshrl.u32 %v4170, 7
        %v4172 = vsub.s32 %v4169, %v4171
        %v4173 = vrot.slane %v4151, %v4172
        %v4175 = vunpack.c.l.s4 1966171168
        %v4176 = vunpack.c.0.s8 %v4175
        %v4177 = vlaneseq
        %v4178 = vshrl.u32 %v4177, 7
        %v4179 = vsub.s32 %v4176, %v4178
        %v4180 = vrot.slane %v4152, %v4179
        %v4181 = vcombine.high %v4159, %v4159
        %v4182 = vcombine.high %v4166, %v4166
        %v4183 = vcombine.high %v4173, %v4173
        %v4184 = vcombine.high %v4180, %v4180
        %v4185 = vcombine.high %v4067, %v4067
        %v4187 = vunpack.c.l.s4 1966171168
        %v4188 = vunpack.c.0.s8 %v4187
        %v4189 = vlaneseq
        %v4190 = vshrl.u32 %v4189, 7
        %v4191 = vsub.s32 %v4188, %v4190
        %v4192 = vrot.slane %v4067, %v4191
        %v4194 = vunpack.c.l.s4 1966171168
        %v4195 = vunpack.c.0.s8 %v4194
        %v4196 = vlaneseq
        %v4197 = vshrl.u32 %v4196, 7
        %v4198 = vsub.s32 %v4195, %v4197
        %v4199 = vrot.slane %v4185, %v4198
        %v4200 = vcombine.high %v4192, %v4192
        %v4201 = vcombine.high %v4199, %v4199
        %v4203 = vunpack.c.l.s4 1966171168
        %v4204 = vunpack.c.0.s8 %v4203
        %v4205 = vlaneseq
        %v4206 = vshrl.u32 %v4205, 7
        %v4207 = vsub.s32 %v4204, %v4206
        %v4208 = vrot.slane %v4192, %v4207
        %v4210 = vunpack.c.l.s4 1966171168
        %v4211 = vunpack.c.0.s8 %v4210
        %v4212 = vlaneseq
        %v4213 = vshrl.u32 %v4212, 7
        %v4214 = vsub.s32 %v4211, %v4213
        %v4215 = vrot.slane %v4199, %v4214
        %v4217 = vunpack.c.l.s4 1966171168
        %v4218 = vunpack.c.0.s8 %v4217
        %v4219 = vlaneseq
        %v4220 = vshrl.u32 %v4219, 7
        %v4221 = vsub.s32 %v4218, %v4220
        %v4222 = vrot.slane %v4200, %v4221
        %v4224 = vunpack.c.l.s4 1966171168
        %v4225 = vunpack.c.0.s8 %v4224
        %v4226 = vlaneseq
        %v4227 = vshrl.u32 %v4226, 7
        %v4228 = vsub.s32 %v4225, %v4227
        %v4229 = vrot.slane %v4201, %v4228
        %v4230 = vcombine.high %v4208, %v4208
        %v4231 = vcombine.high %v4215, %v4215
        %v4232 = vcombine.high %v4222, %v4222
        %v4233 = vcombine.high %v4229, %v4229
        %v4234 = vcombine.high %v4068, %v4068
        %v4236 = vunpack.c.l.s4 1966171168
        %v4237 = vunpack.c.0.s8 %v4236
        %v4238 = vlaneseq
        %v4239 = vshrl.u32 %v4238, 7
        %v4240 = vsub.s32 %v4237, %v4239
        %v4241 = vrot.slane %v4068, %v4240
        %v4243 = vunpack.c.l.s4 1966171168
        %v4244 = vunpack.c.0.s8 %v4243
        %v4245 = vlaneseq
        %v4246 = vshrl.u32 %v4245, 7
        %v4247 = vsub.s32 %v4244, %v4246
        %v4248 = vrot.slane %v4234, %v4247
        %v4249 = vcombine.high %v4241, %v4241
        %v4250 = vcombine.high %v4248, %v4248
        %v4252 = vunpack.c.l.s4 1966171168
        %v4253 = vunpack.c.0.s8 %v4252
        %v4254 = vlaneseq
        %v4255 = vshrl.u32 %v4254, 7
        %v4256 = vsub.s32 %v4253, %v4255
        %v4257 = vrot.slane %v4241, %v4256
        %v4259 = vunpack.c.l.s4 1966171168
        %v4260 = vunpack.c.0.s8 %v4259
        %v4261 = vlaneseq
        %v4262 = vshrl.u32 %v4261, 7
        %v4263 = vsub.s32 %v4260, %v4262
        %v4264 = vrot.slane %v4248, %v4263
        %v4266 = vunpack.c.l.s4 1966171168
        %v4267 = vunpack.c.0.s8 %v4266
        %v4268 = vlaneseq
        %v4269 = vshrl.u32 %v4268, 7
        %v4270 = vsub.s32 %v4267, %v4269
        %v4271 = vrot.slane %v4249, %v4270
        %v4273 = vunpack.c.l.s4 1966171168
        %v4274 = vunpack.c.0.s8 %v4273
        %v4275 = vlaneseq
        %v4276 = vshrl.u32 %v4275, 7
        %v4277 = vsub.s32 %v4274, %v4276
        %v4278 = vrot.slane %v4250, %v4277
        %v4279 = vcombine.high %v4257, %v4257
        %v4280 = vcombine.high %v4264, %v4264
        %v4281 = vcombine.high %v4271, %v4271
        %v4282 = vcombine.high %v4278, %v4278
        %v4283 = vcombine.high %v4069, %v4069
        %v4285 = vunpack.c.l.s4 1966171168
        %v4286 = vunpack.c.0.s8 %v4285
        %v4287 = vlaneseq
        %v4288 = vshrl.u32 %v4287, 7
        %v4289 = vsub.s32 %v4286, %v4288
        %v4290 = vrot.slane %v4069, %v4289
        %v4292 = vunpack.c.l.s4 1966171168
        %v4293 = vunpack.c.0.s8 %v4292
        %v4294 = vlaneseq
        %v4295 = vshrl.u32 %v4294, 7
        %v4296 = vsub.s32 %v4293, %v4295
        %v4297 = vrot.slane %v4283, %v4296
        %v4298 = vcombine.high %v4290, %v4290
        %v4299 = vcombine.high %v4297, %v4297
        %v4301 = vunpack.c.l.s4 1966171168
        %v4302 = vunpack.c.0.s8 %v4301
        %v4303 = vlaneseq
        %v4304 = vshrl.u32 %v4303, 7
        %v4305 = vsub.s32 %v4302, %v4304
        %v4306 = vrot.slane %v4290, %v4305
        %v4308 = vunpack.c.l.s4 1966171168
        %v4309 = vunpack.c.0.s8 %v4308
        %v4310 = vlaneseq
        %v4311 = vshrl.u32 %v4310, 7
        %v4312 = vsub.s32 %v4309, %v4311
        %v4313 = vrot.slane %v4297, %v4312
        %v4315 = vunpack.c.l.s4 1966171168
        %v4316 = vunpack.c.0.s8 %v4315
        %v4317 = vlaneseq
        %v4318 = vshrl.u32 %v4317, 7
        %v4319 = vsub.s32 %v4316, %v4318
        %v4320 = vrot.slane %v4298, %v4319
        %v4322 = vunpack.c.l.s4 1966171168
        %v4323 = vunpack.c.0.s8 %v4322
        %v4324 = vlaneseq
        %v4325 = vshrl.u32 %v4324, 7
        %v4326 = vsub.s32 %v4323, %v4325
        %v4327 = vrot.slane %v4299, %v4326
        %v4328 = vcombine.high %v4306, %v4306
        %v4329 = vcombine.high %v4313, %v4313
        %v4330 = vcombine.high %v4320, %v4320
        %v4331 = vcombine.high %v4327, %v4327
        %v4332 = vcombine.high %v4070, %v4070
        %v4334 = vunpack.c.l.s4 1966171168
        %v4335 = vunpack.c.0.s8 %v4334
        %v4336 = vlaneseq
        %v4337 = vshrl.u32 %v4336, 7
        %v4338 = vsub.s32 %v4335, %v4337
        %v4339 = vrot.slane %v4070, %v4338
        %v4341 = vunpack.c.l.s4 1966171168
        %v4342 = vunpack.c.0.s8 %v4341
        %v4343 = vlaneseq
        %v4344 = vshrl.u32 %v4343, 7
        %v4345 = vsub.s32 %v4342, %v4344
        %v4346 = vrot.slane %v4332, %v4345
        %v4347 = vcombine.high %v4339, %v4339
        %v4348 = vcombine.high %v4346, %v4346
        %v4350 = vunpack.c.l.s4 1966171168
        %v4351 = vunpack.c.0.s8 %v4350
        %v4352 = vlaneseq
        %v4353 = vshrl.u32 %v4352, 7
        %v4354 = vsub.s32 %v4351, %v4353
        %v4355 = vrot.slane %v4339, %v4354
        %v4357 = vunpack.c.l.s4 1966171168
        %v4358 = vunpack.c.0.s8 %v4357
        %v4359 = vlaneseq
        %v4360 = vshrl.u32 %v4359, 7
        %v4361 = vsub.s32 %v4358, %v4360
        %v4362 = vrot.slane %v4346, %v4361
        %v4364 = vunpack.c.l.s4 1966171168
        %v4365 = vunpack.c.0.s8 %v4364
        %v4366 = vlaneseq
        %v4367 = vshrl.u32 %v4366, 7
        %v4368 = vsub.s32 %v4365, %v4367
        %v4369 = vrot.slane %v4347, %v4368
        %v4371 = vunpack.c.l.s4 1966171168
        %v4372 = vunpack.c.0.s8 %v4371
        %v4373 = vlaneseq
        %v4374 = vshrl.u32 %v4373, 7
        %v4375 = vsub.s32 %v4372, %v4374
        %v4376 = vrot.slane %v4348, %v4375
        %v4377 = vcombine.high %v4355, %v4355
        %v4378 = vcombine.high %v4362, %v4362
        %v4379 = vcombine.high %v4369, %v4369
        %v4380 = vcombine.high %v4376, %v4376
        %v4381 = vcombine.high %v4071, %v4071
        %v4383 = vunpack.c.l.s4 1966171168
        %v4384 = vunpack.c.0.s8 %v4383
        %v4385 = vlaneseq
        %v4386 = vshrl.u32 %v4385, 7
        %v4387 = vsub.s32 %v4384, %v4386
        %v4388 = vrot.slane %v4071, %v4387
        %v4390 = vunpack.c.l.s4 1966171168
        %v4391 = vunpack.c.0.s8 %v4390
        %v4392 = vlaneseq
        %v4393 = vshrl.u32 %v4392, 7
        %v4394 = vsub.s32 %v4391, %v4393
        %v4395 = vrot.slane %v4381, %v4394
        %v4396 = vcombine.high %v4388, %v4388
        %v4397 = vcombine.high %v4395, %v4395
        %v4399 = vunpack.c.l.s4 1966171168
        %v4400 = vunpack.c.0.s8 %v4399
        %v4401 = vlaneseq
        %v4402 = vshrl.u32 %v4401, 7
        %v4403 = vsub.s32 %v4400, %v4402
        %v4404 = vrot.slane %v4388, %v4403
        %v4406 = vunpack.c.l.s4 1966171168
        %v4407 = vunpack.c.0.s8 %v4406
        %v4408 = vlaneseq
        %v4409 = vshrl.u32 %v4408, 7
        %v4410 = vsub.s32 %v4407, %v4409
        %v4411 = vrot.slane %v4395, %v4410
        %v4413 = vunpack.c.l.s4 1966171168
        %v4414 = vunpack.c.0.s8 %v4413
        %v4415 = vlaneseq
        %v4416 = vshrl.u32 %v4415, 7
        %v4417 = vsub.s32 %v4414, %v4416
        %v4418 = vrot.slane %v4396, %v4417
        %v4420 = vunpack.c.l.s4 1966171168
        %v4421 = vunpack.c.0.s8 %v4420
        %v4422 = vlaneseq
        %v4423 = vshrl.u32 %v4422, 7
        %v4424 = vsub.s32 %v4421, %v4423
        %v4425 = vrot.slane %v4397, %v4424
        %v4426 = vcombine.high %v4404, %v4404
        %v4427 = vcombine.high %v4411, %v4411
        %v4428 = vcombine.high %v4418, %v4418
        %v4429 = vcombine.high %v4425, %v4425
        %v4430 = vcombine.high %v4072, %v4072
        %v4432 = vunpack.c.l.s4 1966171168
        %v4433 = vunpack.c.0.s8 %v4432
        %v4434 = vlaneseq
        %v4435 = vshrl.u32 %v4434, 7
        %v4436 = vsub.s32 %v4433, %v4435
        %v4437 = vrot.slane %v4072, %v4436
        %v4439 = vunpack.c.l.s4 1966171168
        %v4440 = vunpack.c.0.s8 %v4439
        %v4441 = vlaneseq
        %v4442 = vshrl.u32 %v4441, 7
        %v4443 = vsub.s32 %v4440, %v4442
        %v4444 = vrot.slane %v4430, %v4443
        %v4445 = vcombine.high %v4437, %v4437
        %v4446 = vcombine.high %v4444, %v4444
        %v4448 = vunpack.c.l.s4 1966171168
        %v4449 = vunpack.c.0.s8 %v4448
        %v4450 = vlaneseq
        %v4451 = vshrl.u32 %v4450, 7
        %v4452 = vsub.s32 %v4449, %v4451
        %v4453 = vrot.slane %v4437, %v4452
        %v4455 = vunpack.c.l.s4 1966171168
        %v4456 = vunpack.c.0.s8 %v4455
        %v4457 = vlaneseq
        %v4458 = vshrl.u32 %v4457, 7
        %v4459 = vsub.s32 %v4456, %v4458
        %v4460 = vrot.slane %v4444, %v4459
        %v4462 = vunpack.c.l.s4 1966171168
        %v4463 = vunpack.c.0.s8 %v4462
        %v4464 = vlaneseq
        %v4465 = vshrl.u32 %v4464, 7
        %v4466 = vsub.s32 %v4463, %v4465
        %v4467 = vrot.slane %v4445, %v4466
        %v4469 = vunpack.c.l.s4 1966171168
        %v4470 = vunpack.c.0.s8 %v4469
        %v4471 = vlaneseq
        %v4472 = vshrl.u32 %v4471, 7
        %v4473 = vsub.s32 %v4470, %v4472
        %v4474 = vrot.slane %v4446, %v4473
        %v4475 = vcombine.high %v4453, %v4453
        %v4476 = vcombine.high %v4460, %v4460
        %v4477 = vcombine.high %v4467, %v4467
        %v4478 = vcombine.high %v4474, %v4474
        %v4479 = vcombine.high %v4073, %v4073
        %v4481 = vunpack.c.l.s4 1966171168
        %v4482 = vunpack.c.0.s8 %v4481
        %v4483 = vlaneseq
        %v4484 = vshrl.u32 %v4483, 7
        %v4485 = vsub.s32 %v4482, %v4484
        %v4486 = vrot.slane %v4073, %v4485
        %v4488 = vunpack.c.l.s4 1966171168
        %v4489 = vunpack.c.0.s8 %v4488
        %v4490 = vlaneseq
        %v4491 = vshrl.u32 %v4490, 7
        %v4492 = vsub.s32 %v4489, %v4491
        %v4493 = vrot.slane %v4479, %v4492
        %v4494 = vcombine.high %v4486, %v4486
        %v4495 = vcombine.high %v4493, %v4493
        %v4497 = vunpack.c.l.s4 1966171168
        %v4498 = vunpack.c.0.s8 %v4497
        %v4499 = vlaneseq
        %v4500 = vshrl.u32 %v4499, 7
        %v4501 = vsub.s32 %v4498, %v4500
        %v4502 = vrot.slane %v4486, %v4501
        %v4504 = vunpack.c.l.s4 1966171168
        %v4505 = vunpack.c.0.s8 %v4504
        %v4506 = vlaneseq
        %v4507 = vshrl.u32 %v4506, 7
        %v4508 = vsub.s32 %v4505, %v4507
        %v4509 = vrot.slane %v4493, %v4508
        %v4511 = vunpack.c.l.s4 1966171168
        %v4512 = vunpack.c.0.s8 %v4511
        %v4513 = vlaneseq
        %v4514 = vshrl.u32 %v4513, 7
        %v4515 = vsub.s32 %v4512, %v4514
        %v4516 = vrot.slane %v4494, %v4515
        %v4518 = vunpack.c.l.s4 1966171168
        %v4519 = vunpack.c.0.s8 %v4518
        %v4520 = vlaneseq
        %v4521 = vshrl.u32 %v4520, 7
        %v4522 = vsub.s32 %v4519, %v4521
        %v4523 = vrot.slane %v4495, %v4522
        %v4524 = vcombine.high %v4502, %v4502
        %v4525 = vcombine.high %v4509, %v4509
        %v4526 = vcombine.high %v4516, %v4516
        %v4527 = vcombine.high %v4523, %v4523
        %v4528 = vcombine.high %v4074, %v4074
        %v4530 = vunpack.c.l.s4 1966171168
        %v4531 = vunpack.c.0.s8 %v4530
        %v4532 = vlaneseq
        %v4533 = vshrl.u32 %v4532, 7
        %v4534 = vsub.s32 %v4531, %v4533
        %v4535 = vrot.slane %v4074, %v4534
        %v4537 = vunpack.c.l.s4 1966171168
        %v4538 = vunpack.c.0.s8 %v4537
        %v4539 = vlaneseq
        %v4540 = vshrl.u32 %v4539, 7
        %v4541 = vsub.s32 %v4538, %v4540
        %v4542 = vrot.slane %v4528, %v4541
        %v4543 = vcombine.high %v4535, %v4535
        %v4544 = vcombine.high %v4542, %v4542
        %v4546 = vunpack.c.l.s4 1966171168
        %v4547 = vunpack.c.0.s8 %v4546
        %v4548 = vlaneseq
        %v4549 = vshrl.u32 %v4548, 7
        %v4550 = vsub.s32 %v4547, %v4549
        %v4551 = vrot.slane %v4535, %v4550
        %v4553 = vunpack.c.l.s4 1966171168
        %v4554 = vunpack.c.0.s8 %v4553
        %v4555 = vlaneseq
        %v4556 = vshrl.u32 %v4555, 7
        %v4557 = vsub.s32 %v4554, %v4556
        %v4558 = vrot.slane %v4542, %v4557
        %v4560 = vunpack.c.l.s4 1966171168
        %v4561 = vunpack.c.0.s8 %v4560
        %v4562 = vlaneseq
        %v4563 = vshrl.u32 %v4562, 7
        %v4564 = vsub.s32 %v4561, %v4563
        %v4565 = vrot.slane %v4543, %v4564
        %v4567 = vunpack.c.l.s4 1966171168
        %v4568 = vunpack.c.0.s8 %v4567
        %v4569 = vlaneseq
        %v4570 = vshrl.u32 %v4569, 7
        %v4571 = vsub.s32 %v4568, %v4570
        %v4572 = vrot.slane %v4544, %v4571
        %v4573 = vcombine.high %v4551, %v4551
        %v4574 = vcombine.high %v4558, %v4558
        %v4575 = vcombine.high %v4565, %v4565
        %v4576 = vcombine.high %v4572, %v4572
        %v4578 = vunpack.c.l.s4 1966171168
        %v4579 = vunpack.c.0.s8 %v4578
        %v4580 = vlaneseq
        %v4581 = vshrl.u32 %v4580, 7
        %v4582 = vsub.s32 %v4579, %v4581
        %v4583 = vrot.slane %v4075, %v4582
        %v4585 = vunpack.c.l.s4 1966171168
        %v4586 = vunpack.c.0.s8 %v4585
        %v4587 = vlaneseq
        %v4588 = vshrl.u32 %v4587, 7
        %v4589 = vsub.s32 %v4586, %v4588
        %v4590 = vrot.slane %v4583, %v4589
        %v4591 = vcombine.low %v4110, %v4124
        %v4592 = vcombine.low %v4132, %v4134
        %v4593 = vcombine.low %v4117, %v4131
        %v4595 = vunpack.c.l.s4 1966171168
        %v4596 = vunpack.c.0.s8 %v4595
        %v4597 = vlaneseq
        %v4598 = vshrl.u32 %v4597, 7
        %v4599 = vsub.s32 %v4596, %v4598
        %v4600 = vrot.slane %v4591, %v4599
        %v4602 = vunpack.c.l.s4 1966171168
        %v4603 = vunpack.c.0.s8 %v4602
        %v4604 = vlaneseq
        %v4605 = vshrl.u32 %v4604, 7
        %v4606 = vsub.s32 %v4603, %v4605
        %v4607 = vrot.slane %v4592, %v4606
        %v4609 = vunpack.c.l.s4 1966171168
        %v4610 = vunpack.c.0.s8 %v4609
        %v4611 = vlaneseq
        %v4612 = vshrl.u32 %v4611, 7
        %v4613 = vsub.s32 %v4610, %v4612
        %v4614 = vrot.slane %v4593, %v4613
        %v4616 = vunpack.c.l.s4 1966171168
        %v4617 = vunpack.c.0.s8 %v4616
        %v4618 = vlaneseq
        %v4619 = vshrl.u32 %v4618, 7
        %v4620 = vsub.s32 %v4617, %v4619
        %v4621 = vrot.slane %v4133, %v4620
        %v4622 = vcombine.low %v4600, %v4607
        %v4623 = vcombine.low %v4614, %v4621
        %v4625 = vunpack.c.l.s4 1966171168
        %v4626 = vunpack.c.0.s8 %v4625
        %v4627 = vlaneseq
        %v4628 = vshrl.u32 %v4627, 7
        %v4629 = vsub.s32 %v4626, %v4628
        %v4630 = vrot.slane %v4622, %v4629
        %v4632 = vunpack.c.l.s4 1966171168
        %v4633 = vunpack.c.0.s8 %v4632
        %v4634 = vlaneseq
        %v4635 = vshrl.u32 %v4634, 7
        %v4636 = vsub.s32 %v4633, %v4635
        %v4637 = vrot.slane %v4623, %v4636
        %v4638 = vcombine.low %v4630, %v4637
        %v4639 = vcombine.low %v4173, %v4181
        %v4640 = vcombine.low %v4183, %v4166
        %v4641 = vcombine.low %v4180, %v4182
        %v4643 = vunpack.c.l.s4 1966171168
        %v4644 = vunpack.c.0.s8 %v4643
        %v4645 = vlaneseq
        %v4646 = vshrl.u32 %v4645, 7
        %v4647 = vsub.s32 %v4644, %v4646
        %v4648 = vrot.slane %v4639, %v4647
        %v4650 = vunpack.c.l.s4 1966171168
        %v4651 = vunpack.c.0.s8 %v4650
        %v4652 = vlaneseq
        %v4653 = vshrl.u32 %v4652, 7
        %v4654 = vsub.s32 %v4651, %v4653
        %v4655 = vrot.slane %v4640, %v4654
        %v4657 = vunpack.c.l.s4 1966171168
        %v4658 = vunpack.c.0.s8 %v4657
        %v4659 = vlaneseq
        %v4660 = vshrl.u32 %v4659, 7
        %v4661 = vsub.s32 %v4658, %v4660
        %v4662 = vrot.slane %v4641, %v4661
        %v4664 = vunpack.c.l.s4 1966171168
        %v4665 = vunpack.c.0.s8 %v4664
        %v4666 = vlaneseq
        %v4667 = vshrl.u32 %v4666, 7
        %v4668 = vsub.s32 %v4665, %v4667
        %v4669 = vrot.slane %v4184, %v4668
        %v4670 = vcombine.low %v4648, %v4655
        %v4671 = vcombine.low %v4662, %v4669
        %v4673 = vunpack.c.l.s4 1966171168
        %v4674 = vunpack.c.0.s8 %v4673
        %v4675 = vlaneseq
        %v4676 = vshrl.u32 %v4675, 7
        %v4677 = vsub.s32 %v4674, %v4676
        %v4678 = vrot.slane %v4670, %v4677
        %v4680 = vunpack.c.l.s4 1966171168
        %v4681 = vunpack.c.0.s8 %v4680
        %v4682 = vlaneseq
        %v4683 = vshrl.u32 %v4682, 7
        %v4684 = vsub.s32 %v4681, %v4683
        %v4685 = vrot.slane %v4671, %v4684
        %v4686 = vcombine.low %v4678, %v4685
        %v4687 = vcombine.low %v4230, %v4232
        %v4688 = vcombine.low %v4215, %v4229
        %v4689 = vcombine.low %v4231, %v4233
        %v4691 = vunpack.c.l.s4 1966171168
        %v4692 = vunpack.c.0.s8 %v4691
        %v4693 = vlaneseq
        %v4694 = vshrl.u32 %v4693, 7
        %v4695 = vsub.s32 %v4692, %v4694
        %v4696 = vrot.slane %v4687, %v4695
        %v4698 = vunpack.c.l.s4 1966171168
        %v4699 = vunpack.c.0.s8 %v4698
        %v4700 = vlaneseq
        %v4701 = vshrl.u32 %v4700, 7
        %v4702 = vsub.s32 %v4699, %v4701
        %v4703 = vrot.slane %v4688, %v4702
        %v4705 = vunpack.c.l.s4 1966171168
        %v4706 = vunpack.c.0.s8 %v4705
        %v4707 = vlaneseq
        %v4708 = vshrl.u32 %v4707, 7
        %v4709 = vsub.s32 %v4706, %v4708
        %v4710 = vrot.slane %v4689, %v4709
        %v4712 = vunpack.c.l.s4 1966171168
        %v4713 = vunpack.c.0.s8 %v4712
        %v4714 = vlaneseq
        %v4715 = vshrl.u32 %v4714, 7
        %v4716 = vsub.s32 %v4713, %v4715
        %v4717 = vrot.slane %v4257, %v4716
        %v4718 = vcombine.low %v4696, %v4703
        %v4719 = vcombine.low %v4710, %v4717
        %v4721 = vunpack.c.l.s4 1966171168
        %v4722 = vunpack.c.0.s8 %v4721
        %v4723 = vlaneseq
        %v4724 = vshrl.u32 %v4723, 7
        %v4725 = vsub.s32 %v4722, %v4724
        %v4726 = vrot.slane %v4718, %v4725
        %v4728 = vunpack.c.l.s4 1966171168
        %v4729 = vunpack.c.0.s8 %v4728
        %v4730 = vlaneseq
        %v4731 = vshrl.u32 %v4730, 7
        %v4732 = vsub.s32 %v4729, %v4731
        %v4733 = vrot.slane %v4719, %v4732
        %v4734 = vcombine.low %v4726, %v4733
        %v4735 = vcombine.low %v4281, %v4264
        %v4736 = vcombine.low %v4278, %v4280
        %v4737 = vcombine.low %v4282, %v4306
        %v4739 = vunpack.c.l.s4 1966171168
        %v4740 = vunpack.c.0.s8 %v4739
        %v4741 = vlaneseq
        %v4742 = vshrl.u32 %v4741, 7
        %v4743 = vsub.s32 %v4740, %v4742
        %v4744 = vrot.slane %v4735, %v4743
        %v4746 = vunpack.c.l.s4 1966171168
        %v4747 = vunpack.c.0.s8 %v4746
        %v4748 = vlaneseq
        %v4749 = vshrl.u32 %v4748, 7
        %v4750 = vsub.s32 %v4747, %v4749
        %v4751 = vrot.slane %v4736, %v4750
        %v4753 = vunpack.c.l.s4 1966171168
        %v4754 = vunpack.c.0.s8 %v4753
        %v4755 = vlaneseq
        %v4756 = vshrl.u32 %v4755, 7
        %v4757 = vsub.s32 %v4754, %v4756
        %v4758 = vrot.slane %v4737, %v4757
        %v4760 = vunpack.c.l.s4 1966171168
        %v4761 = vunpack.c.0.s8 %v4760
        %v4762 = vlaneseq
        %v4763 = vshrl.u32 %v4762, 7
        %v4764 = vsub.s32 %v4761, %v4763
        %v4765 = vrot.slane %v4320, %v4764
        %v4766 = vcombine.low %v4744, %v4751
        %v4767 = vcombine.low %v4758, %v4765
        %v4769 = vunpack.c.l.s4 1966171168
        %v4770 = vunpack.c.0.s8 %v4769
        %v4771 = vlaneseq
        %v4772 = vshrl.u32 %v4771, 7
        %v4773 = vsub.s32 %v4770, %v4772
        %v4774 = vrot.slane %v4766, %v4773
        %v4776 = vunpack.c.l.s4 1966171168
        %v4777 = vunpack.c.0.s8 %v4776
        %v4778 = vlaneseq
        %v4779 = vshrl.u32 %v4778, 7
        %v4780 = vsub.s32 %v4777, %v4779
        %v4781 = vrot.slane %v4767, %v4780
        %v4782 = vcombine.low %v4774, %v4781
        %v4783 = vcombine.low %v4313, %v4327
        %v4784 = vcombine.low %v4329, %v4331
        %v4785 = vcombine.low %v4355, %v4369
        %v4787 = vunpack.c.l.s4 1966171168
        %v4788 = vunpack.c.0.s8 %v4787
        %v4789 = vlaneseq
        %v4790 = vshrl.u32 %v4789, 7
        %v4791 = vsub.s32 %v4788, %v4790
        %v4792 = vrot.slane %v4783, %v4791
        %v4794 = vunpack.c.l.s4 1966171168
        %v4795 = vunpack.c.0.s8 %v4794
        %v4796 = vlaneseq
        %v4797 = vshrl.u32 %v4796, 7
        %v4798 = vsub.s32 %v4795, %v4797
        %v4799 = vrot.slane %v4784, %v4798
        %v4801 = vunpack.c.l.s4 1966171168
        %v4802 = vunpack.c.0.s8 %v4801
        %v4803 = vlaneseq
        %v4804 = vshrl.u32 %v4803, 7
        %v4805 = vsub.s32 %v4802, %v4804
        %v4806 = vrot.slane %v4785, %v4805
        %v4808 = vunpack.c.l.s4 1966171168
        %v4809 = vunpack.c.0.s8 %v4808
        %v4810 = vlaneseq
        %v4811 = vshrl.u32 %v4810, 7
        %v4812 = vsub.s32 %v4809, %v4811
        %v4813 = vrot.slane %v4377, %v4812
        %v4814 = vcombine.low %v4792, %v4799
        %v4815 = vcombine.low %v4806, %v4813
        %v4817 = vunpack.c.l.s4 1966171168
        %v4818 = vunpack.c.0.s8 %v4817
        %v4819 = vlaneseq
        %v4820 = vshrl.u32 %v4819, 7
        %v4821 = vsub.s32 %v4818, %v4820
        %v4822 = vrot.slane %v4814, %v4821
        %v4824 = vunpack.c.l.s4 1966171168
        %v4825 = vunpack.c.0.s8 %v4824
        %v4826 = vlaneseq
        %v4827 = vshrl.u32 %v4826, 7
        %v4828 = vsub.s32 %v4825, %v4827
        %v4829 = vrot.slane %v4815, %v4828
        %v4830 = vcombine.low %v4822, %v4829
        %v4831 = vcombine.low %v4376, %v4378
        %v4832 = vcombine.low %v4380, %v4404
        %v4833 = vcombine.low %v4418, %v4426
        %v4835 = vunpack.c.l.s4 1966171168
        %v4836 = vunpack.c.0.s8 %v4835
        %v4837 = vlaneseq
        %v4838 = vshrl.u32 %v4837, 7
        %v4839 = vsub.s32 %v4836, %v4838
        %v4840 = vrot.slane %v4831, %v4839
        %v4842 = vunpack.c.l.s4 1966171168
        %v4843 = vunpack.c.0.s8 %v4842
        %v4844 = vlaneseq
        %v4845 = vshrl.u32 %v4844, 7
        %v4846 = vsub.s32 %v4843, %v4845
        %v4847 = vrot.slane %v4832, %v4846
        %v4849 = vunpack.c.l.s4 1966171168
        %v4850 = vunpack.c.0.s8 %v4849
        %v4851 = vlaneseq
        %v4852 = vshrl.u32 %v4851, 7
        %v4853 = vsub.s32 %v4850, %v4852
        %v4854 = vrot.slane %v4833, %v4853
        %v4856 = vunpack.c.l.s4 1966171168
        %v4857 = vunpack.c.0.s8 %v4856
        %v4858 = vlaneseq
        %v4859 = vshrl.u32 %v4858, 7
        %v4860 = vsub.s32 %v4857, %v4859
        %v4861 = vrot.slane %v4428, %v4860
        %v4862 = vcombine.low %v4840, %v4847
        %v4863 = vcombine.low %v4854, %v4861
        %v4865 = vunpack.c.l.s4 1966171168
        %v4866 = vunpack.c.0.s8 %v4865
        %v4867 = vlaneseq
        %v4868 = vshrl.u32 %v4867, 7
        %v4869 = vsub.s32 %v4866, %v4868
        %v4870 = vrot.slane %v4862, %v4869
        %v4872 = vunpack.c.l.s4 1966171168
        %v4873 = vunpack.c.0.s8 %v4872
        %v4874 = vlaneseq
        %v4875 = vshrl.u32 %v4874, 7
        %v4876 = vsub.s32 %v4873, %v4875
        %v4877 = vrot.slane %v4863, %v4876
        %v4878 = vcombine.low %v4870, %v4877
        %v4879 = vcombine.low %v4427, %v4429
        %v4880 = vcombine.low %v4453, %v4467
        %v4881 = vcombine.low %v4475, %v4477
        %v4883 = vunpack.c.l.s4 1966171168
        %v4884 = vunpack.c.0.s8 %v4883
        %v4885 = vlaneseq
        %v4886 = vshrl.u32 %v4885, 7
        %v4887 = vsub.s32 %v4884, %v4886
        %v4888 = vrot.slane %v4879, %v4887
        %v4890 = vunpack.c.l.s4 1966171168
        %v4891 = vunpack.c.0.s8 %v4890
        %v4892 = vlaneseq
        %v4893 = vshrl.u32 %v4892, 7
        %v4894 = vsub.s32 %v4891, %v4893
        %v4895 = vrot.slane %v4880, %v4894
        %v4897 = vunpack.c.l.s4 1966171168
        %v4898 = vunpack.c.0.s8 %v4897
        %v4899 = vlaneseq
        %v4900 = vshrl.u32 %v4899, 7
        %v4901 = vsub.s32 %v4898, %v4900
        %v4902 = vrot.slane %v4881, %v4901
        %v4904 = vunpack.c.l.s4 1966171168
        %v4905 = vunpack.c.0.s8 %v4904
        %v4906 = vlaneseq
        %v4907 = vshrl.u32 %v4906, 7
        %v4908 = vsub.s32 %v4905, %v4907
        %v4909 = vrot.slane %v4460, %v4908
        %v4910 = vcombine.low %v4888, %v4895
        %v4911 = vcombine.low %v4902, %v4909
        %v4913 = vunpack.c.l.s4 1966171168
        %v4914 = vunpack.c.0.s8 %v4913
        %v4915 = vlaneseq
        %v4916 = vshrl.u32 %v4915, 7
        %v4917 = vsub.s32 %v4914, %v4916
        %v4918 = vrot.slane %v4910, %v4917
        %v4920 = vunpack.c.l.s4 1966171168
        %v4921 = vunpack.c.0.s8 %v4920
        %v4922 = vlaneseq
        %v4923 = vshrl.u32 %v4922, 7
        %v4924 = vsub.s32 %v4921, %v4923
        %v4925 = vrot.slane %v4911, %v4924
        %v4926 = vcombine.low %v4918, %v4925
        %v4934 = vcombine.low %v4124, %v4132
        %v4935 = vcombine.low %v4134, %v4117
        %v4936 = vcombine.low %v4131, %v4133
        %v4938 = vunpack.c.l.s4 1966171168
        %v4939 = vunpack.c.0.s8 %v4938
        %v4940 = vlaneseq
        %v4941 = vshrl.u32 %v4940, 7
        %v4942 = vsub.s32 %v4939, %v4941
        %v4943 = vrot.slane %v4934, %v4942
        %v4945 = vunpack.c.l.s4 1966171168
        %v4946 = vunpack.c.0.s8 %v4945
        %v4947 = vlaneseq
        %v4948 = vshrl.u32 %v4947, 7
        %v4949 = vsub.s32 %v4946, %v4948
        %v4950 = vrot.slane %v4935, %v4949
        %v4952 = vunpack.c.l.s4 1966171168
        %v4953 = vunpack.c.0.s8 %v4952
        %v4954 = vlaneseq
        %v4955 = vshrl.u32 %v4954, 7
        %v4956 = vsub.s32 %v4953, %v4955
        %v4957 = vrot.slane %v4936, %v4956
        %v4959 = vunpack.c.l.s4 1966171168
        %v4960 = vunpack.c.0.s8 %v4959
        %v4961 = vlaneseq
        %v4962 = vshrl.u32 %v4961, 7
        %v4963 = vsub.s32 %v4960, %v4962
        %v4964 = vrot.slane %v4135, %v4963
        %v4965 = vcombine.low %v4943, %v4950
        %v4966 = vcombine.low %v4957, %v4964
        %v4968 = vunpack.c.l.s4 1966171168
        %v4969 = vunpack.c.0.s8 %v4968
        %v4970 = vlaneseq
        %v4971 = vshrl.u32 %v4970, 7
        %v4972 = vsub.s32 %v4969, %v4971
        %v4973 = vrot.slane %v4965, %v4972
        %v4975 = vunpack.c.l.s4 1966171168
        %v4976 = vunpack.c.0.s8 %v4975
        %v4977 = vlaneseq
        %v4978 = vshrl.u32 %v4977, 7
        %v4979 = vsub.s32 %v4976, %v4978
        %v4980 = vrot.slane %v4966, %v4979
        %v4981 = vcombine.low %v4973, %v4980
        %v4982 = vcombine.low %v4181, %v4183
        %v4983 = vcombine.low %v4166, %v4180
        %v4984 = vcombine.low %v4182, %v4184
        %v4986 = vunpack.c.l.s4 1966171168
        %v4987 = vunpack.c.0.s8 %v4986
        %v4988 = vlaneseq
        %v4989 = vshrl.u32 %v4988, 7
        %v4990 = vsub.s32 %v4987, %v4989
        %v4991 = vrot.slane %v4982, %v4990
        %v4993 = vunpack.c.l.s4 1966171168
        %v4994 = vunpack.c.0.s8 %v4993
        %v4995 = vlaneseq
        %v4996 = vshrl.u32 %v4995, 7
        %v4997 = vsub.s32 %v4994, %v4996
        %v4998 = vrot.slane %v4983, %v4997
        %v5000 = vunpack.c.l.s4 1966171168
        %v5001 = vunpack.c.0.s8 %v5000
        %v5002 = vlaneseq
        %v5003 = vshrl.u32 %v5002, 7
        %v5004 = vsub.s32 %v5001, %v5003
        %v5005 = vrot.slane %v4984, %v5004
        %v5007 = vunpack.c.l.s4 1966171168
        %v5008 = vunpack.c.0.s8 %v5007
        %v5009 = vlaneseq
        %v5010 = vshrl.u32 %v5009, 7
        %v5011 = vsub.s32 %v5008, %v5010
        %v5012 = vrot.slane %v4208, %v5011
        %v5013 = vcombine.low %v4991, %v4998
        %v5014 = vcombine.low %v5005, %v5012
        %v5016 = vunpack.c.l.s4 1966171168
        %v5017 = vunpack.c.0.s8 %v5016
        %v5018 = vlaneseq
        %v5019 = vshrl.u32 %v5018, 7
        %v5020 = vsub.s32 %v5017, %v5019
        %v5021 = vrot.slane %v5013, %v5020
        %v5023 = vunpack.c.l.s4 1966171168
        %v5024 = vunpack.c.0.s8 %v5023
        %v5025 = vlaneseq
        %v5026 = vshrl.u32 %v5025, 7
        %v5027 = vsub.s32 %v5024, %v5026
        %v5028 = vrot.slane %v5014, %v5027
        %v5029 = vcombine.low %v5021, %v5028
        %v5030 = vcombine.low %v4232, %v4215
        %v5031 = vcombine.low %v4229, %v4231
        %v5032 = vcombine.low %v4233, %v4257
        %v5034 = vunpack.c.l.s4 1966171168
        %v5035 = vunpack.c.0.s8 %v5034
        %v5036 = vlaneseq
        %v5037 = vshrl.u32 %v5036, 7
        %v5038 = vsub.s32 %v5035, %v5037
        %v5039 = vrot.slane %v5030, %v5038
        %v5041 = vunpack.c.l.s4 1966171168
        %v5042 = vunpack.c.0.s8 %v5041
        %v5043 = vlaneseq
        %v5044 = vshrl.u32 %v5043, 7
        %v5045 = vsub.s32 %v5042, %v5044
        %v5046 = vrot.slane %v5031, %v5045
        %v5048 = vunpack.c.l.s4 1966171168
        %v5049 = vunpack.c.0.s8 %v5048
        %v5050 = vlaneseq
        %v5051 = vshrl.u32 %v5050, 7
        %v5052 = vsub.s32 %v5049, %v5051
        %v5053 = vrot.slane %v5032, %v5052
        %v5055 = vunpack.c.l.s4 1966171168
        %v5056 = vunpack.c.0.s8 %v5055
        %v5057 = vlaneseq
        %v5058 = vshrl.u32 %v5057, 7
        %v5059 = vsub.s32 %v5056, %v5058
        %v5060 = vrot.slane %v4271, %v5059
        %v5061 = vcombine.low %v5039, %v5046
        %v5062 = vcombine.low %v5053, %v5060
        %v5064 = vunpack.c.l.s4 1966171168
        %v5065 = vunpack.c.0.s8 %v5064
        %v5066 = vlaneseq
        %v5067 = vshrl.u32 %v5066, 7
        %v5068 = vsub.s32 %v5065, %v5067
        %v5069 = vrot.slane %v5061, %v5068
        %v5071 = vunpack.c.l.s4 1966171168
        %v5072 = vunpack.c.0.s8 %v5071
        %v5073 = vlaneseq
        %v5074 = vshrl.u32 %v5073, 7
        %v5075 = vsub.s32 %v5072, %v5074
        %v5076 = vrot.slane %v5062, %v5075
        %v5077 = vcombine.low %v5069, %v5076
        %v5078 = vcombine.low %v4264, %v4278
        %v5079 = vcombine.low %v4280, %v4282
        %v5080 = vcombine.low %v4306, %v4320
        %v5082 = vunpack.c.l.s4 1966171168
        %v5083 = vunpack.c.0.s8 %v5082
        %v5084 = vlaneseq
        %v5085 = vshrl.u32 %v5084, 7
        %v5086 = vsub.s32 %v5083, %v5085
        %v5087 = vrot.slane %v5078, %v5086
        %v5089 = vunpack.c.l.s4 1966171168
        %v5090 = vunpack.c.0.s8 %v5089
        %v5091 = vlaneseq
        %v5092 = vshrl.u32 %v5091, 7
        %v5093 = vsub.s32 %v5090, %v5092
        %v5094 = vrot.slane %v5079, %v5093
        %v5096 = vunpack.c.l.s4 1966171168
        %v5097 = vunpack.c.0.s8 %v5096
        %v5098 = vlaneseq
        %v5099 = vshrl.u32 %v5098, 7
        %v5100 = vsub.s32 %v5097, %v5099
        %v5101 = vrot.slane %v5080, %v5100
        %v5103 = vunpack.c.l.s4 1966171168
        %v5104 = vunpack.c.0.s8 %v5103
        %v5105 = vlaneseq
        %v5106 = vshrl.u32 %v5105, 7
        %v5107 = vsub.s32 %v5104, %v5106
        %v5108 = vrot.slane %v4328, %v5107
        %v5109 = vcombine.low %v5087, %v5094
        %v5110 = vcombine.low %v5101, %v5108
        %v5112 = vunpack.c.l.s4 1966171168
        %v5113 = vunpack.c.0.s8 %v5112
        %v5114 = vlaneseq
        %v5115 = vshrl.u32 %v5114, 7
        %v5116 = vsub.s32 %v5113, %v5115
        %v5117 = vrot.slane %v5109, %v5116
        %v5119 = vunpack.c.l.s4 1966171168
        %v5120 = vunpack.c.0.s8 %v5119
        %v5121 = vlaneseq
        %v5122 = vshrl.u32 %v5121, 7
        %v5123 = vsub.s32 %v5120, %v5122
        %v5124 = vrot.slane %v5110, %v5123
        %v5125 = vcombine.low %v5117, %v5124
        %v5126 = vcombine.low %v4327, %v4329
        %v5127 = vcombine.low %v4331, %v4355
        %v5128 = vcombine.low %v4369, %v4377
        %v5130 = vunpack.c.l.s4 1966171168
        %v5131 = vunpack.c.0.s8 %v5130
        %v5132 = vlaneseq
        %v5133 = vshrl.u32 %v5132, 7
        %v5134 = vsub.s32 %v5131, %v5133
        %v5135 = vrot.slane %v5126, %v5134
        %v5137 = vunpack.c.l.s4 1966171168
        %v5138 = vunpack.c.0.s8 %v5137
        %v5139 = vlaneseq
        %v5140 = vshrl.u32 %v5139, 7
        %v5141 = vsub.s32 %v5138, %v5140
        %v5142 = vrot.slane %v5127, %v5141
        %v5144 = vunpack.c.l.s4 1966171168
        %v5145 = vunpack.c.0.s8 %v5144
        %v5146 = vlaneseq
        %v5147 = vshrl.u32 %v5146, 7
        %v5148 = vsub.s32 %v5145, %v5147
        %v5149 = vrot.slane %v5128, %v5148
        %v5151 = vunpack.c.l.s4 1966171168
        %v5152 = vunpack.c.0.s8 %v5151
        %v5153 = vlaneseq
        %v5154 = vshrl.u32 %v5153, 7
        %v5155 = vsub.s32 %v5152, %v5154
        %v5156 = vrot.slane %v4379, %v5155
        %v5157 = vcombine.low %v5135, %v5142
        %v5158 = vcombine.low %v5149, %v5156
        %v5160 = vunpack.c.l.s4 1966171168
        %v5161 = vunpack.c.0.s8 %v5160
        %v5162 = vlaneseq
        %v5163 = vshrl.u32 %v5162, 7
        %v5164 = vsub.s32 %v5161, %v5163
        %v5165 = vrot.slane %v5157, %v5164
        %v5167 = vunpack.c.l.s4 1966171168
        %v5168 = vunpack.c.0.s8 %v5167
        %v5169 = vlaneseq
        %v5170 = vshrl.u32 %v5169, 7
        %v5171 = vsub.s32 %v5168, %v5170
        %v5172 = vrot.slane %v5158, %v5171
        %v5173 = vcombine.low %v5165, %v5172
        %v5174 = vcombine.low %v4378, %v4380
        %v5175 = vcombine.low %v4404, %v4418
        %v5176 = vcombine.low %v4426, %v4428
        %v5178 = vunpack.c.l.s4 1966171168
        %v5179 = vunpack.c.0.s8 %v5178
        %v5180 = vlaneseq
        %v5181 = vshrl.u32 %v5180, 7
        %v5182 = vsub.s32 %v5179, %v5181
        %v5183 = vrot.slane %v5174, %v5182
        %v5185 = vunpack.c.l.s4 1966171168
        %v5186 = vunpack.c.0.s8 %v5185
        %v5187 = vlaneseq
        %v5188 = vshrl.u32 %v5187, 7
        %v5189 = vsub.s32 %v5186, %v5188
        %v5190 = vrot.slane %v5175, %v5189
        %v5192 = vunpack.c.l.s4 1966171168
        %v5193 = vunpack.c.0.s8 %v5192
        %v5194 = vlaneseq
        %v5195 = vshrl.u32 %v5194, 7
        %v5196 = vsub.s32 %v5193, %v5195
        %v5197 = vrot.slane %v5176, %v5196
        %v5199 = vunpack.c.l.s4 1966171168
        %v5200 = vunpack.c.0.s8 %v5199
        %v5201 = vlaneseq
        %v5202 = vshrl.u32 %v5201, 7
        %v5203 = vsub.s32 %v5200, %v5202
        %v5204 = vrot.slane %v4411, %v5203
        %v5205 = vcombine.low %v5183, %v5190
        %v5206 = vcombine.low %v5197, %v5204
        %v5208 = vunpack.c.l.s4 1966171168
        %v5209 = vunpack.c.0.s8 %v5208
        %v5210 = vlaneseq
        %v5211 = vshrl.u32 %v5210, 7
        %v5212 = vsub.s32 %v5209, %v5211
        %v5213 = vrot.slane %v5205, %v5212
        %v5215 = vunpack.c.l.s4 1966171168
        %v5216 = vunpack.c.0.s8 %v5215
        %v5217 = vlaneseq
        %v5218 = vshrl.u32 %v5217, 7
        %v5219 = vsub.s32 %v5216, %v5218
        %v5220 = vrot.slane %v5206, %v5219
        %v5221 = vcombine.low %v5213, %v5220
        %v5222 = vcombine.low %v4429, %v4453
        %v5223 = vcombine.low %v4467, %v4475
        %v5224 = vcombine.low %v4477, %v4460
        %v5226 = vunpack.c.l.s4 1966171168
        %v5227 = vunpack.c.0.s8 %v5226
        %v5228 = vlaneseq
        %v5229 = vshrl.u32 %v5228, 7
        %v5230 = vsub.s32 %v5227, %v5229
        %v5231 = vrot.slane %v5222, %v5230
        %v5233 = vunpack.c.l.s4 1966171168
        %v5234 = vunpack.c.0.s8 %v5233
        %v5235 = vlaneseq
        %v5236 = vshrl.u32 %v5235, 7
        %v5237 = vsub.s32 %v5234, %v5236
        %v5238 = vrot.slane %v5223, %v5237
        %v5240 = vunpack.c.l.s4 1966171168
        %v5241 = vunpack.c.0.s8 %v5240
        %v5242 = vlaneseq
        %v5243 = vshrl.u32 %v5242, 7
        %v5244 = vsub.s32 %v5241, %v5243
        %v5245 = vrot.slane %v5224, %v5244
        %v5247 = vunpack.c.l.s4 1966171168
        %v5248 = vunpack.c.0.s8 %v5247
        %v5249 = vlaneseq
        %v5250 = vshrl.u32 %v5249, 7
        %v5251 = vsub.s32 %v5248, %v5250
        %v5252 = vrot.slane %v4474, %v5251
        %v5253 = vcombine.low %v5231, %v5238
        %v5254 = vcombine.low %v5245, %v5252
        %v5256 = vunpack.c.l.s4 1966171168
        %v5257 = vunpack.c.0.s8 %v5256
        %v5258 = vlaneseq
        %v5259 = vshrl.u32 %v5258, 7
        %v5260 = vsub.s32 %v5257, %v5259
        %v5261 = vrot.slane %v5253, %v5260
        %v5263 = vunpack.c.l.s4 1966171168
        %v5264 = vunpack.c.0.s8 %v5263
        %v5265 = vlaneseq
        %v5266 = vshrl.u32 %v5265, 7
        %v5267 = vsub.s32 %v5264, %v5266
        %v5268 = vrot.slane %v5254, %v5267
        %v5269 = vcombine.low %v5261, %v5268
        %5270 = vrot.lane.b32.xlu0 %v4981, 64
        %v5271 = vpop.permute.xlu0 %5270
        %5272 = vrot.lane.b32.xlu0 %v5029, 64
        %v5273 = vpop.permute.xlu0 %5272
        %5274 = vrot.lane.b32.xlu0 %v5077, 64
        %v5275 = vpop.permute.xlu0 %5274
        %5276 = vrot.lane.b32.xlu0 %v5125, 64
        %v5277 = vpop.permute.xlu0 %5276
        %5278 = vrot.lane.b32.xlu0 %v5173, 64
        %v5279 = vpop.permute.xlu0 %5278
        %5280 = vrot.lane.b32.xlu0 %v5221, 64
        %v5281 = vpop.permute.xlu0 %5280
        %5282 = vrot.lane.b32.xlu0 %v5269, 64
        %v5283 = vpop.permute.xlu0 %5282
        %v5291 = vcombine.low %v4133, %v4135
        %v5293 = vunpack.c.l.s4 1966171168
        %v5294 = vunpack.c.0.s8 %v5293
        %v5295 = vlaneseq
        %v5296 = vshrl.u32 %v5295, 7
        %v5297 = vsub.s32 %v5294, %v5296
        %v5298 = vrot.slane %v5291, %v5297
        %v5300 = vunpack.c.l.s4 1966171168
        %v5301 = vunpack.c.0.s8 %v5300
        %v5302 = vlaneseq
        %v5303 = vshrl.u32 %v5302, 7
        %v5304 = vsub.s32 %v5301, %v5303
        %v5305 = vrot.slane %v4159, %v5304
        %v5306 = vcombine.low %v4607, %v4614
        %v5307 = vcombine.low %v5298, %v5305
        %v5309 = vunpack.c.l.s4 1966171168
        %v5310 = vunpack.c.0.s8 %v5309
        %v5311 = vlaneseq
        %v5312 = vshrl.u32 %v5311, 7
        %v5313 = vsub.s32 %v5310, %v5312
        %v5314 = vrot.slane %v5306, %v5313
        %v5316 = vunpack.c.l.s4 1966171168
        %v5317 = vunpack.c.0.s8 %v5316
        %v5318 = vlaneseq
        %v5319 = vshrl.u32 %v5318, 7
        %v5320 = vsub.s32 %v5317, %v5319
        %v5321 = vrot.slane %v5307, %v5320
        %v5322 = vcombine.low %v5314, %v5321
        %v5323 = vcombine.low %v4184, %v4208
        %v5325 = vunpack.c.l.s4 1966171168
        %v5326 = vunpack.c.0.s8 %v5325
        %v5327 = vlaneseq
        %v5328 = vshrl.u32 %v5327, 7
        %v5329 = vsub.s32 %v5326, %v5328
        %v5330 = vrot.slane %v5323, %v5329
        %v5332 = vunpack.c.l.s4 1966171168
        %v5333 = vunpack.c.0.s8 %v5332
        %v5334 = vlaneseq
        %v5335 = vshrl.u32 %v5334, 7
        %v5336 = vsub.s32 %v5333, %v5335
        %v5337 = vrot.slane %v4222, %v5336
        %v5338 = vcombine.low %v4655, %v4662
        %v5339 = vcombine.low %v5330, %v5337
        %v5341 = vunpack.c.l.s4 1966171168
        %v5342 = vunpack.c.0.s8 %v5341
        %v5343 = vlaneseq
        %v5344 = vshrl.u32 %v5343, 7
        %v5345 = vsub.s32 %v5342, %v5344
        %v5346 = vrot.slane %v5338, %v5345
        %v5348 = vunpack.c.l.s4 1966171168
        %v5349 = vunpack.c.0.s8 %v5348
        %v5350 = vlaneseq
        %v5351 = vshrl.u32 %v5350, 7
        %v5352 = vsub.s32 %v5349, %v5351
        %v5353 = vrot.slane %v5339, %v5352
        %v5354 = vcombine.low %v5346, %v5353
        %v5355 = vcombine.low %v4257, %v4271
        %v5357 = vunpack.c.l.s4 1966171168
        %v5358 = vunpack.c.0.s8 %v5357
        %v5359 = vlaneseq
        %v5360 = vshrl.u32 %v5359, 7
        %v5361 = vsub.s32 %v5358, %v5360
        %v5362 = vrot.slane %v5355, %v5361
        %v5364 = vunpack.c.l.s4 1966171168
        %v5365 = vunpack.c.0.s8 %v5364
        %v5366 = vlaneseq
        %v5367 = vshrl.u32 %v5366, 7
        %v5368 = vsub.s32 %v5365, %v5367
        %v5369 = vrot.slane %v4279, %v5368
        %v5370 = vcombine.low %v4703, %v4710
        %v5371 = vcombine.low %v5362, %v5369
        %v5373 = vunpack.c.l.s4 1966171168
        %v5374 = vunpack.c.0.s8 %v5373
        %v5375 = vlaneseq
        %v5376 = vshrl.u32 %v5375, 7
        %v5377 = vsub.s32 %v5374, %v5376
        %v5378 = vrot.slane %v5370, %v5377
        %v5380 = vunpack.c.l.s4 1966171168
        %v5381 = vunpack.c.0.s8 %v5380
        %v5382 = vlaneseq
        %v5383 = vshrl.u32 %v5382, 7
        %v5384 = vsub.s32 %v5381, %v5383
        %v5385 = vrot.slane %v5371, %v5384
        %v5386 = vcombine.low %v5378, %v5385
        %v5387 = vcombine.low %v4320, %v4328
        %v5389 = vunpack.c.l.s4 1966171168
        %v5390 = vunpack.c.0.s8 %v5389
        %v5391 = vlaneseq
        %v5392 = vshrl.u32 %v5391, 7
        %v5393 = vsub.s32 %v5390, %v5392
        %v5394 = vrot.slane %v5387, %v5393
        %v5396 = vunpack.c.l.s4 1966171168
        %v5397 = vunpack.c.0.s8 %v5396
        %v5398 = vlaneseq
        %v5399 = vshrl.u32 %v5398, 7
        %v5400 = vsub.s32 %v5397, %v5399
        %v5401 = vrot.slane %v4330, %v5400
        %v5402 = vcombine.low %v4751, %v4758
        %v5403 = vcombine.low %v5394, %v5401
        %v5405 = vunpack.c.l.s4 1966171168
        %v5406 = vunpack.c.0.s8 %v5405
        %v5407 = vlaneseq
        %v5408 = vshrl.u32 %v5407, 7
        %v5409 = vsub.s32 %v5406, %v5408
        %v5410 = vrot.slane %v5402, %v5409
        %v5412 = vunpack.c.l.s4 1966171168
        %v5413 = vunpack.c.0.s8 %v5412
        %v5414 = vlaneseq
        %v5415 = vshrl.u32 %v5414, 7
        %v5416 = vsub.s32 %v5413, %v5415
        %v5417 = vrot.slane %v5403, %v5416
        %v5418 = vcombine.low %v5410, %v5417
        %v5419 = vcombine.low %v4377, %v4379
        %v5421 = vunpack.c.l.s4 1966171168
        %v5422 = vunpack.c.0.s8 %v5421
        %v5423 = vlaneseq
        %v5424 = vshrl.u32 %v5423, 7
        %v5425 = vsub.s32 %v5422, %v5424
        %v5426 = vrot.slane %v5419, %v5425
        %v5428 = vunpack.c.l.s4 1966171168
        %v5429 = vunpack.c.0.s8 %v5428
        %v5430 = vlaneseq
        %v5431 = vshrl.u32 %v5430, 7
        %v5432 = vsub.s32 %v5429, %v5431
        %v5433 = vrot.slane %v4362, %v5432
        %v5434 = vcombine.low %v4799, %v4806
        %v5435 = vcombine.low %v5426, %v5433
        %v5437 = vunpack.c.l.s4 1966171168
        %v5438 = vunpack.c.0.s8 %v5437
        %v5439 = vlaneseq
        %v5440 = vshrl.u32 %v5439, 7
        %v5441 = vsub.s32 %v5438, %v5440
        %v5442 = vrot.slane %v5434, %v5441
        %v5444 = vunpack.c.l.s4 1966171168
        %v5445 = vunpack.c.0.s8 %v5444
        %v5446 = vlaneseq
        %v5447 = vshrl.u32 %v5446, 7
        %v5448 = vsub.s32 %v5445, %v5447
        %v5449 = vrot.slane %v5435, %v5448
        %v5450 = vcombine.low %v5442, %v5449
        %v5451 = vcombine.low %v4428, %v4411
        %v5453 = vunpack.c.l.s4 1966171168
        %v5454 = vunpack.c.0.s8 %v5453
        %v5455 = vlaneseq
        %v5456 = vshrl.u32 %v5455, 7
        %v5457 = vsub.s32 %v5454, %v5456
        %v5458 = vrot.slane %v5451, %v5457
        %v5460 = vunpack.c.l.s4 1966171168
        %v5461 = vunpack.c.0.s8 %v5460
        %v5462 = vlaneseq
        %v5463 = vshrl.u32 %v5462, 7
        %v5464 = vsub.s32 %v5461, %v5463
        %v5465 = vrot.slane %v4425, %v5464
        %v5466 = vcombine.low %v4847, %v4854
        %v5467 = vcombine.low %v5458, %v5465
        %v5469 = vunpack.c.l.s4 1966171168
        %v5470 = vunpack.c.0.s8 %v5469
        %v5471 = vlaneseq
        %v5472 = vshrl.u32 %v5471, 7
        %v5473 = vsub.s32 %v5470, %v5472
        %v5474 = vrot.slane %v5466, %v5473
        %v5476 = vunpack.c.l.s4 1966171168
        %v5477 = vunpack.c.0.s8 %v5476
        %v5478 = vlaneseq
        %v5479 = vshrl.u32 %v5478, 7
        %v5480 = vsub.s32 %v5477, %v5479
        %v5481 = vrot.slane %v5467, %v5480
        %v5482 = vcombine.low %v5474, %v5481
        %v5483 = vcombine.low %v4460, %v4474
        %v5485 = vunpack.c.l.s4 1966171168
        %v5486 = vunpack.c.0.s8 %v5485
        %v5487 = vlaneseq
        %v5488 = vshrl.u32 %v5487, 7
        %v5489 = vsub.s32 %v5486, %v5488
        %v5490 = vrot.slane %v5483, %v5489
        %v5492 = vunpack.c.l.s4 1966171168
        %v5493 = vunpack.c.0.s8 %v5492
        %v5494 = vlaneseq
        %v5495 = vshrl.u32 %v5494, 7
        %v5496 = vsub.s32 %v5493, %v5495
        %v5497 = vrot.slane %v4476, %v5496
        %v5498 = vcombine.low %v4895, %v4902
        %v5499 = vcombine.low %v5490, %v5497
        %v5501 = vunpack.c.l.s4 1966171168
        %v5502 = vunpack.c.0.s8 %v5501
        %v5503 = vlaneseq
        %v5504 = vshrl.u32 %v5503, 7
        %v5505 = vsub.s32 %v5502, %v5504
        %v5506 = vrot.slane %v5498, %v5505
        %v5508 = vunpack.c.l.s4 1966171168
        %v5509 = vunpack.c.0.s8 %v5508
        %v5510 = vlaneseq
        %v5511 = vshrl.u32 %v5510, 7
        %v5512 = vsub.s32 %v5509, %v5511
        %v5513 = vrot.slane %v5499, %v5512
        %v5514 = vcombine.low %v5506, %v5513
        %v5522 = vcombine.low %v4478, %v4502
        %v5523 = vcombine.low %v4516, %v4524
        %v5524 = vcombine.low %v4526, %v4509
        %v5526 = vunpack.c.l.s4 1966171168
        %v5527 = vunpack.c.0.s8 %v5526
        %v5528 = vlaneseq
        %v5529 = vshrl.u32 %v5528, 7
        %v5530 = vsub.s32 %v5527, %v5529
        %v5531 = vrot.slane %v5522, %v5530
        %v5533 = vunpack.c.l.s4 1966171168
        %v5534 = vunpack.c.0.s8 %v5533
        %v5535 = vlaneseq
        %v5536 = vshrl.u32 %v5535, 7
        %v5537 = vsub.s32 %v5534, %v5536
        %v5538 = vrot.slane %v5523, %v5537
        %v5540 = vunpack.c.l.s4 1966171168
        %v5541 = vunpack.c.0.s8 %v5540
        %v5542 = vlaneseq
        %v5543 = vshrl.u32 %v5542, 7
        %v5544 = vsub.s32 %v5541, %v5543
        %v5545 = vrot.slane %v5524, %v5544
        %v5547 = vunpack.c.l.s4 1966171168
        %v5548 = vunpack.c.0.s8 %v5547
        %v5549 = vlaneseq
        %v5550 = vshrl.u32 %v5549, 7
        %v5551 = vsub.s32 %v5548, %v5550
        %v5552 = vrot.slane %v4523, %v5551
        %v5553 = vcombine.low %v5531, %v5538
        %v5554 = vcombine.low %v5545, %v5552
        %v5556 = vunpack.c.l.s4 1966171168
        %v5557 = vunpack.c.0.s8 %v5556
        %v5558 = vlaneseq
        %v5559 = vshrl.u32 %v5558, 7
        %v5560 = vsub.s32 %v5557, %v5559
        %v5561 = vrot.slane %v5553, %v5560
        %v5563 = vunpack.c.l.s4 1966171168
        %v5564 = vunpack.c.0.s8 %v5563
        %v5565 = vlaneseq
        %v5566 = vshrl.u32 %v5565, 7
        %v5567 = vsub.s32 %v5564, %v5566
        %v5568 = vrot.slane %v5554, %v5567
        %v5569 = vcombine.low %v5561, %v5568
        %5570 = vrot.lane.b32.xlu0 %v4686, 64
        %v5571 = vpop.permute.xlu0 %5570
        %5572 = vrot.lane.b32.xlu0 %v4734, 64
        %v5573 = vpop.permute.xlu0 %5572
        %5574 = vrot.lane.b32.xlu0 %v4782, 64
        %v5575 = vpop.permute.xlu0 %5574
        %5576 = vrot.lane.b32.xlu0 %v4830, 64
        %v5577 = vpop.permute.xlu0 %5576
        %5578 = vrot.lane.b32.xlu0 %v4878, 64
        %v5579 = vpop.permute.xlu0 %5578
        %5580 = vrot.lane.b32.xlu0 %v4926, 64
        %v5581 = vpop.permute.xlu0 %5580
        %5582 = vrot.lane.b32.xlu0 %v5569, 64
        %v5583 = vpop.permute.xlu0 %5582
        %v5591 = vcombine.low %v4502, %v4516
        %v5592 = vcombine.low %v4524, %v4526
        %v5593 = vcombine.low %v4509, %v4523
        %v5595 = vunpack.c.l.s4 1966171168
        %v5596 = vunpack.c.0.s8 %v5595
        %v5597 = vlaneseq
        %v5598 = vshrl.u32 %v5597, 7
        %v5599 = vsub.s32 %v5596, %v5598
        %v5600 = vrot.slane %v5591, %v5599
        %v5602 = vunpack.c.l.s4 1966171168
        %v5603 = vunpack.c.0.s8 %v5602
        %v5604 = vlaneseq
        %v5605 = vshrl.u32 %v5604, 7
        %v5606 = vsub.s32 %v5603, %v5605
        %v5607 = vrot.slane %v5592, %v5606
        %v5609 = vunpack.c.l.s4 1966171168
        %v5610 = vunpack.c.0.s8 %v5609
        %v5611 = vlaneseq
        %v5612 = vshrl.u32 %v5611, 7
        %v5613 = vsub.s32 %v5610, %v5612
        %v5614 = vrot.slane %v5593, %v5613
        %v5616 = vunpack.c.l.s4 1966171168
        %v5617 = vunpack.c.0.s8 %v5616
        %v5618 = vlaneseq
        %v5619 = vshrl.u32 %v5618, 7
        %v5620 = vsub.s32 %v5617, %v5619
        %v5621 = vrot.slane %v4525, %v5620
        %v5622 = vcombine.low %v5600, %v5607
        %v5623 = vcombine.low %v5614, %v5621
        %v5625 = vunpack.c.l.s4 1966171168
        %v5626 = vunpack.c.0.s8 %v5625
        %v5627 = vlaneseq
        %v5628 = vshrl.u32 %v5627, 7
        %v5629 = vsub.s32 %v5626, %v5628
        %v5630 = vrot.slane %v5622, %v5629
        %v5632 = vunpack.c.l.s4 1966171168
        %v5633 = vunpack.c.0.s8 %v5632
        %v5634 = vlaneseq
        %v5635 = vshrl.u32 %v5634, 7
        %v5636 = vsub.s32 %v5633, %v5635
        %v5637 = vrot.slane %v5623, %v5636
        %v5638 = vcombine.low %v5630, %v5637
        %v5646 = vcombine.low %v4523, %v4525
        %v5648 = vunpack.c.l.s4 1966171168
        %v5649 = vunpack.c.0.s8 %v5648
        %v5650 = vlaneseq
        %v5651 = vshrl.u32 %v5650, 7
        %v5652 = vsub.s32 %v5649, %v5651
        %v5653 = vrot.slane %v5646, %v5652
        %v5655 = vunpack.c.l.s4 1966171168
        %v5656 = vunpack.c.0.s8 %v5655
        %v5657 = vlaneseq
        %v5658 = vshrl.u32 %v5657, 7
        %v5659 = vsub.s32 %v5656, %v5658
        %v5660 = vrot.slane %v4527, %v5659
        %v5661 = vcombine.low %v5538, %v5545
        %v5662 = vcombine.low %v5653, %v5660
        %v5664 = vunpack.c.l.s4 1966171168
        %v5665 = vunpack.c.0.s8 %v5664
        %v5666 = vlaneseq
        %v5667 = vshrl.u32 %v5666, 7
        %v5668 = vsub.s32 %v5665, %v5667
        %v5669 = vrot.slane %v5661, %v5668
        %v5671 = vunpack.c.l.s4 1966171168
        %v5672 = vunpack.c.0.s8 %v5671
        %v5673 = vlaneseq
        %v5674 = vshrl.u32 %v5673, 7
        %v5675 = vsub.s32 %v5672, %v5674
        %v5676 = vrot.slane %v5662, %v5675
        %v5677 = vcombine.low %v5669, %v5676
        %5678 = vrot.lane.b32.xlu0 %v5354, 64
        %v5679 = vpop.permute.xlu0 %5678
        %5680 = vrot.lane.b32.xlu0 %v5386, 64
        %v5681 = vpop.permute.xlu0 %5680
        %5682 = vrot.lane.b32.xlu0 %v5418, 64
        %v5683 = vpop.permute.xlu0 %5682
        %5684 = vrot.lane.b32.xlu0 %v5450, 64
        %v5685 = vpop.permute.xlu0 %5684
        %5686 = vrot.lane.b32.xlu0 %v5482, 64
        %v5687 = vpop.permute.xlu0 %5686
        %5688 = vrot.lane.b32.xlu0 %v5514, 64
        %v5689 = vpop.permute.xlu0 %5688
        %5690 = vrot.lane.b32.xlu0 %v5677, 64
        %v5691 = vpop.permute.xlu0 %5690
        %v5699 = vcombine.low %v4551, %v4565
        %v5700 = vcombine.low %v4573, %v4575
        %v5701 = vcombine.low %v4558, %v4572
        %v5703 = vunpack.c.l.s4 1966171168
        %v5704 = vunpack.c.0.s8 %v5703
        %v5705 = vlaneseq
        %v5706 = vshrl.u32 %v5705, 7
        %v5707 = vsub.s32 %v5704, %v5706
        %v5708 = vrot.slane %v5699, %v5707
        %v5710 = vunpack.c.l.s4 1966171168
        %v5711 = vunpack.c.0.s8 %v5710
        %v5712 = vlaneseq
        %v5713 = vshrl.u32 %v5712, 7
        %v5714 = vsub.s32 %v5711, %v5713
        %v5715 = vrot.slane %v5700, %v5714
        %v5717 = vunpack.c.l.s4 1966171168
        %v5718 = vunpack.c.0.s8 %v5717
        %v5719 = vlaneseq
        %v5720 = vshrl.u32 %v5719, 7
        %v5721 = vsub.s32 %v5718, %v5720
        %v5722 = vrot.slane %v5701, %v5721
        %v5724 = vunpack.c.l.s4 1966171168
        %v5725 = vunpack.c.0.s8 %v5724
        %v5726 = vlaneseq
        %v5727 = vshrl.u32 %v5726, 7
        %v5728 = vsub.s32 %v5725, %v5727
        %v5729 = vrot.slane %v4574, %v5728
        %v5730 = vcombine.low %v5708, %v5715
        %v5731 = vcombine.low %v5722, %v5729
        %v5733 = vunpack.c.l.s4 1966171168
        %v5734 = vunpack.c.0.s8 %v5733
        %v5735 = vlaneseq
        %v5736 = vshrl.u32 %v5735, 7
        %v5737 = vsub.s32 %v5734, %v5736
        %v5738 = vrot.slane %v5730, %v5737
        %v5740 = vunpack.c.l.s4 1966171168
        %v5741 = vunpack.c.0.s8 %v5740
        %v5742 = vlaneseq
        %v5743 = vshrl.u32 %v5742, 7
        %v5744 = vsub.s32 %v5741, %v5743
        %v5745 = vrot.slane %v5731, %v5744
        %v5746 = vcombine.low %v5738, %v5745
        %v5749 = vcombine.low %v4565, %v4573
        %v5750 = vcombine.low %v4575, %v4558
        %v5751 = vcombine.low %v4572, %v4574
        %v5753 = vunpack.c.l.s4 1966171168
        %v5754 = vunpack.c.0.s8 %v5753
        %v5755 = vlaneseq
        %v5756 = vshrl.u32 %v5755, 7
        %v5757 = vsub.s32 %v5754, %v5756
        %v5758 = vrot.slane %v5749, %v5757
        %v5760 = vunpack.c.l.s4 1966171168
        %v5761 = vunpack.c.0.s8 %v5760
        %v5762 = vlaneseq
        %v5763 = vshrl.u32 %v5762, 7
        %v5764 = vsub.s32 %v5761, %v5763
        %v5765 = vrot.slane %v5750, %v5764
        %v5767 = vunpack.c.l.s4 1966171168
        %v5768 = vunpack.c.0.s8 %v5767
        %v5769 = vlaneseq
        %v5770 = vshrl.u32 %v5769, 7
        %v5771 = vsub.s32 %v5768, %v5770
        %v5772 = vrot.slane %v5751, %v5771
        %v5774 = vunpack.c.l.s4 1966171168
        %v5775 = vunpack.c.0.s8 %v5774
        %v5776 = vlaneseq
        %v5777 = vshrl.u32 %v5776, 7
        %v5778 = vsub.s32 %v5775, %v5777
        %v5779 = vrot.slane %v4576, %v5778
        %v5780 = vcombine.low %v5758, %v5765
        %v5781 = vcombine.low %v5772, %v5779
        %v5783 = vunpack.c.l.s4 1966171168
        %v5784 = vunpack.c.0.s8 %v5783
        %v5785 = vlaneseq
        %v5786 = vshrl.u32 %v5785, 7
        %v5787 = vsub.s32 %v5784, %v5786
        %v5788 = vrot.slane %v5780, %v5787
        %v5790 = vunpack.c.l.s4 1966171168
        %v5791 = vunpack.c.0.s8 %v5790
        %v5792 = vlaneseq
        %v5793 = vshrl.u32 %v5792, 7
        %v5794 = vsub.s32 %v5791, %v5793
        %v5795 = vrot.slane %v5781, %v5794
        %v5796 = vcombine.low %v5788, %v5795
        %5797 = vrot.lane.b32.xlu0 %v5638, 64
        %v5798 = vpop.permute.xlu0 %5797
        %5799 = vrot.lane.b32.xlu0 %v5796, 64
        %v5800 = vpop.permute.xlu0 %5799
        %v5803 = vcombine.low %v4574, %v4576
        %v5805 = vunpack.c.l.s4 1966171168
        %v5806 = vunpack.c.0.s8 %v5805
        %v5807 = vlaneseq
        %v5808 = vshrl.u32 %v5807, 7
        %v5809 = vsub.s32 %v5806, %v5808
        %v5810 = vrot.slane %v5803, %v5809
        %v5812 = vunpack.c.l.s4 1966171168
        %v5813 = vunpack.c.0.s8 %v5812
        %v5814 = vlaneseq
        %v5815 = vshrl.u32 %v5814, 7
        %v5816 = vsub.s32 %v5813, %v5815
        %v5817 = vrot.slane %v4590, %v5816
        %v5818 = vcombine.low %v5715, %v5722
        %v5819 = vcombine.low %v5810, %v5817
        %v5821 = vunpack.c.l.s4 1966171168
        %v5822 = vunpack.c.0.s8 %v5821
        %v5823 = vlaneseq
        %v5824 = vshrl.u32 %v5823, 7
        %v5825 = vsub.s32 %v5822, %v5824
        %v5826 = vrot.slane %v5818, %v5825
        %v5828 = vunpack.c.l.s4 1966171168
        %v5829 = vunpack.c.0.s8 %v5828
        %v5830 = vlaneseq
        %v5831 = vshrl.u32 %v5830, 7
        %v5832 = vsub.s32 %v5829, %v5831
        %v5833 = vrot.slane %v5819, %v5832
        %v5834 = vcombine.low %v5826, %v5833
        %v5835 = vsel %vm1198, %v4638, %v5271
        %v5836 = vsel %vm1198, %v4686, %v5273
        %v5837 = vsel %vm1198, %v4734, %v5275
        %v5838 = vsel %vm1198, %v4782, %v5277
        %v5839 = vsel %vm1198, %v4830, %v5279
        %v5840 = vsel %vm1198, %v4878, %v5281
        %v5841 = vsel %vm1198, %v4926, %v5283
        %v5842 = vsel %vm1198, %v5322, %v5571
        %v5843 = vsel %vm1198, %v5354, %v5573
        %v5844 = vsel %vm1198, %v5386, %v5575
        %v5845 = vsel %vm1198, %v5418, %v5577
        %v5846 = vsel %vm1198, %v5450, %v5579
        %v5847 = vsel %vm1198, %v5482, %v5581
        %v5848 = vsel %vm1198, %v5514, %v5583
        %v5849 = vsel %vm1198, %v5029, %v5679
        %v5850 = vsel %vm1198, %v5077, %v5681
        %v5851 = vsel %vm1198, %v5125, %v5683
        %v5852 = vsel %vm1198, %v5173, %v5685
        %v5853 = vsel %vm1198, %v5221, %v5687
        %v5854 = vsel %vm1198, %v5269, %v5689
        %v5855 = vsel %vm1198, %v5638, %v5691
        %v5856 = vsel %vm1198, %v5569, %v5798
        %v5857 = vsel %vm1198, %v5746, %v5800
        %v5881 = vcombine.low %v5835, %v5842
        %v5882 = vcombine.high %v5835, %v5842
        %v5883 = vcombine.low %v5849, %v5837
        %v5884 = vcombine.high %v5849, %v5837
        %v5885 = vcombine.high %v5386, %v5386
        %v5887 = vunpack.c.l.s4 1966171168
        %v5888 = vunpack.c.0.s8 %v5887
        %v5889 = vlaneseq
        %v5890 = vshrl.u32 %v5889, 7
        %v5891 = vsub.s32 %v5888, %v5890
        %v5892 = vrot.slane %v5881, %v5891
        %v5894 = vunpack.c.l.s4 1966171168
        %v5895 = vunpack.c.0.s8 %v5894
        %v5896 = vlaneseq
        %v5897 = vshrl.u32 %v5896, 7
        %v5898 = vsub.s32 %v5895, %v5897
        %v5899 = vrot.slane %v5882, %v5898
        %v5901 = vunpack.c.l.s4 1966171168
        %v5902 = vunpack.c.0.s8 %v5901
        %v5903 = vlaneseq
        %v5904 = vshrl.u32 %v5903, 7
        %v5905 = vsub.s32 %v5902, %v5904
        %v5906 = vrot.slane %v5883, %v5905
        %v5908 = vunpack.c.l.s4 1966171168
        %v5909 = vunpack.c.0.s8 %v5908
        %v5910 = vlaneseq
        %v5911 = vshrl.u32 %v5910, 7
        %v5912 = vsub.s32 %v5909, %v5911
        %v5913 = vrot.slane %v5884, %v5912
        %v5915 = vunpack.c.l.s4 1966171168
        %v5916 = vunpack.c.0.s8 %v5915
        %v5917 = vlaneseq
        %v5918 = vshrl.u32 %v5917, 7
        %v5919 = vsub.s32 %v5916, %v5918
        %v5920 = vrot.slane %v5386, %v5919
        %v5922 = vunpack.c.l.s4 1966171168
        %v5923 = vunpack.c.0.s8 %v5922
        %v5924 = vlaneseq
        %v5925 = vshrl.u32 %v5924, 7
        %v5926 = vsub.s32 %v5923, %v5925
        %v5927 = vrot.slane %v5885, %v5926
        %v5928 = vcombine.low %v5892, %v5906
        %v5929 = vcombine.high %v5892, %v5906
        %v5930 = vcombine.low %v5899, %v5913
        %v5931 = vcombine.high %v5899, %v5913
        %v5932 = vcombine.high %v5920, %v5920
        %v5933 = vcombine.high %v5927, %v5927
        %v5935 = vunpack.c.l.s4 1966171168
        %v5936 = vunpack.c.0.s8 %v5935
        %v5937 = vlaneseq
        %v5938 = vshrl.u32 %v5937, 7
        %v5939 = vsub.s32 %v5936, %v5938
        %v5940 = vrot.slane %v5928, %v5939
        %v5942 = vunpack.c.l.s4 1966171168
        %v5943 = vunpack.c.0.s8 %v5942
        %v5944 = vlaneseq
        %v5945 = vshrl.u32 %v5944, 7
        %v5946 = vsub.s32 %v5943, %v5945
        %v5947 = vrot.slane %v5930, %v5946
        %v5949 = vunpack.c.l.s4 1966171168
        %v5950 = vunpack.c.0.s8 %v5949
        %v5951 = vlaneseq
        %v5952 = vshrl.u32 %v5951, 7
        %v5953 = vsub.s32 %v5950, %v5952
        %v5954 = vrot.slane %v5929, %v5953
        %v5956 = vunpack.c.l.s4 1966171168
        %v5957 = vunpack.c.0.s8 %v5956
        %v5958 = vlaneseq
        %v5959 = vshrl.u32 %v5958, 7
        %v5960 = vsub.s32 %v5957, %v5959
        %v5961 = vrot.slane %v5931, %v5960
        %v5963 = vunpack.c.l.s4 1966171168
        %v5964 = vunpack.c.0.s8 %v5963
        %v5965 = vlaneseq
        %v5966 = vshrl.u32 %v5965, 7
        %v5967 = vsub.s32 %v5964, %v5966
        %v5968 = vrot.slane %v5920, %v5967
        %v5970 = vunpack.c.l.s4 1966171168
        %v5971 = vunpack.c.0.s8 %v5970
        %v5972 = vlaneseq
        %v5973 = vshrl.u32 %v5972, 7
        %v5974 = vsub.s32 %v5971, %v5973
        %v5975 = vrot.slane %v5927, %v5974
        %v5977 = vunpack.c.l.s4 1966171168
        %v5978 = vunpack.c.0.s8 %v5977
        %v5979 = vlaneseq
        %v5980 = vshrl.u32 %v5979, 7
        %v5981 = vsub.s32 %v5978, %v5980
        %v5982 = vrot.slane %v5932, %v5981
        %v5984 = vunpack.c.l.s4 1966171168
        %v5985 = vunpack.c.0.s8 %v5984
        %v5986 = vlaneseq
        %v5987 = vshrl.u32 %v5986, 7
        %v5988 = vsub.s32 %v5985, %v5987
        %v5989 = vrot.slane %v5933, %v5988
        %v5990 = vcombine.low %v5940, %v5968
        %v5991 = vcombine.high %v5940, %v5968
        %v5992 = vcombine.low %v5947, %v5975
        %v5993 = vcombine.high %v5947, %v5975
        %v5994 = vcombine.low %v5954, %v5982
        %v5995 = vcombine.high %v5954, %v5982
        %v5996 = vcombine.low %v5961, %v5989
        %v5997 = vcombine.low %v5836, %v5843
        %v5998 = vcombine.high %v5836, %v5843
        %v5999 = vcombine.low %v5850, %v5838
        %v6000 = vcombine.high %v5850, %v5838
        %v6001 = vcombine.high %v5418, %v5418
        %v6003 = vunpack.c.l.s4 1966171168
        %v6004 = vunpack.c.0.s8 %v6003
        %v6005 = vlaneseq
        %v6006 = vshrl.u32 %v6005, 7
        %v6007 = vsub.s32 %v6004, %v6006
        %v6008 = vrot.slane %v5997, %v6007
        %v6010 = vunpack.c.l.s4 1966171168
        %v6011 = vunpack.c.0.s8 %v6010
        %v6012 = vlaneseq
        %v6013 = vshrl.u32 %v6012, 7
        %v6014 = vsub.s32 %v6011, %v6013
        %v6015 = vrot.slane %v5998, %v6014
        %v6017 = vunpack.c.l.s4 1966171168
        %v6018 = vunpack.c.0.s8 %v6017
        %v6019 = vlaneseq
        %v6020 = vshrl.u32 %v6019, 7
        %v6021 = vsub.s32 %v6018, %v6020
        %v6022 = vrot.slane %v5999, %v6021
        %v6024 = vunpack.c.l.s4 1966171168
        %v6025 = vunpack.c.0.s8 %v6024
        %v6026 = vlaneseq
        %v6027 = vshrl.u32 %v6026, 7
        %v6028 = vsub.s32 %v6025, %v6027
        %v6029 = vrot.slane %v6000, %v6028
        %v6031 = vunpack.c.l.s4 1966171168
        %v6032 = vunpack.c.0.s8 %v6031
        %v6033 = vlaneseq
        %v6034 = vshrl.u32 %v6033, 7
        %v6035 = vsub.s32 %v6032, %v6034
        %v6036 = vrot.slane %v5418, %v6035
        %v6038 = vunpack.c.l.s4 1966171168
        %v6039 = vunpack.c.0.s8 %v6038
        %v6040 = vlaneseq
        %v6041 = vshrl.u32 %v6040, 7
        %v6042 = vsub.s32 %v6039, %v6041
        %v6043 = vrot.slane %v6001, %v6042
        %v6044 = vcombine.low %v6008, %v6022
        %v6045 = vcombine.high %v6008, %v6022
        %v6046 = vcombine.low %v6015, %v6029
        %v6047 = vcombine.high %v6015, %v6029
        %v6048 = vcombine.high %v6036, %v6036
        %v6049 = vcombine.high %v6043, %v6043
        %v6051 = vunpack.c.l.s4 1966171168
        %v6052 = vunpack.c.0.s8 %v6051
        %v6053 = vlaneseq
        %v6054 = vshrl.u32 %v6053, 7
        %v6055 = vsub.s32 %v6052, %v6054
        %v6056 = vrot.slane %v6044, %v6055
        %v6058 = vunpack.c.l.s4 1966171168
        %v6059 = vunpack.c.0.s8 %v6058
        %v6060 = vlaneseq
        %v6061 = vshrl.u32 %v6060, 7
        %v6062 = vsub.s32 %v6059, %v6061
        %v6063 = vrot.slane %v6046, %v6062
        %v6065 = vunpack.c.l.s4 1966171168
        %v6066 = vunpack.c.0.s8 %v6065
        %v6067 = vlaneseq
        %v6068 = vshrl.u32 %v6067, 7
        %v6069 = vsub.s32 %v6066, %v6068
        %v6070 = vrot.slane %v6045, %v6069
        %v6072 = vunpack.c.l.s4 1966171168
        %v6073 = vunpack.c.0.s8 %v6072
        %v6074 = vlaneseq
        %v6075 = vshrl.u32 %v6074, 7
        %v6076 = vsub.s32 %v6073, %v6075
        %v6077 = vrot.slane %v6047, %v6076
        %v6079 = vunpack.c.l.s4 1966171168
        %v6080 = vunpack.c.0.s8 %v6079
        %v6081 = vlaneseq
        %v6082 = vshrl.u32 %v6081, 7
        %v6083 = vsub.s32 %v6080, %v6082
        %v6084 = vrot.slane %v6036, %v6083
        %v6086 = vunpack.c.l.s4 1966171168
        %v6087 = vunpack.c.0.s8 %v6086
        %v6088 = vlaneseq
        %v6089 = vshrl.u32 %v6088, 7
        %v6090 = vsub.s32 %v6087, %v6089
        %v6091 = vrot.slane %v6043, %v6090
        %v6093 = vunpack.c.l.s4 1966171168
        %v6094 = vunpack.c.0.s8 %v6093
        %v6095 = vlaneseq
        %v6096 = vshrl.u32 %v6095, 7
        %v6097 = vsub.s32 %v6094, %v6096
        %v6098 = vrot.slane %v6048, %v6097
        %v6100 = vunpack.c.l.s4 1966171168
        %v6101 = vunpack.c.0.s8 %v6100
        %v6102 = vlaneseq
        %v6103 = vshrl.u32 %v6102, 7
        %v6104 = vsub.s32 %v6101, %v6103
        %v6105 = vrot.slane %v6049, %v6104
        %v6106 = vcombine.low %v6056, %v6084
        %v6107 = vcombine.high %v6056, %v6084
        %v6108 = vcombine.low %v6063, %v6091
        %v6109 = vcombine.high %v6063, %v6091
        %v6110 = vcombine.low %v6070, %v6098
        %v6111 = vcombine.high %v6070, %v6098
        %v6112 = vcombine.low %v6077, %v6105
        %v6113 = vcombine.low %v5837, %v5844
        %v6114 = vcombine.high %v5837, %v5844
        %v6115 = vcombine.low %v5851, %v5839
        %v6116 = vcombine.high %v5851, %v5839
        %v6117 = vcombine.high %v5450, %v5450
        %v6119 = vunpack.c.l.s4 1966171168
        %v6120 = vunpack.c.0.s8 %v6119
        %v6121 = vlaneseq
        %v6122 = vshrl.u32 %v6121, 7
        %v6123 = vsub.s32 %v6120, %v6122
        %v6124 = vrot.slane %v6113, %v6123
        %v6126 = vunpack.c.l.s4 1966171168
        %v6127 = vunpack.c.0.s8 %v6126
        %v6128 = vlaneseq
        %v6129 = vshrl.u32 %v6128, 7
        %v6130 = vsub.s32 %v6127, %v6129
        %v6131 = vrot.slane %v6114, %v6130
        %v6133 = vunpack.c.l.s4 1966171168
        %v6134 = vunpack.c.0.s8 %v6133
        %v6135 = vlaneseq
        %v6136 = vshrl.u32 %v6135, 7
        %v6137 = vsub.s32 %v6134, %v6136
        %v6138 = vrot.slane %v6115, %v6137
        %v6140 = vunpack.c.l.s4 1966171168
        %v6141 = vunpack.c.0.s8 %v6140
        %v6142 = vlaneseq
        %v6143 = vshrl.u32 %v6142, 7
        %v6144 = vsub.s32 %v6141, %v6143
        %v6145 = vrot.slane %v6116, %v6144
        %v6147 = vunpack.c.l.s4 1966171168
        %v6148 = vunpack.c.0.s8 %v6147
        %v6149 = vlaneseq
        %v6150 = vshrl.u32 %v6149, 7
        %v6151 = vsub.s32 %v6148, %v6150
        %v6152 = vrot.slane %v5450, %v6151
        %v6154 = vunpack.c.l.s4 1966171168
        %v6155 = vunpack.c.0.s8 %v6154
        %v6156 = vlaneseq
        %v6157 = vshrl.u32 %v6156, 7
        %v6158 = vsub.s32 %v6155, %v6157
        %v6159 = vrot.slane %v6117, %v6158
        %v6160 = vcombine.low %v6124, %v6138
        %v6161 = vcombine.high %v6124, %v6138
        %v6162 = vcombine.low %v6131, %v6145
        %v6163 = vcombine.high %v6131, %v6145
        %v6164 = vcombine.high %v6152, %v6152
        %v6165 = vcombine.high %v6159, %v6159
        %v6167 = vunpack.c.l.s4 1966171168
        %v6168 = vunpack.c.0.s8 %v6167
        %v6169 = vlaneseq
        %v6170 = vshrl.u32 %v6169, 7
        %v6171 = vsub.s32 %v6168, %v6170
        %v6172 = vrot.slane %v6160, %v6171
        %v6174 = vunpack.c.l.s4 1966171168
        %v6175 = vunpack.c.0.s8 %v6174
        %v6176 = vlaneseq
        %v6177 = vshrl.u32 %v6176, 7
        %v6178 = vsub.s32 %v6175, %v6177
        %v6179 = vrot.slane %v6162, %v6178
        %v6181 = vunpack.c.l.s4 1966171168
        %v6182 = vunpack.c.0.s8 %v6181
        %v6183 = vlaneseq
        %v6184 = vshrl.u32 %v6183, 7
        %v6185 = vsub.s32 %v6182, %v6184
        %v6186 = vrot.slane %v6161, %v6185
        %v6188 = vunpack.c.l.s4 1966171168
        %v6189 = vunpack.c.0.s8 %v6188
        %v6190 = vlaneseq
        %v6191 = vshrl.u32 %v6190, 7
        %v6192 = vsub.s32 %v6189, %v6191
        %v6193 = vrot.slane %v6163, %v6192
        %v6195 = vunpack.c.l.s4 1966171168
        %v6196 = vunpack.c.0.s8 %v6195
        %v6197 = vlaneseq
        %v6198 = vshrl.u32 %v6197, 7
        %v6199 = vsub.s32 %v6196, %v6198
        %v6200 = vrot.slane %v6152, %v6199
        %v6202 = vunpack.c.l.s4 1966171168
        %v6203 = vunpack.c.0.s8 %v6202
        %v6204 = vlaneseq
        %v6205 = vshrl.u32 %v6204, 7
        %v6206 = vsub.s32 %v6203, %v6205
        %v6207 = vrot.slane %v6159, %v6206
        %v6209 = vunpack.c.l.s4 1966171168
        %v6210 = vunpack.c.0.s8 %v6209
        %v6211 = vlaneseq
        %v6212 = vshrl.u32 %v6211, 7
        %v6213 = vsub.s32 %v6210, %v6212
        %v6214 = vrot.slane %v6164, %v6213
        %v6216 = vunpack.c.l.s4 1966171168
        %v6217 = vunpack.c.0.s8 %v6216
        %v6218 = vlaneseq
        %v6219 = vshrl.u32 %v6218, 7
        %v6220 = vsub.s32 %v6217, %v6219
        %v6221 = vrot.slane %v6165, %v6220
        %v6222 = vcombine.low %v6172, %v6200
        %v6223 = vcombine.high %v6172, %v6200
        %v6224 = vcombine.low %v6179, %v6207
        %v6225 = vcombine.high %v6179, %v6207
        %v6226 = vcombine.low %v6186, %v6214
        %v6227 = vcombine.high %v6186, %v6214
        %v6228 = vcombine.low %v6193, %v6221
        %v6229 = vcombine.low %v5838, %v5845
        %v6230 = vcombine.high %v5838, %v5845
        %v6231 = vcombine.low %v5852, %v5840
        %v6232 = vcombine.high %v5852, %v5840
        %v6233 = vcombine.high %v5482, %v5482
        %v6235 = vunpack.c.l.s4 1966171168
        %v6236 = vunpack.c.0.s8 %v6235
        %v6237 = vlaneseq
        %v6238 = vshrl.u32 %v6237, 7
        %v6239 = vsub.s32 %v6236, %v6238
        %v6240 = vrot.slane %v6229, %v6239
        %v6242 = vunpack.c.l.s4 1966171168
        %v6243 = vunpack.c.0.s8 %v6242
        %v6244 = vlaneseq
        %v6245 = vshrl.u32 %v6244, 7
        %v6246 = vsub.s32 %v6243, %v6245
        %v6247 = vrot.slane %v6230, %v6246
        %v6249 = vunpack.c.l.s4 1966171168
        %v6250 = vunpack.c.0.s8 %v6249
        %v6251 = vlaneseq
        %v6252 = vshrl.u32 %v6251, 7
        %v6253 = vsub.s32 %v6250, %v6252
        %v6254 = vrot.slane %v6231, %v6253
        %v6256 = vunpack.c.l.s4 1966171168
        %v6257 = vunpack.c.0.s8 %v6256
        %v6258 = vlaneseq
        %v6259 = vshrl.u32 %v6258, 7
        %v6260 = vsub.s32 %v6257, %v6259
        %v6261 = vrot.slane %v6232, %v6260
        %v6263 = vunpack.c.l.s4 1966171168
        %v6264 = vunpack.c.0.s8 %v6263
        %v6265 = vlaneseq
        %v6266 = vshrl.u32 %v6265, 7
        %v6267 = vsub.s32 %v6264, %v6266
        %v6268 = vrot.slane %v5482, %v6267
        %v6270 = vunpack.c.l.s4 1966171168
        %v6271 = vunpack.c.0.s8 %v6270
        %v6272 = vlaneseq
        %v6273 = vshrl.u32 %v6272, 7
        %v6274 = vsub.s32 %v6271, %v6273
        %v6275 = vrot.slane %v6233, %v6274
        %v6276 = vcombine.low %v6240, %v6254
        %v6277 = vcombine.high %v6240, %v6254
        %v6278 = vcombine.low %v6247, %v6261
        %v6279 = vcombine.high %v6247, %v6261
        %v6280 = vcombine.high %v6268, %v6268
        %v6281 = vcombine.high %v6275, %v6275
        %v6283 = vunpack.c.l.s4 1966171168
        %v6284 = vunpack.c.0.s8 %v6283
        %v6285 = vlaneseq
        %v6286 = vshrl.u32 %v6285, 7
        %v6287 = vsub.s32 %v6284, %v6286
        %v6288 = vrot.slane %v6276, %v6287
        %v6290 = vunpack.c.l.s4 1966171168
        %v6291 = vunpack.c.0.s8 %v6290
        %v6292 = vlaneseq
        %v6293 = vshrl.u32 %v6292, 7
        %v6294 = vsub.s32 %v6291, %v6293
        %v6295 = vrot.slane %v6278, %v6294
        %v6297 = vunpack.c.l.s4 1966171168
        %v6298 = vunpack.c.0.s8 %v6297
        %v6299 = vlaneseq
        %v6300 = vshrl.u32 %v6299, 7
        %v6301 = vsub.s32 %v6298, %v6300
        %v6302 = vrot.slane %v6277, %v6301
        %v6304 = vunpack.c.l.s4 1966171168
        %v6305 = vunpack.c.0.s8 %v6304
        %v6306 = vlaneseq
        %v6307 = vshrl.u32 %v6306, 7
        %v6308 = vsub.s32 %v6305, %v6307
        %v6309 = vrot.slane %v6279, %v6308
        %v6311 = vunpack.c.l.s4 1966171168
        %v6312 = vunpack.c.0.s8 %v6311
        %v6313 = vlaneseq
        %v6314 = vshrl.u32 %v6313, 7
        %v6315 = vsub.s32 %v6312, %v6314
        %v6316 = vrot.slane %v6268, %v6315
        %v6318 = vunpack.c.l.s4 1966171168
        %v6319 = vunpack.c.0.s8 %v6318
        %v6320 = vlaneseq
        %v6321 = vshrl.u32 %v6320, 7
        %v6322 = vsub.s32 %v6319, %v6321
        %v6323 = vrot.slane %v6275, %v6322
        %v6325 = vunpack.c.l.s4 1966171168
        %v6326 = vunpack.c.0.s8 %v6325
        %v6327 = vlaneseq
        %v6328 = vshrl.u32 %v6327, 7
        %v6329 = vsub.s32 %v6326, %v6328
        %v6330 = vrot.slane %v6280, %v6329
        %v6332 = vunpack.c.l.s4 1966171168
        %v6333 = vunpack.c.0.s8 %v6332
        %v6334 = vlaneseq
        %v6335 = vshrl.u32 %v6334, 7
        %v6336 = vsub.s32 %v6333, %v6335
        %v6337 = vrot.slane %v6281, %v6336
        %v6338 = vcombine.low %v6288, %v6316
        %v6339 = vcombine.high %v6288, %v6316
        %v6340 = vcombine.low %v6295, %v6323
        %v6341 = vcombine.high %v6295, %v6323
        %v6342 = vcombine.low %v6302, %v6330
        %v6343 = vcombine.high %v6302, %v6330
        %v6344 = vcombine.low %v6309, %v6337
        %v6345 = vcombine.low %v5839, %v5846
        %v6346 = vcombine.high %v5839, %v5846
        %v6347 = vcombine.low %v5853, %v5841
        %v6348 = vcombine.high %v5853, %v5841
        %v6349 = vcombine.high %v5514, %v5514
        %v6351 = vunpack.c.l.s4 1966171168
        %v6352 = vunpack.c.0.s8 %v6351
        %v6353 = vlaneseq
        %v6354 = vshrl.u32 %v6353, 7
        %v6355 = vsub.s32 %v6352, %v6354
        %v6356 = vrot.slane %v6345, %v6355
        %v6358 = vunpack.c.l.s4 1966171168
        %v6359 = vunpack.c.0.s8 %v6358
        %v6360 = vlaneseq
        %v6361 = vshrl.u32 %v6360, 7
        %v6362 = vsub.s32 %v6359, %v6361
        %v6363 = vrot.slane %v6346, %v6362
        %v6365 = vunpack.c.l.s4 1966171168
        %v6366 = vunpack.c.0.s8 %v6365
        %v6367 = vlaneseq
        %v6368 = vshrl.u32 %v6367, 7
        %v6369 = vsub.s32 %v6366, %v6368
        %v6370 = vrot.slane %v6347, %v6369
        %v6372 = vunpack.c.l.s4 1966171168
        %v6373 = vunpack.c.0.s8 %v6372
        %v6374 = vlaneseq
        %v6375 = vshrl.u32 %v6374, 7
        %v6376 = vsub.s32 %v6373, %v6375
        %v6377 = vrot.slane %v6348, %v6376
        %v6379 = vunpack.c.l.s4 1966171168
        %v6380 = vunpack.c.0.s8 %v6379
        %v6381 = vlaneseq
        %v6382 = vshrl.u32 %v6381, 7
        %v6383 = vsub.s32 %v6380, %v6382
        %v6384 = vrot.slane %v5514, %v6383
        %v6386 = vunpack.c.l.s4 1966171168
        %v6387 = vunpack.c.0.s8 %v6386
        %v6388 = vlaneseq
        %v6389 = vshrl.u32 %v6388, 7
        %v6390 = vsub.s32 %v6387, %v6389
        %v6391 = vrot.slane %v6349, %v6390
        %v6392 = vcombine.low %v6356, %v6370
        %v6393 = vcombine.high %v6356, %v6370
        %v6394 = vcombine.low %v6363, %v6377
        %v6395 = vcombine.high %v6363, %v6377
        %v6396 = vcombine.high %v6384, %v6384
        %v6397 = vcombine.high %v6391, %v6391
        %v6399 = vunpack.c.l.s4 1966171168
        %v6400 = vunpack.c.0.s8 %v6399
        %v6401 = vlaneseq
        %v6402 = vshrl.u32 %v6401, 7
        %v6403 = vsub.s32 %v6400, %v6402
        %v6404 = vrot.slane %v6392, %v6403
        %v6406 = vunpack.c.l.s4 1966171168
        %v6407 = vunpack.c.0.s8 %v6406
        %v6408 = vlaneseq
        %v6409 = vshrl.u32 %v6408, 7
        %v6410 = vsub.s32 %v6407, %v6409
        %v6411 = vrot.slane %v6394, %v6410
        %v6413 = vunpack.c.l.s4 1966171168
        %v6414 = vunpack.c.0.s8 %v6413
        %v6415 = vlaneseq
        %v6416 = vshrl.u32 %v6415, 7
        %v6417 = vsub.s32 %v6414, %v6416
        %v6418 = vrot.slane %v6393, %v6417
        %v6420 = vunpack.c.l.s4 1966171168
        %v6421 = vunpack.c.0.s8 %v6420
        %v6422 = vlaneseq
        %v6423 = vshrl.u32 %v6422, 7
        %v6424 = vsub.s32 %v6421, %v6423
        %v6425 = vrot.slane %v6395, %v6424
        %v6427 = vunpack.c.l.s4 1966171168
        %v6428 = vunpack.c.0.s8 %v6427
        %v6429 = vlaneseq
        %v6430 = vshrl.u32 %v6429, 7
        %v6431 = vsub.s32 %v6428, %v6430
        %v6432 = vrot.slane %v6384, %v6431
        %v6434 = vunpack.c.l.s4 1966171168
        %v6435 = vunpack.c.0.s8 %v6434
        %v6436 = vlaneseq
        %v6437 = vshrl.u32 %v6436, 7
        %v6438 = vsub.s32 %v6435, %v6437
        %v6439 = vrot.slane %v6391, %v6438
        %v6441 = vunpack.c.l.s4 1966171168
        %v6442 = vunpack.c.0.s8 %v6441
        %v6443 = vlaneseq
        %v6444 = vshrl.u32 %v6443, 7
        %v6445 = vsub.s32 %v6442, %v6444
        %v6446 = vrot.slane %v6396, %v6445
        %v6448 = vunpack.c.l.s4 1966171168
        %v6449 = vunpack.c.0.s8 %v6448
        %v6450 = vlaneseq
        %v6451 = vshrl.u32 %v6450, 7
        %v6452 = vsub.s32 %v6449, %v6451
        %v6453 = vrot.slane %v6397, %v6452
        %v6454 = vcombine.low %v6404, %v6432
        %v6455 = vcombine.high %v6404, %v6432
        %v6456 = vcombine.low %v6411, %v6439
        %v6457 = vcombine.high %v6411, %v6439
        %v6458 = vcombine.low %v6418, %v6446
        %v6459 = vcombine.high %v6418, %v6446
        %v6460 = vcombine.low %v6425, %v6453
        %v6461 = vcombine.low %v5840, %v5847
        %v6462 = vcombine.high %v5840, %v5847
        %v6463 = vcombine.low %v5854, %v5856
        %v6464 = vcombine.high %v5854, %v5856
        %v6465 = vcombine.high %v5677, %v5677
        %v6467 = vunpack.c.l.s4 1966171168
        %v6468 = vunpack.c.0.s8 %v6467
        %v6469 = vlaneseq
        %v6470 = vshrl.u32 %v6469, 7
        %v6471 = vsub.s32 %v6468, %v6470
        %v6472 = vrot.slane %v6461, %v6471
        %v6474 = vunpack.c.l.s4 1966171168
        %v6475 = vunpack.c.0.s8 %v6474
        %v6476 = vlaneseq
        %v6477 = vshrl.u32 %v6476, 7
        %v6478 = vsub.s32 %v6475, %v6477
        %v6479 = vrot.slane %v6462, %v6478
        %v6481 = vunpack.c.l.s4 1966171168
        %v6482 = vunpack.c.0.s8 %v6481
        %v6483 = vlaneseq
        %v6484 = vshrl.u32 %v6483, 7
        %v6485 = vsub.s32 %v6482, %v6484
        %v6486 = vrot.slane %v6463, %v6485
        %v6488 = vunpack.c.l.s4 1966171168
        %v6489 = vunpack.c.0.s8 %v6488
        %v6490 = vlaneseq
        %v6491 = vshrl.u32 %v6490, 7
        %v6492 = vsub.s32 %v6489, %v6491
        %v6493 = vrot.slane %v6464, %v6492
        %v6495 = vunpack.c.l.s4 1966171168
        %v6496 = vunpack.c.0.s8 %v6495
        %v6497 = vlaneseq
        %v6498 = vshrl.u32 %v6497, 7
        %v6499 = vsub.s32 %v6496, %v6498
        %v6500 = vrot.slane %v5677, %v6499
        %v6502 = vunpack.c.l.s4 1966171168
        %v6503 = vunpack.c.0.s8 %v6502
        %v6504 = vlaneseq
        %v6505 = vshrl.u32 %v6504, 7
        %v6506 = vsub.s32 %v6503, %v6505
        %v6507 = vrot.slane %v6465, %v6506
        %v6508 = vcombine.low %v6472, %v6486
        %v6509 = vcombine.high %v6472, %v6486
        %v6510 = vcombine.low %v6479, %v6493
        %v6511 = vcombine.high %v6479, %v6493
        %v6512 = vcombine.high %v6500, %v6500
        %v6513 = vcombine.high %v6507, %v6507
        %v6515 = vunpack.c.l.s4 1966171168
        %v6516 = vunpack.c.0.s8 %v6515
        %v6517 = vlaneseq
        %v6518 = vshrl.u32 %v6517, 7
        %v6519 = vsub.s32 %v6516, %v6518
        %v6520 = vrot.slane %v6508, %v6519
        %v6522 = vunpack.c.l.s4 1966171168
        %v6523 = vunpack.c.0.s8 %v6522
        %v6524 = vlaneseq
        %v6525 = vshrl.u32 %v6524, 7
        %v6526 = vsub.s32 %v6523, %v6525
        %v6527 = vrot.slane %v6510, %v6526
        %v6529 = vunpack.c.l.s4 1966171168
        %v6530 = vunpack.c.0.s8 %v6529
        %v6531 = vlaneseq
        %v6532 = vshrl.u32 %v6531, 7
        %v6533 = vsub.s32 %v6530, %v6532
        %v6534 = vrot.slane %v6509, %v6533
        %v6536 = vunpack.c.l.s4 1966171168
        %v6537 = vunpack.c.0.s8 %v6536
        %v6538 = vlaneseq
        %v6539 = vshrl.u32 %v6538, 7
        %v6540 = vsub.s32 %v6537, %v6539
        %v6541 = vrot.slane %v6511, %v6540
        %v6543 = vunpack.c.l.s4 1966171168
        %v6544 = vunpack.c.0.s8 %v6543
        %v6545 = vlaneseq
        %v6546 = vshrl.u32 %v6545, 7
        %v6547 = vsub.s32 %v6544, %v6546
        %v6548 = vrot.slane %v6500, %v6547
        %v6550 = vunpack.c.l.s4 1966171168
        %v6551 = vunpack.c.0.s8 %v6550
        %v6552 = vlaneseq
        %v6553 = vshrl.u32 %v6552, 7
        %v6554 = vsub.s32 %v6551, %v6553
        %v6555 = vrot.slane %v6507, %v6554
        %v6557 = vunpack.c.l.s4 1966171168
        %v6558 = vunpack.c.0.s8 %v6557
        %v6559 = vlaneseq
        %v6560 = vshrl.u32 %v6559, 7
        %v6561 = vsub.s32 %v6558, %v6560
        %v6562 = vrot.slane %v6512, %v6561
        %v6564 = vunpack.c.l.s4 1966171168
        %v6565 = vunpack.c.0.s8 %v6564
        %v6566 = vlaneseq
        %v6567 = vshrl.u32 %v6566, 7
        %v6568 = vsub.s32 %v6565, %v6567
        %v6569 = vrot.slane %v6513, %v6568
        %v6570 = vcombine.low %v6520, %v6548
        %v6571 = vcombine.high %v6520, %v6548
        %v6572 = vcombine.low %v6527, %v6555
        %v6573 = vcombine.high %v6527, %v6555
        %v6574 = vcombine.low %v6534, %v6562
        %v6575 = vcombine.high %v6534, %v6562
        %v6576 = vcombine.low %v6541, %v6569
        %v6577 = vcombine.low %v5841, %v5848
        %v6578 = vcombine.high %v5841, %v5848
        %v6579 = vcombine.low %v5855, %v5857
        %v6580 = vcombine.high %v5855, %v5857
        %v6581 = vcombine.high %v5834, %v5834
        %v6583 = vunpack.c.l.s4 1966171168
        %v6584 = vunpack.c.0.s8 %v6583
        %v6585 = vlaneseq
        %v6586 = vshrl.u32 %v6585, 7
        %v6587 = vsub.s32 %v6584, %v6586
        %v6588 = vrot.slane %v6577, %v6587
        %v6590 = vunpack.c.l.s4 1966171168
        %v6591 = vunpack.c.0.s8 %v6590
        %v6592 = vlaneseq
        %v6593 = vshrl.u32 %v6592, 7
        %v6594 = vsub.s32 %v6591, %v6593
        %v6595 = vrot.slane %v6578, %v6594
        %v6597 = vunpack.c.l.s4 1966171168
        %v6598 = vunpack.c.0.s8 %v6597
        %v6599 = vlaneseq
        %v6600 = vshrl.u32 %v6599, 7
        %v6601 = vsub.s32 %v6598, %v6600
        %v6602 = vrot.slane %v6579, %v6601
        %v6604 = vunpack.c.l.s4 1966171168
        %v6605 = vunpack.c.0.s8 %v6604
        %v6606 = vlaneseq
        %v6607 = vshrl.u32 %v6606, 7
        %v6608 = vsub.s32 %v6605, %v6607
        %v6609 = vrot.slane %v6580, %v6608
        %v6611 = vunpack.c.l.s4 1966171168
        %v6612 = vunpack.c.0.s8 %v6611
        %v6613 = vlaneseq
        %v6614 = vshrl.u32 %v6613, 7
        %v6615 = vsub.s32 %v6612, %v6614
        %v6616 = vrot.slane %v5834, %v6615
        %v6618 = vunpack.c.l.s4 1966171168
        %v6619 = vunpack.c.0.s8 %v6618
        %v6620 = vlaneseq
        %v6621 = vshrl.u32 %v6620, 7
        %v6622 = vsub.s32 %v6619, %v6621
        %v6623 = vrot.slane %v6581, %v6622
        %v6624 = vcombine.low %v6588, %v6602
        %v6625 = vcombine.high %v6588, %v6602
        %v6626 = vcombine.low %v6595, %v6609
        %v6627 = vcombine.high %v6595, %v6609
        %v6628 = vcombine.high %v6616, %v6616
        %v6629 = vcombine.high %v6623, %v6623
        %v6631 = vunpack.c.l.s4 1966171168
        %v6632 = vunpack.c.0.s8 %v6631
        %v6633 = vlaneseq
        %v6634 = vshrl.u32 %v6633, 7
        %v6635 = vsub.s32 %v6632, %v6634
        %v6636 = vrot.slane %v6624, %v6635
        %v6638 = vunpack.c.l.s4 1966171168
        %v6639 = vunpack.c.0.s8 %v6638
        %v6640 = vlaneseq
        %v6641 = vshrl.u32 %v6640, 7
        %v6642 = vsub.s32 %v6639, %v6641
        %v6643 = vrot.slane %v6626, %v6642
        %v6645 = vunpack.c.l.s4 1966171168
        %v6646 = vunpack.c.0.s8 %v6645
        %v6647 = vlaneseq
        %v6648 = vshrl.u32 %v6647, 7
        %v6649 = vsub.s32 %v6646, %v6648
        %v6650 = vrot.slane %v6625, %v6649
        %v6652 = vunpack.c.l.s4 1966171168
        %v6653 = vunpack.c.0.s8 %v6652
        %v6654 = vlaneseq
        %v6655 = vshrl.u32 %v6654, 7
        %v6656 = vsub.s32 %v6653, %v6655
        %v6657 = vrot.slane %v6627, %v6656
        %v6659 = vunpack.c.l.s4 1966171168
        %v6660 = vunpack.c.0.s8 %v6659
        %v6661 = vlaneseq
        %v6662 = vshrl.u32 %v6661, 7
        %v6663 = vsub.s32 %v6660, %v6662
        %v6664 = vrot.slane %v6616, %v6663
        %v6666 = vunpack.c.l.s4 1966171168
        %v6667 = vunpack.c.0.s8 %v6666
        %v6668 = vlaneseq
        %v6669 = vshrl.u32 %v6668, 7
        %v6670 = vsub.s32 %v6667, %v6669
        %v6671 = vrot.slane %v6623, %v6670
        %v6673 = vunpack.c.l.s4 1966171168
        %v6674 = vunpack.c.0.s8 %v6673
        %v6675 = vlaneseq
        %v6676 = vshrl.u32 %v6675, 7
        %v6677 = vsub.s32 %v6674, %v6676
        %v6678 = vrot.slane %v6628, %v6677
        %v6680 = vunpack.c.l.s4 1966171168
        %v6681 = vunpack.c.0.s8 %v6680
        %v6682 = vlaneseq
        %v6683 = vshrl.u32 %v6682, 7
        %v6684 = vsub.s32 %v6681, %v6683
        %v6685 = vrot.slane %v6629, %v6684
        %v6686 = vcombine.low %v6636, %v6664
        %v6687 = vcombine.high %v6636, %v6664
        %v6688 = vcombine.low %v6643, %v6671
        %v6689 = vcombine.high %v6643, %v6671
        %v6690 = vcombine.low %v6650, %v6678
        %v6691 = vcombine.high %v6650, %v6678
        %v6692 = vcombine.low %v6657, %v6685
        %v6694 = vlaneseq
        %v6695 = vshrl.u32 %v6694, 7
        %v6696 = vsub.s32 0, %v6695
        %v6697 = vrot.slane %v554, %v6696
        %v6699 = vcombine.low %v5990, %v5994
        %v6700 = vcombine.high %v5990, %v5994
        %v6701 = vcombine.low %v5991, %v5995
        %v6702 = vcombine.high %v5991, %v5995
        %v6703 = vcombine.low %v5992, %v5996
        %v6704 = vcombine.high %v5992, %v5996
        %v6705 = vcombine.low %v5993, %v6106
        %v6706 = vcombine.high %v5993, %v6106
        %v6708 = vunpack.c.l.s4 1966171168
        %v6709 = vunpack.c.0.s8 %v6708
        %v6710 = vlaneseq
        %v6711 = vshrl.u32 %v6710, 7
        %v6712 = vsub.s32 %v6709, %v6711
        %v6713 = vrot.slane %v6699, %v6712
        %v6715 = vunpack.c.l.s4 1966171168
        %v6716 = vunpack.c.0.s8 %v6715
        %v6717 = vlaneseq
        %v6718 = vshrl.u32 %v6717, 7
        %v6719 = vsub.s32 %v6716, %v6718
        %v6720 = vrot.slane %v6700, %v6719
        %v6722 = vunpack.c.l.s4 1966171168
        %v6723 = vunpack.c.0.s8 %v6722
        %v6724 = vlaneseq
        %v6725 = vshrl.u32 %v6724, 7
        %v6726 = vsub.s32 %v6723, %v6725
        %v6727 = vrot.slane %v6701, %v6726
        %v6729 = vunpack.c.l.s4 1966171168
        %v6730 = vunpack.c.0.s8 %v6729
        %v6731 = vlaneseq
        %v6732 = vshrl.u32 %v6731, 7
        %v6733 = vsub.s32 %v6730, %v6732
        %v6734 = vrot.slane %v6702, %v6733
        %v6736 = vunpack.c.l.s4 1966171168
        %v6737 = vunpack.c.0.s8 %v6736
        %v6738 = vlaneseq
        %v6739 = vshrl.u32 %v6738, 7
        %v6740 = vsub.s32 %v6737, %v6739
        %v6741 = vrot.slane %v6703, %v6740
        %v6743 = vunpack.c.l.s4 1966171168
        %v6744 = vunpack.c.0.s8 %v6743
        %v6745 = vlaneseq
        %v6746 = vshrl.u32 %v6745, 7
        %v6747 = vsub.s32 %v6744, %v6746
        %v6748 = vrot.slane %v6704, %v6747
        %v6750 = vunpack.c.l.s4 1966171168
        %v6751 = vunpack.c.0.s8 %v6750
        %v6752 = vlaneseq
        %v6753 = vshrl.u32 %v6752, 7
        %v6754 = vsub.s32 %v6751, %v6753
        %v6755 = vrot.slane %v6705, %v6754
        %v6757 = vunpack.c.l.s4 1966171168
        %v6758 = vunpack.c.0.s8 %v6757
        %v6759 = vlaneseq
        %v6760 = vshrl.u32 %v6759, 7
        %v6761 = vsub.s32 %v6758, %v6760
        %v6762 = vrot.slane %v6706, %v6761
        %v6763 = vcombine.low %v6713, %v6727
        %v6764 = vcombine.high %v6713, %v6727
        %v6765 = vcombine.low %v6720, %v6734
        %v6766 = vcombine.low %v6741, %v6755
        %v6767 = vcombine.high %v6741, %v6755
        %v6768 = vcombine.low %v6748, %v6762
        %v6770 = vunpack.c.l.s4 1966171168
        %v6771 = vunpack.c.0.s8 %v6770
        %v6772 = vlaneseq
        %v6773 = vshrl.u32 %v6772, 7
        %v6774 = vsub.s32 %v6771, %v6773
        %v6775 = vrot.slane %v6763, %v6774
        %v6777 = vunpack.c.l.s4 1966171168
        %v6778 = vunpack.c.0.s8 %v6777
        %v6779 = vlaneseq
        %v6780 = vshrl.u32 %v6779, 7
        %v6781 = vsub.s32 %v6778, %v6780
        %v6782 = vrot.slane %v6765, %v6781
        %v6784 = vunpack.c.l.s4 1966171168
        %v6785 = vunpack.c.0.s8 %v6784
        %v6786 = vlaneseq
        %v6787 = vshrl.u32 %v6786, 7
        %v6788 = vsub.s32 %v6785, %v6787
        %v6789 = vrot.slane %v6764, %v6788
        %v6791 = vunpack.c.l.s4 1966171168
        %v6792 = vunpack.c.0.s8 %v6791
        %v6793 = vlaneseq
        %v6794 = vshrl.u32 %v6793, 7
        %v6795 = vsub.s32 %v6792, %v6794
        %v6796 = vrot.slane %v6766, %v6795
        %v6798 = vunpack.c.l.s4 1966171168
        %v6799 = vunpack.c.0.s8 %v6798
        %v6800 = vlaneseq
        %v6801 = vshrl.u32 %v6800, 7
        %v6802 = vsub.s32 %v6799, %v6801
        %v6803 = vrot.slane %v6768, %v6802
        %v6805 = vunpack.c.l.s4 1966171168
        %v6806 = vunpack.c.0.s8 %v6805
        %v6807 = vlaneseq
        %v6808 = vshrl.u32 %v6807, 7
        %v6809 = vsub.s32 %v6806, %v6808
        %v6810 = vrot.slane %v6767, %v6809
        %v6811 = vcombine.low %v6775, %v6796
        %v6812 = vcombine.high %v6775, %v6796
        %v6813 = vcombine.low %v6782, %v6803
        %v6814 = vcombine.low %v6789, %v6810
        %v6815 = vcombine.high %v6789, %v6810
        %v6816 = vcombine.low %v6110, %v6107
        %v6817 = vcombine.high %v6110, %v6107
        %v6818 = vcombine.low %v6111, %v6108
        %v6819 = vcombine.high %v6111, %v6108
        %v6820 = vcombine.low %v6112, %v6109
        %v6821 = vcombine.high %v6112, %v6109
        %v6822 = vcombine.low %v6222, %v6226
        %v6823 = vcombine.high %v6222, %v6226
        %v6825 = vunpack.c.l.s4 1966171168
        %v6826 = vunpack.c.0.s8 %v6825
        %v6827 = vlaneseq
        %v6828 = vshrl.u32 %v6827, 7
        %v6829 = vsub.s32 %v6826, %v6828
        %v6830 = vrot.slane %v6816, %v6829
        %v6832 = vunpack.c.l.s4 1966171168
        %v6833 = vunpack.c.0.s8 %v6832
        %v6834 = vlaneseq
        %v6835 = vshrl.u32 %v6834, 7
        %v6836 = vsub.s32 %v6833, %v6835
        %v6837 = vrot.slane %v6817, %v6836
        %v6839 = vunpack.c.l.s4 1966171168
        %v6840 = vunpack.c.0.s8 %v6839
        %v6841 = vlaneseq
        %v6842 = vshrl.u32 %v6841, 7
        %v6843 = vsub.s32 %v6840, %v6842
        %v6844 = vrot.slane %v6818, %v6843
        %v6846 = vunpack.c.l.s4 1966171168
        %v6847 = vunpack.c.0.s8 %v6846
        %v6848 = vlaneseq
        %v6849 = vshrl.u32 %v6848, 7
        %v6850 = vsub.s32 %v6847, %v6849
        %v6851 = vrot.slane %v6819, %v6850
        %v6853 = vunpack.c.l.s4 1966171168
        %v6854 = vunpack.c.0.s8 %v6853
        %v6855 = vlaneseq
        %v6856 = vshrl.u32 %v6855, 7
        %v6857 = vsub.s32 %v6854, %v6856
        %v6858 = vrot.slane %v6820, %v6857
        %v6860 = vunpack.c.l.s4 1966171168
        %v6861 = vunpack.c.0.s8 %v6860
        %v6862 = vlaneseq
        %v6863 = vshrl.u32 %v6862, 7
        %v6864 = vsub.s32 %v6861, %v6863
        %v6865 = vrot.slane %v6821, %v6864
        %v6867 = vunpack.c.l.s4 1966171168
        %v6868 = vunpack.c.0.s8 %v6867
        %v6869 = vlaneseq
        %v6870 = vshrl.u32 %v6869, 7
        %v6871 = vsub.s32 %v6868, %v6870
        %v6872 = vrot.slane %v6822, %v6871
        %v6874 = vunpack.c.l.s4 1966171168
        %v6875 = vunpack.c.0.s8 %v6874
        %v6876 = vlaneseq
        %v6877 = vshrl.u32 %v6876, 7
        %v6878 = vsub.s32 %v6875, %v6877
        %v6879 = vrot.slane %v6823, %v6878
        %v6880 = vcombine.low %v6830, %v6844
        %v6881 = vcombine.high %v6830, %v6844
        %v6882 = vcombine.low %v6837, %v6851
        %v6883 = vcombine.low %v6858, %v6872
        %v6884 = vcombine.high %v6858, %v6872
        %v6885 = vcombine.low %v6865, %v6879
        %v6887 = vunpack.c.l.s4 1966171168
        %v6888 = vunpack.c.0.s8 %v6887
        %v6889 = vlaneseq
        %v6890 = vshrl.u32 %v6889, 7
        %v6891 = vsub.s32 %v6888, %v6890
        %v6892 = vrot.slane %v6880, %v6891
        %v6894 = vunpack.c.l.s4 1966171168
        %v6895 = vunpack.c.0.s8 %v6894
        %v6896 = vlaneseq
        %v6897 = vshrl.u32 %v6896, 7
        %v6898 = vsub.s32 %v6895, %v6897
        %v6899 = vrot.slane %v6882, %v6898
        %v6901 = vunpack.c.l.s4 1966171168
        %v6902 = vunpack.c.0.s8 %v6901
        %v6903 = vlaneseq
        %v6904 = vshrl.u32 %v6903, 7
        %v6905 = vsub.s32 %v6902, %v6904
        %v6906 = vrot.slane %v6881, %v6905
        %v6908 = vunpack.c.l.s4 1966171168
        %v6909 = vunpack.c.0.s8 %v6908
        %v6910 = vlaneseq
        %v6911 = vshrl.u32 %v6910, 7
        %v6912 = vsub.s32 %v6909, %v6911
        %v6913 = vrot.slane %v6883, %v6912
        %v6915 = vunpack.c.l.s4 1966171168
        %v6916 = vunpack.c.0.s8 %v6915
        %v6917 = vlaneseq
        %v6918 = vshrl.u32 %v6917, 7
        %v6919 = vsub.s32 %v6916, %v6918
        %v6920 = vrot.slane %v6885, %v6919
        %v6922 = vunpack.c.l.s4 1966171168
        %v6923 = vunpack.c.0.s8 %v6922
        %v6924 = vlaneseq
        %v6925 = vshrl.u32 %v6924, 7
        %v6926 = vsub.s32 %v6923, %v6925
        %v6927 = vrot.slane %v6884, %v6926
        %v6928 = vcombine.low %v6892, %v6913
        %v6929 = vcombine.high %v6892, %v6913
        %v6930 = vcombine.low %v6899, %v6920
        %v6931 = vcombine.low %v6906, %v6927
        %v6932 = vcombine.high %v6906, %v6927
        %v6933 = vcombine.low %v6223, %v6227
        %v6934 = vcombine.high %v6223, %v6227
        %v6935 = vcombine.low %v6224, %v6228
        %v6936 = vcombine.high %v6224, %v6228
        %v6937 = vcombine.low %v6225, %v6338
        %v6938 = vcombine.high %v6225, %v6338
        %v6939 = vcombine.low %v6342, %v6339
        %v6940 = vcombine.high %v6342, %v6339
        %v6942 = vunpack.c.l.s4 1966171168
        %v6943 = vunpack.c.0.s8 %v6942
        %v6944 = vlaneseq
        %v6945 = vshrl.u32 %v6944, 7
        %v6946 = vsub.s32 %v6943, %v6945
        %v6947 = vrot.slane %v6933, %v6946
        %v6949 = vunpack.c.l.s4 1966171168
        %v6950 = vunpack.c.0.s8 %v6949
        %v6951 = vlaneseq
        %v6952 = vshrl.u32 %v6951, 7
        %v6953 = vsub.s32 %v6950, %v6952
        %v6954 = vrot.slane %v6934, %v6953
        %v6956 = vunpack.c.l.s4 1966171168
        %v6957 = vunpack.c.0.s8 %v6956
        %v6958 = vlaneseq
        %v6959 = vshrl.u32 %v6958, 7
        %v6960 = vsub.s32 %v6957, %v6959
        %v6961 = vrot.slane %v6935, %v6960
        %v6963 = vunpack.c.l.s4 1966171168
        %v6964 = vunpack.c.0.s8 %v6963
        %v6965 = vlaneseq
        %v6966 = vshrl.u32 %v6965, 7
        %v6967 = vsub.s32 %v6964, %v6966
        %v6968 = vrot.slane %v6936, %v6967
        %v6970 = vunpack.c.l.s4 1966171168
        %v6971 = vunpack.c.0.s8 %v6970
        %v6972 = vlaneseq
        %v6973 = vshrl.u32 %v6972, 7
        %v6974 = vsub.s32 %v6971, %v6973
        %v6975 = vrot.slane %v6937, %v6974
        %v6977 = vunpack.c.l.s4 1966171168
        %v6978 = vunpack.c.0.s8 %v6977
        %v6979 = vlaneseq
        %v6980 = vshrl.u32 %v6979, 7
        %v6981 = vsub.s32 %v6978, %v6980
        %v6982 = vrot.slane %v6938, %v6981
        %v6984 = vunpack.c.l.s4 1966171168
        %v6985 = vunpack.c.0.s8 %v6984
        %v6986 = vlaneseq
        %v6987 = vshrl.u32 %v6986, 7
        %v6988 = vsub.s32 %v6985, %v6987
        %v6989 = vrot.slane %v6939, %v6988
        %v6991 = vunpack.c.l.s4 1966171168
        %v6992 = vunpack.c.0.s8 %v6991
        %v6993 = vlaneseq
        %v6994 = vshrl.u32 %v6993, 7
        %v6995 = vsub.s32 %v6992, %v6994
        %v6996 = vrot.slane %v6940, %v6995
        %v6997 = vcombine.low %v6947, %v6961
        %v6998 = vcombine.high %v6947, %v6961
        %v6999 = vcombine.low %v6954, %v6968
        %v7000 = vcombine.low %v6975, %v6989
        %v7001 = vcombine.high %v6975, %v6989
        %v7002 = vcombine.low %v6982, %v6996
        %v7004 = vunpack.c.l.s4 1966171168
        %v7005 = vunpack.c.0.s8 %v7004
        %v7006 = vlaneseq
        %v7007 = vshrl.u32 %v7006, 7
        %v7008 = vsub.s32 %v7005, %v7007
        %v7009 = vrot.slane %v6997, %v7008
        %v7011 = vunpack.c.l.s4 1966171168
        %v7012 = vunpack.c.0.s8 %v7011
        %v7013 = vlaneseq
        %v7014 = vshrl.u32 %v7013, 7
        %v7015 = vsub.s32 %v7012, %v7014
        %v7016 = vrot.slane %v6999, %v7015
        %v7018 = vunpack.c.l.s4 1966171168
        %v7019 = vunpack.c.0.s8 %v7018
        %v7020 = vlaneseq
        %v7021 = vshrl.u32 %v7020, 7
        %v7022 = vsub.s32 %v7019, %v7021
        %v7023 = vrot.slane %v6998, %v7022
        %v7025 = vunpack.c.l.s4 1966171168
        %v7026 = vunpack.c.0.s8 %v7025
        %v7027 = vlaneseq
        %v7028 = vshrl.u32 %v7027, 7
        %v7029 = vsub.s32 %v7026, %v7028
        %v7030 = vrot.slane %v7000, %v7029
        %v7032 = vunpack.c.l.s4 1966171168
        %v7033 = vunpack.c.0.s8 %v7032
        %v7034 = vlaneseq
        %v7035 = vshrl.u32 %v7034, 7
        %v7036 = vsub.s32 %v7033, %v7035
        %v7037 = vrot.slane %v7002, %v7036
        %v7039 = vunpack.c.l.s4 1966171168
        %v7040 = vunpack.c.0.s8 %v7039
        %v7041 = vlaneseq
        %v7042 = vshrl.u32 %v7041, 7
        %v7043 = vsub.s32 %v7040, %v7042
        %v7044 = vrot.slane %v7001, %v7043
        %v7045 = vcombine.low %v7009, %v7030
        %v7046 = vcombine.high %v7009, %v7030
        %v7047 = vcombine.low %v7016, %v7037
        %v7048 = vcombine.low %v7023, %v7044
        %v7049 = vcombine.high %v7023, %v7044
        %v7050 = vcombine.low %v6343, %v6340
        %v7051 = vcombine.high %v6343, %v6340
        %v7052 = vcombine.low %v6344, %v6341
        %v7053 = vcombine.high %v6344, %v6341
        %v7054 = vcombine.low %v6454, %v6458
        %v7055 = vcombine.high %v6454, %v6458
        %v7056 = vcombine.low %v6455, %v6459
        %v7057 = vcombine.high %v6455, %v6459
        %v7059 = vunpack.c.l.s4 1966171168
        %v7060 = vunpack.c.0.s8 %v7059
        %v7061 = vlaneseq
        %v7062 = vshrl.u32 %v7061, 7
        %v7063 = vsub.s32 %v7060, %v7062
        %v7064 = vrot.slane %v7050, %v7063
        %v7066 = vunpack.c.l.s4 1966171168
        %v7067 = vunpack.c.0.s8 %v7066
        %v7068 = vlaneseq
        %v7069 = vshrl.u32 %v7068, 7
        %v7070 = vsub.s32 %v7067, %v7069
        %v7071 = vrot.slane %v7051, %v7070
        %v7073 = vunpack.c.l.s4 1966171168
        %v7074 = vunpack.c.0.s8 %v7073
        %v7075 = vlaneseq
        %v7076 = vshrl.u32 %v7075, 7
        %v7077 = vsub.s32 %v7074, %v7076
        %v7078 = vrot.slane %v7052, %v7077
        %v7080 = vunpack.c.l.s4 1966171168
        %v7081 = vunpack.c.0.s8 %v7080
        %v7082 = vlaneseq
        %v7083 = vshrl.u32 %v7082, 7
        %v7084 = vsub.s32 %v7081, %v7083
        %v7085 = vrot.slane %v7053, %v7084
        %v7087 = vunpack.c.l.s4 1966171168
        %v7088 = vunpack.c.0.s8 %v7087
        %v7089 = vlaneseq
        %v7090 = vshrl.u32 %v7089, 7
        %v7091 = vsub.s32 %v7088, %v7090
        %v7092 = vrot.slane %v7054, %v7091
        %v7094 = vunpack.c.l.s4 1966171168
        %v7095 = vunpack.c.0.s8 %v7094
        %v7096 = vlaneseq
        %v7097 = vshrl.u32 %v7096, 7
        %v7098 = vsub.s32 %v7095, %v7097
        %v7099 = vrot.slane %v7055, %v7098
        %v7101 = vunpack.c.l.s4 1966171168
        %v7102 = vunpack.c.0.s8 %v7101
        %v7103 = vlaneseq
        %v7104 = vshrl.u32 %v7103, 7
        %v7105 = vsub.s32 %v7102, %v7104
        %v7106 = vrot.slane %v7056, %v7105
        %v7108 = vunpack.c.l.s4 1966171168
        %v7109 = vunpack.c.0.s8 %v7108
        %v7110 = vlaneseq
        %v7111 = vshrl.u32 %v7110, 7
        %v7112 = vsub.s32 %v7109, %v7111
        %v7113 = vrot.slane %v7057, %v7112
        %v7114 = vcombine.low %v7064, %v7078
        %v7115 = vcombine.high %v7064, %v7078
        %v7116 = vcombine.low %v7071, %v7085
        %v7117 = vcombine.low %v7092, %v7106
        %v7118 = vcombine.high %v7092, %v7106
        %v7119 = vcombine.low %v7099, %v7113
        %v7121 = vunpack.c.l.s4 1966171168
        %v7122 = vunpack.c.0.s8 %v7121
        %v7123 = vlaneseq
        %v7124 = vshrl.u32 %v7123, 7
        %v7125 = vsub.s32 %v7122, %v7124
        %v7126 = vrot.slane %v7114, %v7125
        %v7128 = vunpack.c.l.s4 1966171168
        %v7129 = vunpack.c.0.s8 %v7128
        %v7130 = vlaneseq
        %v7131 = vshrl.u32 %v7130, 7
        %v7132 = vsub.s32 %v7129, %v7131
        %v7133 = vrot.slane %v7116, %v7132
        %v7135 = vunpack.c.l.s4 1966171168
        %v7136 = vunpack.c.0.s8 %v7135
        %v7137 = vlaneseq
        %v7138 = vshrl.u32 %v7137, 7
        %v7139 = vsub.s32 %v7136, %v7138
        %v7140 = vrot.slane %v7115, %v7139
        %v7142 = vunpack.c.l.s4 1966171168
        %v7143 = vunpack.c.0.s8 %v7142
        %v7144 = vlaneseq
        %v7145 = vshrl.u32 %v7144, 7
        %v7146 = vsub.s32 %v7143, %v7145
        %v7147 = vrot.slane %v7117, %v7146
        %v7149 = vunpack.c.l.s4 1966171168
        %v7150 = vunpack.c.0.s8 %v7149
        %v7151 = vlaneseq
        %v7152 = vshrl.u32 %v7151, 7
        %v7153 = vsub.s32 %v7150, %v7152
        %v7154 = vrot.slane %v7119, %v7153
        %v7156 = vunpack.c.l.s4 1966171168
        %v7157 = vunpack.c.0.s8 %v7156
        %v7158 = vlaneseq
        %v7159 = vshrl.u32 %v7158, 7
        %v7160 = vsub.s32 %v7157, %v7159
        %v7161 = vrot.slane %v7118, %v7160
        %v7162 = vcombine.low %v7126, %v7147
        %v7163 = vcombine.high %v7126, %v7147
        %v7164 = vcombine.low %v7133, %v7154
        %v7165 = vcombine.low %v7140, %v7161
        %v7166 = vcombine.high %v7140, %v7161
        %v7167 = vcombine.low %v6456, %v6460
        %v7168 = vcombine.high %v6456, %v6460
        %v7169 = vcombine.low %v6457, %v6570
        %v7170 = vcombine.high %v6457, %v6570
        %v7171 = vcombine.low %v6574, %v6571
        %v7172 = vcombine.high %v6574, %v6571
        %v7173 = vcombine.low %v6575, %v6572
        %v7174 = vcombine.high %v6575, %v6572
        %v7176 = vunpack.c.l.s4 1966171168
        %v7177 = vunpack.c.0.s8 %v7176
        %v7178 = vlaneseq
        %v7179 = vshrl.u32 %v7178, 7
        %v7180 = vsub.s32 %v7177, %v7179
        %v7181 = vrot.slane %v7167, %v7180
        %v7183 = vunpack.c.l.s4 1966171168
        %v7184 = vunpack.c.0.s8 %v7183
        %v7185 = vlaneseq
        %v7186 = vshrl.u32 %v7185, 7
        %v7187 = vsub.s32 %v7184, %v7186
        %v7188 = vrot.slane %v7168, %v7187
        %v7190 = vunpack.c.l.s4 1966171168
        %v7191 = vunpack.c.0.s8 %v7190
        %v7192 = vlaneseq
        %v7193 = vshrl.u32 %v7192, 7
        %v7194 = vsub.s32 %v7191, %v7193
        %v7195 = vrot.slane %v7169, %v7194
        %v7197 = vunpack.c.l.s4 1966171168
        %v7198 = vunpack.c.0.s8 %v7197
        %v7199 = vlaneseq
        %v7200 = vshrl.u32 %v7199, 7
        %v7201 = vsub.s32 %v7198, %v7200
        %v7202 = vrot.slane %v7170, %v7201
        %v7204 = vunpack.c.l.s4 1966171168
        %v7205 = vunpack.c.0.s8 %v7204
        %v7206 = vlaneseq
        %v7207 = vshrl.u32 %v7206, 7
        %v7208 = vsub.s32 %v7205, %v7207
        %v7209 = vrot.slane %v7171, %v7208
        %v7211 = vunpack.c.l.s4 1966171168
        %v7212 = vunpack.c.0.s8 %v7211
        %v7213 = vlaneseq
        %v7214 = vshrl.u32 %v7213, 7
        %v7215 = vsub.s32 %v7212, %v7214
        %v7216 = vrot.slane %v7172, %v7215
        %v7218 = vunpack.c.l.s4 1966171168
        %v7219 = vunpack.c.0.s8 %v7218
        %v7220 = vlaneseq
        %v7221 = vshrl.u32 %v7220, 7
        %v7222 = vsub.s32 %v7219, %v7221
        %v7223 = vrot.slane %v7173, %v7222
        %v7225 = vunpack.c.l.s4 1966171168
        %v7226 = vunpack.c.0.s8 %v7225
        %v7227 = vlaneseq
        %v7228 = vshrl.u32 %v7227, 7
        %v7229 = vsub.s32 %v7226, %v7228
        %v7230 = vrot.slane %v7174, %v7229
        %v7231 = vcombine.low %v7181, %v7195
        %v7232 = vcombine.high %v7181, %v7195
        %v7233 = vcombine.low %v7188, %v7202
        %v7234 = vcombine.low %v7209, %v7223
        %v7235 = vcombine.high %v7209, %v7223
        %v7236 = vcombine.low %v7216, %v7230
        %v7238 = vunpack.c.l.s4 1966171168
        %v7239 = vunpack.c.0.s8 %v7238
        %v7240 = vlaneseq
        %v7241 = vshrl.u32 %v7240, 7
        %v7242 = vsub.s32 %v7239, %v7241
        %v7243 = vrot.slane %v7231, %v7242
        %v7245 = vunpack.c.l.s4 1966171168
        %v7246 = vunpack.c.0.s8 %v7245
        %v7247 = vlaneseq
        %v7248 = vshrl.u32 %v7247, 7
        %v7249 = vsub.s32 %v7246, %v7248
        %v7250 = vrot.slane %v7233, %v7249
        %v7252 = vunpack.c.l.s4 1966171168
        %v7253 = vunpack.c.0.s8 %v7252
        %v7254 = vlaneseq
        %v7255 = vshrl.u32 %v7254, 7
        %v7256 = vsub.s32 %v7253, %v7255
        %v7257 = vrot.slane %v7232, %v7256
        %v7259 = vunpack.c.l.s4 1966171168
        %v7260 = vunpack.c.0.s8 %v7259
        %v7261 = vlaneseq
        %v7262 = vshrl.u32 %v7261, 7
        %v7263 = vsub.s32 %v7260, %v7262
        %v7264 = vrot.slane %v7234, %v7263
        %v7266 = vunpack.c.l.s4 1966171168
        %v7267 = vunpack.c.0.s8 %v7266
        %v7268 = vlaneseq
        %v7269 = vshrl.u32 %v7268, 7
        %v7270 = vsub.s32 %v7267, %v7269
        %v7271 = vrot.slane %v7236, %v7270
        %v7273 = vunpack.c.l.s4 1966171168
        %v7274 = vunpack.c.0.s8 %v7273
        %v7275 = vlaneseq
        %v7276 = vshrl.u32 %v7275, 7
        %v7277 = vsub.s32 %v7274, %v7276
        %v7278 = vrot.slane %v7235, %v7277
        %v7279 = vcombine.low %v7243, %v7264
        %v7280 = vcombine.high %v7243, %v7264
        %v7281 = vcombine.low %v7250, %v7271
        %v7282 = vcombine.low %v7257, %v7278
        %v7283 = vcombine.high %v7257, %v7278
        %v7284 = vcombine.low %v6576, %v6573
        %v7285 = vcombine.high %v6576, %v6573
        %v7286 = vcombine.low %v6686, %v6690
        %v7287 = vcombine.high %v6686, %v6690
        %v7288 = vcombine.low %v6687, %v6691
        %v7289 = vcombine.high %v6687, %v6691
        %v7290 = vcombine.low %v6688, %v6692
        %v7291 = vcombine.high %v6688, %v6692
        %v7293 = vunpack.c.l.s4 1966171168
        %v7294 = vunpack.c.0.s8 %v7293
        %v7295 = vlaneseq
        %v7296 = vshrl.u32 %v7295, 7
        %v7297 = vsub.s32 %v7294, %v7296
        %v7298 = vrot.slane %v7284, %v7297
        %v7300 = vunpack.c.l.s4 1966171168
        %v7301 = vunpack.c.0.s8 %v7300
        %v7302 = vlaneseq
        %v7303 = vshrl.u32 %v7302, 7
        %v7304 = vsub.s32 %v7301, %v7303
        %v7305 = vrot.slane %v7285, %v7304
        %v7307 = vunpack.c.l.s4 1966171168
        %v7308 = vunpack.c.0.s8 %v7307
        %v7309 = vlaneseq
        %v7310 = vshrl.u32 %v7309, 7
        %v7311 = vsub.s32 %v7308, %v7310
        %v7312 = vrot.slane %v7286, %v7311
        %v7314 = vunpack.c.l.s4 1966171168
        %v7315 = vunpack.c.0.s8 %v7314
        %v7316 = vlaneseq
        %v7317 = vshrl.u32 %v7316, 7
        %v7318 = vsub.s32 %v7315, %v7317
        %v7319 = vrot.slane %v7287, %v7318
        %v7321 = vunpack.c.l.s4 1966171168
        %v7322 = vunpack.c.0.s8 %v7321
        %v7323 = vlaneseq
        %v7324 = vshrl.u32 %v7323, 7
        %v7325 = vsub.s32 %v7322, %v7324
        %v7326 = vrot.slane %v7288, %v7325
        %v7328 = vunpack.c.l.s4 1966171168
        %v7329 = vunpack.c.0.s8 %v7328
        %v7330 = vlaneseq
        %v7331 = vshrl.u32 %v7330, 7
        %v7332 = vsub.s32 %v7329, %v7331
        %v7333 = vrot.slane %v7289, %v7332
        %v7335 = vunpack.c.l.s4 1966171168
        %v7336 = vunpack.c.0.s8 %v7335
        %v7337 = vlaneseq
        %v7338 = vshrl.u32 %v7337, 7
        %v7339 = vsub.s32 %v7336, %v7338
        %v7340 = vrot.slane %v7290, %v7339
        %v7342 = vunpack.c.l.s4 1966171168
        %v7343 = vunpack.c.0.s8 %v7342
        %v7344 = vlaneseq
        %v7345 = vshrl.u32 %v7344, 7
        %v7346 = vsub.s32 %v7343, %v7345
        %v7347 = vrot.slane %v7291, %v7346
        %v7348 = vcombine.low %v7298, %v7312
        %v7349 = vcombine.high %v7298, %v7312
        %v7350 = vcombine.low %v7305, %v7319
        %v7351 = vcombine.low %v7326, %v7340
        %v7352 = vcombine.high %v7326, %v7340
        %v7353 = vcombine.low %v7333, %v7347
        %v7355 = vunpack.c.l.s4 1966171168
        %v7356 = vunpack.c.0.s8 %v7355
        %v7357 = vlaneseq
        %v7358 = vshrl.u32 %v7357, 7
        %v7359 = vsub.s32 %v7356, %v7358
        %v7360 = vrot.slane %v7348, %v7359
        %v7362 = vunpack.c.l.s4 1966171168
        %v7363 = vunpack.c.0.s8 %v7362
        %v7364 = vlaneseq
        %v7365 = vshrl.u32 %v7364, 7
        %v7366 = vsub.s32 %v7363, %v7365
        %v7367 = vrot.slane %v7350, %v7366
        %v7369 = vunpack.c.l.s4 1966171168
        %v7370 = vunpack.c.0.s8 %v7369
        %v7371 = vlaneseq
        %v7372 = vshrl.u32 %v7371, 7
        %v7373 = vsub.s32 %v7370, %v7372
        %v7374 = vrot.slane %v7349, %v7373
        %v7376 = vunpack.c.l.s4 1966171168
        %v7377 = vunpack.c.0.s8 %v7376
        %v7378 = vlaneseq
        %v7379 = vshrl.u32 %v7378, 7
        %v7380 = vsub.s32 %v7377, %v7379
        %v7381 = vrot.slane %v7351, %v7380
        %v7383 = vunpack.c.l.s4 1966171168
        %v7384 = vunpack.c.0.s8 %v7383
        %v7385 = vlaneseq
        %v7386 = vshrl.u32 %v7385, 7
        %v7387 = vsub.s32 %v7384, %v7386
        %v7388 = vrot.slane %v7353, %v7387
        %v7390 = vunpack.c.l.s4 1966171168
        %v7391 = vunpack.c.0.s8 %v7390
        %v7392 = vlaneseq
        %v7393 = vshrl.u32 %v7392, 7
        %v7394 = vsub.s32 %v7391, %v7393
        %v7395 = vrot.slane %v7352, %v7394
        %v7396 = vcombine.low %v7360, %v7381
        %v7397 = vcombine.high %v7360, %v7381
        %v7398 = vcombine.low %v7367, %v7388
        %v7399 = vcombine.low %v7374, %v7395
        %v7400 = vcombine.high %v7374, %v7395
        %v7401 = vcombine.high %v6689, %v6689
        %v7403 = vunpack.c.l.s4 1966171168
        %v7404 = vunpack.c.0.s8 %v7403
        %v7405 = vlaneseq
        %v7406 = vshrl.u32 %v7405, 7
        %v7407 = vsub.s32 %v7404, %v7406
        %v7408 = vrot.slane %v6689, %v7407
        %v7410 = vunpack.c.l.s4 1966171168
        %v7411 = vunpack.c.0.s8 %v7410
        %v7412 = vlaneseq
        %v7413 = vshrl.u32 %v7412, 7
        %v7414 = vsub.s32 %v7411, %v7413
        %v7415 = vrot.slane %v7401, %v7414
        %v7416 = vcombine.high %v7408, %v7408
        %v7418 = vunpack.c.l.s4 1966171168
        %v7419 = vunpack.c.0.s8 %v7418
        %v7420 = vlaneseq
        %v7421 = vshrl.u32 %v7420, 7
        %v7422 = vsub.s32 %v7419, %v7421
        %v7423 = vrot.slane %v7408, %v7422
        %v7425 = vunpack.c.l.s4 1966171168
        %v7426 = vunpack.c.0.s8 %v7425
        %v7427 = vlaneseq
        %v7428 = vshrl.u32 %v7427, 7
        %v7429 = vsub.s32 %v7426, %v7428
        %v7430 = vrot.slane %v7415, %v7429
        %v7432 = vunpack.c.l.s4 1966171168
        %v7433 = vunpack.c.0.s8 %v7432
        %v7434 = vlaneseq
        %v7435 = vshrl.u32 %v7434, 7
        %v7436 = vsub.s32 %v7433, %v7435
        %v7437 = vrot.slane %v7416, %v7436
        %v7438 = vcombine.high %v7423, %v7423
        %v7439 = vcombine.high %v7437, %v7437
        %v7468 = vsel %vm1198, %v6813, 0
        %v7470 = vsel %vm1198, %v6930, 0
        %v7472 = vsel %vm1198, %v7047, 0
        %v7474 = vsel %vm1198, %v7164, 0
        %v7476 = vsel %vm1198, %v7281, 0
        %v7478 = vsel %vm1198, %v7398, 0
        %v7480 = vsel %vm1198, %v7430, 0
        %7482 = vmatprep.subr.mxu0 0.0
        %7483 = vmatpush1.msra.mxu0 %v482
        %7484 = vmatprep.subr.mxu0 0.0
        %7485 = vmatpush1.msra.mxu0 %v483
        %7486 = vmatprep.subr.mxu0 0.0
        %7487 = vmatpush1.msra.mxu0 %v484
        %7488 = vmatprep.subr.mxu0 0.0
        %7489 = vmatpush1.msra.mxu0 %v485
        %7490 = vmatprep.subr.mxu0 0.0
        %7491 = vmatpush1.msra.mxu0 %v486
        %7492 = vmatprep.subr.mxu0 0.0
        %7493 = vmatpush1.msra.mxu0 %v487
        %7494 = vmatprep.subr.mxu0 0.0
        %7495 = vmatpush1.msra.mxu0 %v488
        %7496 = vmatprep.subr.mxu0 0.0
        %7497 = vmatpush1.msra.mxu0 %v489
        %7498 = vmatprep.subr.mxu0 0.0
        %7499 = vmatpush1.msra.mxu0 %v490
        %7500 = vmatprep.subr.mxu0 0.0
        %7501 = vmatpush1.msra.mxu0 %v491
        %7502 = vmatprep.subr.mxu0 0.0
        %7503 = vmatpush1.msra.mxu0 %v492
        %7504 = vmatprep.subr.mxu0 0.0
        %7505 = vmatpush1.msra.mxu0 %v493
        %7506 = vmatprep.subr.mxu0 0.0
        %7507 = vmatpush1.msra.mxu0 %v494
        %7508 = vmatprep.subr.mxu0 0.0
        %7509 = vmatpush1.msra.mxu0 %v495
        %7510 = vmatprep.subr.mxu0 0.0
        %7511 = vmatpush1.msra.mxu0 %v496
        %7512 = vmatprep.subr.mxu0 0.0
        %7513 = vmatpush1.msra.mxu0 %v497
        %7514 = vmatprep.subr.mxu0 0.0
        %7515 = vmatpush1.msra.mxu0 %v498
        %7516 = vmatprep.subr.mxu0 0.0
        %7517 = vmatpush1.msra.mxu0 %v499
        %7518 = vmatprep.subr.mxu0 0.0
        %7519 = vmatpush1.msra.mxu0 %v500
        %7520 = vmatprep.subr.mxu0 0.0
        %7521 = vmatpush1.msra.mxu0 %v501
        %7522 = vmatprep.subr.mxu0 0.0
        %7523 = vmatpush1.msra.mxu0 %v502
        %7524 = vmatprep.subr.mxu0 0.0
        %7525 = vmatpush1.msra.mxu0 %v503
        %7526 = vmatprep.subr.mxu0 0.0
        %7527 = vmatpush1.msra.mxu0 %v504
        %7528 = vmatprep.subr.mxu0 0.0
        %7529 = vmatpush1.msra.mxu0 %v505
        %7530 = vmatprep.subr.mxu0 0.0
        %7531 = vmatpush1.msra.mxu0 %v506
        %7532 = vmatprep.subr.mxu0 0.0
        %7533 = vmatpush1.msra.mxu0 %v507
        %7534 = vmatprep.subr.mxu0 0.0
        %7535 = vmatpush1.msra.mxu0 %v508
        %7536 = vmatprep.subr.mxu0 0.0
        %7537 = vmatpush1.msra.mxu0 %v509
        %7538 = vmatprep.subr.mxu0 0.0
        %7539 = vmatpush1.msra.mxu0 %v510
        %7540 = vmatprep.subr.mxu0 0.0
        %7541 = vmatpush1.msra.mxu0 %v511
        %7542 = vmatprep.subr.mxu0 0.0
        %7543 = vmatpush1.msra.mxu0 %v512
        %7544 = vmatprep.subr.mxu0 0.0
        %7545 = vmatpush1.msra.mxu0 %v513
        %7546 = vmatprep.mubr.f32.mxu0 %v6814
        %7547 = vmatmul.mubr.f32.gmra.mrb[0].mxu0 %v6811
        %v7548 = vpop.f32.mrb[0].mxu0
        %v7549 = vadd.f32 %v6697, %v7548
        %v7550 = vpop.f32.mrb[0].mxu0
        %7551 = vmatprep.mubr.f32.mxu0 %v6931
        %7552 = vmatmul.mubr.f32.gmra.mrb[0].mxu0 %v6928
        %v7553 = vpop.f32.mrb[0].mxu0
        %v7554 = vadd.f32 %v6697, %v7553
        %v7555 = vpop.f32.mrb[0].mxu0
        %7556 = vmatprep.mubr.f32.mxu0 %v7048
        %7557 = vmatmul.mubr.f32.gmra.mrb[0].mxu0 %v7045
        %v7558 = vpop.f32.mrb[0].mxu0
        %v7559 = vadd.f32 %v6697, %v7558
        %v7560 = vpop.f32.mrb[0].mxu0
        %7561 = vmatprep.mubr.f32.mxu0 %v7165
        %7562 = vmatmul.mubr.f32.gmra.mrb[0].mxu0 %v7162
        %v7563 = vpop.f32.mrb[0].mxu0
        %v7564 = vadd.f32 %v6697, %v7563
        %v7565 = vpop.f32.mrb[0].mxu0
        %7566 = vmatprep.mubr.f32.mxu0 %v7282
        %7567 = vmatmul.mubr.f32.gmra.mrb[0].mxu0 %v7279
        %v7568 = vpop.f32.mrb[0].mxu0
        %v7569 = vadd.f32 %v6697, %v7568
        %v7570 = vpop.f32.mrb[0].mxu0
        %7571 = vmatprep.mubr.f32.mxu0 %v7399
        %7572 = vmatmul.mubr.f32.gmra.mrb[0].mxu0 %v7396
        %v7573 = vpop.f32.mrb[0].mxu0
        %v7574 = vadd.f32 %v6697, %v7573
        %v7575 = vpop.f32.mrb[0].mxu0
        %7576 = vmatprep.mubr.f32.mxu0 %v7437
        %7577 = vmatmul.mubr.f32.gmra.mrb[0].mxu0 %v7423
        %v7578 = vpop.f32.mrb[0].mxu0
        %v7579 = vadd.f32 %v6697, %v7578
        %v7580 = vpop.f32.mrb[0].mxu0
        %7581 = vdwg.mxu0
        %7582 = vmatprep.subr.mxu0 0.0
        %7583 = vmatpush1.msra.mxu0 %v514
        %7584 = vmatprep.subr.mxu0 0.0
        %7585 = vmatpush1.msra.mxu0 %v515
        %7586 = vmatprep.subr.mxu0 0.0
        %7587 = vmatpush1.msra.mxu0 %v516
        %7588 = vmatprep.subr.mxu0 0.0
        %7589 = vmatpush1.msra.mxu0 %v517
        %7590 = vmatprep.subr.mxu0 0.0
        %7591 = vmatpush1.msra.mxu0 %v518
        %7592 = vmatprep.subr.mxu0 0.0
        %7593 = vmatpush1.msra.mxu0 %v519
        %7594 = vmatprep.subr.mxu0 0.0
        %7595 = vmatpush1.msra.mxu0 %v520
        %7596 = vmatprep.subr.mxu0 0.0
        %7597 = vmatpush1.msra.mxu0 %v521
        %7598 = vmatprep.subr.mxu0 0.0
        %7599 = vmatpush1.msra.mxu0 %v522
        %7600 = vmatprep.subr.mxu0 0.0
        %7601 = vmatpush1.msra.mxu0 %v523
        %7602 = vmatprep.subr.mxu0 0.0
        %7603 = vmatpush1.msra.mxu0 %v524
        %7604 = vmatprep.subr.mxu0 0.0
        %7605 = vmatpush1.msra.mxu0 %v525
        %7606 = vmatprep.subr.mxu0 0.0
        %7607 = vmatpush1.msra.mxu0 %v526
        %7608 = vmatprep.subr.mxu0 0.0
        %7609 = vmatpush1.msra.mxu0 %v527
        %7610 = vmatprep.subr.mxu0 0.0
        %7611 = vmatpush1.msra.mxu0 %v528
        %7612 = vmatprep.subr.mxu0 0.0
        %7613 = vmatpush1.msra.mxu0 %v529
        %7614 = vmatprep.subr.mxu0 0.0
        %7615 = vmatpush1.msra.mxu0 %v530
        %7616 = vmatprep.subr.mxu0 0.0
        %7617 = vmatpush1.msra.mxu0 %v531
        %7618 = vmatprep.subr.mxu0 0.0
        %7619 = vmatpush1.msra.mxu0 %v532
        %7620 = vmatprep.subr.mxu0 0.0
        %7621 = vmatpush1.msra.mxu0 %v533
        %7622 = vmatprep.subr.mxu0 0.0
        %7623 = vmatpush1.msra.mxu0 %v534
        %7624 = vmatprep.subr.mxu0 0.0
        %7625 = vmatpush1.msra.mxu0 %v535
        %7626 = vmatprep.subr.mxu0 0.0
        %7627 = vmatpush1.msra.mxu0 %v536
        %7628 = vmatprep.subr.mxu0 0.0
        %7629 = vmatpush1.msra.mxu0 %v537
        %7630 = vmatprep.subr.mxu0 0.0
        %7631 = vmatpush1.msra.mxu0 %v538
        %7632 = vmatprep.subr.mxu0 0.0
        %7633 = vmatpush1.msra.mxu0 %v539
        %7634 = vmatprep.subr.mxu0 0.0
        %7635 = vmatpush1.msra.mxu0 %v540
        %7636 = vmatprep.subr.mxu0 0.0
        %7637 = vmatpush1.msra.mxu0 %v541
        %7638 = vmatprep.subr.mxu0 0.0
        %7639 = vmatpush1.msra.mxu0 %v542
        %7640 = vmatprep.subr.mxu0 0.0
        %7641 = vmatpush1.msra.mxu0 %v543
        %7642 = vmatprep.subr.mxu0 0.0
        %7643 = vmatpush1.msra.mxu0 %v544
        %7644 = vmatprep.subr.mxu0 0.0
        %7645 = vmatpush1.msra.mxu0 %v545
        %7646 = vmatprep.mubr.f32.mxu0 %v6815
        %7647 = vmatmul.mubr.f32.gmra.mrb[0].mxu0 %v6812
        %v7648 = vpop.f32.mrb[0].mxu0
        %v7649 = vadd.f32 %v7549, %v7648
        %v7650 = vpop.f32.mrb[0].mxu0
        %7651 = vmatprep.mubr.f32.mxu0 %v6932
        %7652 = vmatmul.mubr.f32.gmra.mrb[0].mxu0 %v6929
        %v7653 = vpop.f32.mrb[0].mxu0
        %v7654 = vadd.f32 %v7554, %v7653
        %v7655 = vpop.f32.mrb[0].mxu0
        %7656 = vmatprep.mubr.f32.mxu0 %v7049
        %7657 = vmatmul.mubr.f32.gmra.mrb[0].mxu0 %v7046
        %v7658 = vpop.f32.mrb[0].mxu0
        %v7659 = vadd.f32 %v7559, %v7658
        %v7660 = vpop.f32.mrb[0].mxu0
        %7661 = vmatprep.mubr.f32.mxu0 %v7166
        %7662 = vmatmul.mubr.f32.gmra.mrb[0].mxu0 %v7163
        %v7663 = vpop.f32.mrb[0].mxu0
        %v7664 = vadd.f32 %v7564, %v7663
        %v7665 = vpop.f32.mrb[0].mxu0
        %7666 = vmatprep.mubr.f32.mxu0 %v7283
        %7667 = vmatmul.mubr.f32.gmra.mrb[0].mxu0 %v7280
        %v7668 = vpop.f32.mrb[0].mxu0
        %v7669 = vadd.f32 %v7569, %v7668
        %v7670 = vpop.f32.mrb[0].mxu0
        %7671 = vmatprep.mubr.f32.mxu0 %v7400
        %7672 = vmatmul.mubr.f32.gmra.mrb[0].mxu0 %v7397
        %v7673 = vpop.f32.mrb[0].mxu0
        %v7674 = vadd.f32 %v7574, %v7673
        %v7675 = vpop.f32.mrb[0].mxu0
        %7676 = vmatprep.mubr.f32.mxu0 %v7439
        %7677 = vmatmul.mubr.f32.gmra.mrb[0].mxu0 %v7438
        %v7678 = vpop.f32.mrb[0].mxu0
        %v7679 = vadd.f32 %v7579, %v7678
        %v7680 = vpop.f32.mrb[0].mxu0
        %7681 = vdwg.mxu0
        %7682 = vmatprep.subr.mxu0 0.0
        %7683 = vmatpush1.msra.mxu0 %v546
        %7684 = vmatprep.subr.mxu0 0.0
        %7685 = vmatpush1.msra.mxu0 %v547
        %7686 = vmatprep.subr.mxu0 0.0
        %7687 = vmatpush1.msra.mxu0 %v548
        %7688 = vmatprep.subr.mxu0 0.0
        %7689 = vmatpush1.msra.mxu0 %v549
        %7690 = vmatprep.subr.mxu0 0.0
        %7691 = vmatpush1.msra.mxu0 %v550
        %7692 = vmatprep.subr.mxu0 0.0
        %7693 = vmatpush1.msra.mxu0 %v551
        %7694 = vmatprep.subr.mxu0 0.0
        %7695 = vmatpush1.msra.mxu0 %v552
        %7696 = vmatprep.subr.mxu0 0.0
        %7697 = vmatpush1.msra.mxu0 %v553
        %7698 = vmatprep.subr.mxu0 0.0
        %7699 = vmatpush1.msra.mxu0 0.0
        %7700 = vmatprep.subr.mxu0 0.0
        %7701 = vmatpush1.msra.mxu0 0.0
        %7702 = vmatprep.subr.mxu0 0.0
        %7703 = vmatpush1.msra.mxu0 0.0
        %7704 = vmatprep.subr.mxu0 0.0
        %7705 = vmatpush1.msra.mxu0 0.0
        %7706 = vmatprep.subr.mxu0 0.0
        %7707 = vmatpush1.msra.mxu0 0.0
        %7708 = vmatprep.subr.mxu0 0.0
        %7709 = vmatpush1.msra.mxu0 0.0
        %7710 = vmatprep.subr.mxu0 0.0
        %7711 = vmatpush1.msra.mxu0 0.0
        %7712 = vmatprep.subr.mxu0 0.0
        %7713 = vmatpush1.msra.mxu0 0.0
        %7714 = vmatprep.subr.mxu0 0.0
        %7715 = vmatpush1.msra.mxu0 0.0
        %7716 = vmatprep.subr.mxu0 0.0
        %7717 = vmatpush1.msra.mxu0 0.0
        %7718 = vmatprep.subr.mxu0 0.0
        %7719 = vmatpush1.msra.mxu0 0.0
        %7720 = vmatprep.subr.mxu0 0.0
        %7721 = vmatpush1.msra.mxu0 0.0
        %7722 = vmatprep.subr.mxu0 0.0
        %7723 = vmatpush1.msra.mxu0 0.0
        %7724 = vmatprep.subr.mxu0 0.0
        %7725 = vmatpush1.msra.mxu0 0.0
        %7726 = vmatprep.subr.mxu0 0.0
        %7727 = vmatpush1.msra.mxu0 0.0
        %7728 = vmatprep.subr.mxu0 0.0
        %7729 = vmatpush1.msra.mxu0 0.0
        %7730 = vmatprep.subr.mxu0 0.0
        %7731 = vmatpush1.msra.mxu0 0.0
        %7732 = vmatprep.subr.mxu0 0.0
        %7733 = vmatpush1.msra.mxu0 0.0
        %7734 = vmatprep.subr.mxu0 0.0
        %7735 = vmatpush1.msra.mxu0 0.0
        %7736 = vmatprep.subr.mxu0 0.0
        %7737 = vmatpush1.msra.mxu0 0.0
        %7738 = vmatprep.subr.mxu0 0.0
        %7739 = vmatpush1.msra.mxu0 0.0
        %7740 = vmatprep.subr.mxu0 0.0
        %7741 = vmatpush1.msra.mxu0 0.0
        %7742 = vmatprep.subr.mxu0 0.0
        %7743 = vmatpush1.msra.mxu0 0.0
        %7744 = vmatprep.subr.mxu0 0.0
        %7745 = vmatpush1.msra.mxu0 0.0
        %7746 = vmatprep.mubr.f32.mxu0 0.0
        %7747 = vmatmul.mubr.f32.gmra.mrb[0].mxu0 %v7468
        %v7748 = vpop.f32.mrb[0].mxu0
        %v7749 = vadd.f32 %v7649, %v7748
        %v7750 = vpop.f32.mrb[0].mxu0
        %7751 = vmatprep.mubr.f32.mxu0 0.0
        %7752 = vmatmul.mubr.f32.gmra.mrb[0].mxu0 %v7470
        %v7753 = vpop.f32.mrb[0].mxu0
        %v7754 = vadd.f32 %v7654, %v7753
        %v7755 = vpop.f32.mrb[0].mxu0
        %7756 = vmatprep.mubr.f32.mxu0 0.0
        %7757 = vmatmul.mubr.f32.gmra.mrb[0].mxu0 %v7472
        %v7758 = vpop.f32.mrb[0].mxu0
        %v7759 = vadd.f32 %v7659, %v7758
        %v7760 = vpop.f32.mrb[0].mxu0
        %7761 = vmatprep.mubr.f32.mxu0 0.0
        %7762 = vmatmul.mubr.f32.gmra.mrb[0].mxu0 %v7474
        %v7763 = vpop.f32.mrb[0].mxu0
        %v7764 = vadd.f32 %v7664, %v7763
        %v7765 = vpop.f32.mrb[0].mxu0
        %7766 = vmatprep.mubr.f32.mxu0 0.0
        %7767 = vmatmul.mubr.f32.gmra.mrb[0].mxu0 %v7476
        %v7768 = vpop.f32.mrb[0].mxu0
        %v7769 = vadd.f32 %v7669, %v7768
        %v7770 = vpop.f32.mrb[0].mxu0
        %7771 = vmatprep.mubr.f32.mxu0 0.0
        %7772 = vmatmul.mubr.f32.gmra.mrb[0].mxu0 %v7478
        %v7773 = vpop.f32.mrb[0].mxu0
        %v7774 = vadd.f32 %v7674, %v7773
        %v7775 = vpop.f32.mrb[0].mxu0
        %7776 = vmatprep.mubr.f32.mxu0 0.0
        %7777 = vmatmul.mubr.f32.gmra.mrb[0].mxu0 %v7480
        %v7778 = vpop.f32.mrb[0].mxu0
        %v7779 = vadd.f32 %v7679, %v7778
        %v7780 = vpop.f32.mrb[0].mxu0
        %7781 = vdwg.mxu0
        %v7782 = vmax.f32 %v7749, 0.0
        %v7783 = vmax.f32 %v7754, 0.0
        %v7784 = vmax.f32 %v7759, 0.0
        %v7785 = vmax.f32 %v7764, 0.0
        %v7786 = vmax.f32 %v7769, 0.0
        %v7787 = vmax.f32 %v7774, 0.0
        %v7788 = vmax.f32 %v7779, 0.0
        %v7796 = vcombine.high %v7782, %v7782
        %v7798 = vunpack.c.l.s4 1966171168
        %v7799 = vunpack.c.0.s8 %v7798
        %v7800 = vlaneseq
        %v7801 = vshrl.u32 %v7800, 7
        %v7802 = vsub.s32 %v7799, %v7801
        %v7803 = vrot.slane %v7782, %v7802
        %v7805 = vunpack.c.l.s4 1966171168
        %v7806 = vunpack.c.0.s8 %v7805
        %v7807 = vlaneseq
        %v7808 = vshrl.u32 %v7807, 7
        %v7809 = vsub.s32 %v7806, %v7808
        %v7810 = vrot.slane %v7796, %v7809
        %v7811 = vcombine.high %v7803, %v7803
        %v7812 = vcombine.high %v7810, %v7810
        %v7814 = vunpack.c.l.s4 1966171168
        %v7815 = vunpack.c.0.s8 %v7814
        %v7816 = vlaneseq
        %v7817 = vshrl.u32 %v7816, 7
        %v7818 = vsub.s32 %v7815, %v7817
        %v7819 = vrot.slane %v7803, %v7818
        %v7821 = vunpack.c.l.s4 1966171168
        %v7822 = vunpack.c.0.s8 %v7821
        %v7823 = vlaneseq
        %v7824 = vshrl.u32 %v7823, 7
        %v7825 = vsub.s32 %v7822, %v7824
        %v7826 = vrot.slane %v7810, %v7825
        %v7828 = vunpack.c.l.s4 1966171168
        %v7829 = vunpack.c.0.s8 %v7828
        %v7830 = vlaneseq
        %v7831 = vshrl.u32 %v7830, 7
        %v7832 = vsub.s32 %v7829, %v7831
        %v7833 = vrot.slane %v7811, %v7832
        %v7835 = vunpack.c.l.s4 1966171168
        %v7836 = vunpack.c.0.s8 %v7835
        %v7837 = vlaneseq
        %v7838 = vshrl.u32 %v7837, 7
        %v7839 = vsub.s32 %v7836, %v7838
        %v7840 = vrot.slane %v7812, %v7839
        %v7841 = vcombine.high %v7819, %v7819
        %v7842 = vcombine.high %v7826, %v7826
        %v7843 = vcombine.high %v7833, %v7833
        %v7844 = vcombine.high %v7840, %v7840
        %v7845 = vcombine.high %v7783, %v7783
        %v7847 = vunpack.c.l.s4 1966171168
        %v7848 = vunpack.c.0.s8 %v7847
        %v7849 = vlaneseq
        %v7850 = vshrl.u32 %v7849, 7
        %v7851 = vsub.s32 %v7848, %v7850
        %v7852 = vrot.slane %v7783, %v7851
        %v7854 = vunpack.c.l.s4 1966171168
        %v7855 = vunpack.c.0.s8 %v7854
        %v7856 = vlaneseq
        %v7857 = vshrl.u32 %v7856, 7
        %v7858 = vsub.s32 %v7855, %v7857
        %v7859 = vrot.slane %v7845, %v7858
        %v7860 = vcombine.high %v7852, %v7852
        %v7861 = vcombine.high %v7859, %v7859
        %v7863 = vunpack.c.l.s4 1966171168
        %v7864 = vunpack.c.0.s8 %v7863
        %v7865 = vlaneseq
        %v7866 = vshrl.u32 %v7865, 7
        %v7867 = vsub.s32 %v7864, %v7866
        %v7868 = vrot.slane %v7852, %v7867
        %v7870 = vunpack.c.l.s4 1966171168
        %v7871 = vunpack.c.0.s8 %v7870
        %v7872 = vlaneseq
        %v7873 = vshrl.u32 %v7872, 7
        %v7874 = vsub.s32 %v7871, %v7873
        %v7875 = vrot.slane %v7859, %v7874
        %v7877 = vunpack.c.l.s4 1966171168
        %v7878 = vunpack.c.0.s8 %v7877
        %v7879 = vlaneseq
        %v7880 = vshrl.u32 %v7879, 7
        %v7881 = vsub.s32 %v7878, %v7880
        %v7882 = vrot.slane %v7860, %v7881
        %v7884 = vunpack.c.l.s4 1966171168
        %v7885 = vunpack.c.0.s8 %v7884
        %v7886 = vlaneseq
        %v7887 = vshrl.u32 %v7886, 7
        %v7888 = vsub.s32 %v7885, %v7887
        %v7889 = vrot.slane %v7861, %v7888
        %v7890 = vcombine.high %v7868, %v7868
        %v7891 = vcombine.high %v7875, %v7875
        %v7892 = vcombine.high %v7882, %v7882
        %v7893 = vcombine.high %v7889, %v7889
        %v7894 = vcombine.high %v7784, %v7784
        %v7896 = vunpack.c.l.s4 1966171168
        %v7897 = vunpack.c.0.s8 %v7896
        %v7898 = vlaneseq
        %v7899 = vshrl.u32 %v7898, 7
        %v7900 = vsub.s32 %v7897, %v7899
        %v7901 = vrot.slane %v7784, %v7900
        %v7903 = vunpack.c.l.s4 1966171168
        %v7904 = vunpack.c.0.s8 %v7903
        %v7905 = vlaneseq
        %v7906 = vshrl.u32 %v7905, 7
        %v7907 = vsub.s32 %v7904, %v7906
        %v7908 = vrot.slane %v7894, %v7907
        %v7909 = vcombine.high %v7901, %v7901
        %v7910 = vcombine.high %v7908, %v7908
        %v7912 = vunpack.c.l.s4 1966171168
        %v7913 = vunpack.c.0.s8 %v7912
        %v7914 = vlaneseq
        %v7915 = vshrl.u32 %v7914, 7
        %v7916 = vsub.s32 %v7913, %v7915
        %v7917 = vrot.slane %v7901, %v7916
        %v7919 = vunpack.c.l.s4 1966171168
        %v7920 = vunpack.c.0.s8 %v7919
        %v7921 = vlaneseq
        %v7922 = vshrl.u32 %v7921, 7
        %v7923 = vsub.s32 %v7920, %v7922
        %v7924 = vrot.slane %v7908, %v7923
        %v7926 = vunpack.c.l.s4 1966171168
        %v7927 = vunpack.c.0.s8 %v7926
        %v7928 = vlaneseq
        %v7929 = vshrl.u32 %v7928, 7
        %v7930 = vsub.s32 %v7927, %v7929
        %v7931 = vrot.slane %v7909, %v7930
        %v7933 = vunpack.c.l.s4 1966171168
        %v7934 = vunpack.c.0.s8 %v7933
        %v7935 = vlaneseq
        %v7936 = vshrl.u32 %v7935, 7
        %v7937 = vsub.s32 %v7934, %v7936
        %v7938 = vrot.slane %v7910, %v7937
        %v7939 = vcombine.high %v7917, %v7917
        %v7940 = vcombine.high %v7924, %v7924
        %v7941 = vcombine.high %v7931, %v7931
        %v7942 = vcombine.high %v7938, %v7938
        %v7943 = vcombine.high %v7785, %v7785
        %v7945 = vunpack.c.l.s4 1966171168
        %v7946 = vunpack.c.0.s8 %v7945
        %v7947 = vlaneseq
        %v7948 = vshrl.u32 %v7947, 7
        %v7949 = vsub.s32 %v7946, %v7948
        %v7950 = vrot.slane %v7785, %v7949
        %v7952 = vunpack.c.l.s4 1966171168
        %v7953 = vunpack.c.0.s8 %v7952
        %v7954 = vlaneseq
        %v7955 = vshrl.u32 %v7954, 7
        %v7956 = vsub.s32 %v7953, %v7955
        %v7957 = vrot.slane %v7943, %v7956
        %v7958 = vcombine.high %v7950, %v7950
        %v7959 = vcombine.high %v7957, %v7957
        %v7961 = vunpack.c.l.s4 1966171168
        %v7962 = vunpack.c.0.s8 %v7961
        %v7963 = vlaneseq
        %v7964 = vshrl.u32 %v7963, 7
        %v7965 = vsub.s32 %v7962, %v7964
        %v7966 = vrot.slane %v7950, %v7965
        %v7968 = vunpack.c.l.s4 1966171168
        %v7969 = vunpack.c.0.s8 %v7968
        %v7970 = vlaneseq
        %v7971 = vshrl.u32 %v7970, 7
        %v7972 = vsub.s32 %v7969, %v7971
        %v7973 = vrot.slane %v7957, %v7972
        %v7975 = vunpack.c.l.s4 1966171168
        %v7976 = vunpack.c.0.s8 %v7975
        %v7977 = vlaneseq
        %v7978 = vshrl.u32 %v7977, 7
        %v7979 = vsub.s32 %v7976, %v7978
        %v7980 = vrot.slane %v7958, %v7979
        %v7982 = vunpack.c.l.s4 1966171168
        %v7983 = vunpack.c.0.s8 %v7982
        %v7984 = vlaneseq
        %v7985 = vshrl.u32 %v7984, 7
        %v7986 = vsub.s32 %v7983, %v7985
        %v7987 = vrot.slane %v7959, %v7986
        %v7988 = vcombine.high %v7966, %v7966
        %v7989 = vcombine.high %v7973, %v7973
        %v7990 = vcombine.high %v7980, %v7980
        %v7991 = vcombine.high %v7987, %v7987
        %v7992 = vcombine.high %v7786, %v7786
        %v7994 = vunpack.c.l.s4 1966171168
        %v7995 = vunpack.c.0.s8 %v7994
        %v7996 = vlaneseq
        %v7997 = vshrl.u32 %v7996, 7
        %v7998 = vsub.s32 %v7995, %v7997
        %v7999 = vrot.slane %v7786, %v7998
        %v8001 = vunpack.c.l.s4 1966171168
        %v8002 = vunpack.c.0.s8 %v8001
        %v8003 = vlaneseq
        %v8004 = vshrl.u32 %v8003, 7
        %v8005 = vsub.s32 %v8002, %v8004
        %v8006 = vrot.slane %v7992, %v8005
        %v8007 = vcombine.high %v7999, %v7999
        %v8008 = vcombine.high %v8006, %v8006
        %v8010 = vunpack.c.l.s4 1966171168
        %v8011 = vunpack.c.0.s8 %v8010
        %v8012 = vlaneseq
        %v8013 = vshrl.u32 %v8012, 7
        %v8014 = vsub.s32 %v8011, %v8013
        %v8015 = vrot.slane %v7999, %v8014
        %v8017 = vunpack.c.l.s4 1966171168
        %v8018 = vunpack.c.0.s8 %v8017
        %v8019 = vlaneseq
        %v8020 = vshrl.u32 %v8019, 7
        %v8021 = vsub.s32 %v8018, %v8020
        %v8022 = vrot.slane %v8006, %v8021
        %v8024 = vunpack.c.l.s4 1966171168
        %v8025 = vunpack.c.0.s8 %v8024
        %v8026 = vlaneseq
        %v8027 = vshrl.u32 %v8026, 7
        %v8028 = vsub.s32 %v8025, %v8027
        %v8029 = vrot.slane %v8007, %v8028
        %v8031 = vunpack.c.l.s4 1966171168
        %v8032 = vunpack.c.0.s8 %v8031
        %v8033 = vlaneseq
        %v8034 = vshrl.u32 %v8033, 7
        %v8035 = vsub.s32 %v8032, %v8034
        %v8036 = vrot.slane %v8008, %v8035
        %v8037 = vcombine.high %v8015, %v8015
        %v8038 = vcombine.high %v8022, %v8022
        %v8039 = vcombine.high %v8029, %v8029
        %v8040 = vcombine.high %v8036, %v8036
        %v8041 = vcombine.high %v7787, %v7787
        %v8043 = vunpack.c.l.s4 1966171168
        %v8044 = vunpack.c.0.s8 %v8043
        %v8045 = vlaneseq
        %v8046 = vshrl.u32 %v8045, 7
        %v8047 = vsub.s32 %v8044, %v8046
        %v8048 = vrot.slane %v7787, %v8047
        %v8050 = vunpack.c.l.s4 1966171168
        %v8051 = vunpack.c.0.s8 %v8050
        %v8052 = vlaneseq
        %v8053 = vshrl.u32 %v8052, 7
        %v8054 = vsub.s32 %v8051, %v8053
        %v8055 = vrot.slane %v8041, %v8054
        %v8056 = vcombine.high %v8048, %v8048
        %v8057 = vcombine.high %v8055, %v8055
        %v8059 = vunpack.c.l.s4 1966171168
        %v8060 = vunpack.c.0.s8 %v8059
        %v8061 = vlaneseq
        %v8062 = vshrl.u32 %v8061, 7
        %v8063 = vsub.s32 %v8060, %v8062
        %v8064 = vrot.slane %v8048, %v8063
        %v8066 = vunpack.c.l.s4 1966171168
        %v8067 = vunpack.c.0.s8 %v8066
        %v8068 = vlaneseq
        %v8069 = vshrl.u32 %v8068, 7
        %v8070 = vsub.s32 %v8067, %v8069
        %v8071 = vrot.slane %v8055, %v8070
        %v8073 = vunpack.c.l.s4 1966171168
        %v8074 = vunpack.c.0.s8 %v8073
        %v8075 = vlaneseq
        %v8076 = vshrl.u32 %v8075, 7
        %v8077 = vsub.s32 %v8074, %v8076
        %v8078 = vrot.slane %v8056, %v8077
        %v8080 = vunpack.c.l.s4 1966171168
        %v8081 = vunpack.c.0.s8 %v8080
        %v8082 = vlaneseq
        %v8083 = vshrl.u32 %v8082, 7
        %v8084 = vsub.s32 %v8081, %v8083
        %v8085 = vrot.slane %v8057, %v8084
        %v8086 = vcombine.high %v8064, %v8064
        %v8087 = vcombine.high %v8071, %v8071
        %v8088 = vcombine.high %v8078, %v8078
        %v8089 = vcombine.high %v8085, %v8085
        %v8091 = vunpack.c.l.s4 1966171168
        %v8092 = vunpack.c.0.s8 %v8091
        %v8093 = vlaneseq
        %v8094 = vshrl.u32 %v8093, 7
        %v8095 = vsub.s32 %v8092, %v8094
        %v8096 = vrot.slane %v7788, %v8095
        %v8098 = vunpack.c.l.s4 1966171168
        %v8099 = vunpack.c.0.s8 %v8098
        %v8100 = vlaneseq
        %v8101 = vshrl.u32 %v8100, 7
        %v8102 = vsub.s32 %v8099, %v8101
        %v8103 = vrot.slane %v8096, %v8102
        %v8104 = vcombine.low %v7819, %v7844
        %v8105 = vcombine.low %v7891, %v7938
        %v8106 = vcombine.low %v7973, %v8039
        %v8108 = vunpack.c.l.s4 1966171168
        %v8109 = vunpack.c.0.s8 %v8108
        %v8110 = vlaneseq
        %v8111 = vshrl.u32 %v8110, 7
        %v8112 = vsub.s32 %v8109, %v8111
        %v8113 = vrot.slane %v8104, %v8112
        %v8115 = vunpack.c.l.s4 1966171168
        %v8116 = vunpack.c.0.s8 %v8115
        %v8117 = vlaneseq
        %v8118 = vshrl.u32 %v8117, 7
        %v8119 = vsub.s32 %v8116, %v8118
        %v8120 = vrot.slane %v8105, %v8119
        %v8122 = vunpack.c.l.s4 1966171168
        %v8123 = vunpack.c.0.s8 %v8122
        %v8124 = vlaneseq
        %v8125 = vshrl.u32 %v8124, 7
        %v8126 = vsub.s32 %v8123, %v8125
        %v8127 = vrot.slane %v8106, %v8126
        %v8129 = vunpack.c.l.s4 1966171168
        %v8130 = vunpack.c.0.s8 %v8129
        %v8131 = vlaneseq
        %v8132 = vshrl.u32 %v8131, 7
        %v8133 = vsub.s32 %v8130, %v8132
        %v8134 = vrot.slane %v8086, %v8133
        %v8135 = vcombine.low %v8113, %v8120
        %v8136 = vcombine.low %v8127, %v8134
        %v8138 = vunpack.c.l.s4 1966171168
        %v8139 = vunpack.c.0.s8 %v8138
        %v8140 = vlaneseq
        %v8141 = vshrl.u32 %v8140, 7
        %v8142 = vsub.s32 %v8139, %v8141
        %v8143 = vrot.slane %v8135, %v8142
        %v8145 = vunpack.c.l.s4 1966171168
        %v8146 = vunpack.c.0.s8 %v8145
        %v8147 = vlaneseq
        %v8148 = vshrl.u32 %v8147, 7
        %v8149 = vsub.s32 %v8146, %v8148
        %v8150 = vrot.slane %v8136, %v8149
        %v8151 = vcombine.low %v8143, %v8150
        %v8153 = vcombine.low %v7833, %v7868
        %v8154 = vcombine.low %v7893, %v7940
        %v8155 = vcombine.low %v7987, %v8022
        %v8157 = vunpack.c.l.s4 1966171168
        %v8158 = vunpack.c.0.s8 %v8157
        %v8159 = vlaneseq
        %v8160 = vshrl.u32 %v8159, 7
        %v8161 = vsub.s32 %v8158, %v8160
        %v8162 = vrot.slane %v8153, %v8161
        %v8164 = vunpack.c.l.s4 1966171168
        %v8165 = vunpack.c.0.s8 %v8164
        %v8166 = vlaneseq
        %v8167 = vshrl.u32 %v8166, 7
        %v8168 = vsub.s32 %v8165, %v8167
        %v8169 = vrot.slane %v8154, %v8168
        %v8171 = vunpack.c.l.s4 1966171168
        %v8172 = vunpack.c.0.s8 %v8171
        %v8173 = vlaneseq
        %v8174 = vshrl.u32 %v8173, 7
        %v8175 = vsub.s32 %v8172, %v8174
        %v8176 = vrot.slane %v8155, %v8175
        %v8178 = vunpack.c.l.s4 1966171168
        %v8179 = vunpack.c.0.s8 %v8178
        %v8180 = vlaneseq
        %v8181 = vshrl.u32 %v8180, 7
        %v8182 = vsub.s32 %v8179, %v8181
        %v8183 = vrot.slane %v8088, %v8182
        %v8184 = vcombine.low %v8162, %v8169
        %v8185 = vcombine.low %v8176, %v8183
        %v8187 = vunpack.c.l.s4 1966171168
        %v8188 = vunpack.c.0.s8 %v8187
        %v8189 = vlaneseq
        %v8190 = vshrl.u32 %v8189, 7
        %v8191 = vsub.s32 %v8188, %v8190
        %v8192 = vrot.slane %v8184, %v8191
        %v8194 = vunpack.c.l.s4 1966171168
        %v8195 = vunpack.c.0.s8 %v8194
        %v8196 = vlaneseq
        %v8197 = vshrl.u32 %v8196, 7
        %v8198 = vsub.s32 %v8195, %v8197
        %v8199 = vrot.slane %v8185, %v8198
        %v8200 = vcombine.low %v8192, %v8199
        %8201 = vrot.lane.b32.xlu0 %v8200, 64
        %v8202 = vpop.permute.xlu0 %8201
        %v8204 = vcombine.low %v7841, %v7882
        %v8205 = vcombine.low %v7917, %v7942
        %v8206 = vcombine.low %v7989, %v8036
        %v8208 = vunpack.c.l.s4 1966171168
        %v8209 = vunpack.c.0.s8 %v8208
        %v8210 = vlaneseq
        %v8211 = vshrl.u32 %v8210, 7
        %v8212 = vsub.s32 %v8209, %v8211
        %v8213 = vrot.slane %v8204, %v8212
        %v8215 = vunpack.c.l.s4 1966171168
        %v8216 = vunpack.c.0.s8 %v8215
        %v8217 = vlaneseq
        %v8218 = vshrl.u32 %v8217, 7
        %v8219 = vsub.s32 %v8216, %v8218
        %v8220 = vrot.slane %v8205, %v8219
        %v8222 = vunpack.c.l.s4 1966171168
        %v8223 = vunpack.c.0.s8 %v8222
        %v8224 = vlaneseq
        %v8225 = vshrl.u32 %v8224, 7
        %v8226 = vsub.s32 %v8223, %v8225
        %v8227 = vrot.slane %v8206, %v8226
        %v8229 = vunpack.c.l.s4 1966171168
        %v8230 = vunpack.c.0.s8 %v8229
        %v8231 = vlaneseq
        %v8232 = vshrl.u32 %v8231, 7
        %v8233 = vsub.s32 %v8230, %v8232
        %v8234 = vrot.slane %v8071, %v8233
        %v8235 = vcombine.low %v8213, %v8220
        %v8236 = vcombine.low %v8227, %v8234
        %v8238 = vunpack.c.l.s4 1966171168
        %v8239 = vunpack.c.0.s8 %v8238
        %v8240 = vlaneseq
        %v8241 = vshrl.u32 %v8240, 7
        %v8242 = vsub.s32 %v8239, %v8241
        %v8243 = vrot.slane %v8235, %v8242
        %v8245 = vunpack.c.l.s4 1966171168
        %v8246 = vunpack.c.0.s8 %v8245
        %v8247 = vlaneseq
        %v8248 = vshrl.u32 %v8247, 7
        %v8249 = vsub.s32 %v8246, %v8248
        %v8250 = vrot.slane %v8236, %v8249
        %v8251 = vcombine.low %v8243, %v8250
        %v8253 = vcombine.low %v7843, %v7890
        %v8254 = vcombine.low %v7931, %v7966
        %v8255 = vcombine.low %v7991, %v8038
        %v8257 = vunpack.c.l.s4 1966171168
        %v8258 = vunpack.c.0.s8 %v8257
        %v8259 = vlaneseq
        %v8260 = vshrl.u32 %v8259, 7
        %v8261 = vsub.s32 %v8258, %v8260
        %v8262 = vrot.slane %v8253, %v8261
        %v8264 = vunpack.c.l.s4 1966171168
        %v8265 = vunpack.c.0.s8 %v8264
        %v8266 = vlaneseq
        %v8267 = vshrl.u32 %v8266, 7
        %v8268 = vsub.s32 %v8265, %v8267
        %v8269 = vrot.slane %v8254, %v8268
        %v8271 = vunpack.c.l.s4 1966171168
        %v8272 = vunpack.c.0.s8 %v8271
        %v8273 = vlaneseq
        %v8274 = vshrl.u32 %v8273, 7
        %v8275 = vsub.s32 %v8272, %v8274
        %v8276 = vrot.slane %v8255, %v8275
        %v8278 = vunpack.c.l.s4 1966171168
        %v8279 = vunpack.c.0.s8 %v8278
        %v8280 = vlaneseq
        %v8281 = vshrl.u32 %v8280, 7
        %v8282 = vsub.s32 %v8279, %v8281
        %v8283 = vrot.slane %v8085, %v8282
        %v8284 = vcombine.low %v8262, %v8269
        %v8285 = vcombine.low %v8276, %v8283
        %v8287 = vunpack.c.l.s4 1966171168
        %v8288 = vunpack.c.0.s8 %v8287
        %v8289 = vlaneseq
        %v8290 = vshrl.u32 %v8289, 7
        %v8291 = vsub.s32 %v8288, %v8290
        %v8292 = vrot.slane %v8284, %v8291
        %v8294 = vunpack.c.l.s4 1966171168
        %v8295 = vunpack.c.0.s8 %v8294
        %v8296 = vlaneseq
        %v8297 = vshrl.u32 %v8296, 7
        %v8298 = vsub.s32 %v8295, %v8297
        %v8299 = vrot.slane %v8285, %v8298
        %v8300 = vcombine.low %v8292, %v8299
        %8301 = vrot.lane.b32.xlu0 %v8300, 64
        %v8302 = vpop.permute.xlu0 %8301
        %v8304 = vcombine.low %v7826, %v7892
        %v8305 = vcombine.low %v7939, %v7980
        %v8306 = vcombine.low %v8015, %v8040
        %v8308 = vunpack.c.l.s4 1966171168
        %v8309 = vunpack.c.0.s8 %v8308
        %v8310 = vlaneseq
        %v8311 = vshrl.u32 %v8310, 7
        %v8312 = vsub.s32 %v8309, %v8311
        %v8313 = vrot.slane %v8304, %v8312
        %v8315 = vunpack.c.l.s4 1966171168
        %v8316 = vunpack.c.0.s8 %v8315
        %v8317 = vlaneseq
        %v8318 = vshrl.u32 %v8317, 7
        %v8319 = vsub.s32 %v8316, %v8318
        %v8320 = vrot.slane %v8305, %v8319
        %v8322 = vunpack.c.l.s4 1966171168
        %v8323 = vunpack.c.0.s8 %v8322
        %v8324 = vlaneseq
        %v8325 = vshrl.u32 %v8324, 7
        %v8326 = vsub.s32 %v8323, %v8325
        %v8327 = vrot.slane %v8306, %v8326
        %v8329 = vunpack.c.l.s4 1966171168
        %v8330 = vunpack.c.0.s8 %v8329
        %v8331 = vlaneseq
        %v8332 = vshrl.u32 %v8331, 7
        %v8333 = vsub.s32 %v8330, %v8332
        %v8334 = vrot.slane %v8087, %v8333
        %v8335 = vcombine.low %v8313, %v8320
        %v8336 = vcombine.low %v8327, %v8334
        %v8338 = vunpack.c.l.s4 1966171168
        %v8339 = vunpack.c.0.s8 %v8338
        %v8340 = vlaneseq
        %v8341 = vshrl.u32 %v8340, 7
        %v8342 = vsub.s32 %v8339, %v8341
        %v8343 = vrot.slane %v8335, %v8342
        %v8345 = vunpack.c.l.s4 1966171168
        %v8346 = vunpack.c.0.s8 %v8345
        %v8347 = vlaneseq
        %v8348 = vshrl.u32 %v8347, 7
        %v8349 = vsub.s32 %v8346, %v8348
        %v8350 = vrot.slane %v8336, %v8349
        %v8351 = vcombine.low %v8343, %v8350
        %v8353 = vcombine.low %v7840, %v7875
        %v8354 = vcombine.low %v7941, %v7988
        %v8355 = vcombine.low %v8029, %v8064
        %v8357 = vunpack.c.l.s4 1966171168
        %v8358 = vunpack.c.0.s8 %v8357
        %v8359 = vlaneseq
        %v8360 = vshrl.u32 %v8359, 7
        %v8361 = vsub.s32 %v8358, %v8360
        %v8362 = vrot.slane %v8353, %v8361
        %v8364 = vunpack.c.l.s4 1966171168
        %v8365 = vunpack.c.0.s8 %v8364
        %v8366 = vlaneseq
        %v8367 = vshrl.u32 %v8366, 7
        %v8368 = vsub.s32 %v8365, %v8367
        %v8369 = vrot.slane %v8354, %v8368
        %v8371 = vunpack.c.l.s4 1966171168
        %v8372 = vunpack.c.0.s8 %v8371
        %v8373 = vlaneseq
        %v8374 = vshrl.u32 %v8373, 7
        %v8375 = vsub.s32 %v8372, %v8374
        %v8376 = vrot.slane %v8355, %v8375
        %v8378 = vunpack.c.l.s4 1966171168
        %v8379 = vunpack.c.0.s8 %v8378
        %v8380 = vlaneseq
        %v8381 = vshrl.u32 %v8380, 7
        %v8382 = vsub.s32 %v8379, %v8381
        %v8383 = vrot.slane %v8089, %v8382
        %v8384 = vcombine.low %v8362, %v8369
        %v8385 = vcombine.low %v8376, %v8383
        %v8387 = vunpack.c.l.s4 1966171168
        %v8388 = vunpack.c.0.s8 %v8387
        %v8389 = vlaneseq
        %v8390 = vshrl.u32 %v8389, 7
        %v8391 = vsub.s32 %v8388, %v8390
        %v8392 = vrot.slane %v8384, %v8391
        %v8394 = vunpack.c.l.s4 1966171168
        %v8395 = vunpack.c.0.s8 %v8394
        %v8396 = vlaneseq
        %v8397 = vshrl.u32 %v8396, 7
        %v8398 = vsub.s32 %v8395, %v8397
        %v8399 = vrot.slane %v8385, %v8398
        %v8400 = vcombine.low %v8392, %v8399
        %8401 = vrot.lane.b32.xlu0 %v8400, 64
        %v8402 = vpop.permute.xlu0 %8401
        %v8404 = vcombine.low %v7842, %v7889
        %v8405 = vcombine.low %v7924, %v7990
        %v8406 = vcombine.low %v8037, %v8078
        %v8408 = vunpack.c.l.s4 1966171168
        %v8409 = vunpack.c.0.s8 %v8408
        %v8410 = vlaneseq
        %v8411 = vshrl.u32 %v8410, 7
        %v8412 = vsub.s32 %v8409, %v8411
        %v8413 = vrot.slane %v8404, %v8412
        %v8415 = vunpack.c.l.s4 1966171168
        %v8416 = vunpack.c.0.s8 %v8415
        %v8417 = vlaneseq
        %v8418 = vshrl.u32 %v8417, 7
        %v8419 = vsub.s32 %v8416, %v8418
        %v8420 = vrot.slane %v8405, %v8419
        %v8422 = vunpack.c.l.s4 1966171168
        %v8423 = vunpack.c.0.s8 %v8422
        %v8424 = vlaneseq
        %v8425 = vshrl.u32 %v8424, 7
        %v8426 = vsub.s32 %v8423, %v8425
        %v8427 = vrot.slane %v8406, %v8426
        %v8429 = vunpack.c.l.s4 1966171168
        %v8430 = vunpack.c.0.s8 %v8429
        %v8431 = vlaneseq
        %v8432 = vshrl.u32 %v8431, 7
        %v8433 = vsub.s32 %v8430, %v8432
        %v8434 = vrot.slane %v8103, %v8433
        %v8435 = vcombine.low %v8413, %v8420
        %v8436 = vcombine.low %v8427, %v8434
        %v8438 = vunpack.c.l.s4 1966171168
        %v8439 = vunpack.c.0.s8 %v8438
        %v8440 = vlaneseq
        %v8441 = vshrl.u32 %v8440, 7
        %v8442 = vsub.s32 %v8439, %v8441
        %v8443 = vrot.slane %v8435, %v8442
        %v8445 = vunpack.c.l.s4 1966171168
        %v8446 = vunpack.c.0.s8 %v8445
        %v8447 = vlaneseq
        %v8448 = vshrl.u32 %v8447, 7
        %v8449 = vsub.s32 %v8446, %v8448
        %v8450 = vrot.slane %v8436, %v8449
        %v8451 = vcombine.low %v8443, %v8450
        %v8453 = vsel %vm1198, %v8151, %v8202
        %v8454 = vsel %vm1198, %v8251, %v8302
        %v8455 = vsel %vm1198, %v8351, %v8402
        %v8459 = vrot.slane %v8453, 1
        %v8460 = vrot.slane %v8454, 1
        %v8461 = vrot.slane %v8455, 1
        %v8462 = vrot.slane %v8451, 1
        %8463 = vrot.lane.b32.xlu0 %v8459, 64
        %v8464 = vpop.permute.xlu0 %8463
        %8465 = vrot.lane.b32.xlu0 %v8460, 64
        %v8466 = vpop.permute.xlu0 %8465
        %8467 = vrot.lane.b32.xlu0 %v8461, 64
        %v8468 = vpop.permute.xlu0 %8467
        %8469 = vrot.lane.b32.xlu0 %v8462, 64
        %v8470 = vpop.permute.xlu0 %8469
        %v8471 = vsel %vm1198, %v8464, %v8466
        %v8472 = vsel %vm1198, %v8466, %v8468
        %v8473 = vsel %vm1198, %v8468, %v8470
        %v8478 = vrot.slane %v8453, 2
        %v8479 = vrot.slane %v8454, 2
        %v8480 = vrot.slane %v8455, 2
        %v8481 = vrot.slane %v8451, 2
        %v8486 = vrot.slane %v8453, 3
        %v8487 = vrot.slane %v8454, 3
        %v8488 = vrot.slane %v8455, 3
        %v8489 = vrot.slane %v8451, 3
        %8490 = vrot.lane.b32.xlu0 %v8486, 64
        %v8491 = vpop.permute.xlu0 %8490
        %8492 = vrot.lane.b32.xlu0 %v8487, 64
        %v8493 = vpop.permute.xlu0 %8492
        %8494 = vrot.lane.b32.xlu0 %v8488, 64
        %v8495 = vpop.permute.xlu0 %8494
        %8496 = vrot.lane.b32.xlu0 %v8489, 64
        %v8497 = vpop.permute.xlu0 %8496
        %v8498 = vsel %vm1198, %v8491, %v8493
        %v8499 = vsel %vm1198, %v8493, %v8495
        %v8500 = vsel %vm1198, %v8495, %v8497
        %v8505 = vrot.slane %v8453, 4
        %v8506 = vrot.slane %v8454, 4
        %v8507 = vrot.slane %v8455, 4
        %v8508 = vrot.slane %v8451, 4
        %v8513 = vrot.slane %v8453, 5
        %v8514 = vrot.slane %v8454, 5
        %v8515 = vrot.slane %v8455, 5
        %v8516 = vrot.slane %v8451, 5
        %8517 = vrot.lane.b32.xlu0 %v8513, 64
        %v8518 = vpop.permute.xlu0 %8517
        %8519 = vrot.lane.b32.xlu0 %v8514, 64
        %v8520 = vpop.permute.xlu0 %8519
        %8521 = vrot.lane.b32.xlu0 %v8515, 64
        %v8522 = vpop.permute.xlu0 %8521
        %8523 = vrot.lane.b32.xlu0 %v8516, 64
        %v8524 = vpop.permute.xlu0 %8523
        %v8525 = vsel %vm1198, %v8518, %v8520
        %v8526 = vsel %vm1198, %v8520, %v8522
        %v8527 = vsel %vm1198, %v8522, %v8524
        %v8532 = vrot.slane %v8453, 6
        %v8533 = vrot.slane %v8454, 6
        %v8534 = vrot.slane %v8455, 6
        %v8535 = vrot.slane %v8451, 6
        %v8539 = vsel %vm1198, %v8451, %v8464
        %v8540 = vsel %vm1198, %v8481, %v8491
        %v8541 = vsel %vm1198, %v8508, %v8518
        %v8542 = vsel %vm1198, %v8535, 0
        %8544 = vmatprep.subr.mxu0 0.0
        %8545 = vmatpush1.msra.mxu0 %v555
        %8546 = vmatprep.subr.mxu0 0.0
        %8547 = vmatpush1.msra.mxu0 %v556
        %8548 = vmatprep.subr.mxu0 0.0
        %8549 = vmatpush1.msra.mxu0 %v557
        %8550 = vmatprep.subr.mxu0 0.0
        %8551 = vmatpush1.msra.mxu0 %v558
        %8552 = vmatprep.subr.mxu0 0.0
        %8553 = vmatpush1.msra.mxu0 %v559
        %8554 = vmatprep.subr.mxu0 0.0
        %8555 = vmatpush1.msra.mxu0 %v560
        %8556 = vmatprep.subr.mxu0 0.0
        %8557 = vmatpush1.msra.mxu0 %v561
        %8558 = vmatprep.subr.mxu0 0.0
        %8559 = vmatpush1.msra.mxu0 %v562
        %8560 = vmatprep.subr.mxu0 0.0
        %8561 = vmatpush1.msra.mxu0 %v563
        %8562 = vmatprep.subr.mxu0 0.0
        %8563 = vmatpush1.msra.mxu0 %v564
        %8564 = vmatprep.subr.mxu0 0.0
        %8565 = vmatpush1.msra.mxu0 %v565
        %8566 = vmatprep.subr.mxu0 0.0
        %8567 = vmatpush1.msra.mxu0 %v566
        %8568 = vmatprep.subr.mxu0 0.0
        %8569 = vmatpush1.msra.mxu0 %v567
        %8570 = vmatprep.subr.mxu0 0.0
        %8571 = vmatpush1.msra.mxu0 %v568
        %8572 = vmatprep.subr.mxu0 0.0
        %8573 = vmatpush1.msra.mxu0 %v569
        %8574 = vmatprep.subr.mxu0 0.0
        %8575 = vmatpush1.msra.mxu0 %v570
        %8576 = vmatprep.subr.mxu0 0.0
        %8577 = vmatpush1.msra.mxu0 %v571
        %8578 = vmatprep.subr.mxu0 0.0
        %8579 = vmatpush1.msra.mxu0 %v572
        %8580 = vmatprep.subr.mxu0 0.0
        %8581 = vmatpush1.msra.mxu0 %v573
        %8582 = vmatprep.subr.mxu0 0.0
        %8583 = vmatpush1.msra.mxu0 %v574
        %8584 = vmatprep.subr.mxu0 0.0
        %8585 = vmatpush1.msra.mxu0 %v575
        %8586 = vmatprep.subr.mxu0 0.0
        %8587 = vmatpush1.msra.mxu0 %v576
        %8588 = vmatprep.subr.mxu0 0.0
        %8589 = vmatpush1.msra.mxu0 %v577
        %8590 = vmatprep.subr.mxu0 0.0
        %8591 = vmatpush1.msra.mxu0 %v578
        %8592 = vmatprep.subr.mxu0 0.0
        %8593 = vmatpush1.msra.mxu0 %v579
        %8594 = vmatprep.subr.mxu0 0.0
        %8595 = vmatpush1.msra.mxu0 %v580
        %8596 = vmatprep.subr.mxu0 0.0
        %8597 = vmatpush1.msra.mxu0 %v581
        %8598 = vmatprep.subr.mxu0 0.0
        %8599 = vmatpush1.msra.mxu0 %v582
        %8600 = vmatprep.subr.mxu0 0.0
        %8601 = vmatpush1.msra.mxu0 %v583
        %8602 = vmatprep.subr.mxu0 0.0
        %8603 = vmatpush1.msra.mxu0 %v584
        %8604 = vmatprep.subr.mxu0 0.0
        %8605 = vmatpush1.msra.mxu0 %v585
        %8606 = vmatprep.subr.mxu0 0.0
        %8607 = vmatpush1.msra.mxu0 %v586
        %8608 = vmatprep.mubr.f32.mxu0 %v8454
        %8609 = vmatmul.mubr.f32.gmra.mrb[0].mxu0 %v8453
        %v8610 = vpop.f32.mrb[0].mxu0
        %v8611 = vadd.f32 %v947, %v8610
        %v8612 = vpop.f32.mrb[0].mxu0
        %8613 = vdwg.mxu0
        %8614 = vmatprep.subr.mxu0 0.0
        %8615 = vmatpush1.msra.mxu0 %v587
        %8616 = vmatprep.subr.mxu0 0.0
        %8617 = vmatpush1.msra.mxu0 %v588
        %8618 = vmatprep.subr.mxu0 0.0
        %8619 = vmatpush1.msra.mxu0 %v589
        %8620 = vmatprep.subr.mxu0 0.0
        %8621 = vmatpush1.msra.mxu0 %v590
        %8622 = vmatprep.subr.mxu0 0.0
        %8623 = vmatpush1.msra.mxu0 %v591
        %8624 = vmatprep.subr.mxu0 0.0
        %8625 = vmatpush1.msra.mxu0 %v592
        %8626 = vmatprep.subr.mxu0 0.0
        %8627 = vmatpush1.msra.mxu0 %v593
        %8628 = vmatprep.subr.mxu0 0.0
        %8629 = vmatpush1.msra.mxu0 %v594
        %8630 = vmatprep.subr.mxu0 0.0
        %8631 = vmatpush1.msra.mxu0 %v595
        %8632 = vmatprep.subr.mxu0 0.0
        %8633 = vmatpush1.msra.mxu0 %v596
        %8634 = vmatprep.subr.mxu0 0.0
        %8635 = vmatpush1.msra.mxu0 %v597
        %8636 = vmatprep.subr.mxu0 0.0
        %8637 = vmatpush1.msra.mxu0 %v598
        %8638 = vmatprep.subr.mxu0 0.0
        %8639 = vmatpush1.msra.mxu0 %v599
        %8640 = vmatprep.subr.mxu0 0.0
        %8641 = vmatpush1.msra.mxu0 %v600
        %8642 = vmatprep.subr.mxu0 0.0
        %8643 = vmatpush1.msra.mxu0 %v601
        %8644 = vmatprep.subr.mxu0 0.0
        %8645 = vmatpush1.msra.mxu0 %v602
        %8646 = vmatprep.subr.mxu0 0.0
        %8647 = vmatpush1.msra.mxu0 %v603
        %8648 = vmatprep.subr.mxu0 0.0
        %8649 = vmatpush1.msra.mxu0 %v604
        %8650 = vmatprep.subr.mxu0 0.0
        %8651 = vmatpush1.msra.mxu0 %v605
        %8652 = vmatprep.subr.mxu0 0.0
        %8653 = vmatpush1.msra.mxu0 %v606
        %8654 = vmatprep.subr.mxu0 0.0
        %8655 = vmatpush1.msra.mxu0 %v607
        %8656 = vmatprep.subr.mxu0 0.0
        %8657 = vmatpush1.msra.mxu0 %v608
        %8658 = vmatprep.subr.mxu0 0.0
        %8659 = vmatpush1.msra.mxu0 %v609
        %8660 = vmatprep.subr.mxu0 0.0
        %8661 = vmatpush1.msra.mxu0 %v610
        %8662 = vmatprep.subr.mxu0 0.0
        %8663 = vmatpush1.msra.mxu0 %v611
        %8664 = vmatprep.subr.mxu0 0.0
        %8665 = vmatpush1.msra.mxu0 %v612
        %8666 = vmatprep.subr.mxu0 0.0
        %8667 = vmatpush1.msra.mxu0 %v613
        %8668 = vmatprep.subr.mxu0 0.0
        %8669 = vmatpush1.msra.mxu0 %v614
        %8670 = vmatprep.subr.mxu0 0.0
        %8671 = vmatpush1.msra.mxu0 %v615
        %8672 = vmatprep.subr.mxu0 0.0
        %8673 = vmatpush1.msra.mxu0 %v616
        %8674 = vmatprep.subr.mxu0 0.0
        %8675 = vmatpush1.msra.mxu0 %v617
        %8676 = vmatprep.subr.mxu0 0.0
        %8677 = vmatpush1.msra.mxu0 %v618
        %8678 = vmatprep.mubr.f32.mxu0 %v8539
        %8679 = vmatmul.mubr.f32.gmra.mrb[0].mxu0 %v8455
        %v8680 = vpop.f32.mrb[0].mxu0
        %v8681 = vadd.f32 %v8611, %v8680
        %v8682 = vpop.f32.mrb[0].mxu0
        %8683 = vdwg.mxu0
        %8684 = vmatprep.subr.mxu0 0.0
        %8685 = vmatpush1.msra.mxu0 %v619
        %8686 = vmatprep.subr.mxu0 0.0
        %8687 = vmatpush1.msra.mxu0 %v620
        %8688 = vmatprep.subr.mxu0 0.0
        %8689 = vmatpush1.msra.mxu0 %v621
        %8690 = vmatprep.subr.mxu0 0.0
        %8691 = vmatpush1.msra.mxu0 %v622
        %8692 = vmatprep.subr.mxu0 0.0
        %8693 = vmatpush1.msra.mxu0 %v623
        %8694 = vmatprep.subr.mxu0 0.0
        %8695 = vmatpush1.msra.mxu0 %v624
        %8696 = vmatprep.subr.mxu0 0.0
        %8697 = vmatpush1.msra.mxu0 %v625
        %8698 = vmatprep.subr.mxu0 0.0
        %8699 = vmatpush1.msra.mxu0 %v626
        %8700 = vmatprep.subr.mxu0 0.0
        %8701 = vmatpush1.msra.mxu0 %v627
        %8702 = vmatprep.subr.mxu0 0.0
        %8703 = vmatpush1.msra.mxu0 %v628
        %8704 = vmatprep.subr.mxu0 0.0
        %8705 = vmatpush1.msra.mxu0 %v629
        %8706 = vmatprep.subr.mxu0 0.0
        %8707 = vmatpush1.msra.mxu0 %v630
        %8708 = vmatprep.subr.mxu0 0.0
        %8709 = vmatpush1.msra.mxu0 %v631
        %8710 = vmatprep.subr.mxu0 0.0
        %8711 = vmatpush1.msra.mxu0 %v632
        %8712 = vmatprep.subr.mxu0 0.0
        %8713 = vmatpush1.msra.mxu0 %v633
        %8714 = vmatprep.subr.mxu0 0.0
        %8715 = vmatpush1.msra.mxu0 %v634
        %8716 = vmatprep.subr.mxu0 0.0
        %8717 = vmatpush1.msra.mxu0 %v635
        %8718 = vmatprep.subr.mxu0 0.0
        %8719 = vmatpush1.msra.mxu0 %v636
        %8720 = vmatprep.subr.mxu0 0.0
        %8721 = vmatpush1.msra.mxu0 %v637
        %8722 = vmatprep.subr.mxu0 0.0
        %8723 = vmatpush1.msra.mxu0 %v638
        %8724 = vmatprep.subr.mxu0 0.0
        %8725 = vmatpush1.msra.mxu0 %v639
        %8726 = vmatprep.subr.mxu0 0.0
        %8727 = vmatpush1.msra.mxu0 %v640
        %8728 = vmatprep.subr.mxu0 0.0
        %8729 = vmatpush1.msra.mxu0 %v641
        %8730 = vmatprep.subr.mxu0 0.0
        %8731 = vmatpush1.msra.mxu0 %v642
        %8732 = vmatprep.subr.mxu0 0.0
        %8733 = vmatpush1.msra.mxu0 %v643
        %8734 = vmatprep.subr.mxu0 0.0
        %8735 = vmatpush1.msra.mxu0 %v644
        %8736 = vmatprep.subr.mxu0 0.0
        %8737 = vmatpush1.msra.mxu0 %v645
        %8738 = vmatprep.subr.mxu0 0.0
        %8739 = vmatpush1.msra.mxu0 %v646
        %8740 = vmatprep.subr.mxu0 0.0
        %8741 = vmatpush1.msra.mxu0 %v647
        %8742 = vmatprep.subr.mxu0 0.0
        %8743 = vmatpush1.msra.mxu0 %v648
        %8744 = vmatprep.subr.mxu0 0.0
        %8745 = vmatpush1.msra.mxu0 %v649
        %8746 = vmatprep.subr.mxu0 0.0
        %8747 = vmatpush1.msra.mxu0 %v650
        %8748 = vmatprep.mubr.f32.mxu0 %v8472
        %8749 = vmatmul.mubr.f32.gmra.mrb[0].mxu0 %v8471
        %v8750 = vpop.f32.mrb[0].mxu0
        %v8751 = vadd.f32 %v8681, %v8750
        %v8752 = vpop.f32.mrb[0].mxu0
        %8753 = vdwg.mxu0
        %8754 = vmatprep.subr.mxu0 0.0
        %8755 = vmatpush1.msra.mxu0 %v651
        %8756 = vmatprep.subr.mxu0 0.0
        %8757 = vmatpush1.msra.mxu0 %v652
        %8758 = vmatprep.subr.mxu0 0.0
        %8759 = vmatpush1.msra.mxu0 %v653
        %8760 = vmatprep.subr.mxu0 0.0
        %8761 = vmatpush1.msra.mxu0 %v654
        %8762 = vmatprep.subr.mxu0 0.0
        %8763 = vmatpush1.msra.mxu0 %v655
        %8764 = vmatprep.subr.mxu0 0.0
        %8765 = vmatpush1.msra.mxu0 %v656
        %8766 = vmatprep.subr.mxu0 0.0
        %8767 = vmatpush1.msra.mxu0 %v657
        %8768 = vmatprep.subr.mxu0 0.0
        %8769 = vmatpush1.msra.mxu0 %v658
        %8770 = vmatprep.subr.mxu0 0.0
        %8771 = vmatpush1.msra.mxu0 %v659
        %8772 = vmatprep.subr.mxu0 0.0
        %8773 = vmatpush1.msra.mxu0 %v660
        %8774 = vmatprep.subr.mxu0 0.0
        %8775 = vmatpush1.msra.mxu0 %v661
        %8776 = vmatprep.subr.mxu0 0.0
        %8777 = vmatpush1.msra.mxu0 %v662
        %8778 = vmatprep.subr.mxu0 0.0
        %8779 = vmatpush1.msra.mxu0 %v663
        %8780 = vmatprep.subr.mxu0 0.0
        %8781 = vmatpush1.msra.mxu0 %v664
        %8782 = vmatprep.subr.mxu0 0.0
        %8783 = vmatpush1.msra.mxu0 %v665
        %8784 = vmatprep.subr.mxu0 0.0
        %8785 = vmatpush1.msra.mxu0 %v666
        %8786 = vmatprep.subr.mxu0 0.0
        %8787 = vmatpush1.msra.mxu0 %v667
        %8788 = vmatprep.subr.mxu0 0.0
        %8789 = vmatpush1.msra.mxu0 %v668
        %8790 = vmatprep.subr.mxu0 0.0
        %8791 = vmatpush1.msra.mxu0 %v669
        %8792 = vmatprep.subr.mxu0 0.0
        %8793 = vmatpush1.msra.mxu0 %v670
        %8794 = vmatprep.subr.mxu0 0.0
        %8795 = vmatpush1.msra.mxu0 %v671
        %8796 = vmatprep.subr.mxu0 0.0
        %8797 = vmatpush1.msra.mxu0 %v672
        %8798 = vmatprep.subr.mxu0 0.0
        %8799 = vmatpush1.msra.mxu0 %v673
        %8800 = vmatprep.subr.mxu0 0.0
        %8801 = vmatpush1.msra.mxu0 %v674
        %8802 = vmatprep.subr.mxu0 0.0
        %8803 = vmatpush1.msra.mxu0 %v675
        %8804 = vmatprep.subr.mxu0 0.0
        %8805 = vmatpush1.msra.mxu0 %v676
        %8806 = vmatprep.subr.mxu0 0.0
        %8807 = vmatpush1.msra.mxu0 %v677
        %8808 = vmatprep.subr.mxu0 0.0
        %8809 = vmatpush1.msra.mxu0 %v678
        %8810 = vmatprep.subr.mxu0 0.0
        %8811 = vmatpush1.msra.mxu0 %v679
        %8812 = vmatprep.subr.mxu0 0.0
        %8813 = vmatpush1.msra.mxu0 %v680
        %8814 = vmatprep.subr.mxu0 0.0
        %8815 = vmatpush1.msra.mxu0 %v681
        %8816 = vmatprep.subr.mxu0 0.0
        %8817 = vmatpush1.msra.mxu0 %v682
        %8818 = vmatprep.mubr.f32.mxu0 %v8478
        %8819 = vmatmul.mubr.f32.gmra.mrb[0].mxu0 %v8473
        %v8820 = vpop.f32.mrb[0].mxu0
        %v8821 = vadd.f32 %v8751, %v8820
        %v8822 = vpop.f32.mrb[0].mxu0
        %8823 = vdwg.mxu0
        %8824 = vmatprep.subr.mxu0 0.0
        %8825 = vmatpush1.msra.mxu0 %v683
        %8826 = vmatprep.subr.mxu0 0.0
        %8827 = vmatpush1.msra.mxu0 %v684
        %8828 = vmatprep.subr.mxu0 0.0
        %8829 = vmatpush1.msra.mxu0 %v685
        %8830 = vmatprep.subr.mxu0 0.0
        %8831 = vmatpush1.msra.mxu0 %v686
        %8832 = vmatprep.subr.mxu0 0.0
        %8833 = vmatpush1.msra.mxu0 %v687
        %8834 = vmatprep.subr.mxu0 0.0
        %8835 = vmatpush1.msra.mxu0 %v688
        %8836 = vmatprep.subr.mxu0 0.0
        %8837 = vmatpush1.msra.mxu0 %v689
        %8838 = vmatprep.subr.mxu0 0.0
        %8839 = vmatpush1.msra.mxu0 %v690
        %8840 = vmatprep.subr.mxu0 0.0
        %8841 = vmatpush1.msra.mxu0 %v691
        %8842 = vmatprep.subr.mxu0 0.0
        %8843 = vmatpush1.msra.mxu0 %v692
        %8844 = vmatprep.subr.mxu0 0.0
        %8845 = vmatpush1.msra.mxu0 %v693
        %8846 = vmatprep.subr.mxu0 0.0
        %8847 = vmatpush1.msra.mxu0 %v694
        %8848 = vmatprep.subr.mxu0 0.0
        %8849 = vmatpush1.msra.mxu0 %v695
        %8850 = vmatprep.subr.mxu0 0.0
        %8851 = vmatpush1.msra.mxu0 %v696
        %8852 = vmatprep.subr.mxu0 0.0
        %8853 = vmatpush1.msra.mxu0 %v697
        %8854 = vmatprep.subr.mxu0 0.0
        %8855 = vmatpush1.msra.mxu0 %v698
        %8856 = vmatprep.subr.mxu0 0.0
        %8857 = vmatpush1.msra.mxu0 %v699
        %8858 = vmatprep.subr.mxu0 0.0
        %8859 = vmatpush1.msra.mxu0 %v700
        %8860 = vmatprep.subr.mxu0 0.0
        %8861 = vmatpush1.msra.mxu0 %v701
        %8862 = vmatprep.subr.mxu0 0.0
        %8863 = vmatpush1.msra.mxu0 %v702
        %8864 = vmatprep.subr.mxu0 0.0
        %8865 = vmatpush1.msra.mxu0 %v703
        %8866 = vmatprep.subr.mxu0 0.0
        %8867 = vmatpush1.msra.mxu0 %v704
        %8868 = vmatprep.subr.mxu0 0.0
        %8869 = vmatpush1.msra.mxu0 %v705
        %8870 = vmatprep.subr.mxu0 0.0
        %8871 = vmatpush1.msra.mxu0 %v706
        %8872 = vmatprep.subr.mxu0 0.0
        %8873 = vmatpush1.msra.mxu0 %v707
        %8874 = vmatprep.subr.mxu0 0.0
        %8875 = vmatpush1.msra.mxu0 %v708
        %8876 = vmatprep.subr.mxu0 0.0
        %8877 = vmatpush1.msra.mxu0 %v709
        %8878 = vmatprep.subr.mxu0 0.0
        %8879 = vmatpush1.msra.mxu0 %v710
        %8880 = vmatprep.subr.mxu0 0.0
        %8881 = vmatpush1.msra.mxu0 %v711
        %8882 = vmatprep.subr.mxu0 0.0
        %8883 = vmatpush1.msra.mxu0 %v712
        %8884 = vmatprep.subr.mxu0 0.0
        %8885 = vmatpush1.msra.mxu0 %v713
        %8886 = vmatprep.subr.mxu0 0.0
        %8887 = vmatpush1.msra.mxu0 %v714
        %8888 = vmatprep.mubr.f32.mxu0 %v8480
        %8889 = vmatmul.mubr.f32.gmra.mrb[0].mxu0 %v8479
        %v8890 = vpop.f32.mrb[0].mxu0
        %v8891 = vadd.f32 %v8821, %v8890
        %v8892 = vpop.f32.mrb[0].mxu0
        %8893 = vdwg.mxu0
        %8894 = vmatprep.subr.mxu0 0.0
        %8895 = vmatpush1.msra.mxu0 %v715
        %8896 = vmatprep.subr.mxu0 0.0
        %8897 = vmatpush1.msra.mxu0 %v716
        %8898 = vmatprep.subr.mxu0 0.0
        %8899 = vmatpush1.msra.mxu0 %v717
        %8900 = vmatprep.subr.mxu0 0.0
        %8901 = vmatpush1.msra.mxu0 %v718
        %8902 = vmatprep.subr.mxu0 0.0
        %8903 = vmatpush1.msra.mxu0 %v719
        %8904 = vmatprep.subr.mxu0 0.0
        %8905 = vmatpush1.msra.mxu0 %v720
        %8906 = vmatprep.subr.mxu0 0.0
        %8907 = vmatpush1.msra.mxu0 %v721
        %8908 = vmatprep.subr.mxu0 0.0
        %8909 = vmatpush1.msra.mxu0 %v722
        %8910 = vmatprep.subr.mxu0 0.0
        %8911 = vmatpush1.msra.mxu0 %v723
        %8912 = vmatprep.subr.mxu0 0.0
        %8913 = vmatpush1.msra.mxu0 %v724
        %8914 = vmatprep.subr.mxu0 0.0
        %8915 = vmatpush1.msra.mxu0 %v725
        %8916 = vmatprep.subr.mxu0 0.0
        %8917 = vmatpush1.msra.mxu0 %v726
        %8918 = vmatprep.subr.mxu0 0.0
        %8919 = vmatpush1.msra.mxu0 %v727
        %8920 = vmatprep.subr.mxu0 0.0
        %8921 = vmatpush1.msra.mxu0 %v728
        %8922 = vmatprep.subr.mxu0 0.0
        %8923 = vmatpush1.msra.mxu0 %v729
        %8924 = vmatprep.subr.mxu0 0.0
        %8925 = vmatpush1.msra.mxu0 %v730
        %8926 = vmatprep.subr.mxu0 0.0
        %8927 = vmatpush1.msra.mxu0 %v731
        %8928 = vmatprep.subr.mxu0 0.0
        %8929 = vmatpush1.msra.mxu0 %v732
        %8930 = vmatprep.subr.mxu0 0.0
        %8931 = vmatpush1.msra.mxu0 %v733
        %8932 = vmatprep.subr.mxu0 0.0
        %8933 = vmatpush1.msra.mxu0 %v734
        %8934 = vmatprep.subr.mxu0 0.0
        %8935 = vmatpush1.msra.mxu0 %v735
        %8936 = vmatprep.subr.mxu0 0.0
        %8937 = vmatpush1.msra.mxu0 %v736
        %8938 = vmatprep.subr.mxu0 0.0
        %8939 = vmatpush1.msra.mxu0 %v737
        %8940 = vmatprep.subr.mxu0 0.0
        %8941 = vmatpush1.msra.mxu0 %v738
        %8942 = vmatprep.subr.mxu0 0.0
        %8943 = vmatpush1.msra.mxu0 %v739
        %8944 = vmatprep.subr.mxu0 0.0
        %8945 = vmatpush1.msra.mxu0 %v740
        %8946 = vmatprep.subr.mxu0 0.0
        %8947 = vmatpush1.msra.mxu0 %v741
        %8948 = vmatprep.subr.mxu0 0.0
        %8949 = vmatpush1.msra.mxu0 %v742
        %8950 = vmatprep.subr.mxu0 0.0
        %8951 = vmatpush1.msra.mxu0 %v743
        %8952 = vmatprep.subr.mxu0 0.0
        %8953 = vmatpush1.msra.mxu0 %v744
        %8954 = vmatprep.subr.mxu0 0.0
        %8955 = vmatpush1.msra.mxu0 %v745
        %8956 = vmatprep.subr.mxu0 0.0
        %8957 = vmatpush1.msra.mxu0 %v746
        %8958 = vmatprep.mubr.f32.mxu0 %v8498
        %8959 = vmatmul.mubr.f32.gmra.mrb[0].mxu0 %v8540
        %v8960 = vpop.f32.mrb[0].mxu0
        %v8961 = vadd.f32 %v8891, %v8960
        %v8962 = vpop.f32.mrb[0].mxu0
        %8963 = vdwg.mxu0
        %8964 = vmatprep.subr.mxu0 0.0
        %8965 = vmatpush1.msra.mxu0 %v747
        %8966 = vmatprep.subr.mxu0 0.0
        %8967 = vmatpush1.msra.mxu0 %v748
        %8968 = vmatprep.subr.mxu0 0.0
        %8969 = vmatpush1.msra.mxu0 %v749
        %8970 = vmatprep.subr.mxu0 0.0
        %8971 = vmatpush1.msra.mxu0 %v750
        %8972 = vmatprep.subr.mxu0 0.0
        %8973 = vmatpush1.msra.mxu0 %v751
        %8974 = vmatprep.subr.mxu0 0.0
        %8975 = vmatpush1.msra.mxu0 %v752
        %8976 = vmatprep.subr.mxu0 0.0
        %8977 = vmatpush1.msra.mxu0 %v753
        %8978 = vmatprep.subr.mxu0 0.0
        %8979 = vmatpush1.msra.mxu0 %v754
        %8980 = vmatprep.subr.mxu0 0.0
        %8981 = vmatpush1.msra.mxu0 %v755
        %8982 = vmatprep.subr.mxu0 0.0
        %8983 = vmatpush1.msra.mxu0 %v756
        %8984 = vmatprep.subr.mxu0 0.0
        %8985 = vmatpush1.msra.mxu0 %v757
        %8986 = vmatprep.subr.mxu0 0.0
        %8987 = vmatpush1.msra.mxu0 %v758
        %8988 = vmatprep.subr.mxu0 0.0
        %8989 = vmatpush1.msra.mxu0 %v759
        %8990 = vmatprep.subr.mxu0 0.0
        %8991 = vmatpush1.msra.mxu0 %v760
        %8992 = vmatprep.subr.mxu0 0.0
        %8993 = vmatpush1.msra.mxu0 %v761
        %8994 = vmatprep.subr.mxu0 0.0
        %8995 = vmatpush1.msra.mxu0 %v762
        %8996 = vmatprep.subr.mxu0 0.0
        %8997 = vmatpush1.msra.mxu0 %v763
        %8998 = vmatprep.subr.mxu0 0.0
        %8999 = vmatpush1.msra.mxu0 %v764
        %9000 = vmatprep.subr.mxu0 0.0
        %9001 = vmatpush1.msra.mxu0 %v765
        %9002 = vmatprep.subr.mxu0 0.0
        %9003 = vmatpush1.msra.mxu0 %v766
        %9004 = vmatprep.subr.mxu0 0.0
        %9005 = vmatpush1.msra.mxu0 %v767
        %9006 = vmatprep.subr.mxu0 0.0
        %9007 = vmatpush1.msra.mxu0 %v768
        %9008 = vmatprep.subr.mxu0 0.0
        %9009 = vmatpush1.msra.mxu0 %v769
        %9010 = vmatprep.subr.mxu0 0.0
        %9011 = vmatpush1.msra.mxu0 %v770
        %9012 = vmatprep.subr.mxu0 0.0
        %9013 = vmatpush1.msra.mxu0 %v771
        %9014 = vmatprep.subr.mxu0 0.0
        %9015 = vmatpush1.msra.mxu0 %v772
        %9016 = vmatprep.subr.mxu0 0.0
        %9017 = vmatpush1.msra.mxu0 %v773
        %9018 = vmatprep.subr.mxu0 0.0
        %9019 = vmatpush1.msra.mxu0 %v774
        %9020 = vmatprep.subr.mxu0 0.0
        %9021 = vmatpush1.msra.mxu0 %v775
        %9022 = vmatprep.subr.mxu0 0.0
        %9023 = vmatpush1.msra.mxu0 %v776
        %9024 = vmatprep.subr.mxu0 0.0
        %9025 = vmatpush1.msra.mxu0 %v777
        %9026 = vmatprep.subr.mxu0 0.0
        %9027 = vmatpush1.msra.mxu0 %v778
        %9028 = vmatprep.mubr.f32.mxu0 %v8500
        %9029 = vmatmul.mubr.f32.gmra.mrb[0].mxu0 %v8499
        %v9030 = vpop.f32.mrb[0].mxu0
        %v9031 = vadd.f32 %v8961, %v9030
        %v9032 = vpop.f32.mrb[0].mxu0
        %9033 = vdwg.mxu0
        %9034 = vmatprep.subr.mxu0 0.0
        %9035 = vmatpush1.msra.mxu0 %v779
        %9036 = vmatprep.subr.mxu0 0.0
        %9037 = vmatpush1.msra.mxu0 %v780
        %9038 = vmatprep.subr.mxu0 0.0
        %9039 = vmatpush1.msra.mxu0 %v781
        %9040 = vmatprep.subr.mxu0 0.0
        %9041 = vmatpush1.msra.mxu0 %v782
        %9042 = vmatprep.subr.mxu0 0.0
        %9043 = vmatpush1.msra.mxu0 %v783
        %9044 = vmatprep.subr.mxu0 0.0
        %9045 = vmatpush1.msra.mxu0 %v784
        %9046 = vmatprep.subr.mxu0 0.0
        %9047 = vmatpush1.msra.mxu0 %v785
        %9048 = vmatprep.subr.mxu0 0.0
        %9049 = vmatpush1.msra.mxu0 %v786
        %9050 = vmatprep.subr.mxu0 0.0
        %9051 = vmatpush1.msra.mxu0 %v787
        %9052 = vmatprep.subr.mxu0 0.0
        %9053 = vmatpush1.msra.mxu0 %v788
        %9054 = vmatprep.subr.mxu0 0.0
        %9055 = vmatpush1.msra.mxu0 %v789
        %9056 = vmatprep.subr.mxu0 0.0
        %9057 = vmatpush1.msra.mxu0 %v790
        %9058 = vmatprep.subr.mxu0 0.0
        %9059 = vmatpush1.msra.mxu0 %v791
        %9060 = vmatprep.subr.mxu0 0.0
        %9061 = vmatpush1.msra.mxu0 %v792
        %9062 = vmatprep.subr.mxu0 0.0
        %9063 = vmatpush1.msra.mxu0 %v793
        %9064 = vmatprep.subr.mxu0 0.0
        %9065 = vmatpush1.msra.mxu0 %v794
        %9066 = vmatprep.subr.mxu0 0.0
        %9067 = vmatpush1.msra.mxu0 %v795
        %9068 = vmatprep.subr.mxu0 0.0
        %9069 = vmatpush1.msra.mxu0 %v796
        %9070 = vmatprep.subr.mxu0 0.0
        %9071 = vmatpush1.msra.mxu0 %v797
        %9072 = vmatprep.subr.mxu0 0.0
        %9073 = vmatpush1.msra.mxu0 %v798
        %9074 = vmatprep.subr.mxu0 0.0
        %9075 = vmatpush1.msra.mxu0 %v799
        %9076 = vmatprep.subr.mxu0 0.0
        %9077 = vmatpush1.msra.mxu0 %v800
        %9078 = vmatprep.subr.mxu0 0.0
        %9079 = vmatpush1.msra.mxu0 %v801
        %9080 = vmatprep.subr.mxu0 0.0
        %9081 = vmatpush1.msra.mxu0 %v802
        %9082 = vmatprep.subr.mxu0 0.0
        %9083 = vmatpush1.msra.mxu0 %v803
        %9084 = vmatprep.subr.mxu0 0.0
        %9085 = vmatpush1.msra.mxu0 %v804
        %9086 = vmatprep.subr.mxu0 0.0
        %9087 = vmatpush1.msra.mxu0 %v805
        %9088 = vmatprep.subr.mxu0 0.0
        %9089 = vmatpush1.msra.mxu0 %v806
        %9090 = vmatprep.subr.mxu0 0.0
        %9091 = vmatpush1.msra.mxu0 %v807
        %9092 = vmatprep.subr.mxu0 0.0
        %9093 = vmatpush1.msra.mxu0 %v808
        %9094 = vmatprep.subr.mxu0 0.0
        %9095 = vmatpush1.msra.mxu0 %v809
        %9096 = vmatprep.subr.mxu0 0.0
        %9097 = vmatpush1.msra.mxu0 %v810
        %9098 = vmatprep.mubr.f32.mxu0 %v8506
        %9099 = vmatmul.mubr.f32.gmra.mrb[0].mxu0 %v8505
        %v9100 = vpop.f32.mrb[0].mxu0
        %v9101 = vadd.f32 %v9031, %v9100
        %v9102 = vpop.f32.mrb[0].mxu0
        %9103 = vdwg.mxu0
        %9104 = vmatprep.subr.mxu0 0.0
        %9105 = vmatpush1.msra.mxu0 %v811
        %9106 = vmatprep.subr.mxu0 0.0
        %9107 = vmatpush1.msra.mxu0 %v812
        %9108 = vmatprep.subr.mxu0 0.0
        %9109 = vmatpush1.msra.mxu0 %v813
        %9110 = vmatprep.subr.mxu0 0.0
        %9111 = vmatpush1.msra.mxu0 %v814
        %9112 = vmatprep.subr.mxu0 0.0
        %9113 = vmatpush1.msra.mxu0 %v815
        %9114 = vmatprep.subr.mxu0 0.0
        %9115 = vmatpush1.msra.mxu0 %v816
        %9116 = vmatprep.subr.mxu0 0.0
        %9117 = vmatpush1.msra.mxu0 %v817
        %9118 = vmatprep.subr.mxu0 0.0
        %9119 = vmatpush1.msra.mxu0 %v818
        %9120 = vmatprep.subr.mxu0 0.0
        %9121 = vmatpush1.msra.mxu0 %v819
        %9122 = vmatprep.subr.mxu0 0.0
        %9123 = vmatpush1.msra.mxu0 %v820
        %9124 = vmatprep.subr.mxu0 0.0
        %9125 = vmatpush1.msra.mxu0 %v821
        %9126 = vmatprep.subr.mxu0 0.0
        %9127 = vmatpush1.msra.mxu0 %v822
        %9128 = vmatprep.subr.mxu0 0.0
        %9129 = vmatpush1.msra.mxu0 %v823
        %9130 = vmatprep.subr.mxu0 0.0
        %9131 = vmatpush1.msra.mxu0 %v824
        %9132 = vmatprep.subr.mxu0 0.0
        %9133 = vmatpush1.msra.mxu0 %v825
        %9134 = vmatprep.subr.mxu0 0.0
        %9135 = vmatpush1.msra.mxu0 %v826
        %9136 = vmatprep.subr.mxu0 0.0
        %9137 = vmatpush1.msra.mxu0 %v827
        %9138 = vmatprep.subr.mxu0 0.0
        %9139 = vmatpush1.msra.mxu0 %v828
        %9140 = vmatprep.subr.mxu0 0.0
        %9141 = vmatpush1.msra.mxu0 %v829
        %9142 = vmatprep.subr.mxu0 0.0
        %9143 = vmatpush1.msra.mxu0 %v830
        %9144 = vmatprep.subr.mxu0 0.0
        %9145 = vmatpush1.msra.mxu0 %v831
        %9146 = vmatprep.subr.mxu0 0.0
        %9147 = vmatpush1.msra.mxu0 %v832
        %9148 = vmatprep.subr.mxu0 0.0
        %9149 = vmatpush1.msra.mxu0 %v833
        %9150 = vmatprep.subr.mxu0 0.0
        %9151 = vmatpush1.msra.mxu0 %v834
        %9152 = vmatprep.subr.mxu0 0.0
        %9153 = vmatpush1.msra.mxu0 %v835
        %9154 = vmatprep.subr.mxu0 0.0
        %9155 = vmatpush1.msra.mxu0 %v836
        %9156 = vmatprep.subr.mxu0 0.0
        %9157 = vmatpush1.msra.mxu0 %v837
        %9158 = vmatprep.subr.mxu0 0.0
        %9159 = vmatpush1.msra.mxu0 %v838
        %9160 = vmatprep.subr.mxu0 0.0
        %9161 = vmatpush1.msra.mxu0 %v839
        %9162 = vmatprep.subr.mxu0 0.0
        %9163 = vmatpush1.msra.mxu0 %v840
        %9164 = vmatprep.subr.mxu0 0.0
        %9165 = vmatpush1.msra.mxu0 %v841
        %9166 = vmatprep.subr.mxu0 0.0
        %9167 = vmatpush1.msra.mxu0 %v842
        %9168 = vmatprep.mubr.f32.mxu0 %v8541
        %9169 = vmatmul.mubr.f32.gmra.mrb[0].mxu0 %v8507
        %v9170 = vpop.f32.mrb[0].mxu0
        %v9171 = vadd.f32 %v9101, %v9170
        %v9172 = vpop.f32.mrb[0].mxu0
        %9173 = vdwg.mxu0
        %9174 = vmatprep.subr.mxu0 0.0
        %9175 = vmatpush1.msra.mxu0 %v843
        %9176 = vmatprep.subr.mxu0 0.0
        %9177 = vmatpush1.msra.mxu0 %v844
        %9178 = vmatprep.subr.mxu0 0.0
        %9179 = vmatpush1.msra.mxu0 %v845
        %9180 = vmatprep.subr.mxu0 0.0
        %9181 = vmatpush1.msra.mxu0 %v846
        %9182 = vmatprep.subr.mxu0 0.0
        %9183 = vmatpush1.msra.mxu0 %v847
        %9184 = vmatprep.subr.mxu0 0.0
        %9185 = vmatpush1.msra.mxu0 %v848
        %9186 = vmatprep.subr.mxu0 0.0
        %9187 = vmatpush1.msra.mxu0 %v849
        %9188 = vmatprep.subr.mxu0 0.0
        %9189 = vmatpush1.msra.mxu0 %v850
        %9190 = vmatprep.subr.mxu0 0.0
        %9191 = vmatpush1.msra.mxu0 %v851
        %9192 = vmatprep.subr.mxu0 0.0
        %9193 = vmatpush1.msra.mxu0 %v852
        %9194 = vmatprep.subr.mxu0 0.0
        %9195 = vmatpush1.msra.mxu0 %v853
        %9196 = vmatprep.subr.mxu0 0.0
        %9197 = vmatpush1.msra.mxu0 %v854
        %9198 = vmatprep.subr.mxu0 0.0
        %9199 = vmatpush1.msra.mxu0 %v855
        %9200 = vmatprep.subr.mxu0 0.0
        %9201 = vmatpush1.msra.mxu0 %v856
        %9202 = vmatprep.subr.mxu0 0.0
        %9203 = vmatpush1.msra.mxu0 %v857
        %9204 = vmatprep.subr.mxu0 0.0
        %9205 = vmatpush1.msra.mxu0 %v858
        %9206 = vmatprep.subr.mxu0 0.0
        %9207 = vmatpush1.msra.mxu0 %v859
        %9208 = vmatprep.subr.mxu0 0.0
        %9209 = vmatpush1.msra.mxu0 %v860
        %9210 = vmatprep.subr.mxu0 0.0
        %9211 = vmatpush1.msra.mxu0 %v861
        %9212 = vmatprep.subr.mxu0 0.0
        %9213 = vmatpush1.msra.mxu0 %v862
        %9214 = vmatprep.subr.mxu0 0.0
        %9215 = vmatpush1.msra.mxu0 %v863
        %9216 = vmatprep.subr.mxu0 0.0
        %9217 = vmatpush1.msra.mxu0 %v864
        %9218 = vmatprep.subr.mxu0 0.0
        %9219 = vmatpush1.msra.mxu0 %v865
        %9220 = vmatprep.subr.mxu0 0.0
        %9221 = vmatpush1.msra.mxu0 %v866
        %9222 = vmatprep.subr.mxu0 0.0
        %9223 = vmatpush1.msra.mxu0 %v867
        %9224 = vmatprep.subr.mxu0 0.0
        %9225 = vmatpush1.msra.mxu0 %v868
        %9226 = vmatprep.subr.mxu0 0.0
        %9227 = vmatpush1.msra.mxu0 %v869
        %9228 = vmatprep.subr.mxu0 0.0
        %9229 = vmatpush1.msra.mxu0 %v870
        %9230 = vmatprep.subr.mxu0 0.0
        %9231 = vmatpush1.msra.mxu0 %v871
        %9232 = vmatprep.subr.mxu0 0.0
        %9233 = vmatpush1.msra.mxu0 %v872
        %9234 = vmatprep.subr.mxu0 0.0
        %9235 = vmatpush1.msra.mxu0 %v873
        %9236 = vmatprep.subr.mxu0 0.0
        %9237 = vmatpush1.msra.mxu0 %v874
        %9238 = vmatprep.mubr.f32.mxu0 %v8526
        %9239 = vmatmul.mubr.f32.gmra.mrb[0].mxu0 %v8525
        %v9240 = vpop.f32.mrb[0].mxu0
        %v9241 = vadd.f32 %v9171, %v9240
        %v9242 = vpop.f32.mrb[0].mxu0
        %9243 = vdwg.mxu0
        %9244 = vmatprep.subr.mxu0 0.0
        %9245 = vmatpush1.msra.mxu0 %v875
        %9246 = vmatprep.subr.mxu0 0.0
        %9247 = vmatpush1.msra.mxu0 %v876
        %9248 = vmatprep.subr.mxu0 0.0
        %9249 = vmatpush1.msra.mxu0 %v877
        %9250 = vmatprep.subr.mxu0 0.0
        %9251 = vmatpush1.msra.mxu0 %v878
        %9252 = vmatprep.subr.mxu0 0.0
        %9253 = vmatpush1.msra.mxu0 %v879
        %9254 = vmatprep.subr.mxu0 0.0
        %9255 = vmatpush1.msra.mxu0 %v880
        %9256 = vmatprep.subr.mxu0 0.0
        %9257 = vmatpush1.msra.mxu0 %v881
        %9258 = vmatprep.subr.mxu0 0.0
        %9259 = vmatpush1.msra.mxu0 %v882
        %9260 = vmatprep.subr.mxu0 0.0
        %9261 = vmatpush1.msra.mxu0 %v883
        %9262 = vmatprep.subr.mxu0 0.0
        %9263 = vmatpush1.msra.mxu0 %v884
        %9264 = vmatprep.subr.mxu0 0.0
        %9265 = vmatpush1.msra.mxu0 %v885
        %9266 = vmatprep.subr.mxu0 0.0
        %9267 = vmatpush1.msra.mxu0 %v886
        %9268 = vmatprep.subr.mxu0 0.0
        %9269 = vmatpush1.msra.mxu0 %v887
        %9270 = vmatprep.subr.mxu0 0.0
        %9271 = vmatpush1.msra.mxu0 %v888
        %9272 = vmatprep.subr.mxu0 0.0
        %9273 = vmatpush1.msra.mxu0 %v889
        %9274 = vmatprep.subr.mxu0 0.0
        %9275 = vmatpush1.msra.mxu0 %v890
        %9276 = vmatprep.subr.mxu0 0.0
        %9277 = vmatpush1.msra.mxu0 %v891
        %9278 = vmatprep.subr.mxu0 0.0
        %9279 = vmatpush1.msra.mxu0 %v892
        %9280 = vmatprep.subr.mxu0 0.0
        %9281 = vmatpush1.msra.mxu0 %v893
        %9282 = vmatprep.subr.mxu0 0.0
        %9283 = vmatpush1.msra.mxu0 %v894
        %9284 = vmatprep.subr.mxu0 0.0
        %9285 = vmatpush1.msra.mxu0 %v895
        %9286 = vmatprep.subr.mxu0 0.0
        %9287 = vmatpush1.msra.mxu0 %v896
        %9288 = vmatprep.subr.mxu0 0.0
        %9289 = vmatpush1.msra.mxu0 %v897
        %9290 = vmatprep.subr.mxu0 0.0
        %9291 = vmatpush1.msra.mxu0 %v898
        %9292 = vmatprep.subr.mxu0 0.0
        %9293 = vmatpush1.msra.mxu0 %v899
        %9294 = vmatprep.subr.mxu0 0.0
        %9295 = vmatpush1.msra.mxu0 %v900
        %9296 = vmatprep.subr.mxu0 0.0
        %9297 = vmatpush1.msra.mxu0 %v901
        %9298 = vmatprep.subr.mxu0 0.0
        %9299 = vmatpush1.msra.mxu0 %v902
        %9300 = vmatprep.subr.mxu0 0.0
        %9301 = vmatpush1.msra.mxu0 %v903
        %9302 = vmatprep.subr.mxu0 0.0
        %9303 = vmatpush1.msra.mxu0 %v904
        %9304 = vmatprep.subr.mxu0 0.0
        %9305 = vmatpush1.msra.mxu0 %v905
        %9306 = vmatprep.subr.mxu0 0.0
        %9307 = vmatpush1.msra.mxu0 %v906
        %9308 = vmatprep.mubr.f32.mxu0 %v8532
        %9309 = vmatmul.mubr.f32.gmra.mrb[0].mxu0 %v8527
        %v9310 = vpop.f32.mrb[0].mxu0
        %v9311 = vadd.f32 %v9241, %v9310
        %v9312 = vpop.f32.mrb[0].mxu0
        %9313 = vdwg.mxu0
        %9314 = vmatprep.subr.mxu0 0.0
        %9315 = vmatpush1.msra.mxu0 %v907
        %9316 = vmatprep.subr.mxu0 0.0
        %9317 = vmatpush1.msra.mxu0 %v908
        %9318 = vmatprep.subr.mxu0 0.0
        %9319 = vmatpush1.msra.mxu0 %v909
        %9320 = vmatprep.subr.mxu0 0.0
        %9321 = vmatpush1.msra.mxu0 %v910
        %9322 = vmatprep.subr.mxu0 0.0
        %9323 = vmatpush1.msra.mxu0 %v911
        %9324 = vmatprep.subr.mxu0 0.0
        %9325 = vmatpush1.msra.mxu0 %v912
        %9326 = vmatprep.subr.mxu0 0.0
        %9327 = vmatpush1.msra.mxu0 %v913
        %9328 = vmatprep.subr.mxu0 0.0
        %9329 = vmatpush1.msra.mxu0 %v914
        %9330 = vmatprep.subr.mxu0 0.0
        %9331 = vmatpush1.msra.mxu0 %v915
        %9332 = vmatprep.subr.mxu0 0.0
        %9333 = vmatpush1.msra.mxu0 %v916
        %9334 = vmatprep.subr.mxu0 0.0
        %9335 = vmatpush1.msra.mxu0 %v917
        %9336 = vmatprep.subr.mxu0 0.0
        %9337 = vmatpush1.msra.mxu0 %v918
        %9338 = vmatprep.subr.mxu0 0.0
        %9339 = vmatpush1.msra.mxu0 %v919
        %9340 = vmatprep.subr.mxu0 0.0
        %9341 = vmatpush1.msra.mxu0 %v920
        %9342 = vmatprep.subr.mxu0 0.0
        %9343 = vmatpush1.msra.mxu0 %v921
        %9344 = vmatprep.subr.mxu0 0.0
        %9345 = vmatpush1.msra.mxu0 %v922
        %9346 = vmatprep.subr.mxu0 0.0
        %9347 = vmatpush1.msra.mxu0 %v923
        %9348 = vmatprep.subr.mxu0 0.0
        %9349 = vmatpush1.msra.mxu0 %v924
        %9350 = vmatprep.subr.mxu0 0.0
        %9351 = vmatpush1.msra.mxu0 %v925
        %9352 = vmatprep.subr.mxu0 0.0
        %9353 = vmatpush1.msra.mxu0 %v926
        %9354 = vmatprep.subr.mxu0 0.0
        %9355 = vmatpush1.msra.mxu0 %v927
        %9356 = vmatprep.subr.mxu0 0.0
        %9357 = vmatpush1.msra.mxu0 %v928
        %9358 = vmatprep.subr.mxu0 0.0
        %9359 = vmatpush1.msra.mxu0 %v929
        %9360 = vmatprep.subr.mxu0 0.0
        %9361 = vmatpush1.msra.mxu0 %v930
        %9362 = vmatprep.subr.mxu0 0.0
        %9363 = vmatpush1.msra.mxu0 %v931
        %9364 = vmatprep.subr.mxu0 0.0
        %9365 = vmatpush1.msra.mxu0 %v932
        %9366 = vmatprep.subr.mxu0 0.0
        %9367 = vmatpush1.msra.mxu0 %v933
        %9368 = vmatprep.subr.mxu0 0.0
        %9369 = vmatpush1.msra.mxu0 %v934
        %9370 = vmatprep.subr.mxu0 0.0
        %9371 = vmatpush1.msra.mxu0 %v935
        %9372 = vmatprep.subr.mxu0 0.0
        %9373 = vmatpush1.msra.mxu0 %v936
        %9374 = vmatprep.subr.mxu0 0.0
        %9375 = vmatpush1.msra.mxu0 %v937
        %9376 = vmatprep.subr.mxu0 0.0
        %9377 = vmatpush1.msra.mxu0 %v938
        %9378 = vmatprep.mubr.f32.mxu0 %v8534
        %9379 = vmatmul.mubr.f32.gmra.mrb[0].mxu0 %v8533
        %v9380 = vpop.f32.mrb[0].mxu0
        %v9381 = vadd.f32 %v9311, %v9380
        %v9382 = vpop.f32.mrb[0].mxu0
        %9383 = vdwg.mxu0
        %9384 = vmatprep.subr.mxu0 0.0
        %9385 = vmatpush1.msra.mxu0 %v939
        %9386 = vmatprep.subr.mxu0 0.0
        %9387 = vmatpush1.msra.mxu0 %v940
        %9388 = vmatprep.subr.mxu0 0.0
        %9389 = vmatpush1.msra.mxu0 %v941
        %9390 = vmatprep.subr.mxu0 0.0
        %9391 = vmatpush1.msra.mxu0 %v942
        %9392 = vmatprep.subr.mxu0 0.0
        %9393 = vmatpush1.msra.mxu0 %v943
        %9394 = vmatprep.subr.mxu0 0.0
        %9395 = vmatpush1.msra.mxu0 %v944
        %9396 = vmatprep.subr.mxu0 0.0
        %9397 = vmatpush1.msra.mxu0 %v945
        %9398 = vmatprep.subr.mxu0 0.0
        %9399 = vmatpush1.msra.mxu0 %v946
        %9400 = vmatprep.subr.mxu0 0.0
        %9401 = vmatpush1.msra.mxu0 0.0
        %9402 = vmatprep.subr.mxu0 0.0
        %9403 = vmatpush1.msra.mxu0 0.0
        %9404 = vmatprep.subr.mxu0 0.0
        %9405 = vmatpush1.msra.mxu0 0.0
        %9406 = vmatprep.subr.mxu0 0.0
        %9407 = vmatpush1.msra.mxu0 0.0
        %9408 = vmatprep.subr.mxu0 0.0
        %9409 = vmatpush1.msra.mxu0 0.0
        %9410 = vmatprep.subr.mxu0 0.0
        %9411 = vmatpush1.msra.mxu0 0.0
        %9412 = vmatprep.subr.mxu0 0.0
        %9413 = vmatpush1.msra.mxu0 0.0
        %9414 = vmatprep.subr.mxu0 0.0
        %9415 = vmatpush1.msra.mxu0 0.0
        %9416 = vmatprep.subr.mxu0 0.0
        %9417 = vmatpush1.msra.mxu0 0.0
        %9418 = vmatprep.subr.mxu0 0.0
        %9419 = vmatpush1.msra.mxu0 0.0
        %9420 = vmatprep.subr.mxu0 0.0
        %9421 = vmatpush1.msra.mxu0 0.0
        %9422 = vmatprep.subr.mxu0 0.0
        %9423 = vmatpush1.msra.mxu0 0.0
        %9424 = vmatprep.subr.mxu0 0.0
        %9425 = vmatpush1.msra.mxu0 0.0
        %9426 = vmatprep.subr.mxu0 0.0
        %9427 = vmatpush1.msra.mxu0 0.0
        %9428 = vmatprep.subr.mxu0 0.0
        %9429 = vmatpush1.msra.mxu0 0.0
        %9430 = vmatprep.subr.mxu0 0.0
        %9431 = vmatpush1.msra.mxu0 0.0
        %9432 = vmatprep.subr.mxu0 0.0
        %9433 = vmatpush1.msra.mxu0 0.0
        %9434 = vmatprep.subr.mxu0 0.0
        %9435 = vmatpush1.msra.mxu0 0.0
        %9436 = vmatprep.subr.mxu0 0.0
        %9437 = vmatpush1.msra.mxu0 0.0
        %9438 = vmatprep.subr.mxu0 0.0
        %9439 = vmatpush1.msra.mxu0 0.0
        %9440 = vmatprep.subr.mxu0 0.0
        %9441 = vmatpush1.msra.mxu0 0.0
        %9442 = vmatprep.subr.mxu0 0.0
        %9443 = vmatpush1.msra.mxu0 0.0
        %9444 = vmatprep.subr.mxu0 0.0
        %9445 = vmatpush1.msra.mxu0 0.0
        %9446 = vmatprep.subr.mxu0 0.0
        %9447 = vmatpush1.msra.mxu0 0.0
        %9448 = vmatprep.mubr.f32.mxu0 0.0
        %9449 = vmatmul.mubr.f32.gmra.mrb[0].mxu0 %v8542
        %v9450 = vpop.f32.mrb[0].mxu0
        %v9451 = vadd.f32 %v9381, %v9450
        %v9452 = vpop.f32.mrb[0].mxu0
        %9453 = vdwg.mxu0
        %v9454 = vmax.f32 %v9451, 0.0
        %v9456 = vsel %vm1198, %v9454, 0
        %9458 = vmatprep.subr.mxu0 0.0
        %9459 = vmatpush1.msra.mxu0 %v948
        %9460 = vmatprep.subr.mxu0 0.0
        %9461 = vmatpush1.msra.mxu0 %v949
        %9462 = vmatprep.subr.mxu0 0.0
        %9463 = vmatpush1.msra.mxu0 %v950
        %9464 = vmatprep.subr.mxu0 0.0
        %9465 = vmatpush1.msra.mxu0 %v951
        %9466 = vmatprep.subr.mxu0 0.0
        %9467 = vmatpush1.msra.mxu0 %v952
        %9468 = vmatprep.subr.mxu0 0.0
        %9469 = vmatpush1.msra.mxu0 %v953
        %9470 = vmatprep.subr.mxu0 0.0
        %9471 = vmatpush1.msra.mxu0 %v954
        %9472 = vmatprep.subr.mxu0 0.0
        %9473 = vmatpush1.msra.mxu0 %v955
        %9474 = vmatprep.subr.mxu0 0.0
        %9475 = vmatpush1.msra.mxu0 0.0
        %9476 = vmatprep.subr.mxu0 0.0
        %9477 = vmatpush1.msra.mxu0 0.0
        %9478 = vmatprep.subr.mxu0 0.0
        %9479 = vmatpush1.msra.mxu0 0.0
        %9480 = vmatprep.subr.mxu0 0.0
        %9481 = vmatpush1.msra.mxu0 0.0
        %9482 = vmatprep.subr.mxu0 0.0
        %9483 = vmatpush1.msra.mxu0 0.0
        %9484 = vmatprep.subr.mxu0 0.0
        %9485 = vmatpush1.msra.mxu0 0.0
        %9486 = vmatprep.subr.mxu0 0.0
        %9487 = vmatpush1.msra.mxu0 0.0
        %9488 = vmatprep.subr.mxu0 0.0
        %9489 = vmatpush1.msra.mxu0 0.0
        %9490 = vmatprep.subr.mxu0 0.0
        %9491 = vmatpush1.msra.mxu0 0.0
        %9492 = vmatprep.subr.mxu0 0.0
        %9493 = vmatpush1.msra.mxu0 0.0
        %9494 = vmatprep.subr.mxu0 0.0
        %9495 = vmatpush1.msra.mxu0 0.0
        %9496 = vmatprep.subr.mxu0 0.0
        %9497 = vmatpush1.msra.mxu0 0.0
        %9498 = vmatprep.subr.mxu0 0.0
        %9499 = vmatpush1.msra.mxu0 0.0
        %9500 = vmatprep.subr.mxu0 0.0
        %9501 = vmatpush1.msra.mxu0 0.0
        %9502 = vmatprep.subr.mxu0 0.0
        %9503 = vmatpush1.msra.mxu0 0.0
        %9504 = vmatprep.subr.mxu0 0.0
        %9505 = vmatpush1.msra.mxu0 0.0
        %9506 = vmatprep.subr.mxu0 0.0
        %9507 = vmatpush1.msra.mxu0 0.0
        %9508 = vmatprep.subr.mxu0 0.0
        %9509 = vmatpush1.msra.mxu0 0.0
        %9510 = vmatprep.subr.mxu0 0.0
        %9511 = vmatpush1.msra.mxu0 0.0
        %9512 = vmatprep.subr.mxu0 0.0
        %9513 = vmatpush1.msra.mxu0 0.0
        %9514 = vmatprep.subr.mxu0 0.0
        %9515 = vmatpush1.msra.mxu0 0.0
        %9516 = vmatprep.subr.mxu0 0.0
        %9517 = vmatpush1.msra.mxu0 0.0
        %9518 = vmatprep.subr.mxu0 0.0
        %9519 = vmatpush1.msra.mxu0 0.0
        %9520 = vmatprep.subr.mxu0 0.0
        %9521 = vmatpush1.msra.mxu0 0.0
        %9522 = vmatprep.mubr.f32.mxu0 0.0
        %9523 = vmatmul.mubr.f32.gmra.mrb[0].mxu0 %v9456
        %v9524 = vpop.f32.mrb[0].mxu0
        %v9525 = vadd.f32 %v956, %v9524
        %v9526 = vpop.f32.mrb[0].mxu0
        %9527 = vdwg.mxu0
        %vm9528 = vcmask 40960
        %v9529 = vsel %vm9528, %v9525, 0.0
        %9530 = vadd.xlane.f32.xlu0 %v9529
        %v9531 = vpop.xlane.xlu0 %9530
        %v9532 = vmul.f32 %v9531, 0.16666667
        %v9533 = vsub.f32 %v9525, %v9532
        %9535 = vset.pattern.permute.xlu0 6
        %9536 = vperm.xlu0 %9535, %v9533
        %v9537 = vpop.permute.xlu0 %9536
        %v9539 = vadd.f32 %v9525, %v9537
        %9540 = vst [vmem:[%s378] sm:$0x1] %v9539
        %s9541 = sand.u32 %s269, 1
        %s9542 = scalar_lea.sflag [#allocation3], %s9541
        %s9543 = sand.u32 %s269, 1
        %s9544 = scalar_lea.vmem [#allocation2], %s9543
        // Predicated region
        $region65: #{forward.1} parent=63 // pred_check
          %p9545 = pneg %p279
        $region66: #{forward.1} parent=63 // pred_check_branch
          %9547 = sbr.rel (%p9545) target = $region68
        $region67: #{forward.1} parent=63 // pred_region
          %s9549 = ssub.s32 16, 16
          %9550 = vsyncadd %s9542, %s9549
          %s9551 = smul.addr %s25, 16
          %s9552 = scalar_lea.hbm %s11, %s9551
          %s9554 = sshll.u32 %s9544, 4
          %s9555 = int_to_ptr.vmem [resolvable:$true] %s9554
          %9557 = dma.vmem_to_hbm [thread:$0]  %s9555, 16, %s9552, %s9542
        $region68: #{forward.1} parent=63 // pred_fallthru
          _
      $region64: #{forward.1} parent=5 // pred_fallthru
        _
      %p9558 = scmp.le.s32.totalorder 2, %s20
      // Predicated region
      $region69: #{forward.1} parent=5 // pred_check
        %p9559 = pneg %p9558
      $region70: #{forward.1} parent=5 // pred_check_branch
        %9561 = sbr.rel (%p9559) target = $region72
      $region71: #{forward.1} parent=5 // pred_region
        %s9562 = ssub.s32 %s20, 2
        // Predicated region
        $region73: #{forward.1} parent=71 // pred_check
          %p9563 = pneg %p285
        $region74: #{forward.1} parent=71 // pred_check_branch
          %9565 = sbr.rel (%p9563) target = $region76
        $region75: #{forward.1} parent=71 // pred_region
          %s9566 = sand.u32 %s270, 1
          %s9567 = scalar_lea.sflag [#allocation3], %s9566
          %s9568 = sand.u32 %s270, 1
          %s9569 = scalar_lea.vmem [#allocation2], %s9568
          %9570 = dma.done %s9567, 16
        $region76: #{forward.1} parent=71 // pred_fallthru
          _
      $region72: #{forward.1} parent=5 // pred_fallthru
        _
    $region6: #{forward.1} parent=1 // loop_footer
      %s24 = sadd.s32 1, %s20
    $region7: #{forward.1} parent=1 // loop_footer_branch
      %19 = sbr.rel target = $region3
    $region8: #{forward.1} parent=1 // loop_exit
      _
    %9571 = vsyncpa [#allocation3], 1
    %s9572 = scalar_lea.sflag [#allocation3], 1
    %9573 = vsyncpa %s9572, 1

</llo_original>
